<compile_context>
chip_gen: v6e
topology: v6e:2x2x1
jax: 0.10.0
libtpu: 0.0.40
codegen_flags: <defaults>
</compile_context>

<pallas_src>
import numpy as np
import jax
import jax.numpy as jnp
from jax.experimental import pallas as pl
from jax.experimental.pallas import tpu as pltpu

CR = 8                  # channel rows per tap block (= one f32 sublane tile)
MAX_CHUNK_TAPS = 17     # taps per K-chunk of the im2col matmul (K = 136 >= 128)


# ----------------------------------------------------------------------------
# glue helpers (plain JAX / numpy)
# ----------------------------------------------------------------------------
def _bilinear_matrix(n_in, n_out):
    """Interpolation matrix matching F.interpolate(mode='bilinear', align_corners=True)."""
    m = np.zeros((n_out, n_in), np.float32)
    if n_out == 1 or n_in == 1:
        m[:, 0] = 1.0
        return m
    scale = (n_in - 1) / (n_out - 1)
    for i in range(n_out):
        src = i * scale
        i0 = int(np.floor(src))
        i1 = min(i0 + 1, n_in - 1)
        f = src - i0
        m[i, i0] += 1.0 - f
        m[i, i1] += f
    return m


def _split_chunks(n, maxc):
    """Split n taps into near-equal chunks of size <= maxc."""
    k = -(-n // maxc)
    base, rem = divmod(n, k)
    return [base + (1 if i < rem else 0) for i in range(k)]


def _pack_padded_lanes(x, pmax, lp, rows):
    """(B, C, H, W) -> (rows, B*lp): channels on sublanes (zero-padded to
    `rows`), per-image zero-bordered spatial field flattened on lanes."""
    b, c, h, w = x.shape
    hp, wp = h + 2 * pmax, w + 2 * pmax
    xp = jnp.pad(x, ((0, 0), (0, 0), (pmax, pmax), (pmax, pmax)))
    xp = xp.reshape(b, c, hp * wp)
    xp = jnp.pad(xp, ((0, 0), (0, rows - c), (0, lp - hp * wp)))
    return jnp.transpose(xp, (1, 0, 2)).reshape(rows, b * lp)


def _pack_mix_weights(conv_w, c_out, c_in):
    # (O, I, 3, 3) -> (8, 9*8) bf16 with [o, 8*t + i] = conv_w[o, i, kh, kw], t = kh*3+kw
    w = jnp.transpose(conv_w, (0, 2, 3, 1)).reshape(c_out, 9, c_in)
    w = jnp.pad(w, ((0, CR - c_out), (0, 0), (0, CR - c_in)))
    return w.reshape(CR, 9 * CR).astype(jnp.bfloat16)


def _pack_ms_weights(params, c):
    # Fuse pointwise(depthwise(.)) of the 3/5/7 branches into one 7x7-support weight.
    wfull = jnp.zeros((c, c, 7, 7), jnp.float32)
    for k in (3, 5, 7):
        dw = params[f'd{k}_dw'][:, 0]               # (C, k, k)
        pw = params[f'd{k}_pw'][:, :, 0, 0]         # (C_out, C_in)
        p = 3 - k // 2
        emb = jnp.pad(dw, ((0, 0), (p, p), (p, p)))  # (C, 7, 7)
        wfull = wfull + pw[:, :, None, None] * emb[None, :, :, :]
    w = jnp.transpose(wfull, (0, 2, 3, 1)).reshape(c, 49, c)
    w = jnp.pad(w, ((0, CR - c), (0, 0), (0, CR - c)))
    return w.reshape(CR, 49 * CR).astype(jnp.bfloat16)


def _pack_sa_weights(sa_w):
    # (1, 2, 7, 7) -> flat (98,) f32 for SMEM: [t] = w_max tap t, [49+t] = w_avg tap t
    return sa_w.reshape(2, 49).reshape(-1).astype(jnp.float32)


def _pick_bt(b, lp):
    """Images folded per grid step: prefer >=2 grid steps (v7x dual-TC) while
    keeping each step's live VMEM (~420 B/lane) well inside the scoped limit."""
    budget_lanes = (20 * 2 ** 20) // 420
    divisors = [d for d in range(1, min(b, 8) + 1) if b % d == 0]
    fit = [d for d in divisors if d * lp <= budget_lanes] or [1]
    multi = [d for d in fit if b // d >= 2]
    return max(multi) if multi else max(fit)


# ----------------------------------------------------------------------------
# the Pallas kernel
# ----------------------------------------------------------------------------
def _make_kernel(c_real, shifts3, shifts7, chunks3, chunks7):
    nt7 = len(shifts7)

    def kernel(x1_ref, x2_ref, mask_ref, wmix_ref, b_ref, wms_ref, wsa_ref,
               o_ref, col_ref):
        npt = x1_ref.shape[1]
        mask = mask_ref[...]                                     # (1, npt) f32

        def conv(src, shifts, chunk_sizes, w_ref):
            """Roll-based im2col (bf16 slab, K-chunked) + MXU matmul, f32 acc."""
            acc, c0 = None, 0
            for nt in chunk_sizes:
                for t in range(nt):
                    # roll in f32 (XLU), cast at the store -> bf16 slab
                    col_ref[CR * t:CR * (t + 1), :] = (
                        pltpu.roll(src, shifts[c0 + t], axis=1)
                        .astype(jnp.bfloat16))
                part = jnp.dot(w_ref[:, CR * c0:CR * (c0 + nt)],
                               col_ref[0:CR * nt, :],
                               preferred_element_type=jnp.float32)
                acc = part if acc is None else acc + part
                c0 += nt
            return acc                                           # (CR, npt) f32

        # --- 3x3 mix conv (dim -> outdim) + bias + ReLU, add x2, kill pad ring
        y = conv(x1_ref[...], shifts3, chunks3, wmix_ref)
        y = jnp.maximum(y + b_ref[...], 0.0)
        combined = (y + x2_ref[...]) * mask                      # (CR, npt) f32

        # --- MultiScaleConv: dw3/5/7 + pointwise, fused into one 49-tap conv
        ms = conv(combined, shifts7, chunks7, wms_ref)

        # --- SpatialAttention: channel max/mean -> 7x7 conv on the VPU -> sigmoid(s)*s
        msc = ms[0:c_real, :]
        mx = jnp.max(msc, axis=0, keepdims=True)
        av = jnp.sum(msc, axis=0, keepdims=True) * (1.0 / c_real)
        sa = jnp.concatenate([mx, av], axis=0) * mask            # (2, npt) f32

        s = None
        for t, sh in enumerate(shifts7):
            r = pltpu.roll(sa, sh, axis=1)
            contrib = wsa_ref[t] * r[0:1, :] + wsa_ref[nt7 + t] * r[1:2, :]
            s = contrib if s is None else s + contrib

        o_ref[...] = jax.nn.sigmoid(s) * s                       # (1, npt) lane-dense

    return kernel


# ----------------------------------------------------------------------------
# wrapper
# ----------------------------------------------------------------------------
def spatial_weights_forward(x1, x2, params):
    """x1: (B, dim, H/2, W/2), x2: (B, outdim, H, W) in NCHW -> (B, 1, H, W)."""
    b, cin, hs, ws = x1.shape
    b2, c, h, w = x2.shape
    assert b == b2 and h == 2 * hs and w == 2 * ws
    assert cin <= CR and c <= CR, "channel counts > 8 need multi-row channel tiling"

    pmax = 3
    hp, wp = h + 2 * pmax, w + 2 * pmax
    lp = ((hp * wp + 127) // 128) * 128          # per-image lane stride (128-aligned)
    # roll-wraparound safety: every tap read from a valid pixel must stay inside
    # the image's own zero-bordered [0, hp*wp) slab.
    assert lp >= hp * wp
    assert 3 * wp + 3 <= pmax * wp + pmax
    assert 3 * wp + 3 < lp

    bt = _pick_bt(b, lp)
    npt = bt * lp

    # bilinear upsample (align_corners=True) as separable matmuls; stays NCHW
    uh = jnp.asarray(_bilinear_matrix(hs, h))
    uw = jnp.asarray(_bilinear_matrix(ws, w))
    x1u = jnp.einsum('hp,bcpq,wq->bchw', uh, x1.astype(jnp.float32), uw,
                     precision=jax.lax.Precision.HIGHEST)

    # embed inputs into the (8 channel-rows, B*Lp) lane-dense padded layout
    x1p = _pack_padded_lanes(x1u, pmax, lp, CR)
    x2p = _pack_padded_lanes(x2.astype(jnp.float32), pmax, lp, CR)

    # valid-region mask for one batch block (identical for every block)
    m = jnp.zeros((hp, wp), jnp.float32).at[pmax:pmax + h, pmax:pmax + w].set(1.0)
    m = jnp.pad(m.reshape(-1), (0, lp - hp * wp))
    mask = jnp.tile(m, bt).reshape(1, npt)

    # weight repacking (pure preprocessing, done once)
    wmix = _pack_mix_weights(params['conv_w'], c, cin)
    b8 = jnp.pad(params['conv_b'], (0, CR - c)).reshape(CR, 1).astype(jnp.float32)
    wms = _pack_ms_weights(params, c)
    wsa = _pack_sa_weights(params['sa_w'])

    # static roll amounts so that rolled[:, n] == src[:, n + dh*Wp + dw]
    shifts3 = [(-(dh * wp + dw)) % npt for dh in (-1, 0, 1) for dw in (-1, 0, 1)]
    shifts7 = [(-(dh * wp + dw)) % npt
               for dh in range(-3, 4) for dw in range(-3, 4)]
    chunks3 = _split_chunks(len(shifts3), MAX_CHUNK_TAPS)
    chunks7 = _split_chunks(len(shifts7), MAX_CHUNK_TAPS)
    col_rows = CR * max(chunks3 + chunks7)       # 136 rows (bf16)

    kernel = _make_kernel(c, shifts3, shifts7, chunks3, chunks7)

    # per-step VMEM estimate -> raised scoped limit (helps v5e's 16 MiB default)
    est = npt * (2 * 2 * CR * 4 + col_rows * 2 + 2 * 4 + 2 * 4) \
        + 4 * (wmix.size + wms.size + wsa.size + b8.size)
    vmem_limit = int(min(64 * 2 ** 20, max(32 * 2 ** 20, 2 * est)))

    out_flat = pl.pallas_call(
        kernel,
        out_shape=jax.ShapeDtypeStruct((1, b * lp), jnp.float32),
        grid_spec=pltpu.PrefetchScalarGridSpec(
            num_scalar_prefetch=0,
            grid=(b // bt,),
            in_specs=[
                pl.BlockSpec((CR, npt), lambda g: (0, g)),        # x1 (upsampled, padded)
                pl.BlockSpec((CR, npt), lambda g: (0, g)),        # x2 (padded)
                pl.BlockSpec((1, npt), lambda g: (0, 0)),         # valid-region mask
                pl.BlockSpec((CR, 9 * CR), lambda g: (0, 0)),     # mix-conv weights (bf16)
                pl.BlockSpec((CR, 1), lambda g: (0, 0)),          # mix-conv bias
                pl.BlockSpec((CR, 49 * CR), lambda g: (0, 0)),    # fused multiscale weights (bf16)
                pl.BlockSpec(memory_space=pltpu.MemorySpace.SMEM),  # SA weights (98 scalars)
            ],
            out_specs=pl.BlockSpec((1, npt), lambda g: (0, g)),
            scratch_shapes=[pltpu.VMEM((col_rows, npt), jnp.bfloat16)],  # shared im2col slab
        ),
        compiler_params=pltpu.CompilerParams(
            dimension_semantics=("parallel",),
            vmem_limit_bytes=vmem_limit),
    )(x1p, x2p, mask, wmix, b8, wms, wsa)

    # slice the valid pixels back out -> NCHW (B, 1, H, W)
    out = out_flat.reshape(b, lp)[:, :hp * wp].reshape(b, hp, wp)
    out = out[:, pmax:pmax + h, pmax:pmax + w]
    return out[:, None, :, :]


# ----------------------------------------------------------------------------
# pure-JAX reference (for correctness check)
# ----------------------------------------------------------------------------
def _conv_ref(x, w, pad, groups=1):
    return jax.lax.conv_general_dilated(
        x, w, window_strides=(1, 1), padding=[(pad, pad), (pad, pad)],
        dimension_numbers=('NCHW', 'OIHW', 'NCHW'),
        feature_group_count=groups, precision=jax.lax.Precision.HIGHEST)


def reference_forward(x1, x2, params):
    _, _, hs, ws = x1.shape
    _, c, hh, ww = x2.shape
    uh = jnp.asarray(_bilinear_matrix(hs, hh))
    uw = jnp.asarray(_bilinear_matrix(ws, ww))
    x1u = jnp.einsum('hp,bcpq,wq->bchw', uh, x1.astype(jnp.float32), uw,
                     precision=jax.lax.Precision.HIGHEST)
    y = _conv_ref(x1u, params['conv_w'], 1) + params['conv_b'][None, :, None, None]
    y = jnp.maximum(y, 0.0)
    comb = y + x2

    def dsc(x, dw, pw, k):
        d = _conv_ref(x, dw, k // 2, groups=c)
        return _conv_ref(d, pw, 0)

    ms = (dsc(comb, params['d3_dw'], params['d3_pw'], 3)
          + dsc(comb, params['d5_dw'], params['d5_pw'], 5)
          + dsc(comb, params['d7_dw'], params['d7_pw'], 7))
    mx = jnp.max(ms, axis=1, keepdims=True)
    av = jnp.mean(ms, axis=1, keepdims=True)
    s = _conv_ref(jnp.concatenate([mx, av], axis=1), params['sa_w'], 3)
    return jax.nn.sigmoid(s) * s


# ----------------------------------------------------------------------------
if __name__ == "__main__":
    key = jax.random.PRNGKey(0)
    b, dim, outdim = 2, 6, 4
    hs = ws = 8        # x1 spatial (upsampled x2 inside the forward)
    hh = ww = 16       # x2 spatial
    ks = jax.random.split(key, 11)

    def init(k, shape, fan_in):
        return (jax.random.normal(k, shape, jnp.float32) / np.sqrt(fan_in)
                ).astype(jnp.float32)

    params = {
        'conv_w': init(ks[0], (outdim, dim, 3, 3), dim * 9),
        'conv_b': init(ks[1], (outdim,), dim * 9),
        'd3_dw': init(ks[2], (outdim, 1, 3, 3), 9),
        'd3_pw': init(ks[3], (outdim, outdim, 1, 1), outdim),
        'd5_dw': init(ks[4], (outdim, 1, 5, 5), 25),
        'd5_pw': init(ks[5], (outdim, outdim, 1, 1), outdim),
        'd7_dw': init(ks[6], (outdim, 1, 7, 7), 49),
        'd7_pw': init(ks[7], (outdim, outdim, 1, 1), outdim),
        'sa_w': init(ks[8], (1, 2, 7, 7), 2 * 49),
    }
    x1 = jax.random.normal(ks[9], (b, dim, hs, ws), jnp.float32)
    x2 = jax.random.normal(ks[10], (b, outdim, hh, ww), jnp.float32)

    out = jax.block_until_ready(spatial_weights_forward(x1, x2, params))
    ref = jax.block_until_ready(reference_forward(x1, x2, params))

    assert out.shape == (b, 1, hh, ww), out.shape
    err = float(jnp.max(jnp.abs(out - ref)))
    # bf16 MXU operands are deliberate (perf review #1); tolerance sized for that.
    assert bool(jnp.allclose(out, ref, atol=5e-2, rtol=5e-2)), f"max abs err {err}"
    print("KERNEL_OK")
</pallas_src>

<mosaic_0001>
module attributes {stable_mosaic.version = 11 : i64} {
  func.func @kernel(%arg0: i32, %arg1: memref<8x512xf32, #tpu.memory_space<vmem>>, %arg2: memref<8x512xf32, #tpu.memory_space<vmem>>, %arg3: memref<1x512xf32, #tpu.memory_space<vmem>>, %arg4: memref<8x72xbf16, #tpu.memory_space<vmem>>, %arg5: memref<8x1xf32, #tpu.memory_space<vmem>>, %arg6: memref<8x392xbf16, #tpu.memory_space<vmem>>, %arg7: memref<98xf32, #tpu.memory_space<smem>>, %arg8: memref<1x512xf32, #tpu.memory_space<vmem>>, %arg9: memref<136x512xbf16, #tpu.memory_space<vmem>>) attributes {dimension_semantics = [#tpu.dimension_semantics<parallel>], iteration_bounds = array<i64: 2>, scalar_prefetch = 0 : i64, scratch_operands = 1 : i64, tpu.core_type = #tpu.core_type<tc>, window_params = [{transform_indices = @transform_0, window_bounds = array<i64: 8, 512>}, {transform_indices = @transform_1, window_bounds = array<i64: 8, 512>}, {pipeline_mode = #tpu.pipeline_mode<synchronous>, transform_indices = @transform_2, window_bounds = array<i64: 1, 512>}, {pipeline_mode = #tpu.pipeline_mode<synchronous>, transform_indices = @transform_3, window_bounds = array<i64: 8, 72>}, {pipeline_mode = #tpu.pipeline_mode<synchronous>, transform_indices = @transform_4, window_bounds = array<i64: 8, 1>}, {pipeline_mode = #tpu.pipeline_mode<synchronous>, transform_indices = @transform_5, window_bounds = array<i64: 8, 392>}, {transform_indices = @transform_6, window_bounds = array<i64: 98>}, {transform_indices = @transform_7, window_bounds = array<i64: 1, 512>}]} {
    %c0 = arith.constant 0 : index
    %c0_0 = arith.constant 0 : index
    %0 = vector.load %arg3[%c0, %c0_0] : memref<1x512xf32, #tpu.memory_space<vmem>>, vector<1x512xf32>
    %c0_1 = arith.constant 0 : index
    %c0_2 = arith.constant 0 : index
    %1 = vector.load %arg1[%c0_1, %c0_2] : memref<8x512xf32, #tpu.memory_space<vmem>>, vector<8x512xf32>
    %c23_i32 = arith.constant 23 : i32
    %2 = tpu.dynamic_rotate %1 by %c23_i32 dim 1 : vector<8x512xf32>, i32 -> vector<8x512xf32>
    %3 = arith.truncf %2 : vector<8x512xf32> to vector<8x512xbf16>
    %c0_3 = arith.constant 0 : index
    %c0_4 = arith.constant 0 : index
    %4 = vector.load %arg9[%c0_3, %c0_4] : memref<136x512xbf16, #tpu.memory_space<vmem>>, vector<8x512xbf16>
    tpu.vector_store %arg9[%c0_3, %c0_4], %3 {strides = array<i32>} : memref<136x512xbf16, #tpu.memory_space<vmem>>, vector<8x512xbf16>,
    %c22_i32 = arith.constant 22 : i32
    %5 = tpu.dynamic_rotate %1 by %c22_i32 dim 1 : vector<8x512xf32>, i32 -> vector<8x512xf32>
    %6 = arith.truncf %5 : vector<8x512xf32> to vector<8x512xbf16>
    %c8 = arith.constant 8 : index
    %c0_5 = arith.constant 0 : index
    %7 = vector.load %arg9[%c8, %c0_5] : memref<136x512xbf16, #tpu.memory_space<vmem>>, vector<8x512xbf16>
    tpu.vector_store %arg9[%c8, %c0_5], %6 {strides = array<i32>} : memref<136x512xbf16, #tpu.memory_space<vmem>>, vector<8x512xbf16>,
    %c21_i32 = arith.constant 21 : i32
    %8 = tpu.dynamic_rotate %1 by %c21_i32 dim 1 : vector<8x512xf32>, i32 -> vector<8x512xf32>
    %9 = arith.truncf %8 : vector<8x512xf32> to vector<8x512xbf16>
    %c16 = arith.constant 16 : index
    %c0_6 = arith.constant 0 : index
    %10 = vector.load %arg9[%c16, %c0_6] : memref<136x512xbf16, #tpu.memory_space<vmem>>, vector<8x512xbf16>
    tpu.vector_store %arg9[%c16, %c0_6], %9 {strides = array<i32>} : memref<136x512xbf16, #tpu.memory_space<vmem>>, vector<8x512xbf16>,
    %c1_i32 = arith.constant 1 : i32
    %11 = tpu.dynamic_rotate %1 by %c1_i32 dim 1 : vector<8x512xf32>, i32 -> vector<8x512xf32>
    %12 = arith.truncf %11 : vector<8x512xf32> to vector<8x512xbf16>
    %c24 = arith.constant 24 : index
    %c0_7 = arith.constant 0 : index
    %13 = vector.load %arg9[%c24, %c0_7] : memref<136x512xbf16, #tpu.memory_space<vmem>>, vector<8x512xbf16>
    tpu.vector_store %arg9[%c24, %c0_7], %12 {strides = array<i32>} : memref<136x512xbf16, #tpu.memory_space<vmem>>, vector<8x512xbf16>,
    %c0_i32 = arith.constant 0 : i32
    %14 = tpu.dynamic_rotate %1 by %c0_i32 dim 1 : vector<8x512xf32>, i32 -> vector<8x512xf32>
    %15 = arith.truncf %14 : vector<8x512xf32> to vector<8x512xbf16>
    %c32 = arith.constant 32 : index
    %c0_8 = arith.constant 0 : index
    %16 = vector.load %arg9[%c32, %c0_8] : memref<136x512xbf16, #tpu.memory_space<vmem>>, vector<8x512xbf16>
    tpu.vector_store %arg9[%c32, %c0_8], %15 {strides = array<i32>} : memref<136x512xbf16, #tpu.memory_space<vmem>>, vector<8x512xbf16>,
    %c511_i32 = arith.constant 511 : i32
    %17 = tpu.dynamic_rotate %1 by %c511_i32 dim 1 : vector<8x512xf32>, i32 -> vector<8x512xf32>
    %18 = arith.truncf %17 : vector<8x512xf32> to vector<8x512xbf16>
    %c40 = arith.constant 40 : index
    %c0_9 = arith.constant 0 : index
    %19 = vector.load %arg9[%c40, %c0_9] : memref<136x512xbf16, #tpu.memory_space<vmem>>, vector<8x512xbf16>
    tpu.vector_store %arg9[%c40, %c0_9], %18 {strides = array<i32>} : memref<136x512xbf16, #tpu.memory_space<vmem>>, vector<8x512xbf16>,
    %c491_i32 = arith.constant 491 : i32
    %20 = tpu.dynamic_rotate %1 by %c491_i32 dim 1 : vector<8x512xf32>, i32 -> vector<8x512xf32>
    %21 = arith.truncf %20 : vector<8x512xf32> to vector<8x512xbf16>
    %c48 = arith.constant 48 : index
    %c0_10 = arith.constant 0 : index
    %22 = vector.load %arg9[%c48, %c0_10] : memref<136x512xbf16, #tpu.memory_space<vmem>>, vector<8x512xbf16>
    tpu.vector_store %arg9[%c48, %c0_10], %21 {strides = array<i32>} : memref<136x512xbf16, #tpu.memory_space<vmem>>, vector<8x512xbf16>,
    %c490_i32 = arith.constant 490 : i32
    %23 = tpu.dynamic_rotate %1 by %c490_i32 dim 1 : vector<8x512xf32>, i32 -> vector<8x512xf32>
    %24 = arith.truncf %23 : vector<8x512xf32> to vector<8x512xbf16>
    %c56 = arith.constant 56 : index
    %c0_11 = arith.constant 0 : index
    %25 = vector.load %arg9[%c56, %c0_11] : memref<136x512xbf16, #tpu.memory_space<vmem>>, vector<8x512xbf16>
    tpu.vector_store %arg9[%c56, %c0_11], %24 {strides = array<i32>} : memref<136x512xbf16, #tpu.memory_space<vmem>>, vector<8x512xbf16>,
    %c489_i32 = arith.constant 489 : i32
    %26 = tpu.dynamic_rotate %1 by %c489_i32 dim 1 : vector<8x512xf32>, i32 -> vector<8x512xf32>
    %27 = arith.truncf %26 : vector<8x512xf32> to vector<8x512xbf16>
    %c64 = arith.constant 64 : index
    %c0_12 = arith.constant 0 : index
    %28 = vector.load %arg9[%c64, %c0_12] : memref<136x512xbf16, #tpu.memory_space<vmem>>, vector<8x512xbf16>
    tpu.vector_store %arg9[%c64, %c0_12], %27 {strides = array<i32>} : memref<136x512xbf16, #tpu.memory_space<vmem>>, vector<8x512xbf16>,
    %c0_13 = arith.constant 0 : index
    %c0_14 = arith.constant 0 : index
    %29 = vector.load %arg4[%c0_13, %c0_14] : memref<8x72xbf16, #tpu.memory_space<vmem>>, vector<8x72xbf16>
    %c0_15 = arith.constant 0 : index
    %c0_16 = arith.constant 0 : index
    %30 = vector.load %arg9[%c0_15, %c0_16] : memref<136x512xbf16, #tpu.memory_space<vmem>>, vector<72x512xbf16>
    %cst = arith.constant dense<0.000000e+00> : vector<8x512xf32>
    %31 = tpu.matmul %29, %30, %cst {dimension_numbers = #tpu.dot_dimension_numbers<[1], [0], [0], [1], [0, 0, 1, 1], [], []>} : vector<8x72xbf16>, vector<72x512xbf16>, vector<8x512xf32> -> vector<8x512xf32>
    %c0_17 = arith.constant 0 : index
    %c0_18 = arith.constant 0 : index
    %32 = vector.load %arg5[%c0_17, %c0_18] : memref<8x1xf32, #tpu.memory_space<vmem>>, vector<8x1xf32>
    %33 = vector.broadcast %32 : vector<8x1xf32> to vector<8x512xf32>
    %34 = arith.addf %31, %33 : vector<8x512xf32>
    %cst_19 = arith.constant 0.000000e+00 : f32
    %35 = vector.broadcast %cst_19 : f32 to vector<8x512xf32>
    %36 = arith.maximumf %34, %35 : vector<8x512xf32>
    %c0_20 = arith.constant 0 : index
    %c0_21 = arith.constant 0 : index
    %37 = vector.load %arg2[%c0_20, %c0_21] : memref<8x512xf32, #tpu.memory_space<vmem>>, vector<8x512xf32>
    %38 = arith.addf %36, %37 : vector<8x512xf32>
    %39 = vector.broadcast %0 : vector<1x512xf32> to vector<8x512xf32>
    %40 = arith.mulf %38, %39 : vector<8x512xf32>
    %c69_i32 = arith.constant 69 : i32
    %41 = tpu.dynamic_rotate %40 by %c69_i32 dim 1 : vector<8x512xf32>, i32 -> vector<8x512xf32>
    %42 = arith.truncf %41 : vector<8x512xf32> to vector<8x512xbf16>
    %c0_22 = arith.constant 0 : index
    %c0_23 = arith.constant 0 : index
    %43 = vector.load %arg9[%c0_22, %c0_23] : memref<136x512xbf16, #tpu.memory_space<vmem>>, vector<8x512xbf16>
    tpu.vector_store %arg9[%c0_22, %c0_23], %42 {strides = array<i32>} : memref<136x512xbf16, #tpu.memory_space<vmem>>, vector<8x512xbf16>,
    %c68_i32 = arith.constant 68 : i32
    %44 = tpu.dynamic_rotate %40 by %c68_i32 dim 1 : vector<8x512xf32>, i32 -> vector<8x512xf32>
    %45 = arith.truncf %44 : vector<8x512xf32> to vector<8x512xbf16>
    %c8_24 = arith.constant 8 : index
    %c0_25 = arith.constant 0 : index
    %46 = vector.load %arg9[%c8_24, %c0_25] : memref<136x512xbf16, #tpu.memory_space<vmem>>, vector<8x512xbf16>
    tpu.vector_store %arg9[%c8_24, %c0_25], %45 {strides = array<i32>} : memref<136x512xbf16, #tpu.memory_space<vmem>>, vector<8x512xbf16>,
    %c67_i32 = arith.constant 67 : i32
    %47 = tpu.dynamic_rotate %40 by %c67_i32 dim 1 : vector<8x512xf32>, i32 -> vector<8x512xf32>
    %48 = arith.truncf %47 : vector<8x512xf32> to vector<8x512xbf16>
    %c16_26 = arith.constant 16 : index
    %c0_27 = arith.constant 0 : index
    %49 = vector.load %arg9[%c16_26, %c0_27] : memref<136x512xbf16, #tpu.memory_space<vmem>>, vector<8x512xbf16>
    tpu.vector_store %arg9[%c16_26, %c0_27], %48 {strides = array<i32>} : memref<136x512xbf16, #tpu.memory_space<vmem>>, vector<8x512xbf16>,
    %c66_i32 = arith.constant 66 : i32
    %50 = tpu.dynamic_rotate %40 by %c66_i32 dim 1 : vector<8x512xf32>, i32 -> vector<8x512xf32>
    %51 = arith.truncf %50 : vector<8x512xf32> to vector<8x512xbf16>
    %c24_28 = arith.constant 24 : index
    %c0_29 = arith.constant 0 : index
    %52 = vector.load %arg9[%c24_28, %c0_29] : memref<136x512xbf16, #tpu.memory_space<vmem>>, vector<8x512xbf16>
    tpu.vector_store %arg9[%c24_28, %c0_29], %51 {strides = array<i32>} : memref<136x512xbf16, #tpu.memory_space<vmem>>, vector<8x512xbf16>,
    %c65_i32 = arith.constant 65 : i32
    %53 = tpu.dynamic_rotate %40 by %c65_i32 dim 1 : vector<8x512xf32>, i32 -> vector<8x512xf32>
    %54 = arith.truncf %53 : vector<8x512xf32> to vector<8x512xbf16>
    %c32_30 = arith.constant 32 : index
    %c0_31 = arith.constant 0 : index
    %55 = vector.load %arg9[%c32_30, %c0_31] : memref<136x512xbf16, #tpu.memory_space<vmem>>, vector<8x512xbf16>
    tpu.vector_store %arg9[%c32_30, %c0_31], %54 {strides = array<i32>} : memref<136x512xbf16, #tpu.memory_space<vmem>>, vector<8x512xbf16>,
    %c64_i32 = arith.constant 64 : i32
    %56 = tpu.dynamic_rotate %40 by %c64_i32 dim 1 : vector<8x512xf32>, i32 -> vector<8x512xf32>
    %57 = arith.truncf %56 : vector<8x512xf32> to vector<8x512xbf16>
    %c40_32 = arith.constant 40 : index
    %c0_33 = arith.constant 0 : index
    %58 = vector.load %arg9[%c40_32, %c0_33] : memref<136x512xbf16, #tpu.memory_space<vmem>>, vector<8x512xbf16>
    tpu.vector_store %arg9[%c40_32, %c0_33], %57 {strides = array<i32>} : memref<136x512xbf16, #tpu.memory_space<vmem>>, vector<8x512xbf16>,
    %c63_i32 = arith.constant 63 : i32
    %59 = tpu.dynamic_rotate %40 by %c63_i32 dim 1 : vector<8x512xf32>, i32 -> vector<8x512xf32>
    %60 = arith.truncf %59 : vector<8x512xf32> to vector<8x512xbf16>
    %c48_34 = arith.constant 48 : index
    %c0_35 = arith.constant 0 : index
    %61 = vector.load %arg9[%c48_34, %c0_35] : memref<136x512xbf16, #tpu.memory_space<vmem>>, vector<8x512xbf16>
    tpu.vector_store %arg9[%c48_34, %c0_35], %60 {strides = array<i32>} : memref<136x512xbf16, #tpu.memory_space<vmem>>, vector<8x512xbf16>,
    %c47_i32 = arith.constant 47 : i32
    %62 = tpu.dynamic_rotate %40 by %c47_i32 dim 1 : vector<8x512xf32>, i32 -> vector<8x512xf32>
    %63 = arith.truncf %62 : vector<8x512xf32> to vector<8x512xbf16>
    %c56_36 = arith.constant 56 : index
    %c0_37 = arith.constant 0 : index
    %64 = vector.load %arg9[%c56_36, %c0_37] : memref<136x512xbf16, #tpu.memory_space<vmem>>, vector<8x512xbf16>
    tpu.vector_store %arg9[%c56_36, %c0_37], %63 {strides = array<i32>} : memref<136x512xbf16, #tpu.memory_space<vmem>>, vector<8x512xbf16>,
    %c46_i32 = arith.constant 46 : i32
    %65 = tpu.dynamic_rotate %40 by %c46_i32 dim 1 : vector<8x512xf32>, i32 -> vector<8x512xf32>
    %66 = arith.truncf %65 : vector<8x512xf32> to vector<8x512xbf16>
    %c64_38 = arith.constant 64 : index
    %c0_39 = arith.constant 0 : index
    %67 = vector.load %arg9[%c64_38, %c0_39] : memref<136x512xbf16, #tpu.memory_space<vmem>>, vector<8x512xbf16>
    tpu.vector_store %arg9[%c64_38, %c0_39], %66 {strides = array<i32>} : memref<136x512xbf16, #tpu.memory_space<vmem>>, vector<8x512xbf16>,
    %c45_i32 = arith.constant 45 : i32
    %68 = tpu.dynamic_rotate %40 by %c45_i32 dim 1 : vector<8x512xf32>, i32 -> vector<8x512xf32>
    %69 = arith.truncf %68 : vector<8x512xf32> to vector<8x512xbf16>
    %c72 = arith.constant 72 : index
    %c0_40 = arith.constant 0 : index
    %70 = vector.load %arg9[%c72, %c0_40] : memref<136x512xbf16, #tpu.memory_space<vmem>>, vector<8x512xbf16>
    tpu.vector_store %arg9[%c72, %c0_40], %69 {strides = array<i32>} : memref<136x512xbf16, #tpu.memory_space<vmem>>, vector<8x512xbf16>,
    %c44_i32 = arith.constant 44 : i32
    %71 = tpu.dynamic_rotate %40 by %c44_i32 dim 1 : vector<8x512xf32>, i32 -> vector<8x512xf32>
    %72 = arith.truncf %71 : vector<8x512xf32> to vector<8x512xbf16>
    %c80 = arith.constant 80 : index
    %c0_41 = arith.constant 0 : index
    %73 = vector.load %arg9[%c80, %c0_41] : memref<136x512xbf16, #tpu.memory_space<vmem>>, vector<8x512xbf16>
    tpu.vector_store %arg9[%c80, %c0_41], %72 {strides = array<i32>} : memref<136x512xbf16, #tpu.memory_space<vmem>>, vector<8x512xbf16>,
    %c43_i32 = arith.constant 43 : i32
    %74 = tpu.dynamic_rotate %40 by %c43_i32 dim 1 : vector<8x512xf32>, i32 -> vector<8x512xf32>
    %75 = arith.truncf %74 : vector<8x512xf32> to vector<8x512xbf16>
    %c88 = arith.constant 88 : index
    %c0_42 = arith.constant 0 : index
    %76 = vector.load %arg9[%c88, %c0_42] : memref<136x512xbf16, #tpu.memory_space<vmem>>, vector<8x512xbf16>
    tpu.vector_store %arg9[%c88, %c0_42], %75 {strides = array<i32>} : memref<136x512xbf16, #tpu.memory_space<vmem>>, vector<8x512xbf16>,
    %c42_i32 = arith.constant 42 : i32
    %77 = tpu.dynamic_rotate %40 by %c42_i32 dim 1 : vector<8x512xf32>, i32 -> vector<8x512xf32>
    %78 = arith.truncf %77 : vector<8x512xf32> to vector<8x512xbf16>
    %c96 = arith.constant 96 : index
    %c0_43 = arith.constant 0 : index
    %79 = vector.load %arg9[%c96, %c0_43] : memref<136x512xbf16, #tpu.memory_space<vmem>>, vector<8x512xbf16>
    tpu.vector_store %arg9[%c96, %c0_43], %78 {strides = array<i32>} : memref<136x512xbf16, #tpu.memory_space<vmem>>, vector<8x512xbf16>,
    %c41_i32 = arith.constant 41 : i32
    %80 = tpu.dynamic_rotate %40 by %c41_i32 dim 1 : vector<8x512xf32>, i32 -> vector<8x512xf32>
    %81 = arith.truncf %80 : vector<8x512xf32> to vector<8x512xbf16>
    %c104 = arith.constant 104 : index
    %c0_44 = arith.constant 0 : index
    %82 = vector.load %arg9[%c104, %c0_44] : memref<136x512xbf16, #tpu.memory_space<vmem>>, vector<8x512xbf16>
    tpu.vector_store %arg9[%c104, %c0_44], %81 {strides = array<i32>} : memref<136x512xbf16, #tpu.memory_space<vmem>>, vector<8x512xbf16>,
    %c25_i32 = arith.constant 25 : i32
    %83 = tpu.dynamic_rotate %40 by %c25_i32 dim 1 : vector<8x512xf32>, i32 -> vector<8x512xf32>
    %84 = arith.truncf %83 : vector<8x512xf32> to vector<8x512xbf16>
    %c112 = arith.constant 112 : index
    %c0_45 = arith.constant 0 : index
    %85 = vector.load %arg9[%c112, %c0_45] : memref<136x512xbf16, #tpu.memory_space<vmem>>, vector<8x512xbf16>
    tpu.vector_store %arg9[%c112, %c0_45], %84 {strides = array<i32>} : memref<136x512xbf16, #tpu.memory_space<vmem>>, vector<8x512xbf16>,
    %c24_i32 = arith.constant 24 : i32
    %86 = tpu.dynamic_rotate %40 by %c24_i32 dim 1 : vector<8x512xf32>, i32 -> vector<8x512xf32>
    %87 = arith.truncf %86 : vector<8x512xf32> to vector<8x512xbf16>
    %c120 = arith.constant 120 : index
    %c0_46 = arith.constant 0 : index
    %88 = vector.load %arg9[%c120, %c0_46] : memref<136x512xbf16, #tpu.memory_space<vmem>>, vector<8x512xbf16>
    tpu.vector_store %arg9[%c120, %c0_46], %87 {strides = array<i32>} : memref<136x512xbf16, #tpu.memory_space<vmem>>, vector<8x512xbf16>,
    %c23_i32_47 = arith.constant 23 : i32
    %89 = tpu.dynamic_rotate %40 by %c23_i32_47 dim 1 : vector<8x512xf32>, i32 -> vector<8x512xf32>
    %90 = arith.truncf %89 : vector<8x512xf32> to vector<8x512xbf16>
    %c128 = arith.constant 128 : index
    %c0_48 = arith.constant 0 : index
    %91 = vector.load %arg9[%c128, %c0_48] : memref<136x512xbf16, #tpu.memory_space<vmem>>, vector<8x512xbf16>
    tpu.vector_store %arg9[%c128, %c0_48], %90 {strides = array<i32>} : memref<136x512xbf16, #tpu.memory_space<vmem>>, vector<8x512xbf16>,
    %c0_49 = arith.constant 0 : index
    %c0_50 = arith.constant 0 : index
    %92 = vector.load %arg6[%c0_49, %c0_50] : memref<8x392xbf16, #tpu.memory_space<vmem>>, vector<8x136xbf16>
    %c0_51 = arith.constant 0 : index
    %c0_52 = arith.constant 0 : index
    %93 = vector.load %arg9[%c0_51, %c0_52] : memref<136x512xbf16, #tpu.memory_space<vmem>>, vector<136x512xbf16>
    %cst_53 = arith.constant dense<0.000000e+00> : vector<8x512xf32>
    %94 = tpu.matmul %92, %93, %cst_53 {dimension_numbers = #tpu.dot_dimension_numbers<[1], [0], [0], [1], [0, 0, 1, 1], [], []>} : vector<8x136xbf16>, vector<136x512xbf16>, vector<8x512xf32> -> vector<8x512xf32>
    %c22_i32_54 = arith.constant 22 : i32
    %95 = tpu.dynamic_rotate %40 by %c22_i32_54 dim 1 : vector<8x512xf32>, i32 -> vector<8x512xf32>
    %96 = arith.truncf %95 : vector<8x512xf32> to vector<8x512xbf16>
    %c0_55 = arith.constant 0 : index
    %c0_56 = arith.constant 0 : index
    %97 = vector.load %arg9[%c0_55, %c0_56] : memref<136x512xbf16, #tpu.memory_space<vmem>>, vector<8x512xbf16>
    tpu.vector_store %arg9[%c0_55, %c0_56], %96 {strides = array<i32>} : memref<136x512xbf16, #tpu.memory_space<vmem>>, vector<8x512xbf16>,
    %c21_i32_57 = arith.constant 21 : i32
    %98 = tpu.dynamic_rotate %40 by %c21_i32_57 dim 1 : vector<8x512xf32>, i32 -> vector<8x512xf32>
    %99 = arith.truncf %98 : vector<8x512xf32> to vector<8x512xbf16>
    %c8_58 = arith.constant 8 : index
    %c0_59 = arith.constant 0 : index
    %100 = vector.load %arg9[%c8_58, %c0_59] : memref<136x512xbf16, #tpu.memory_space<vmem>>, vector<8x512xbf16>
    tpu.vector_store %arg9[%c8_58, %c0_59], %99 {strides = array<i32>} : memref<136x512xbf16, #tpu.memory_space<vmem>>, vector<8x512xbf16>,
    %c20_i32 = arith.constant 20 : i32
    %101 = tpu.dynamic_rotate %40 by %c20_i32 dim 1 : vector<8x512xf32>, i32 -> vector<8x512xf32>
    %102 = arith.truncf %101 : vector<8x512xf32> to vector<8x512xbf16>
    %c16_60 = arith.constant 16 : index
    %c0_61 = arith.constant 0 : index
    %103 = vector.load %arg9[%c16_60, %c0_61] : memref<136x512xbf16, #tpu.memory_space<vmem>>, vector<8x512xbf16>
    tpu.vector_store %arg9[%c16_60, %c0_61], %102 {strides = array<i32>} : memref<136x512xbf16, #tpu.memory_space<vmem>>, vector<8x512xbf16>,
    %c19_i32 = arith.constant 19 : i32
    %104 = tpu.dynamic_rotate %40 by %c19_i32 dim 1 : vector<8x512xf32>, i32 -> vector<8x512xf32>
    %105 = arith.truncf %104 : vector<8x512xf32> to vector<8x512xbf16>
    %c24_62 = arith.constant 24 : index
    %c0_63 = arith.constant 0 : index
    %106 = vector.load %arg9[%c24_62, %c0_63] : memref<136x512xbf16, #tpu.memory_space<vmem>>, vector<8x512xbf16>
    tpu.vector_store %arg9[%c24_62, %c0_63], %105 {strides = array<i32>} : memref<136x512xbf16, #tpu.memory_space<vmem>>, vector<8x512xbf16>,
    %c3_i32 = arith.constant 3 : i32
    %107 = tpu.dynamic_rotate %40 by %c3_i32 dim 1 : vector<8x512xf32>, i32 -> vector<8x512xf32>
    %108 = arith.truncf %107 : vector<8x512xf32> to vector<8x512xbf16>
    %c32_64 = arith.constant 32 : index
    %c0_65 = arith.constant 0 : index
    %109 = vector.load %arg9[%c32_64, %c0_65] : memref<136x512xbf16, #tpu.memory_space<vmem>>, vector<8x512xbf16>
    tpu.vector_store %arg9[%c32_64, %c0_65], %108 {strides = array<i32>} : memref<136x512xbf16, #tpu.memory_space<vmem>>, vector<8x512xbf16>,
    %c2_i32 = arith.constant 2 : i32
    %110 = tpu.dynamic_rotate %40 by %c2_i32 dim 1 : vector<8x512xf32>, i32 -> vector<8x512xf32>
    %111 = arith.truncf %110 : vector<8x512xf32> to vector<8x512xbf16>
    %c40_66 = arith.constant 40 : index
    %c0_67 = arith.constant 0 : index
    %112 = vector.load %arg9[%c40_66, %c0_67] : memref<136x512xbf16, #tpu.memory_space<vmem>>, vector<8x512xbf16>
    tpu.vector_store %arg9[%c40_66, %c0_67], %111 {strides = array<i32>} : memref<136x512xbf16, #tpu.memory_space<vmem>>, vector<8x512xbf16>,
    %c1_i32_68 = arith.constant 1 : i32
    %113 = tpu.dynamic_rotate %40 by %c1_i32_68 dim 1 : vector<8x512xf32>, i32 -> vector<8x512xf32>
    %114 = arith.truncf %113 : vector<8x512xf32> to vector<8x512xbf16>
    %c48_69 = arith.constant 48 : index
    %c0_70 = arith.constant 0 : index
    %115 = vector.load %arg9[%c48_69, %c0_70] : memref<136x512xbf16, #tpu.memory_space<vmem>>, vector<8x512xbf16>
    tpu.vector_store %arg9[%c48_69, %c0_70], %114 {strides = array<i32>} : memref<136x512xbf16, #tpu.memory_space<vmem>>, vector<8x512xbf16>,
    %c0_i32_71 = arith.constant 0 : i32
    %116 = tpu.dynamic_rotate %40 by %c0_i32_71 dim 1 : vector<8x512xf32>, i32 -> vector<8x512xf32>
    %117 = arith.truncf %116 : vector<8x512xf32> to vector<8x512xbf16>
    %c56_72 = arith.constant 56 : index
    %c0_73 = arith.constant 0 : index
    %118 = vector.load %arg9[%c56_72, %c0_73] : memref<136x512xbf16, #tpu.memory_space<vmem>>, vector<8x512xbf16>
    tpu.vector_store %arg9[%c56_72, %c0_73], %117 {strides = array<i32>} : memref<136x512xbf16, #tpu.memory_space<vmem>>, vector<8x512xbf16>,
    %c511_i32_74 = arith.constant 511 : i32
    %119 = tpu.dynamic_rotate %40 by %c511_i32_74 dim 1 : vector<8x512xf32>, i32 -> vector<8x512xf32>
    %120 = arith.truncf %119 : vector<8x512xf32> to vector<8x512xbf16>
    %c64_75 = arith.constant 64 : index
    %c0_76 = arith.constant 0 : index
    %121 = vector.load %arg9[%c64_75, %c0_76] : memref<136x512xbf16, #tpu.memory_space<vmem>>, vector<8x512xbf16>
    tpu.vector_store %arg9[%c64_75, %c0_76], %120 {strides = array<i32>} : memref<136x512xbf16, #tpu.memory_space<vmem>>, vector<8x512xbf16>,
    %c510_i32 = arith.constant 510 : i32
    %122 = tpu.dynamic_rotate %40 by %c510_i32 dim 1 : vector<8x512xf32>, i32 -> vector<8x512xf32>
    %123 = arith.truncf %122 : vector<8x512xf32> to vector<8x512xbf16>
    %c72_77 = arith.constant 72 : index
    %c0_78 = arith.constant 0 : index
    %124 = vector.load %arg9[%c72_77, %c0_78] : memref<136x512xbf16, #tpu.memory_space<vmem>>, vector<8x512xbf16>
    tpu.vector_store %arg9[%c72_77, %c0_78], %123 {strides = array<i32>} : memref<136x512xbf16, #tpu.memory_space<vmem>>, vector<8x512xbf16>,
    %c509_i32 = arith.constant 509 : i32
    %125 = tpu.dynamic_rotate %40 by %c509_i32 dim 1 : vector<8x512xf32>, i32 -> vector<8x512xf32>
    %126 = arith.truncf %125 : vector<8x512xf32> to vector<8x512xbf16>
    %c80_79 = arith.constant 80 : index
    %c0_80 = arith.constant 0 : index
    %127 = vector.load %arg9[%c80_79, %c0_80] : memref<136x512xbf16, #tpu.memory_space<vmem>>, vector<8x512xbf16>
    tpu.vector_store %arg9[%c80_79, %c0_80], %126 {strides = array<i32>} : memref<136x512xbf16, #tpu.memory_space<vmem>>, vector<8x512xbf16>,
    %c493_i32 = arith.constant 493 : i32
    %128 = tpu.dynamic_rotate %40 by %c493_i32 dim 1 : vector<8x512xf32>, i32 -> vector<8x512xf32>
    %129 = arith.truncf %128 : vector<8x512xf32> to vector<8x512xbf16>
    %c88_81 = arith.constant 88 : index
    %c0_82 = arith.constant 0 : index
    %130 = vector.load %arg9[%c88_81, %c0_82] : memref<136x512xbf16, #tpu.memory_space<vmem>>, vector<8x512xbf16>
    tpu.vector_store %arg9[%c88_81, %c0_82], %129 {strides = array<i32>} : memref<136x512xbf16, #tpu.memory_space<vmem>>, vector<8x512xbf16>,
    %c492_i32 = arith.constant 492 : i32
    %131 = tpu.dynamic_rotate %40 by %c492_i32 dim 1 : vector<8x512xf32>, i32 -> vector<8x512xf32>
    %132 = arith.truncf %131 : vector<8x512xf32> to vector<8x512xbf16>
    %c96_83 = arith.constant 96 : index
    %c0_84 = arith.constant 0 : index
    %133 = vector.load %arg9[%c96_83, %c0_84] : memref<136x512xbf16, #tpu.memory_space<vmem>>, vector<8x512xbf16>
    tpu.vector_store %arg9[%c96_83, %c0_84], %132 {strides = array<i32>} : memref<136x512xbf16, #tpu.memory_space<vmem>>, vector<8x512xbf16>,
    %c491_i32_85 = arith.constant 491 : i32
    %134 = tpu.dynamic_rotate %40 by %c491_i32_85 dim 1 : vector<8x512xf32>, i32 -> vector<8x512xf32>
    %135 = arith.truncf %134 : vector<8x512xf32> to vector<8x512xbf16>
    %c104_86 = arith.constant 104 : index
    %c0_87 = arith.constant 0 : index
    %136 = vector.load %arg9[%c104_86, %c0_87] : memref<136x512xbf16, #tpu.memory_space<vmem>>, vector<8x512xbf16>
    tpu.vector_store %arg9[%c104_86, %c0_87], %135 {strides = array<i32>} : memref<136x512xbf16, #tpu.memory_space<vmem>>, vector<8x512xbf16>,
    %c490_i32_88 = arith.constant 490 : i32
    %137 = tpu.dynamic_rotate %40 by %c490_i32_88 dim 1 : vector<8x512xf32>, i32 -> vector<8x512xf32>
    %138 = arith.truncf %137 : vector<8x512xf32> to vector<8x512xbf16>
    %c112_89 = arith.constant 112 : index
    %c0_90 = arith.constant 0 : index
    %139 = vector.load %arg9[%c112_89, %c0_90] : memref<136x512xbf16, #tpu.memory_space<vmem>>, vector<8x512xbf16>
    tpu.vector_store %arg9[%c112_89, %c0_90], %138 {strides = array<i32>} : memref<136x512xbf16, #tpu.memory_space<vmem>>, vector<8x512xbf16>,
    %c489_i32_91 = arith.constant 489 : i32
    %140 = tpu.dynamic_rotate %40 by %c489_i32_91 dim 1 : vector<8x512xf32>, i32 -> vector<8x512xf32>
    %141 = arith.truncf %140 : vector<8x512xf32> to vector<8x512xbf16>
    %c120_92 = arith.constant 120 : index
    %c0_93 = arith.constant 0 : index
    %142 = vector.load %arg9[%c120_92, %c0_93] : memref<136x512xbf16, #tpu.memory_space<vmem>>, vector<8x512xbf16>
    tpu.vector_store %arg9[%c120_92, %c0_93], %141 {strides = array<i32>} : memref<136x512xbf16, #tpu.memory_space<vmem>>, vector<8x512xbf16>,
    %c0_94 = arith.constant 0 : index
    %c136 = arith.constant 136 : index
    %143 = vector.load %arg6[%c0_94, %c136] : memref<8x392xbf16, #tpu.memory_space<vmem>>, vector<8x128xbf16>
    %c0_95 = arith.constant 0 : index
    %c0_96 = arith.constant 0 : index
    %144 = vector.load %arg9[%c0_95, %c0_96] : memref<136x512xbf16, #tpu.memory_space<vmem>>, vector<128x512xbf16>
    %cst_97 = arith.constant dense<0.000000e+00> : vector<8x512xf32>
    %145 = tpu.matmul %143, %144, %cst_97 {dimension_numbers = #tpu.dot_dimension_numbers<[1], [0], [0], [1], [0, 0, 1, 1], [], []>} : vector<8x128xbf16>, vector<128x512xbf16>, vector<8x512xf32> -> vector<8x512xf32>
    %146 = arith.addf %94, %145 : vector<8x512xf32>
    %c488_i32 = arith.constant 488 : i32
    %147 = tpu.dynamic_rotate %40 by %c488_i32 dim 1 : vector<8x512xf32>, i32 -> vector<8x512xf32>
    %148 = arith.truncf %147 : vector<8x512xf32> to vector<8x512xbf16>
    %c0_98 = arith.constant 0 : index
    %c0_99 = arith.constant 0 : index
    %149 = vector.load %arg9[%c0_98, %c0_99] : memref<136x512xbf16, #tpu.memory_space<vmem>>, vector<8x512xbf16>
    tpu.vector_store %arg9[%c0_98, %c0_99], %148 {strides = array<i32>} : memref<136x512xbf16, #tpu.memory_space<vmem>>, vector<8x512xbf16>,
    %c487_i32 = arith.constant 487 : i32
    %150 = tpu.dynamic_rotate %40 by %c487_i32 dim 1 : vector<8x512xf32>, i32 -> vector<8x512xf32>
    %151 = arith.truncf %150 : vector<8x512xf32> to vector<8x512xbf16>
    %c8_100 = arith.constant 8 : index
    %c0_101 = arith.constant 0 : index
    %152 = vector.load %arg9[%c8_100, %c0_101] : memref<136x512xbf16, #tpu.memory_space<vmem>>, vector<8x512xbf16>
    tpu.vector_store %arg9[%c8_100, %c0_101], %151 {strides = array<i32>} : memref<136x512xbf16, #tpu.memory_space<vmem>>, vector<8x512xbf16>,
    %c471_i32 = arith.constant 471 : i32
    %153 = tpu.dynamic_rotate %40 by %c471_i32 dim 1 : vector<8x512xf32>, i32 -> vector<8x512xf32>
    %154 = arith.truncf %153 : vector<8x512xf32> to vector<8x512xbf16>
    %c16_102 = arith.constant 16 : index
    %c0_103 = arith.constant 0 : index
    %155 = vector.load %arg9[%c16_102, %c0_103] : memref<136x512xbf16, #tpu.memory_space<vmem>>, vector<8x512xbf16>
    tpu.vector_store %arg9[%c16_102, %c0_103], %154 {strides = array<i32>} : memref<136x512xbf16, #tpu.memory_space<vmem>>, vector<8x512xbf16>,
    %c470_i32 = arith.constant 470 : i32
    %156 = tpu.dynamic_rotate %40 by %c470_i32 dim 1 : vector<8x512xf32>, i32 -> vector<8x512xf32>
    %157 = arith.truncf %156 : vector<8x512xf32> to vector<8x512xbf16>
    %c24_104 = arith.constant 24 : index
    %c0_105 = arith.constant 0 : index
    %158 = vector.load %arg9[%c24_104, %c0_105] : memref<136x512xbf16, #tpu.memory_space<vmem>>, vector<8x512xbf16>
    tpu.vector_store %arg9[%c24_104, %c0_105], %157 {strides = array<i32>} : memref<136x512xbf16, #tpu.memory_space<vmem>>, vector<8x512xbf16>,
    %c469_i32 = arith.constant 469 : i32
    %159 = tpu.dynamic_rotate %40 by %c469_i32 dim 1 : vector<8x512xf32>, i32 -> vector<8x512xf32>
    %160 = arith.truncf %159 : vector<8x512xf32> to vector<8x512xbf16>
    %c32_106 = arith.constant 32 : index
    %c0_107 = arith.constant 0 : index
    %161 = vector.load %arg9[%c32_106, %c0_107] : memref<136x512xbf16, #tpu.memory_space<vmem>>, vector<8x512xbf16>
    tpu.vector_store %arg9[%c32_106, %c0_107], %160 {strides = array<i32>} : memref<136x512xbf16, #tpu.memory_space<vmem>>, vector<8x512xbf16>,
    %c468_i32 = arith.constant 468 : i32
    %162 = tpu.dynamic_rotate %40 by %c468_i32 dim 1 : vector<8x512xf32>, i32 -> vector<8x512xf32>
    %163 = arith.truncf %162 : vector<8x512xf32> to vector<8x512xbf16>
    %c40_108 = arith.constant 40 : index
    %c0_109 = arith.constant 0 : index
    %164 = vector.load %arg9[%c40_108, %c0_109] : memref<136x512xbf16, #tpu.memory_space<vmem>>, vector<8x512xbf16>
    tpu.vector_store %arg9[%c40_108, %c0_109], %163 {strides = array<i32>} : memref<136x512xbf16, #tpu.memory_space<vmem>>, vector<8x512xbf16>,
    %c467_i32 = arith.constant 467 : i32
    %165 = tpu.dynamic_rotate %40 by %c467_i32 dim 1 : vector<8x512xf32>, i32 -> vector<8x512xf32>
    %166 = arith.truncf %165 : vector<8x512xf32> to vector<8x512xbf16>
    %c48_110 = arith.constant 48 : index
    %c0_111 = arith.constant 0 : index
    %167 = vector.load %arg9[%c48_110, %c0_111] : memref<136x512xbf16, #tpu.memory_space<vmem>>, vector<8x512xbf16>
    tpu.vector_store %arg9[%c48_110, %c0_111], %166 {strides = array<i32>} : memref<136x512xbf16, #tpu.memory_space<vmem>>, vector<8x512xbf16>,
    %c466_i32 = arith.constant 466 : i32
    %168 = tpu.dynamic_rotate %40 by %c466_i32 dim 1 : vector<8x512xf32>, i32 -> vector<8x512xf32>
    %169 = arith.truncf %168 : vector<8x512xf32> to vector<8x512xbf16>
    %c56_112 = arith.constant 56 : index
    %c0_113 = arith.constant 0 : index
    %170 = vector.load %arg9[%c56_112, %c0_113] : memref<136x512xbf16, #tpu.memory_space<vmem>>, vector<8x512xbf16>
    tpu.vector_store %arg9[%c56_112, %c0_113], %169 {strides = array<i32>} : memref<136x512xbf16, #tpu.memory_space<vmem>>, vector<8x512xbf16>,
    %c465_i32 = arith.constant 465 : i32
    %171 = tpu.dynamic_rotate %40 by %c465_i32 dim 1 : vector<8x512xf32>, i32 -> vector<8x512xf32>
    %172 = arith.truncf %171 : vector<8x512xf32> to vector<8x512xbf16>
    %c64_114 = arith.constant 64 : index
    %c0_115 = arith.constant 0 : index
    %173 = vector.load %arg9[%c64_114, %c0_115] : memref<136x512xbf16, #tpu.memory_space<vmem>>, vector<8x512xbf16>
    tpu.vector_store %arg9[%c64_114, %c0_115], %172 {strides = array<i32>} : memref<136x512xbf16, #tpu.memory_space<vmem>>, vector<8x512xbf16>,
    %c449_i32 = arith.constant 449 : i32
    %174 = tpu.dynamic_rotate %40 by %c449_i32 dim 1 : vector<8x512xf32>, i32 -> vector<8x512xf32>
    %175 = arith.truncf %174 : vector<8x512xf32> to vector<8x512xbf16>
    %c72_116 = arith.constant 72 : index
    %c0_117 = arith.constant 0 : index
    %176 = vector.load %arg9[%c72_116, %c0_117] : memref<136x512xbf16, #tpu.memory_space<vmem>>, vector<8x512xbf16>
    tpu.vector_store %arg9[%c72_116, %c0_117], %175 {strides = array<i32>} : memref<136x512xbf16, #tpu.memory_space<vmem>>, vector<8x512xbf16>,
    %c448_i32 = arith.constant 448 : i32
    %177 = tpu.dynamic_rotate %40 by %c448_i32 dim 1 : vector<8x512xf32>, i32 -> vector<8x512xf32>
    %178 = arith.truncf %177 : vector<8x512xf32> to vector<8x512xbf16>
    %c80_118 = arith.constant 80 : index
    %c0_119 = arith.constant 0 : index
    %179 = vector.load %arg9[%c80_118, %c0_119] : memref<136x512xbf16, #tpu.memory_space<vmem>>, vector<8x512xbf16>
    tpu.vector_store %arg9[%c80_118, %c0_119], %178 {strides = array<i32>} : memref<136x512xbf16, #tpu.memory_space<vmem>>, vector<8x512xbf16>,
    %c447_i32 = arith.constant 447 : i32
    %180 = tpu.dynamic_rotate %40 by %c447_i32 dim 1 : vector<8x512xf32>, i32 -> vector<8x512xf32>
    %181 = arith.truncf %180 : vector<8x512xf32> to vector<8x512xbf16>
    %c88_120 = arith.constant 88 : index
    %c0_121 = arith.constant 0 : index
    %182 = vector.load %arg9[%c88_120, %c0_121] : memref<136x512xbf16, #tpu.memory_space<vmem>>, vector<8x512xbf16>
    tpu.vector_store %arg9[%c88_120, %c0_121], %181 {strides = array<i32>} : memref<136x512xbf16, #tpu.memory_space<vmem>>, vector<8x512xbf16>,
    %c446_i32 = arith.constant 446 : i32
    %183 = tpu.dynamic_rotate %40 by %c446_i32 dim 1 : vector<8x512xf32>, i32 -> vector<8x512xf32>
    %184 = arith.truncf %183 : vector<8x512xf32> to vector<8x512xbf16>
    %c96_122 = arith.constant 96 : index
    %c0_123 = arith.constant 0 : index
    %185 = vector.load %arg9[%c96_122, %c0_123] : memref<136x512xbf16, #tpu.memory_space<vmem>>, vector<8x512xbf16>
    tpu.vector_store %arg9[%c96_122, %c0_123], %184 {strides = array<i32>} : memref<136x512xbf16, #tpu.memory_space<vmem>>, vector<8x512xbf16>,
    %c445_i32 = arith.constant 445 : i32
    %186 = tpu.dynamic_rotate %40 by %c445_i32 dim 1 : vector<8x512xf32>, i32 -> vector<8x512xf32>
    %187 = arith.truncf %186 : vector<8x512xf32> to vector<8x512xbf16>
    %c104_124 = arith.constant 104 : index
    %c0_125 = arith.constant 0 : index
    %188 = vector.load %arg9[%c104_124, %c0_125] : memref<136x512xbf16, #tpu.memory_space<vmem>>, vector<8x512xbf16>
    tpu.vector_store %arg9[%c104_124, %c0_125], %187 {strides = array<i32>} : memref<136x512xbf16, #tpu.memory_space<vmem>>, vector<8x512xbf16>,
    %c444_i32 = arith.constant 444 : i32
    %189 = tpu.dynamic_rotate %40 by %c444_i32 dim 1 : vector<8x512xf32>, i32 -> vector<8x512xf32>
    %190 = arith.truncf %189 : vector<8x512xf32> to vector<8x512xbf16>
    %c112_126 = arith.constant 112 : index
    %c0_127 = arith.constant 0 : index
    %191 = vector.load %arg9[%c112_126, %c0_127] : memref<136x512xbf16, #tpu.memory_space<vmem>>, vector<8x512xbf16>
    tpu.vector_store %arg9[%c112_126, %c0_127], %190 {strides = array<i32>} : memref<136x512xbf16, #tpu.memory_space<vmem>>, vector<8x512xbf16>,
    %c443_i32 = arith.constant 443 : i32
    %192 = tpu.dynamic_rotate %40 by %c443_i32 dim 1 : vector<8x512xf32>, i32 -> vector<8x512xf32>
    %193 = arith.truncf %192 : vector<8x512xf32> to vector<8x512xbf16>
    %c120_128 = arith.constant 120 : index
    %c0_129 = arith.constant 0 : index
    %194 = vector.load %arg9[%c120_128, %c0_129] : memref<136x512xbf16, #tpu.memory_space<vmem>>, vector<8x512xbf16>
    tpu.vector_store %arg9[%c120_128, %c0_129], %193 {strides = array<i32>} : memref<136x512xbf16, #tpu.memory_space<vmem>>, vector<8x512xbf16>,
    %c0_130 = arith.constant 0 : index
    %c264 = arith.constant 264 : index
    %195 = vector.load %arg6[%c0_130, %c264] : memref<8x392xbf16, #tpu.memory_space<vmem>>, vector<8x128xbf16>
    %c0_131 = arith.constant 0 : index
    %c0_132 = arith.constant 0 : index
    %196 = vector.load %arg9[%c0_131, %c0_132] : memref<136x512xbf16, #tpu.memory_space<vmem>>, vector<128x512xbf16>
    %cst_133 = arith.constant dense<0.000000e+00> : vector<8x512xf32>
    %197 = tpu.matmul %195, %196, %cst_133 {dimension_numbers = #tpu.dot_dimension_numbers<[1], [0], [0], [1], [0, 0, 1, 1], [], []>} : vector<8x128xbf16>, vector<128x512xbf16>, vector<8x512xf32> -> vector<8x512xf32>
    %198 = arith.addf %146, %197 : vector<8x512xf32>
    %199 = vector.extract_strided_slice %198 {offsets = [0, 0], sizes = [4, 512], strides = [1, 1]} : vector<8x512xf32> to vector<4x512xf32>
    %cst_134 = arith.constant dense<0xFF800000> : vector<512xf32>
    %200 = vector.multi_reduction <maximumf>, %199, %cst_134 [0] : vector<4x512xf32> to vector<512xf32>
    %201 = vector.shape_cast %200 : vector<512xf32> to vector<1x512xf32>
    %cst_135 = arith.constant dense<0.000000e+00> : vector<512xf32>
    %202 = vector.multi_reduction <add>, %199, %cst_135 [0] : vector<4x512xf32> to vector<512xf32>
    %203 = vector.shape_cast %202 : vector<512xf32> to vector<1x512xf32>
    %cst_136 = arith.constant 2.500000e-01 : f32
    %204 = vector.broadcast %cst_136 : f32 to vector<1x512xf32>
    %205 = arith.mulf %203, %204 : vector<1x512xf32>
    %206 = tpu.concatenate %201, %205 in 0 : vector<1x512xf32>, vector<1x512xf32> -> vector<2x512xf32>
    %207 = vector.broadcast %0 : vector<1x512xf32> to vector<2x512xf32>
    %208 = arith.mulf %206, %207 : vector<2x512xf32>
    %c69_i32_137 = arith.constant 69 : i32
    %209 = tpu.dynamic_rotate %208 by %c69_i32_137 dim 1 : vector<2x512xf32>, i32 -> vector<2x512xf32>
    %c0_138 = arith.constant 0 : index
    %210 = memref.load %arg7[%c0_138] : memref<98xf32, #tpu.memory_space<smem>>
    %211 = vector.extract_strided_slice %209 {offsets = [0, 0], sizes = [1, 512], strides = [1, 1]} : vector<2x512xf32> to vector<1x512xf32>
    %212 = vector.broadcast %210 : f32 to vector<1x512xf32>
    %213 = arith.mulf %212, %211 : vector<1x512xf32>
    %c49 = arith.constant 49 : index
    %214 = memref.load %arg7[%c49] : memref<98xf32, #tpu.memory_space<smem>>
    %215 = vector.extract_strided_slice %209 {offsets = [1, 0], sizes = [1, 512], strides = [1, 1]} : vector<2x512xf32> to vector<1x512xf32>
    %216 = vector.broadcast %214 : f32 to vector<1x512xf32>
    %217 = arith.mulf %216, %215 : vector<1x512xf32>
    %218 = arith.addf %213, %217 : vector<1x512xf32>
    %c68_i32_139 = arith.constant 68 : i32
    %219 = tpu.dynamic_rotate %208 by %c68_i32_139 dim 1 : vector<2x512xf32>, i32 -> vector<2x512xf32>
    %c1 = arith.constant 1 : index
    %220 = memref.load %arg7[%c1] : memref<98xf32, #tpu.memory_space<smem>>
    %221 = vector.extract_strided_slice %219 {offsets = [0, 0], sizes = [1, 512], strides = [1, 1]} : vector<2x512xf32> to vector<1x512xf32>
    %222 = vector.broadcast %220 : f32 to vector<1x512xf32>
    %223 = arith.mulf %222, %221 : vector<1x512xf32>
    %c50 = arith.constant 50 : index
    %224 = memref.load %arg7[%c50] : memref<98xf32, #tpu.memory_space<smem>>
    %225 = vector.extract_strided_slice %219 {offsets = [1, 0], sizes = [1, 512], strides = [1, 1]} : vector<2x512xf32> to vector<1x512xf32>
    %226 = vector.broadcast %224 : f32 to vector<1x512xf32>
    %227 = arith.mulf %226, %225 : vector<1x512xf32>
    %228 = arith.addf %223, %227 : vector<1x512xf32>
    %229 = arith.addf %218, %228 : vector<1x512xf32>
    %c67_i32_140 = arith.constant 67 : i32
    %230 = tpu.dynamic_rotate %208 by %c67_i32_140 dim 1 : vector<2x512xf32>, i32 -> vector<2x512xf32>
    %c2 = arith.constant 2 : index
    %231 = memref.load %arg7[%c2] : memref<98xf32, #tpu.memory_space<smem>>
    %232 = vector.extract_strided_slice %230 {offsets = [0, 0], sizes = [1, 512], strides = [1, 1]} : vector<2x512xf32> to vector<1x512xf32>
    %233 = vector.broadcast %231 : f32 to vector<1x512xf32>
    %234 = arith.mulf %233, %232 : vector<1x512xf32>
    %c51 = arith.constant 51 : index
    %235 = memref.load %arg7[%c51] : memref<98xf32, #tpu.memory_space<smem>>
    %236 = vector.extract_strided_slice %230 {offsets = [1, 0], sizes = [1, 512], strides = [1, 1]} : vector<2x512xf32> to vector<1x512xf32>
    %237 = vector.broadcast %235 : f32 to vector<1x512xf32>
    %238 = arith.mulf %237, %236 : vector<1x512xf32>
    %239 = arith.addf %234, %238 : vector<1x512xf32>
    %240 = arith.addf %229, %239 : vector<1x512xf32>
    %c66_i32_141 = arith.constant 66 : i32
    %241 = tpu.dynamic_rotate %208 by %c66_i32_141 dim 1 : vector<2x512xf32>, i32 -> vector<2x512xf32>
    %c3 = arith.constant 3 : index
    %242 = memref.load %arg7[%c3] : memref<98xf32, #tpu.memory_space<smem>>
    %243 = vector.extract_strided_slice %241 {offsets = [0, 0], sizes = [1, 512], strides = [1, 1]} : vector<2x512xf32> to vector<1x512xf32>
    %244 = vector.broadcast %242 : f32 to vector<1x512xf32>
    %245 = arith.mulf %244, %243 : vector<1x512xf32>
    %c52 = arith.constant 52 : index
    %246 = memref.load %arg7[%c52] : memref<98xf32, #tpu.memory_space<smem>>
    %247 = vector.extract_strided_slice %241 {offsets = [1, 0], sizes = [1, 512], strides = [1, 1]} : vector<2x512xf32> to vector<1x512xf32>
    %248 = vector.broadcast %246 : f32 to vector<1x512xf32>
    %249 = arith.mulf %248, %247 : vector<1x512xf32>
    %250 = arith.addf %245, %249 : vector<1x512xf32>
    %251 = arith.addf %240, %250 : vector<1x512xf32>
    %c65_i32_142 = arith.constant 65 : i32
    %252 = tpu.dynamic_rotate %208 by %c65_i32_142 dim 1 : vector<2x512xf32>, i32 -> vector<2x512xf32>
    %c4 = arith.constant 4 : index
    %253 = memref.load %arg7[%c4] : memref<98xf32, #tpu.memory_space<smem>>
    %254 = vector.extract_strided_slice %252 {offsets = [0, 0], sizes = [1, 512], strides = [1, 1]} : vector<2x512xf32> to vector<1x512xf32>
    %255 = vector.broadcast %253 : f32 to vector<1x512xf32>
    %256 = arith.mulf %255, %254 : vector<1x512xf32>
    %c53 = arith.constant 53 : index
    %257 = memref.load %arg7[%c53] : memref<98xf32, #tpu.memory_space<smem>>
    %258 = vector.extract_strided_slice %252 {offsets = [1, 0], sizes = [1, 512], strides = [1, 1]} : vector<2x512xf32> to vector<1x512xf32>
    %259 = vector.broadcast %257 : f32 to vector<1x512xf32>
    %260 = arith.mulf %259, %258 : vector<1x512xf32>
    %261 = arith.addf %256, %260 : vector<1x512xf32>
    %262 = arith.addf %251, %261 : vector<1x512xf32>
    %c64_i32_143 = arith.constant 64 : i32
    %263 = tpu.dynamic_rotate %208 by %c64_i32_143 dim 1 : vector<2x512xf32>, i32 -> vector<2x512xf32>
    %c5 = arith.constant 5 : index
    %264 = memref.load %arg7[%c5] : memref<98xf32, #tpu.memory_space<smem>>
    %265 = vector.extract_strided_slice %263 {offsets = [0, 0], sizes = [1, 512], strides = [1, 1]} : vector<2x512xf32> to vector<1x512xf32>
    %266 = vector.broadcast %264 : f32 to vector<1x512xf32>
    %267 = arith.mulf %266, %265 : vector<1x512xf32>
    %c54 = arith.constant 54 : index
    %268 = memref.load %arg7[%c54] : memref<98xf32, #tpu.memory_space<smem>>
    %269 = vector.extract_strided_slice %263 {offsets = [1, 0], sizes = [1, 512], strides = [1, 1]} : vector<2x512xf32> to vector<1x512xf32>
    %270 = vector.broadcast %268 : f32 to vector<1x512xf32>
    %271 = arith.mulf %270, %269 : vector<1x512xf32>
    %272 = arith.addf %267, %271 : vector<1x512xf32>
    %273 = arith.addf %262, %272 : vector<1x512xf32>
    %c63_i32_144 = arith.constant 63 : i32
    %274 = tpu.dynamic_rotate %208 by %c63_i32_144 dim 1 : vector<2x512xf32>, i32 -> vector<2x512xf32>
    %c6 = arith.constant 6 : index
    %275 = memref.load %arg7[%c6] : memref<98xf32, #tpu.memory_space<smem>>
    %276 = vector.extract_strided_slice %274 {offsets = [0, 0], sizes = [1, 512], strides = [1, 1]} : vector<2x512xf32> to vector<1x512xf32>
    %277 = vector.broadcast %275 : f32 to vector<1x512xf32>
    %278 = arith.mulf %277, %276 : vector<1x512xf32>
    %c55 = arith.constant 55 : index
    %279 = memref.load %arg7[%c55] : memref<98xf32, #tpu.memory_space<smem>>
    %280 = vector.extract_strided_slice %274 {offsets = [1, 0], sizes = [1, 512], strides = [1, 1]} : vector<2x512xf32> to vector<1x512xf32>
    %281 = vector.broadcast %279 : f32 to vector<1x512xf32>
    %282 = arith.mulf %281, %280 : vector<1x512xf32>
    %283 = arith.addf %278, %282 : vector<1x512xf32>
    %284 = arith.addf %273, %283 : vector<1x512xf32>
    %c47_i32_145 = arith.constant 47 : i32
    %285 = tpu.dynamic_rotate %208 by %c47_i32_145 dim 1 : vector<2x512xf32>, i32 -> vector<2x512xf32>
    %c7 = arith.constant 7 : index
    %286 = memref.load %arg7[%c7] : memref<98xf32, #tpu.memory_space<smem>>
    %287 = vector.extract_strided_slice %285 {offsets = [0, 0], sizes = [1, 512], strides = [1, 1]} : vector<2x512xf32> to vector<1x512xf32>
    %288 = vector.broadcast %286 : f32 to vector<1x512xf32>
    %289 = arith.mulf %288, %287 : vector<1x512xf32>
    %c56_146 = arith.constant 56 : index
    %290 = memref.load %arg7[%c56_146] : memref<98xf32, #tpu.memory_space<smem>>
    %291 = vector.extract_strided_slice %285 {offsets = [1, 0], sizes = [1, 512], strides = [1, 1]} : vector<2x512xf32> to vector<1x512xf32>
    %292 = vector.broadcast %290 : f32 to vector<1x512xf32>
    %293 = arith.mulf %292, %291 : vector<1x512xf32>
    %294 = arith.addf %289, %293 : vector<1x512xf32>
    %295 = arith.addf %284, %294 : vector<1x512xf32>
    %c46_i32_147 = arith.constant 46 : i32
    %296 = tpu.dynamic_rotate %208 by %c46_i32_147 dim 1 : vector<2x512xf32>, i32 -> vector<2x512xf32>
    %c8_148 = arith.constant 8 : index
    %297 = memref.load %arg7[%c8_148] : memref<98xf32, #tpu.memory_space<smem>>
    %298 = vector.extract_strided_slice %296 {offsets = [0, 0], sizes = [1, 512], strides = [1, 1]} : vector<2x512xf32> to vector<1x512xf32>
    %299 = vector.broadcast %297 : f32 to vector<1x512xf32>
    %300 = arith.mulf %299, %298 : vector<1x512xf32>
    %c57 = arith.constant 57 : index
    %301 = memref.load %arg7[%c57] : memref<98xf32, #tpu.memory_space<smem>>
    %302 = vector.extract_strided_slice %296 {offsets = [1, 0], sizes = [1, 512], strides = [1, 1]} : vector<2x512xf32> to vector<1x512xf32>
    %303 = vector.broadcast %301 : f32 to vector<1x512xf32>
    %304 = arith.mulf %303, %302 : vector<1x512xf32>
    %305 = arith.addf %300, %304 : vector<1x512xf32>
    %306 = arith.addf %295, %305 : vector<1x512xf32>
    %c45_i32_149 = arith.constant 45 : i32
    %307 = tpu.dynamic_rotate %208 by %c45_i32_149 dim 1 : vector<2x512xf32>, i32 -> vector<2x512xf32>
    %c9 = arith.constant 9 : index
    %308 = memref.load %arg7[%c9] : memref<98xf32, #tpu.memory_space<smem>>
    %309 = vector.extract_strided_slice %307 {offsets = [0, 0], sizes = [1, 512], strides = [1, 1]} : vector<2x512xf32> to vector<1x512xf32>
    %310 = vector.broadcast %308 : f32 to vector<1x512xf32>
    %311 = arith.mulf %310, %309 : vector<1x512xf32>
    %c58 = arith.constant 58 : index
    %312 = memref.load %arg7[%c58] : memref<98xf32, #tpu.memory_space<smem>>
    %313 = vector.extract_strided_slice %307 {offsets = [1, 0], sizes = [1, 512], strides = [1, 1]} : vector<2x512xf32> to vector<1x512xf32>
    %314 = vector.broadcast %312 : f32 to vector<1x512xf32>
    %315 = arith.mulf %314, %313 : vector<1x512xf32>
    %316 = arith.addf %311, %315 : vector<1x512xf32>
    %317 = arith.addf %306, %316 : vector<1x512xf32>
    %c44_i32_150 = arith.constant 44 : i32
    %318 = tpu.dynamic_rotate %208 by %c44_i32_150 dim 1 : vector<2x512xf32>, i32 -> vector<2x512xf32>
    %c10 = arith.constant 10 : index
    %319 = memref.load %arg7[%c10] : memref<98xf32, #tpu.memory_space<smem>>
    %320 = vector.extract_strided_slice %318 {offsets = [0, 0], sizes = [1, 512], strides = [1, 1]} : vector<2x512xf32> to vector<1x512xf32>
    %321 = vector.broadcast %319 : f32 to vector<1x512xf32>
    %322 = arith.mulf %321, %320 : vector<1x512xf32>
    %c59 = arith.constant 59 : index
    %323 = memref.load %arg7[%c59] : memref<98xf32, #tpu.memory_space<smem>>
    %324 = vector.extract_strided_slice %318 {offsets = [1, 0], sizes = [1, 512], strides = [1, 1]} : vector<2x512xf32> to vector<1x512xf32>
    %325 = vector.broadcast %323 : f32 to vector<1x512xf32>
    %326 = arith.mulf %325, %324 : vector<1x512xf32>
    %327 = arith.addf %322, %326 : vector<1x512xf32>
    %328 = arith.addf %317, %327 : vector<1x512xf32>
    %c43_i32_151 = arith.constant 43 : i32
    %329 = tpu.dynamic_rotate %208 by %c43_i32_151 dim 1 : vector<2x512xf32>, i32 -> vector<2x512xf32>
    %c11 = arith.constant 11 : index
    %330 = memref.load %arg7[%c11] : memref<98xf32, #tpu.memory_space<smem>>
    %331 = vector.extract_strided_slice %329 {offsets = [0, 0], sizes = [1, 512], strides = [1, 1]} : vector<2x512xf32> to vector<1x512xf32>
    %332 = vector.broadcast %330 : f32 to vector<1x512xf32>
    %333 = arith.mulf %332, %331 : vector<1x512xf32>
    %c60 = arith.constant 60 : index
    %334 = memref.load %arg7[%c60] : memref<98xf32, #tpu.memory_space<smem>>
    %335 = vector.extract_strided_slice %329 {offsets = [1, 0], sizes = [1, 512], strides = [1, 1]} : vector<2x512xf32> to vector<1x512xf32>
    %336 = vector.broadcast %334 : f32 to vector<1x512xf32>
    %337 = arith.mulf %336, %335 : vector<1x512xf32>
    %338 = arith.addf %333, %337 : vector<1x512xf32>
    %339 = arith.addf %328, %338 : vector<1x512xf32>
    %c42_i32_152 = arith.constant 42 : i32
    %340 = tpu.dynamic_rotate %208 by %c42_i32_152 dim 1 : vector<2x512xf32>, i32 -> vector<2x512xf32>
    %c12 = arith.constant 12 : index
    %341 = memref.load %arg7[%c12] : memref<98xf32, #tpu.memory_space<smem>>
    %342 = vector.extract_strided_slice %340 {offsets = [0, 0], sizes = [1, 512], strides = [1, 1]} : vector<2x512xf32> to vector<1x512xf32>
    %343 = vector.broadcast %341 : f32 to vector<1x512xf32>
    %344 = arith.mulf %343, %342 : vector<1x512xf32>
    %c61 = arith.constant 61 : index
    %345 = memref.load %arg7[%c61] : memref<98xf32, #tpu.memory_space<smem>>
    %346 = vector.extract_strided_slice %340 {offsets = [1, 0], sizes = [1, 512], strides = [1, 1]} : vector<2x512xf32> to vector<1x512xf32>
    %347 = vector.broadcast %345 : f32 to vector<1x512xf32>
    %348 = arith.mulf %347, %346 : vector<1x512xf32>
    %349 = arith.addf %344, %348 : vector<1x512xf32>
    %350 = arith.addf %339, %349 : vector<1x512xf32>
    %c41_i32_153 = arith.constant 41 : i32
    %351 = tpu.dynamic_rotate %208 by %c41_i32_153 dim 1 : vector<2x512xf32>, i32 -> vector<2x512xf32>
    %c13 = arith.constant 13 : index
    %352 = memref.load %arg7[%c13] : memref<98xf32, #tpu.memory_space<smem>>
    %353 = vector.extract_strided_slice %351 {offsets = [0, 0], sizes = [1, 512], strides = [1, 1]} : vector<2x512xf32> to vector<1x512xf32>
    %354 = vector.broadcast %352 : f32 to vector<1x512xf32>
    %355 = arith.mulf %354, %353 : vector<1x512xf32>
    %c62 = arith.constant 62 : index
    %356 = memref.load %arg7[%c62] : memref<98xf32, #tpu.memory_space<smem>>
    %357 = vector.extract_strided_slice %351 {offsets = [1, 0], sizes = [1, 512], strides = [1, 1]} : vector<2x512xf32> to vector<1x512xf32>
    %358 = vector.broadcast %356 : f32 to vector<1x512xf32>
    %359 = arith.mulf %358, %357 : vector<1x512xf32>
    %360 = arith.addf %355, %359 : vector<1x512xf32>
    %361 = arith.addf %350, %360 : vector<1x512xf32>
    %c25_i32_154 = arith.constant 25 : i32
    %362 = tpu.dynamic_rotate %208 by %c25_i32_154 dim 1 : vector<2x512xf32>, i32 -> vector<2x512xf32>
    %c14 = arith.constant 14 : index
    %363 = memref.load %arg7[%c14] : memref<98xf32, #tpu.memory_space<smem>>
    %364 = vector.extract_strided_slice %362 {offsets = [0, 0], sizes = [1, 512], strides = [1, 1]} : vector<2x512xf32> to vector<1x512xf32>
    %365 = vector.broadcast %363 : f32 to vector<1x512xf32>
    %366 = arith.mulf %365, %364 : vector<1x512xf32>
    %c63 = arith.constant 63 : index
    %367 = memref.load %arg7[%c63] : memref<98xf32, #tpu.memory_space<smem>>
    %368 = vector.extract_strided_slice %362 {offsets = [1, 0], sizes = [1, 512], strides = [1, 1]} : vector<2x512xf32> to vector<1x512xf32>
    %369 = vector.broadcast %367 : f32 to vector<1x512xf32>
    %370 = arith.mulf %369, %368 : vector<1x512xf32>
    %371 = arith.addf %366, %370 : vector<1x512xf32>
    %372 = arith.addf %361, %371 : vector<1x512xf32>
    %c24_i32_155 = arith.constant 24 : i32
    %373 = tpu.dynamic_rotate %208 by %c24_i32_155 dim 1 : vector<2x512xf32>, i32 -> vector<2x512xf32>
    %c15 = arith.constant 15 : index
    %374 = memref.load %arg7[%c15] : memref<98xf32, #tpu.memory_space<smem>>
    %375 = vector.extract_strided_slice %373 {offsets = [0, 0], sizes = [1, 512], strides = [1, 1]} : vector<2x512xf32> to vector<1x512xf32>
    %376 = vector.broadcast %374 : f32 to vector<1x512xf32>
    %377 = arith.mulf %376, %375 : vector<1x512xf32>
    %c64_156 = arith.constant 64 : index
    %378 = memref.load %arg7[%c64_156] : memref<98xf32, #tpu.memory_space<smem>>
    %379 = vector.extract_strided_slice %373 {offsets = [1, 0], sizes = [1, 512], strides = [1, 1]} : vector<2x512xf32> to vector<1x512xf32>
    %380 = vector.broadcast %378 : f32 to vector<1x512xf32>
    %381 = arith.mulf %380, %379 : vector<1x512xf32>
    %382 = arith.addf %377, %381 : vector<1x512xf32>
    %383 = arith.addf %372, %382 : vector<1x512xf32>
    %c23_i32_157 = arith.constant 23 : i32
    %384 = tpu.dynamic_rotate %208 by %c23_i32_157 dim 1 : vector<2x512xf32>, i32 -> vector<2x512xf32>
    %c16_158 = arith.constant 16 : index
    %385 = memref.load %arg7[%c16_158] : memref<98xf32, #tpu.memory_space<smem>>
    %386 = vector.extract_strided_slice %384 {offsets = [0, 0], sizes = [1, 512], strides = [1, 1]} : vector<2x512xf32> to vector<1x512xf32>
    %387 = vector.broadcast %385 : f32 to vector<1x512xf32>
    %388 = arith.mulf %387, %386 : vector<1x512xf32>
    %c65 = arith.constant 65 : index
    %389 = memref.load %arg7[%c65] : memref<98xf32, #tpu.memory_space<smem>>
    %390 = vector.extract_strided_slice %384 {offsets = [1, 0], sizes = [1, 512], strides = [1, 1]} : vector<2x512xf32> to vector<1x512xf32>
    %391 = vector.broadcast %389 : f32 to vector<1x512xf32>
    %392 = arith.mulf %391, %390 : vector<1x512xf32>
    %393 = arith.addf %388, %392 : vector<1x512xf32>
    %394 = arith.addf %383, %393 : vector<1x512xf32>
    %c22_i32_159 = arith.constant 22 : i32
    %395 = tpu.dynamic_rotate %208 by %c22_i32_159 dim 1 : vector<2x512xf32>, i32 -> vector<2x512xf32>
    %c17 = arith.constant 17 : index
    %396 = memref.load %arg7[%c17] : memref<98xf32, #tpu.memory_space<smem>>
    %397 = vector.extract_strided_slice %395 {offsets = [0, 0], sizes = [1, 512], strides = [1, 1]} : vector<2x512xf32> to vector<1x512xf32>
    %398 = vector.broadcast %396 : f32 to vector<1x512xf32>
    %399 = arith.mulf %398, %397 : vector<1x512xf32>
    %c66 = arith.constant 66 : index
    %400 = memref.load %arg7[%c66] : memref<98xf32, #tpu.memory_space<smem>>
    %401 = vector.extract_strided_slice %395 {offsets = [1, 0], sizes = [1, 512], strides = [1, 1]} : vector<2x512xf32> to vector<1x512xf32>
    %402 = vector.broadcast %400 : f32 to vector<1x512xf32>
    %403 = arith.mulf %402, %401 : vector<1x512xf32>
    %404 = arith.addf %399, %403 : vector<1x512xf32>
    %405 = arith.addf %394, %404 : vector<1x512xf32>
    %c21_i32_160 = arith.constant 21 : i32
    %406 = tpu.dynamic_rotate %208 by %c21_i32_160 dim 1 : vector<2x512xf32>, i32 -> vector<2x512xf32>
    %c18 = arith.constant 18 : index
    %407 = memref.load %arg7[%c18] : memref<98xf32, #tpu.memory_space<smem>>
    %408 = vector.extract_strided_slice %406 {offsets = [0, 0], sizes = [1, 512], strides = [1, 1]} : vector<2x512xf32> to vector<1x512xf32>
    %409 = vector.broadcast %407 : f32 to vector<1x512xf32>
    %410 = arith.mulf %409, %408 : vector<1x512xf32>
    %c67 = arith.constant 67 : index
    %411 = memref.load %arg7[%c67] : memref<98xf32, #tpu.memory_space<smem>>
    %412 = vector.extract_strided_slice %406 {offsets = [1, 0], sizes = [1, 512], strides = [1, 1]} : vector<2x512xf32> to vector<1x512xf32>
    %413 = vector.broadcast %411 : f32 to vector<1x512xf32>
    %414 = arith.mulf %413, %412 : vector<1x512xf32>
    %415 = arith.addf %410, %414 : vector<1x512xf32>
    %416 = arith.addf %405, %415 : vector<1x512xf32>
    %c20_i32_161 = arith.constant 20 : i32
    %417 = tpu.dynamic_rotate %208 by %c20_i32_161 dim 1 : vector<2x512xf32>, i32 -> vector<2x512xf32>
    %c19 = arith.constant 19 : index
    %418 = memref.load %arg7[%c19] : memref<98xf32, #tpu.memory_space<smem>>
    %419 = vector.extract_strided_slice %417 {offsets = [0, 0], sizes = [1, 512], strides = [1, 1]} : vector<2x512xf32> to vector<1x512xf32>
    %420 = vector.broadcast %418 : f32 to vector<1x512xf32>
    %421 = arith.mulf %420, %419 : vector<1x512xf32>
    %c68 = arith.constant 68 : index
    %422 = memref.load %arg7[%c68] : memref<98xf32, #tpu.memory_space<smem>>
    %423 = vector.extract_strided_slice %417 {offsets = [1, 0], sizes = [1, 512], strides = [1, 1]} : vector<2x512xf32> to vector<1x512xf32>
    %424 = vector.broadcast %422 : f32 to vector<1x512xf32>
    %425 = arith.mulf %424, %423 : vector<1x512xf32>
    %426 = arith.addf %421, %425 : vector<1x512xf32>
    %427 = arith.addf %416, %426 : vector<1x512xf32>
    %c19_i32_162 = arith.constant 19 : i32
    %428 = tpu.dynamic_rotate %208 by %c19_i32_162 dim 1 : vector<2x512xf32>, i32 -> vector<2x512xf32>
    %c20 = arith.constant 20 : index
    %429 = memref.load %arg7[%c20] : memref<98xf32, #tpu.memory_space<smem>>
    %430 = vector.extract_strided_slice %428 {offsets = [0, 0], sizes = [1, 512], strides = [1, 1]} : vector<2x512xf32> to vector<1x512xf32>
    %431 = vector.broadcast %429 : f32 to vector<1x512xf32>
    %432 = arith.mulf %431, %430 : vector<1x512xf32>
    %c69 = arith.constant 69 : index
    %433 = memref.load %arg7[%c69] : memref<98xf32, #tpu.memory_space<smem>>
    %434 = vector.extract_strided_slice %428 {offsets = [1, 0], sizes = [1, 512], strides = [1, 1]} : vector<2x512xf32> to vector<1x512xf32>
    %435 = vector.broadcast %433 : f32 to vector<1x512xf32>
    %436 = arith.mulf %435, %434 : vector<1x512xf32>
    %437 = arith.addf %432, %436 : vector<1x512xf32>
    %438 = arith.addf %427, %437 : vector<1x512xf32>
    %c3_i32_163 = arith.constant 3 : i32
    %439 = tpu.dynamic_rotate %208 by %c3_i32_163 dim 1 : vector<2x512xf32>, i32 -> vector<2x512xf32>
    %c21 = arith.constant 21 : index
    %440 = memref.load %arg7[%c21] : memref<98xf32, #tpu.memory_space<smem>>
    %441 = vector.extract_strided_slice %439 {offsets = [0, 0], sizes = [1, 512], strides = [1, 1]} : vector<2x512xf32> to vector<1x512xf32>
    %442 = vector.broadcast %440 : f32 to vector<1x512xf32>
    %443 = arith.mulf %442, %441 : vector<1x512xf32>
    %c70 = arith.constant 70 : index
    %444 = memref.load %arg7[%c70] : memref<98xf32, #tpu.memory_space<smem>>
    %445 = vector.extract_strided_slice %439 {offsets = [1, 0], sizes = [1, 512], strides = [1, 1]} : vector<2x512xf32> to vector<1x512xf32>
    %446 = vector.broadcast %444 : f32 to vector<1x512xf32>
    %447 = arith.mulf %446, %445 : vector<1x512xf32>
    %448 = arith.addf %443, %447 : vector<1x512xf32>
    %449 = arith.addf %438, %448 : vector<1x512xf32>
    %c2_i32_164 = arith.constant 2 : i32
    %450 = tpu.dynamic_rotate %208 by %c2_i32_164 dim 1 : vector<2x512xf32>, i32 -> vector<2x512xf32>
    %c22 = arith.constant 22 : index
    %451 = memref.load %arg7[%c22] : memref<98xf32, #tpu.memory_space<smem>>
    %452 = vector.extract_strided_slice %450 {offsets = [0, 0], sizes = [1, 512], strides = [1, 1]} : vector<2x512xf32> to vector<1x512xf32>
    %453 = vector.broadcast %451 : f32 to vector<1x512xf32>
    %454 = arith.mulf %453, %452 : vector<1x512xf32>
    %c71 = arith.constant 71 : index
    %455 = memref.load %arg7[%c71] : memref<98xf32, #tpu.memory_space<smem>>
    %456 = vector.extract_strided_slice %450 {offsets = [1, 0], sizes = [1, 512], strides = [1, 1]} : vector<2x512xf32> to vector<1x512xf32>
    %457 = vector.broadcast %455 : f32 to vector<1x512xf32>
    %458 = arith.mulf %457, %456 : vector<1x512xf32>
    %459 = arith.addf %454, %458 : vector<1x512xf32>
    %460 = arith.addf %449, %459 : vector<1x512xf32>
    %c1_i32_165 = arith.constant 1 : i32
    %461 = tpu.dynamic_rotate %208 by %c1_i32_165 dim 1 : vector<2x512xf32>, i32 -> vector<2x512xf32>
    %c23 = arith.constant 23 : index
    %462 = memref.load %arg7[%c23] : memref<98xf32, #tpu.memory_space<smem>>
    %463 = vector.extract_strided_slice %461 {offsets = [0, 0], sizes = [1, 512], strides = [1, 1]} : vector<2x512xf32> to vector<1x512xf32>
    %464 = vector.broadcast %462 : f32 to vector<1x512xf32>
    %465 = arith.mulf %464, %463 : vector<1x512xf32>
    %c72_166 = arith.constant 72 : index
    %466 = memref.load %arg7[%c72_166] : memref<98xf32, #tpu.memory_space<smem>>
    %467 = vector.extract_strided_slice %461 {offsets = [1, 0], sizes = [1, 512], strides = [1, 1]} : vector<2x512xf32> to vector<1x512xf32>
    %468 = vector.broadcast %466 : f32 to vector<1x512xf32>
    %469 = arith.mulf %468, %467 : vector<1x512xf32>
    %470 = arith.addf %465, %469 : vector<1x512xf32>
    %471 = arith.addf %460, %470 : vector<1x512xf32>
    %c0_i32_167 = arith.constant 0 : i32
    %472 = tpu.dynamic_rotate %208 by %c0_i32_167 dim 1 : vector<2x512xf32>, i32 -> vector<2x512xf32>
    %c24_168 = arith.constant 24 : index
    %473 = memref.load %arg7[%c24_168] : memref<98xf32, #tpu.memory_space<smem>>
    %474 = vector.extract_strided_slice %472 {offsets = [0, 0], sizes = [1, 512], strides = [1, 1]} : vector<2x512xf32> to vector<1x512xf32>
    %475 = vector.broadcast %473 : f32 to vector<1x512xf32>
    %476 = arith.mulf %475, %474 : vector<1x512xf32>
    %c73 = arith.constant 73 : index
    %477 = memref.load %arg7[%c73] : memref<98xf32, #tpu.memory_space<smem>>
    %478 = vector.extract_strided_slice %472 {offsets = [1, 0], sizes = [1, 512], strides = [1, 1]} : vector<2x512xf32> to vector<1x512xf32>
    %479 = vector.broadcast %477 : f32 to vector<1x512xf32>
    %480 = arith.mulf %479, %478 : vector<1x512xf32>
    %481 = arith.addf %476, %480 : vector<1x512xf32>
    %482 = arith.addf %471, %481 : vector<1x512xf32>
    %c511_i32_169 = arith.constant 511 : i32
    %483 = tpu.dynamic_rotate %208 by %c511_i32_169 dim 1 : vector<2x512xf32>, i32 -> vector<2x512xf32>
    %c25 = arith.constant 25 : index
    %484 = memref.load %arg7[%c25] : memref<98xf32, #tpu.memory_space<smem>>
    %485 = vector.extract_strided_slice %483 {offsets = [0, 0], sizes = [1, 512], strides = [1, 1]} : vector<2x512xf32> to vector<1x512xf32>
    %486 = vector.broadcast %484 : f32 to vector<1x512xf32>
    %487 = arith.mulf %486, %485 : vector<1x512xf32>
    %c74 = arith.constant 74 : index
    %488 = memref.load %arg7[%c74] : memref<98xf32, #tpu.memory_space<smem>>
    %489 = vector.extract_strided_slice %483 {offsets = [1, 0], sizes = [1, 512], strides = [1, 1]} : vector<2x512xf32> to vector<1x512xf32>
    %490 = vector.broadcast %488 : f32 to vector<1x512xf32>
    %491 = arith.mulf %490, %489 : vector<1x512xf32>
    %492 = arith.addf %487, %491 : vector<1x512xf32>
    %493 = arith.addf %482, %492 : vector<1x512xf32>
    %c510_i32_170 = arith.constant 510 : i32
    %494 = tpu.dynamic_rotate %208 by %c510_i32_170 dim 1 : vector<2x512xf32>, i32 -> vector<2x512xf32>
    %c26 = arith.constant 26 : index
    %495 = memref.load %arg7[%c26] : memref<98xf32, #tpu.memory_space<smem>>
    %496 = vector.extract_strided_slice %494 {offsets = [0, 0], sizes = [1, 512], strides = [1, 1]} : vector<2x512xf32> to vector<1x512xf32>
    %497 = vector.broadcast %495 : f32 to vector<1x512xf32>
    %498 = arith.mulf %497, %496 : vector<1x512xf32>
    %c75 = arith.constant 75 : index
    %499 = memref.load %arg7[%c75] : memref<98xf32, #tpu.memory_space<smem>>
    %500 = vector.extract_strided_slice %494 {offsets = [1, 0], sizes = [1, 512], strides = [1, 1]} : vector<2x512xf32> to vector<1x512xf32>
    %501 = vector.broadcast %499 : f32 to vector<1x512xf32>
    %502 = arith.mulf %501, %500 : vector<1x512xf32>
    %503 = arith.addf %498, %502 : vector<1x512xf32>
    %504 = arith.addf %493, %503 : vector<1x512xf32>
    %c509_i32_171 = arith.constant 509 : i32
    %505 = tpu.dynamic_rotate %208 by %c509_i32_171 dim 1 : vector<2x512xf32>, i32 -> vector<2x512xf32>
    %c27 = arith.constant 27 : index
    %506 = memref.load %arg7[%c27] : memref<98xf32, #tpu.memory_space<smem>>
    %507 = vector.extract_strided_slice %505 {offsets = [0, 0], sizes = [1, 512], strides = [1, 1]} : vector<2x512xf32> to vector<1x512xf32>
    %508 = vector.broadcast %506 : f32 to vector<1x512xf32>
    %509 = arith.mulf %508, %507 : vector<1x512xf32>
    %c76 = arith.constant 76 : index
    %510 = memref.load %arg7[%c76] : memref<98xf32, #tpu.memory_space<smem>>
    %511 = vector.extract_strided_slice %505 {offsets = [1, 0], sizes = [1, 512], strides = [1, 1]} : vector<2x512xf32> to vector<1x512xf32>
    %512 = vector.broadcast %510 : f32 to vector<1x512xf32>
    %513 = arith.mulf %512, %511 : vector<1x512xf32>
    %514 = arith.addf %509, %513 : vector<1x512xf32>
    %515 = arith.addf %504, %514 : vector<1x512xf32>
    %c493_i32_172 = arith.constant 493 : i32
    %516 = tpu.dynamic_rotate %208 by %c493_i32_172 dim 1 : vector<2x512xf32>, i32 -> vector<2x512xf32>
    %c28 = arith.constant 28 : index
    %517 = memref.load %arg7[%c28] : memref<98xf32, #tpu.memory_space<smem>>
    %518 = vector.extract_strided_slice %516 {offsets = [0, 0], sizes = [1, 512], strides = [1, 1]} : vector<2x512xf32> to vector<1x512xf32>
    %519 = vector.broadcast %517 : f32 to vector<1x512xf32>
    %520 = arith.mulf %519, %518 : vector<1x512xf32>
    %c77 = arith.constant 77 : index
    %521 = memref.load %arg7[%c77] : memref<98xf32, #tpu.memory_space<smem>>
    %522 = vector.extract_strided_slice %516 {offsets = [1, 0], sizes = [1, 512], strides = [1, 1]} : vector<2x512xf32> to vector<1x512xf32>
    %523 = vector.broadcast %521 : f32 to vector<1x512xf32>
    %524 = arith.mulf %523, %522 : vector<1x512xf32>
    %525 = arith.addf %520, %524 : vector<1x512xf32>
    %526 = arith.addf %515, %525 : vector<1x512xf32>
    %c492_i32_173 = arith.constant 492 : i32
    %527 = tpu.dynamic_rotate %208 by %c492_i32_173 dim 1 : vector<2x512xf32>, i32 -> vector<2x512xf32>
    %c29 = arith.constant 29 : index
    %528 = memref.load %arg7[%c29] : memref<98xf32, #tpu.memory_space<smem>>
    %529 = vector.extract_strided_slice %527 {offsets = [0, 0], sizes = [1, 512], strides = [1, 1]} : vector<2x512xf32> to vector<1x512xf32>
    %530 = vector.broadcast %528 : f32 to vector<1x512xf32>
    %531 = arith.mulf %530, %529 : vector<1x512xf32>
    %c78 = arith.constant 78 : index
    %532 = memref.load %arg7[%c78] : memref<98xf32, #tpu.memory_space<smem>>
    %533 = vector.extract_strided_slice %527 {offsets = [1, 0], sizes = [1, 512], strides = [1, 1]} : vector<2x512xf32> to vector<1x512xf32>
    %534 = vector.broadcast %532 : f32 to vector<1x512xf32>
    %535 = arith.mulf %534, %533 : vector<1x512xf32>
    %536 = arith.addf %531, %535 : vector<1x512xf32>
    %537 = arith.addf %526, %536 : vector<1x512xf32>
    %c491_i32_174 = arith.constant 491 : i32
    %538 = tpu.dynamic_rotate %208 by %c491_i32_174 dim 1 : vector<2x512xf32>, i32 -> vector<2x512xf32>
    %c30 = arith.constant 30 : index
    %539 = memref.load %arg7[%c30] : memref<98xf32, #tpu.memory_space<smem>>
    %540 = vector.extract_strided_slice %538 {offsets = [0, 0], sizes = [1, 512], strides = [1, 1]} : vector<2x512xf32> to vector<1x512xf32>
    %541 = vector.broadcast %539 : f32 to vector<1x512xf32>
    %542 = arith.mulf %541, %540 : vector<1x512xf32>
    %c79 = arith.constant 79 : index
    %543 = memref.load %arg7[%c79] : memref<98xf32, #tpu.memory_space<smem>>
    %544 = vector.extract_strided_slice %538 {offsets = [1, 0], sizes = [1, 512], strides = [1, 1]} : vector<2x512xf32> to vector<1x512xf32>
    %545 = vector.broadcast %543 : f32 to vector<1x512xf32>
    %546 = arith.mulf %545, %544 : vector<1x512xf32>
    %547 = arith.addf %542, %546 : vector<1x512xf32>
    %548 = arith.addf %537, %547 : vector<1x512xf32>
    %c490_i32_175 = arith.constant 490 : i32
    %549 = tpu.dynamic_rotate %208 by %c490_i32_175 dim 1 : vector<2x512xf32>, i32 -> vector<2x512xf32>
    %c31 = arith.constant 31 : index
    %550 = memref.load %arg7[%c31] : memref<98xf32, #tpu.memory_space<smem>>
    %551 = vector.extract_strided_slice %549 {offsets = [0, 0], sizes = [1, 512], strides = [1, 1]} : vector<2x512xf32> to vector<1x512xf32>
    %552 = vector.broadcast %550 : f32 to vector<1x512xf32>
    %553 = arith.mulf %552, %551 : vector<1x512xf32>
    %c80_176 = arith.constant 80 : index
    %554 = memref.load %arg7[%c80_176] : memref<98xf32, #tpu.memory_space<smem>>
    %555 = vector.extract_strided_slice %549 {offsets = [1, 0], sizes = [1, 512], strides = [1, 1]} : vector<2x512xf32> to vector<1x512xf32>
    %556 = vector.broadcast %554 : f32 to vector<1x512xf32>
    %557 = arith.mulf %556, %555 : vector<1x512xf32>
    %558 = arith.addf %553, %557 : vector<1x512xf32>
    %559 = arith.addf %548, %558 : vector<1x512xf32>
    %c489_i32_177 = arith.constant 489 : i32
    %560 = tpu.dynamic_rotate %208 by %c489_i32_177 dim 1 : vector<2x512xf32>, i32 -> vector<2x512xf32>
    %c32_178 = arith.constant 32 : index
    %561 = memref.load %arg7[%c32_178] : memref<98xf32, #tpu.memory_space<smem>>
    %562 = vector.extract_strided_slice %560 {offsets = [0, 0], sizes = [1, 512], strides = [1, 1]} : vector<2x512xf32> to vector<1x512xf32>
    %563 = vector.broadcast %561 : f32 to vector<1x512xf32>
    %564 = arith.mulf %563, %562 : vector<1x512xf32>
    %c81 = arith.constant 81 : index
    %565 = memref.load %arg7[%c81] : memref<98xf32, #tpu.memory_space<smem>>
    %566 = vector.extract_strided_slice %560 {offsets = [1, 0], sizes = [1, 512], strides = [1, 1]} : vector<2x512xf32> to vector<1x512xf32>
    %567 = vector.broadcast %565 : f32 to vector<1x512xf32>
    %568 = arith.mulf %567, %566 : vector<1x512xf32>
    %569 = arith.addf %564, %568 : vector<1x512xf32>
    %570 = arith.addf %559, %569 : vector<1x512xf32>
    %c488_i32_179 = arith.constant 488 : i32
    %571 = tpu.dynamic_rotate %208 by %c488_i32_179 dim 1 : vector<2x512xf32>, i32 -> vector<2x512xf32>
    %c33 = arith.constant 33 : index
    %572 = memref.load %arg7[%c33] : memref<98xf32, #tpu.memory_space<smem>>
    %573 = vector.extract_strided_slice %571 {offsets = [0, 0], sizes = [1, 512], strides = [1, 1]} : vector<2x512xf32> to vector<1x512xf32>
    %574 = vector.broadcast %572 : f32 to vector<1x512xf32>
    %575 = arith.mulf %574, %573 : vector<1x512xf32>
    %c82 = arith.constant 82 : index
    %576 = memref.load %arg7[%c82] : memref<98xf32, #tpu.memory_space<smem>>
    %577 = vector.extract_strided_slice %571 {offsets = [1, 0], sizes = [1, 512], strides = [1, 1]} : vector<2x512xf32> to vector<1x512xf32>
    %578 = vector.broadcast %576 : f32 to vector<1x512xf32>
    %579 = arith.mulf %578, %577 : vector<1x512xf32>
    %580 = arith.addf %575, %579 : vector<1x512xf32>
    %581 = arith.addf %570, %580 : vector<1x512xf32>
    %c487_i32_180 = arith.constant 487 : i32
    %582 = tpu.dynamic_rotate %208 by %c487_i32_180 dim 1 : vector<2x512xf32>, i32 -> vector<2x512xf32>
    %c34 = arith.constant 34 : index
    %583 = memref.load %arg7[%c34] : memref<98xf32, #tpu.memory_space<smem>>
    %584 = vector.extract_strided_slice %582 {offsets = [0, 0], sizes = [1, 512], strides = [1, 1]} : vector<2x512xf32> to vector<1x512xf32>
    %585 = vector.broadcast %583 : f32 to vector<1x512xf32>
    %586 = arith.mulf %585, %584 : vector<1x512xf32>
    %c83 = arith.constant 83 : index
    %587 = memref.load %arg7[%c83] : memref<98xf32, #tpu.memory_space<smem>>
    %588 = vector.extract_strided_slice %582 {offsets = [1, 0], sizes = [1, 512], strides = [1, 1]} : vector<2x512xf32> to vector<1x512xf32>
    %589 = vector.broadcast %587 : f32 to vector<1x512xf32>
    %590 = arith.mulf %589, %588 : vector<1x512xf32>
    %591 = arith.addf %586, %590 : vector<1x512xf32>
    %592 = arith.addf %581, %591 : vector<1x512xf32>
    %c471_i32_181 = arith.constant 471 : i32
    %593 = tpu.dynamic_rotate %208 by %c471_i32_181 dim 1 : vector<2x512xf32>, i32 -> vector<2x512xf32>
    %c35 = arith.constant 35 : index
    %594 = memref.load %arg7[%c35] : memref<98xf32, #tpu.memory_space<smem>>
    %595 = vector.extract_strided_slice %593 {offsets = [0, 0], sizes = [1, 512], strides = [1, 1]} : vector<2x512xf32> to vector<1x512xf32>
    %596 = vector.broadcast %594 : f32 to vector<1x512xf32>
    %597 = arith.mulf %596, %595 : vector<1x512xf32>
    %c84 = arith.constant 84 : index
    %598 = memref.load %arg7[%c84] : memref<98xf32, #tpu.memory_space<smem>>
    %599 = vector.extract_strided_slice %593 {offsets = [1, 0], sizes = [1, 512], strides = [1, 1]} : vector<2x512xf32> to vector<1x512xf32>
    %600 = vector.broadcast %598 : f32 to vector<1x512xf32>
    %601 = arith.mulf %600, %599 : vector<1x512xf32>
    %602 = arith.addf %597, %601 : vector<1x512xf32>
    %603 = arith.addf %592, %602 : vector<1x512xf32>
    %c470_i32_182 = arith.constant 470 : i32
    %604 = tpu.dynamic_rotate %208 by %c470_i32_182 dim 1 : vector<2x512xf32>, i32 -> vector<2x512xf32>
    %c36 = arith.constant 36 : index
    %605 = memref.load %arg7[%c36] : memref<98xf32, #tpu.memory_space<smem>>
    %606 = vector.extract_strided_slice %604 {offsets = [0, 0], sizes = [1, 512], strides = [1, 1]} : vector<2x512xf32> to vector<1x512xf32>
    %607 = vector.broadcast %605 : f32 to vector<1x512xf32>
    %608 = arith.mulf %607, %606 : vector<1x512xf32>
    %c85 = arith.constant 85 : index
    %609 = memref.load %arg7[%c85] : memref<98xf32, #tpu.memory_space<smem>>
    %610 = vector.extract_strided_slice %604 {offsets = [1, 0], sizes = [1, 512], strides = [1, 1]} : vector<2x512xf32> to vector<1x512xf32>
    %611 = vector.broadcast %609 : f32 to vector<1x512xf32>
    %612 = arith.mulf %611, %610 : vector<1x512xf32>
    %613 = arith.addf %608, %612 : vector<1x512xf32>
    %614 = arith.addf %603, %613 : vector<1x512xf32>
    %c469_i32_183 = arith.constant 469 : i32
    %615 = tpu.dynamic_rotate %208 by %c469_i32_183 dim 1 : vector<2x512xf32>, i32 -> vector<2x512xf32>
    %c37 = arith.constant 37 : index
    %616 = memref.load %arg7[%c37] : memref<98xf32, #tpu.memory_space<smem>>
    %617 = vector.extract_strided_slice %615 {offsets = [0, 0], sizes = [1, 512], strides = [1, 1]} : vector<2x512xf32> to vector<1x512xf32>
    %618 = vector.broadcast %616 : f32 to vector<1x512xf32>
    %619 = arith.mulf %618, %617 : vector<1x512xf32>
    %c86 = arith.constant 86 : index
    %620 = memref.load %arg7[%c86] : memref<98xf32, #tpu.memory_space<smem>>
    %621 = vector.extract_strided_slice %615 {offsets = [1, 0], sizes = [1, 512], strides = [1, 1]} : vector<2x512xf32> to vector<1x512xf32>
    %622 = vector.broadcast %620 : f32 to vector<1x512xf32>
    %623 = arith.mulf %622, %621 : vector<1x512xf32>
    %624 = arith.addf %619, %623 : vector<1x512xf32>
    %625 = arith.addf %614, %624 : vector<1x512xf32>
    %c468_i32_184 = arith.constant 468 : i32
    %626 = tpu.dynamic_rotate %208 by %c468_i32_184 dim 1 : vector<2x512xf32>, i32 -> vector<2x512xf32>
    %c38 = arith.constant 38 : index
    %627 = memref.load %arg7[%c38] : memref<98xf32, #tpu.memory_space<smem>>
    %628 = vector.extract_strided_slice %626 {offsets = [0, 0], sizes = [1, 512], strides = [1, 1]} : vector<2x512xf32> to vector<1x512xf32>
    %629 = vector.broadcast %627 : f32 to vector<1x512xf32>
    %630 = arith.mulf %629, %628 : vector<1x512xf32>
    %c87 = arith.constant 87 : index
    %631 = memref.load %arg7[%c87] : memref<98xf32, #tpu.memory_space<smem>>
    %632 = vector.extract_strided_slice %626 {offsets = [1, 0], sizes = [1, 512], strides = [1, 1]} : vector<2x512xf32> to vector<1x512xf32>
    %633 = vector.broadcast %631 : f32 to vector<1x512xf32>
    %634 = arith.mulf %633, %632 : vector<1x512xf32>
    %635 = arith.addf %630, %634 : vector<1x512xf32>
    %636 = arith.addf %625, %635 : vector<1x512xf32>
    %c467_i32_185 = arith.constant 467 : i32
    %637 = tpu.dynamic_rotate %208 by %c467_i32_185 dim 1 : vector<2x512xf32>, i32 -> vector<2x512xf32>
    %c39 = arith.constant 39 : index
    %638 = memref.load %arg7[%c39] : memref<98xf32, #tpu.memory_space<smem>>
    %639 = vector.extract_strided_slice %637 {offsets = [0, 0], sizes = [1, 512], strides = [1, 1]} : vector<2x512xf32> to vector<1x512xf32>
    %640 = vector.broadcast %638 : f32 to vector<1x512xf32>
    %641 = arith.mulf %640, %639 : vector<1x512xf32>
    %c88_186 = arith.constant 88 : index
    %642 = memref.load %arg7[%c88_186] : memref<98xf32, #tpu.memory_space<smem>>
    %643 = vector.extract_strided_slice %637 {offsets = [1, 0], sizes = [1, 512], strides = [1, 1]} : vector<2x512xf32> to vector<1x512xf32>
    %644 = vector.broadcast %642 : f32 to vector<1x512xf32>
    %645 = arith.mulf %644, %643 : vector<1x512xf32>
    %646 = arith.addf %641, %645 : vector<1x512xf32>
    %647 = arith.addf %636, %646 : vector<1x512xf32>
    %c466_i32_187 = arith.constant 466 : i32
    %648 = tpu.dynamic_rotate %208 by %c466_i32_187 dim 1 : vector<2x512xf32>, i32 -> vector<2x512xf32>
    %c40_188 = arith.constant 40 : index
    %649 = memref.load %arg7[%c40_188] : memref<98xf32, #tpu.memory_space<smem>>
    %650 = vector.extract_strided_slice %648 {offsets = [0, 0], sizes = [1, 512], strides = [1, 1]} : vector<2x512xf32> to vector<1x512xf32>
    %651 = vector.broadcast %649 : f32 to vector<1x512xf32>
    %652 = arith.mulf %651, %650 : vector<1x512xf32>
    %c89 = arith.constant 89 : index
    %653 = memref.load %arg7[%c89] : memref<98xf32, #tpu.memory_space<smem>>
    %654 = vector.extract_strided_slice %648 {offsets = [1, 0], sizes = [1, 512], strides = [1, 1]} : vector<2x512xf32> to vector<1x512xf32>
    %655 = vector.broadcast %653 : f32 to vector<1x512xf32>
    %656 = arith.mulf %655, %654 : vector<1x512xf32>
    %657 = arith.addf %652, %656 : vector<1x512xf32>
    %658 = arith.addf %647, %657 : vector<1x512xf32>
    %c465_i32_189 = arith.constant 465 : i32
    %659 = tpu.dynamic_rotate %208 by %c465_i32_189 dim 1 : vector<2x512xf32>, i32 -> vector<2x512xf32>
    %c41 = arith.constant 41 : index
    %660 = memref.load %arg7[%c41] : memref<98xf32, #tpu.memory_space<smem>>
    %661 = vector.extract_strided_slice %659 {offsets = [0, 0], sizes = [1, 512], strides = [1, 1]} : vector<2x512xf32> to vector<1x512xf32>
    %662 = vector.broadcast %660 : f32 to vector<1x512xf32>
    %663 = arith.mulf %662, %661 : vector<1x512xf32>
    %c90 = arith.constant 90 : index
    %664 = memref.load %arg7[%c90] : memref<98xf32, #tpu.memory_space<smem>>
    %665 = vector.extract_strided_slice %659 {offsets = [1, 0], sizes = [1, 512], strides = [1, 1]} : vector<2x512xf32> to vector<1x512xf32>
    %666 = vector.broadcast %664 : f32 to vector<1x512xf32>
    %667 = arith.mulf %666, %665 : vector<1x512xf32>
    %668 = arith.addf %663, %667 : vector<1x512xf32>
    %669 = arith.addf %658, %668 : vector<1x512xf32>
    %c449_i32_190 = arith.constant 449 : i32
    %670 = tpu.dynamic_rotate %208 by %c449_i32_190 dim 1 : vector<2x512xf32>, i32 -> vector<2x512xf32>
    %c42 = arith.constant 42 : index
    %671 = memref.load %arg7[%c42] : memref<98xf32, #tpu.memory_space<smem>>
    %672 = vector.extract_strided_slice %670 {offsets = [0, 0], sizes = [1, 512], strides = [1, 1]} : vector<2x512xf32> to vector<1x512xf32>
    %673 = vector.broadcast %671 : f32 to vector<1x512xf32>
    %674 = arith.mulf %673, %672 : vector<1x512xf32>
    %c91 = arith.constant 91 : index
    %675 = memref.load %arg7[%c91] : memref<98xf32, #tpu.memory_space<smem>>
    %676 = vector.extract_strided_slice %670 {offsets = [1, 0], sizes = [1, 512], strides = [1, 1]} : vector<2x512xf32> to vector<1x512xf32>
    %677 = vector.broadcast %675 : f32 to vector<1x512xf32>
    %678 = arith.mulf %677, %676 : vector<1x512xf32>
    %679 = arith.addf %674, %678 : vector<1x512xf32>
    %680 = arith.addf %669, %679 : vector<1x512xf32>
    %c448_i32_191 = arith.constant 448 : i32
    %681 = tpu.dynamic_rotate %208 by %c448_i32_191 dim 1 : vector<2x512xf32>, i32 -> vector<2x512xf32>
    %c43 = arith.constant 43 : index
    %682 = memref.load %arg7[%c43] : memref<98xf32, #tpu.memory_space<smem>>
    %683 = vector.extract_strided_slice %681 {offsets = [0, 0], sizes = [1, 512], strides = [1, 1]} : vector<2x512xf32> to vector<1x512xf32>
    %684 = vector.broadcast %682 : f32 to vector<1x512xf32>
    %685 = arith.mulf %684, %683 : vector<1x512xf32>
    %c92 = arith.constant 92 : index
    %686 = memref.load %arg7[%c92] : memref<98xf32, #tpu.memory_space<smem>>
    %687 = vector.extract_strided_slice %681 {offsets = [1, 0], sizes = [1, 512], strides = [1, 1]} : vector<2x512xf32> to vector<1x512xf32>
    %688 = vector.broadcast %686 : f32 to vector<1x512xf32>
    %689 = arith.mulf %688, %687 : vector<1x512xf32>
    %690 = arith.addf %685, %689 : vector<1x512xf32>
    %691 = arith.addf %680, %690 : vector<1x512xf32>
    %c447_i32_192 = arith.constant 447 : i32
    %692 = tpu.dynamic_rotate %208 by %c447_i32_192 dim 1 : vector<2x512xf32>, i32 -> vector<2x512xf32>
    %c44 = arith.constant 44 : index
    %693 = memref.load %arg7[%c44] : memref<98xf32, #tpu.memory_space<smem>>
    %694 = vector.extract_strided_slice %692 {offsets = [0, 0], sizes = [1, 512], strides = [1, 1]} : vector<2x512xf32> to vector<1x512xf32>
    %695 = vector.broadcast %693 : f32 to vector<1x512xf32>
    %696 = arith.mulf %695, %694 : vector<1x512xf32>
    %c93 = arith.constant 93 : index
    %697 = memref.load %arg7[%c93] : memref<98xf32, #tpu.memory_space<smem>>
    %698 = vector.extract_strided_slice %692 {offsets = [1, 0], sizes = [1, 512], strides = [1, 1]} : vector<2x512xf32> to vector<1x512xf32>
    %699 = vector.broadcast %697 : f32 to vector<1x512xf32>
    %700 = arith.mulf %699, %698 : vector<1x512xf32>
    %701 = arith.addf %696, %700 : vector<1x512xf32>
    %702 = arith.addf %691, %701 : vector<1x512xf32>
    %c446_i32_193 = arith.constant 446 : i32
    %703 = tpu.dynamic_rotate %208 by %c446_i32_193 dim 1 : vector<2x512xf32>, i32 -> vector<2x512xf32>
    %c45 = arith.constant 45 : index
    %704 = memref.load %arg7[%c45] : memref<98xf32, #tpu.memory_space<smem>>
    %705 = vector.extract_strided_slice %703 {offsets = [0, 0], sizes = [1, 512], strides = [1, 1]} : vector<2x512xf32> to vector<1x512xf32>
    %706 = vector.broadcast %704 : f32 to vector<1x512xf32>
    %707 = arith.mulf %706, %705 : vector<1x512xf32>
    %c94 = arith.constant 94 : index
    %708 = memref.load %arg7[%c94] : memref<98xf32, #tpu.memory_space<smem>>
    %709 = vector.extract_strided_slice %703 {offsets = [1, 0], sizes = [1, 512], strides = [1, 1]} : vector<2x512xf32> to vector<1x512xf32>
    %710 = vector.broadcast %708 : f32 to vector<1x512xf32>
    %711 = arith.mulf %710, %709 : vector<1x512xf32>
    %712 = arith.addf %707, %711 : vector<1x512xf32>
    %713 = arith.addf %702, %712 : vector<1x512xf32>
    %c445_i32_194 = arith.constant 445 : i32
    %714 = tpu.dynamic_rotate %208 by %c445_i32_194 dim 1 : vector<2x512xf32>, i32 -> vector<2x512xf32>
    %c46 = arith.constant 46 : index
    %715 = memref.load %arg7[%c46] : memref<98xf32, #tpu.memory_space<smem>>
    %716 = vector.extract_strided_slice %714 {offsets = [0, 0], sizes = [1, 512], strides = [1, 1]} : vector<2x512xf32> to vector<1x512xf32>
    %717 = vector.broadcast %715 : f32 to vector<1x512xf32>
    %718 = arith.mulf %717, %716 : vector<1x512xf32>
    %c95 = arith.constant 95 : index
    %719 = memref.load %arg7[%c95] : memref<98xf32, #tpu.memory_space<smem>>
    %720 = vector.extract_strided_slice %714 {offsets = [1, 0], sizes = [1, 512], strides = [1, 1]} : vector<2x512xf32> to vector<1x512xf32>
    %721 = vector.broadcast %719 : f32 to vector<1x512xf32>
    %722 = arith.mulf %721, %720 : vector<1x512xf32>
    %723 = arith.addf %718, %722 : vector<1x512xf32>
    %724 = arith.addf %713, %723 : vector<1x512xf32>
    %c444_i32_195 = arith.constant 444 : i32
    %725 = tpu.dynamic_rotate %208 by %c444_i32_195 dim 1 : vector<2x512xf32>, i32 -> vector<2x512xf32>
    %c47 = arith.constant 47 : index
    %726 = memref.load %arg7[%c47] : memref<98xf32, #tpu.memory_space<smem>>
    %727 = vector.extract_strided_slice %725 {offsets = [0, 0], sizes = [1, 512], strides = [1, 1]} : vector<2x512xf32> to vector<1x512xf32>
    %728 = vector.broadcast %726 : f32 to vector<1x512xf32>
    %729 = arith.mulf %728, %727 : vector<1x512xf32>
    %c96_196 = arith.constant 96 : index
    %730 = memref.load %arg7[%c96_196] : memref<98xf32, #tpu.memory_space<smem>>
    %731 = vector.extract_strided_slice %725 {offsets = [1, 0], sizes = [1, 512], strides = [1, 1]} : vector<2x512xf32> to vector<1x512xf32>
    %732 = vector.broadcast %730 : f32 to vector<1x512xf32>
    %733 = arith.mulf %732, %731 : vector<1x512xf32>
    %734 = arith.addf %729, %733 : vector<1x512xf32>
    %735 = arith.addf %724, %734 : vector<1x512xf32>
    %c443_i32_197 = arith.constant 443 : i32
    %736 = tpu.dynamic_rotate %208 by %c443_i32_197 dim 1 : vector<2x512xf32>, i32 -> vector<2x512xf32>
    %c48_198 = arith.constant 48 : index
    %737 = memref.load %arg7[%c48_198] : memref<98xf32, #tpu.memory_space<smem>>
    %738 = vector.extract_strided_slice %736 {offsets = [0, 0], sizes = [1, 512], strides = [1, 1]} : vector<2x512xf32> to vector<1x512xf32>
    %739 = vector.broadcast %737 : f32 to vector<1x512xf32>
    %740 = arith.mulf %739, %738 : vector<1x512xf32>
    %c97 = arith.constant 97 : index
    %741 = memref.load %arg7[%c97] : memref<98xf32, #tpu.memory_space<smem>>
    %742 = vector.extract_strided_slice %736 {offsets = [1, 0], sizes = [1, 512], strides = [1, 1]} : vector<2x512xf32> to vector<1x512xf32>
    %743 = vector.broadcast %741 : f32 to vector<1x512xf32>
    %744 = arith.mulf %743, %742 : vector<1x512xf32>
    %745 = arith.addf %740, %744 : vector<1x512xf32>
    %746 = arith.addf %735, %745 : vector<1x512xf32>
    %747 = arith.negf %746 : vector<1x512xf32>
    %748 = math.exp %747 : vector<1x512xf32>
    %cst_199 = arith.constant 1.000000e+00 : f32
    %749 = vector.broadcast %cst_199 : f32 to vector<1x512xf32>
    %750 = arith.addf %749, %748 : vector<1x512xf32>
    %751 = arith.divf %749, %750 : vector<1x512xf32>
    %752 = arith.mulf %751, %746 : vector<1x512xf32>
    %c0_200 = arith.constant 0 : index
    %c0_201 = arith.constant 0 : index
    %753 = vector.load %arg8[%c0_200, %c0_201] : memref<1x512xf32, #tpu.memory_space<vmem>>, vector<1x512xf32>
    tpu.vector_store %arg8[%c0_200, %c0_201], %752 {strides = array<i32>} : memref<1x512xf32, #tpu.memory_space<vmem>>, vector<1x512xf32>,
    return
  }
  func.func @transform_0(%arg0: i32) -> (i32, i32) {
    %c0_i32 = arith.constant 0 : i32
    %c0_i32_0 = arith.constant 0 : i32
    return %c0_i32, %arg0 : i32, i32
  }
  func.func @transform_1(%arg0: i32) -> (i32, i32) {
    %c0_i32 = arith.constant 0 : i32
    %c0_i32_0 = arith.constant 0 : i32
    return %c0_i32, %arg0 : i32, i32
  }
  func.func @transform_2(%arg0: i32) -> (i32, i32) {
    %c0_i32 = arith.constant 0 : i32
    %c0_i32_0 = arith.constant 0 : i32
    %c0_i32_1 = arith.constant 0 : i32
    return %c0_i32, %c0_i32_0 : i32, i32
  }
  func.func @transform_3(%arg0: i32) -> (i32, i32) {
    %c0_i32 = arith.constant 0 : i32
    %c0_i32_0 = arith.constant 0 : i32
    %c0_i32_1 = arith.constant 0 : i32
    return %c0_i32, %c0_i32_0 : i32, i32
  }
  func.func @transform_4(%arg0: i32) -> (i32, i32) {
    %c0_i32 = arith.constant 0 : i32
    %c0_i32_0 = arith.constant 0 : i32
    %c0_i32_1 = arith.constant 0 : i32
    return %c0_i32, %c0_i32_0 : i32, i32
  }
  func.func @transform_5(%arg0: i32) -> (i32, i32) {
    %c0_i32 = arith.constant 0 : i32
    %c0_i32_0 = arith.constant 0 : i32
    %c0_i32_1 = arith.constant 0 : i32
    return %c0_i32, %c0_i32_0 : i32, i32
  }
  func.func @transform_6(%arg0: i32) -> i32 {
    %c0_i32 = arith.constant 0 : i32
    %c0_i32_0 = arith.constant 0 : i32
    return %c0_i32 : i32
  }
  func.func @transform_7(%arg0: i32) -> (i32, i32) {
    %c0_i32 = arith.constant 0 : i32
    %c0_i32_0 = arith.constant 0 : i32
    return %c0_i32, %arg0 : i32, i32
  }
}

</mosaic_0001>

<llo_original>
// kernel: tpu_custom_call.1
$region0: #{tpu_custom_call.1}
  #allocation0 [shape = 'u32[]', space=smem, size = 0x4, offset = 0x4, fixed_abs, tag = 'smem constant byte address 0x4 - core index']
  #allocation1 [shape = 'u32[144,128]{1,0:T(1,128)}', space=vmem, size = 0x12000, scoped, tag = 'internal scratch']
  #allocation2 [shape = 'bf16[136,512]{1,0:T(8,128)(2,1)}', space=vmem, size = 0x22000, scoped, tag = 'scratch operand']
  %s0 = inlined_call_operand.hbm [shape: f32[8,1024], index: 0, kind: input, shape index: {}]
  %s1 = inlined_call_operand.hbm [shape: f32[8,1024], index: 1, kind: input, shape index: {}]
  %s2 = inlined_call_operand.hbm [shape: f32[1,512], index: 2, kind: input, shape index: {}]
  %s3 = inlined_call_operand.hbm [shape: bf16[8,72], index: 3, kind: input, shape index: {}]
  %s4 = inlined_call_operand.vmem [shape: f32[8,1], index: 4, kind: input, shape index: {}]
  %s5 = inlined_call_operand.vmem [shape: bf16[8,392], index: 5, kind: input, shape index: {}]
  %s6 = inlined_call_operand.vmem [shape: f32[98], index: 6, kind: input, shape index: {}]
  %s7 = inlined_call_operand.hbm [shape: f32[1,1024], index: 7, kind: output, shape index: {}]
  %s8 = sld [smem:[#allocation0]]
  $region81: #{tpu_custom_call.1} parent=0
    _
  %s10 = ssub.s32 1, %s8
  %s11 = scalar_select 0, %s10, %s8
  $region1: #{tpu_custom_call.1} parent=0
    #allocation3 [shape = 'u8[32768]{0}', space=vmem, size = 0x8000, scoped, tag = 'input window, operand 0']
    #allocation4 [shape = 's32[2]{0}', space=sflag, size = 0x8, scoped, tag = 'scoped memory for tpu_custom_call.1']
    #allocation5 [shape = 's32[2]{0}', space=sflag, size = 0x8, scoped, tag = 'scoped memory for tpu_custom_call.1']
    #allocation6 [shape = 's32[2]{0}', space=sflag, size = 0x8, scoped, tag = 'scoped memory for tpu_custom_call.1']
    #allocation7 [shape = 'u8[32768]{0}', space=vmem, size = 0x8000, scoped, tag = 'input window, operand 1']
    #allocation8 [shape = 's32[2]{0}', space=sflag, size = 0x8, scoped, tag = 'scoped memory for tpu_custom_call.1']
    #allocation9 [shape = 'u8[2048]{0}', space=vmem, size = 0x800, scoped, tag = 'input window, operand 2, single buffered']
    #allocation10 [shape = 'u8[2048]{0}', space=vmem, size = 0x800, scoped, tag = 'input window, operand 3, single buffered']
    #allocation11 [shape = 's32[1]{0}', space=sflag, size = 0x4, scoped, tag = 'scoped memory for tpu_custom_call.1']
    #allocation12 [shape = 'u8[512]{0}', space=smem, size = 0x200, scoped, tag = 'input window, operand 6, single buffered']
    #allocation13 [shape = 'u8[4096]{0}', space=vmem, size = 0x1000, scoped, tag = 'output window, operand 0']
    %12 = vsyncpa [#allocation4], 0
    %s13 = scalar_lea.sflag [#allocation4], 1
    %14 = vsyncpa %s13, 0
    %15 = vsyncpa [#allocation8], 0
    %s16 = scalar_lea.sflag [#allocation8], 1
    %17 = vsyncpa %s16, 0
    %18 = vsyncpa [#allocation11], 0
    %19 = vsyncpa [#allocation6], 0
    %20 = vsyncpa [#allocation5], 0
    %s21 = scalar_lea.sflag [#allocation5], 1
    %22 = vsyncpa %s21, 0
    loop: start=0, step=1, limit=4
    $region2: #{tpu_custom_call.1} parent=1 // loop_pre_header
      _
    $region3: #{tpu_custom_call.1} parent=1 // loop_header
      %s24 = sphi 0, %s28
      %p25 = scmp.ge.s32.totalorder %s24, 4
      %s34 = sphi 0, %s36
      %s37 = sphi 0, %s34
      %s38 = sphi 0, %s37
      %s54 = sphi 0, %s38
      %s60 = sphi 0, %s62
      %s63 = sphi 0, %s60
      %s64 = sphi 0, %s63
      %s80 = sphi 0, %s64
      %s84 = sphi 0, %s84
      %s86 = sphi 0, %s84
      %s87 = sphi 0, %s86
      %s101 = sphi 0, %s87
      %s105 = sphi 0, %s105
      %s107 = sphi 0, %s105
      %s108 = sphi 0, %s107
      %s122 = sphi 0, %s108
      %s126 = sphi 0, %s126
      %s128 = sphi 0, %s126
      %s129 = sphi 0, %s128
      %s143 = sphi 0, %s129
      %s147 = sphi 0, %s147
      %s149 = sphi 0, %s147
      %s150 = sphi 0, %s149
      %s164 = sphi 0, %s150
      %s168 = sphi 0, %s168
      %s170 = sphi 0, %s168
      %s171 = sphi 0, %s170
      %s185 = sphi 0, %s171
      %s191 = sphi 0, %s193
      %s194 = sphi 0, %s191
      %s195 = sphi 0, %s194
      %s211 = sphi 0, %s195
    $region4: #{tpu_custom_call.1} parent=1 // loop_header_branch
      %27 = sbr.rel (%p25) target = $region8
    $region5: #{tpu_custom_call.1} parent=1 // loop_body
      %s29 = ssub.s32 %s24, 1
      %s30 = ssub.s32 %s24, 2
      %s31 = sadd.s32 %s24, 1
      %s32 = ssub.s32 %s24, %s31
      %p33 = scmp.eq.s32.totalorder %s32, 0
      %s35 = sadd.s32 %s34, 1
      %s36 = scalar_select %p33, %s34, %s35
      %p39 = pneg %p33
      %p40 = scmp.eq.s32.totalorder %s24, 1
      %p41 = por %p39, %p40
      %p42 = scmp.ne.s32.totalorder %s34, %s37
      %p43 = scmp.eq.s32.totalorder %s24, 0
      %p44 = por %p42, %p43
      %p45 = scmp.ne.s32.totalorder %s34, %s37
      %p46 = scmp.eq.s32.totalorder %s29, 1
      %p47 = por %p45, %p46
      %p48 = scmp.ne.s32.totalorder %s37, %s38
      %p49 = scmp.eq.s32.totalorder %s29, 0
      %p50 = por %p48, %p49
      %p51 = scmp.ne.s32.totalorder %s37, %s38
      %p52 = scmp.eq.s32.totalorder %s30, 1
      %p53 = por %p51, %p52
      %p55 = scmp.ne.s32.totalorder %s38, %s54
      %p56 = scmp.eq.s32.totalorder %s30, 0
      %p57 = por %p55, %p56
      %s58 = ssub.s32 %s24, %s31
      %p59 = scmp.eq.s32.totalorder %s58, 0
      %s61 = sadd.s32 %s60, 1
      %s62 = scalar_select %p59, %s60, %s61
      %p65 = pneg %p59
      %p66 = scmp.eq.s32.totalorder %s24, 1
      %p67 = por %p65, %p66
      %p68 = scmp.ne.s32.totalorder %s60, %s63
      %p69 = scmp.eq.s32.totalorder %s24, 0
      %p70 = por %p68, %p69
      %p71 = scmp.ne.s32.totalorder %s60, %s63
      %p72 = scmp.eq.s32.totalorder %s29, 1
      %p73 = por %p71, %p72
      %p74 = scmp.ne.s32.totalorder %s63, %s64
      %p75 = scmp.eq.s32.totalorder %s29, 0
      %p76 = por %p74, %p75
      %p77 = scmp.ne.s32.totalorder %s63, %s64
      %p78 = scmp.eq.s32.totalorder %s30, 1
      %p79 = por %p77, %p78
      %p81 = scmp.ne.s32.totalorder %s64, %s80
      %p82 = scmp.eq.s32.totalorder %s30, 0
      %p83 = por %p81, %p82
      %s85 = sadd.s32 %s84, 1
      %p88 = scmp.eq.s32.totalorder %s24, 1
      %p89 = scmp.ne.s32.totalorder %s84, %s86
      %p90 = scmp.eq.s32.totalorder %s24, 0
      %p91 = por %p89, %p90
      %p92 = scmp.ne.s32.totalorder %s84, %s86
      %p93 = scmp.eq.s32.totalorder %s29, 1
      %p94 = por %p92, %p93
      %p95 = scmp.ne.s32.totalorder %s86, %s87
      %p96 = scmp.eq.s32.totalorder %s29, 0
      %p97 = por %p95, %p96
      %p98 = scmp.ne.s32.totalorder %s86, %s87
      %p99 = scmp.eq.s32.totalorder %s30, 1
      %p100 = por %p98, %p99
      %p102 = scmp.ne.s32.totalorder %s87, %s101
      %p103 = scmp.eq.s32.totalorder %s30, 0
      %p104 = por %p102, %p103
      %s106 = sadd.s32 %s105, 1
      %p109 = scmp.eq.s32.totalorder %s24, 1
      %p110 = scmp.ne.s32.totalorder %s105, %s107
      %p111 = scmp.eq.s32.totalorder %s24, 0
      %p112 = por %p110, %p111
      %p113 = scmp.ne.s32.totalorder %s105, %s107
      %p114 = scmp.eq.s32.totalorder %s29, 1
      %p115 = por %p113, %p114
      %p116 = scmp.ne.s32.totalorder %s107, %s108
      %p117 = scmp.eq.s32.totalorder %s29, 0
      %p118 = por %p116, %p117
      %p119 = scmp.ne.s32.totalorder %s107, %s108
      %p120 = scmp.eq.s32.totalorder %s30, 1
      %p121 = por %p119, %p120
      %p123 = scmp.ne.s32.totalorder %s108, %s122
      %p124 = scmp.eq.s32.totalorder %s30, 0
      %p125 = por %p123, %p124
      %s127 = sadd.s32 %s126, 1
      %p130 = scmp.eq.s32.totalorder %s24, 1
      %p131 = scmp.ne.s32.totalorder %s126, %s128
      %p132 = scmp.eq.s32.totalorder %s24, 0
      %p133 = por %p131, %p132
      %p134 = scmp.ne.s32.totalorder %s126, %s128
      %p135 = scmp.eq.s32.totalorder %s29, 1
      %p136 = por %p134, %p135
      %p137 = scmp.ne.s32.totalorder %s128, %s129
      %p138 = scmp.eq.s32.totalorder %s29, 0
      %p139 = por %p137, %p138
      %p140 = scmp.ne.s32.totalorder %s128, %s129
      %p141 = scmp.eq.s32.totalorder %s30, 1
      %p142 = por %p140, %p141
      %p144 = scmp.ne.s32.totalorder %s129, %s143
      %p145 = scmp.eq.s32.totalorder %s30, 0
      %p146 = por %p144, %p145
      %s148 = sadd.s32 %s147, 1
      %p151 = scmp.eq.s32.totalorder %s24, 1
      %p152 = scmp.ne.s32.totalorder %s147, %s149
      %p153 = scmp.eq.s32.totalorder %s24, 0
      %p154 = por %p152, %p153
      %p155 = scmp.ne.s32.totalorder %s147, %s149
      %p156 = scmp.eq.s32.totalorder %s29, 1
      %p157 = por %p155, %p156
      %p158 = scmp.ne.s32.totalorder %s149, %s150
      %p159 = scmp.eq.s32.totalorder %s29, 0
      %p160 = por %p158, %p159
      %p161 = scmp.ne.s32.totalorder %s149, %s150
      %p162 = scmp.eq.s32.totalorder %s30, 1
      %p163 = por %p161, %p162
      %p165 = scmp.ne.s32.totalorder %s150, %s164
      %p166 = scmp.eq.s32.totalorder %s30, 0
      %p167 = por %p165, %p166
      %s169 = sadd.s32 %s168, 1
      %p172 = scmp.eq.s32.totalorder %s24, 1
      %p173 = scmp.ne.s32.totalorder %s168, %s170
      %p174 = scmp.eq.s32.totalorder %s24, 0
      %p175 = por %p173, %p174
      %p176 = scmp.ne.s32.totalorder %s168, %s170
      %p177 = scmp.eq.s32.totalorder %s29, 1
      %p178 = por %p176, %p177
      %p179 = scmp.ne.s32.totalorder %s170, %s171
      %p180 = scmp.eq.s32.totalorder %s29, 0
      %p181 = por %p179, %p180
      %p182 = scmp.ne.s32.totalorder %s170, %s171
      %p183 = scmp.eq.s32.totalorder %s30, 1
      %p184 = por %p182, %p183
      %p186 = scmp.ne.s32.totalorder %s171, %s185
      %p187 = scmp.eq.s32.totalorder %s30, 0
      %p188 = por %p186, %p187
      %s189 = ssub.s32 %s24, %s31
      %p190 = scmp.eq.s32.totalorder %s189, 0
      %s192 = sadd.s32 %s191, 1
      %s193 = scalar_select %p190, %s191, %s192
      %p196 = pneg %p190
      %p197 = scmp.eq.s32.totalorder %s24, 1
      %p198 = por %p196, %p197
      %p199 = scmp.ne.s32.totalorder %s191, %s194
      %p200 = scmp.eq.s32.totalorder %s24, 0
      %p201 = por %p199, %p200
      %p202 = scmp.ne.s32.totalorder %s191, %s194
      %p203 = scmp.eq.s32.totalorder %s29, 1
      %p204 = por %p202, %p203
      %p205 = scmp.ne.s32.totalorder %s194, %s195
      %p206 = scmp.eq.s32.totalorder %s29, 0
      %p207 = por %p205, %p206
      %p208 = scmp.ne.s32.totalorder %s194, %s195
      %p209 = scmp.eq.s32.totalorder %s30, 1
      %p210 = por %p208, %p209
      %p212 = scmp.ne.s32.totalorder %s195, %s211
      %p213 = scmp.eq.s32.totalorder %s30, 0
      %p214 = por %p212, %p213
      %p215 = scmp.le.s32.totalorder 1, %s24
      %p216 = scmp.lt.s32.totalorder %s24, 3
      %p217 = pnand %p215, %p216
      %p218 = pneg %p217
      // Predicated region
      $region9: #{tpu_custom_call.1} parent=5 // pred_check
        _
      $region10: #{tpu_custom_call.1} parent=5 // pred_check_branch
        %220 = sbr.rel (%p217) target = $region12
      $region11: #{tpu_custom_call.1} parent=5 // pred_region
        %s221 = ssub.s32 %s24, 1
        // Predicated region
        $region13: #{tpu_custom_call.1} parent=11 // pred_check
          %p222 = pneg %p97
        $region14: #{tpu_custom_call.1} parent=11 // pred_check_branch
          %224 = sbr.rel (%p222) target = $region16
        $region15: #{tpu_custom_call.1} parent=11 // pred_region
          %s226 = ssub.s32 64, 64
          %227 = vsyncadd [#allocation8], %s226
          %s229 = sshll.u32 [#allocation9], 4
          %s230 = int_to_ptr.vmem [resolvable:$true] %s229
          %232 = dma.hbm_to_vmem [thread:$0]  %s2, 64, %s230, [#allocation8]
        $region16: #{tpu_custom_call.1} parent=11 // pred_fallthru
          _
        // Predicated region
        $region17: #{tpu_custom_call.1} parent=11 // pred_check
          %p233 = pneg %p118
        $region18: #{tpu_custom_call.1} parent=11 // pred_check_branch
          %235 = sbr.rel (%p233) target = $region20
        $region19: #{tpu_custom_call.1} parent=11 // pred_region
          %s237 = ssub.s32 64, 64
          %238 = vsyncadd [#allocation11], %s237
          %s240 = sshll.u32 [#allocation10], 4
          %s241 = int_to_ptr.vmem [resolvable:$true] %s240
          %243 = dma.hbm_to_vmem [thread:$0]  %s3, 64, %s241, [#allocation11]
        $region20: #{tpu_custom_call.1} parent=11 // pred_fallthru
          _
        // Predicated region
        $region21: #{tpu_custom_call.1} parent=11 // pred_check
          %p244 = pneg %p139
        $region22: #{tpu_custom_call.1} parent=11 // pred_check_branch
          %246 = sbr.rel (%p244) target = $region24
        $region23: #{tpu_custom_call.1} parent=11 // pred_region
          _
        $region24: #{tpu_custom_call.1} parent=11 // pred_fallthru
          _
        // Predicated region
        $region25: #{tpu_custom_call.1} parent=11 // pred_check
          %p247 = pneg %p160
        $region26: #{tpu_custom_call.1} parent=11 // pred_check_branch
          %249 = sbr.rel (%p247) target = $region28
        $region27: #{tpu_custom_call.1} parent=11 // pred_region
          _
        $region28: #{tpu_custom_call.1} parent=11 // pred_fallthru
          _
        // Predicated region
        $region29: #{tpu_custom_call.1} parent=11 // pred_check
          %p250 = pneg %p181
        $region30: #{tpu_custom_call.1} parent=11 // pred_check_branch
          %252 = sbr.rel (%p250) target = $region32
        $region31: #{tpu_custom_call.1} parent=11 // pred_region
          %s254 = ssub.s32 16, 16
          %255 = vsyncadd [#allocation6], %s254
          %s257 = sshll.u32 %s6, 4
          %s258 = int_to_ptr.vmem [resolvable:$true] %s257
          %260 = dma.vmem_to_smem %s258, 16, [#allocation12], [#allocation6]
        $region32: #{tpu_custom_call.1} parent=11 // pred_fallthru
          _
      $region12: #{tpu_custom_call.1} parent=5 // pred_fallthru
        _
      %p261 = scmp.lt.s32.totalorder %s24, 2
      // Predicated region
      $region33: #{tpu_custom_call.1} parent=5 // pred_check
        %p262 = pneg %p261
      $region34: #{tpu_custom_call.1} parent=5 // pred_check_branch
        %264 = sbr.rel (%p262) target = $region36
      $region35: #{tpu_custom_call.1} parent=5 // pred_region
        // Predicated region
        $region37: #{tpu_custom_call.1} parent=35 // pred_check
          %p265 = pneg %p44
        $region38: #{tpu_custom_call.1} parent=35 // pred_check_branch
          %267 = sbr.rel (%p265) target = $region40
        $region39: #{tpu_custom_call.1} parent=35 // pred_region
          %s268 = sand.u32 %s34, 1
          %s269 = scalar_lea.sflag [#allocation4], %s268
          %s270 = sand.u32 %s34, 1
          %s271 = smul.addr %s270, 32
          %s272 = scalar_lea.vmem [#allocation3], %s271
          %s273 = smul.u32 4, %s24
          %s275 = ssub.s32 512, 512
          %276 = vsyncadd %s269, %s275
          %s277 = smul.addr %s273, 128
          %s278 = scalar_lea.hbm %s0, %s277
          %s280 = sshll.u32 %s272, 4
          %s281 = int_to_ptr.vmem [resolvable:$true] %s280
          %283 = dma.hbm_to_vmem [thread:$0]  %s278, 512, %s281, %s269
        $region40: #{tpu_custom_call.1} parent=35 // pred_fallthru
          _
        // Predicated region
        $region41: #{tpu_custom_call.1} parent=35 // pred_check
          %p284 = pneg %p70
        $region42: #{tpu_custom_call.1} parent=35 // pred_check_branch
          %286 = sbr.rel (%p284) target = $region44
        $region43: #{tpu_custom_call.1} parent=35 // pred_region
          %s287 = sand.u32 %s24, 1
          %s288 = scalar_lea.sflag [#allocation8], %s287
          %s289 = sand.u32 %s60, 1
          %s290 = smul.addr %s289, 32
          %s291 = scalar_lea.vmem [#allocation7], %s290
          %s292 = smul.u32 4, %s24
          %s294 = ssub.s32 512, 512
          %295 = vsyncadd %s288, %s294
          %s296 = smul.addr %s292, 128
          %s297 = scalar_lea.hbm %s1, %s296
          %s299 = sshll.u32 %s291, 4
          %s300 = int_to_ptr.vmem [resolvable:$true] %s299
          %302 = dma.hbm_to_vmem [thread:$0]  %s297, 512, %s300, %s288
        $region44: #{tpu_custom_call.1} parent=35 // pred_fallthru
          _
      $region36: #{tpu_custom_call.1} parent=5 // pred_fallthru
        _
      %p303 = scmp.le.s32.totalorder 1, %s24
      %p304 = scmp.lt.s32.totalorder %s24, 3
      %p305 = pnand %p303, %p304
      %p306 = pneg %p305
      // Predicated region
      $region45: #{tpu_custom_call.1} parent=5 // pred_check
        _
      $region46: #{tpu_custom_call.1} parent=5 // pred_check_branch
        %308 = sbr.rel (%p305) target = $region48
      $region47: #{tpu_custom_call.1} parent=5 // pred_region
        %s309 = ssub.s32 %s24, 1
        %s310 = sand.u32 %s37, 1
        %s311 = scalar_lea.sflag [#allocation4], %s310
        %s312 = sand.u32 %s37, 1
        %s313 = smul.addr %s312, 32
        %s314 = scalar_lea.vmem [#allocation3], %s313
        // Predicated region
        $region49: #{tpu_custom_call.1} parent=47 // pred_check
          %p315 = pneg %p50
        $region50: #{tpu_custom_call.1} parent=47 // pred_check_branch
          %317 = sbr.rel (%p315) target = $region52
        $region51: #{tpu_custom_call.1} parent=47 // pred_region
          %318 = dma.done %s311, 512
        $region52: #{tpu_custom_call.1} parent=47 // pred_fallthru
          _
        %s319 = sand.u32 %s29, 1
        %s320 = scalar_lea.sflag [#allocation8], %s319
        %s321 = sand.u32 %s63, 1
        %s322 = smul.addr %s321, 32
        %s323 = scalar_lea.vmem [#allocation7], %s322
        // Predicated region
        $region53: #{tpu_custom_call.1} parent=47 // pred_check
          %p324 = pneg %p76
        $region54: #{tpu_custom_call.1} parent=47 // pred_check_branch
          %326 = sbr.rel (%p324) target = $region56
        $region55: #{tpu_custom_call.1} parent=47 // pred_region
          %327 = dma.done %s320, 512
        $region56: #{tpu_custom_call.1} parent=47 // pred_fallthru
          _
        // Predicated region
        $region57: #{tpu_custom_call.1} parent=47 // pred_check
          %p328 = pneg %p97
        $region58: #{tpu_custom_call.1} parent=47 // pred_check_branch
          %330 = sbr.rel (%p328) target = $region60
        $region59: #{tpu_custom_call.1} parent=47 // pred_region
          %331 = dma.done [#allocation8], 64
        $region60: #{tpu_custom_call.1} parent=47 // pred_fallthru
          _
        // Predicated region
        $region61: #{tpu_custom_call.1} parent=47 // pred_check
          %p332 = pneg %p118
        $region62: #{tpu_custom_call.1} parent=47 // pred_check_branch
          %334 = sbr.rel (%p332) target = $region64
        $region63: #{tpu_custom_call.1} parent=47 // pred_region
          %335 = dma.done [#allocation11], 64
        $region64: #{tpu_custom_call.1} parent=47 // pred_fallthru
          _
        // Predicated region
        $region65: #{tpu_custom_call.1} parent=47 // pred_check
          %p336 = pneg %p181
        $region66: #{tpu_custom_call.1} parent=47 // pred_check_branch
          %338 = sbr.rel (%p336) target = $region68
        $region67: #{tpu_custom_call.1} parent=47 // pred_region
          %339 = dma.done [#allocation6], 16
        $region68: #{tpu_custom_call.1} parent=47 // pred_fallthru
          _
        %340 = sfence
        %s341 = sand.u32 %s37, 1
        %s342 = scalar_lea.sflag [#allocation4], %s341
        %s343 = sand.u32 %s37, 1
        %s344 = smul.addr %s343, 32
        %s345 = scalar_lea.vmem [#allocation3], %s344
        %p346 = pneg %p50
        %p347 = pneg %p47
        %s348 = sand.u32 %s29, 1
        %s349 = scalar_lea.sflag [#allocation8], %s348
        %s350 = sand.u32 %s63, 1
        %s351 = smul.addr %s350, 32
        %s352 = scalar_lea.vmem [#allocation7], %s351
        %p353 = pneg %p76
        %p354 = pneg %p73
        %p355 = pneg %p97
        %p356 = pneg %p94
        %p357 = pneg %p118
        %p358 = pneg %p115
        %p359 = pneg %p139
        %p360 = pneg %p136
        %p361 = pneg %p160
        %p362 = pneg %p157
        %p363 = pneg %p181
        %p364 = pneg %p178
        %p365 = pneg %p207
        %p366 = pneg %p204
        %s367 = sand.u32 %s194, 1
        %s368 = scalar_lea.sflag [#allocation5], %s367
        %s369 = sand.u32 %s194, 1
        %s370 = smul.addr %s369, 4
        %s371 = scalar_lea.vmem [#allocation13], %s370
        %s372 = smul.u32 4, %s29
        %s373 = smul.u32 4, %s29
        %s374 = smul.u32 4, %s29
        %v376 = vld [vmem:[#allocation9] sm:$0xf]
        %v377 = vld [vmem:[%s314] sm:$0xff]
        %v378 = vld [vmem:[%s314 + $0x8] sm:$0xff]
        %v379 = vld [vmem:[%s314 + $0x10] sm:$0xff]
        %v380 = vld [vmem:[%s314 + $0x18] sm:$0xff]
        %381 = vrot.lane.b32.xlu0 %v377, 23
        %v382 = vpop.permute.xlu0 %381
        %383 = vrot.lane.b32.xlu0 %v378, 23
        %v384 = vpop.permute.xlu0 %383
        %385 = vrot.lane.b32.xlu0 %v379, 23
        %v386 = vpop.permute.xlu0 %385
        %387 = vrot.lane.b32.xlu0 %v380, 23
        %v388 = vpop.permute.xlu0 %387
        %v389 = vlaneseq
        %v390 = vand.u32 %v389, 127
        %vm391 = vcmp.lt.s32.totalorder %v390, 23
        %v392 = vsel %vm391, %v386, %v388
        %v393 = vsel %vm391, %v384, %v386
        %v394 = vsel %vm391, %v382, %v384
        %v395 = vsel %vm391, %v388, %v382
        %v396 = vpack.c.bf16 %v395, %v395
        %v397 = vpack.c.bf16 %v394, %v394
        %v398 = vpack.c.bf16 %v393, %v393
        %v399 = vpack.c.bf16 %v392, %v392
        %v404 = vunpack.c.l.b16 %v396
        %v405 = vunpack.c.l.b16 %v397
        %v406 = vunpack.c.l.b16 %v398
        %v407 = vunpack.c.l.b16 %v399
        %v408 = vpack.c.b16 %v405, %v404
        %v409 = vpack.c.b16 %v407, %v406
        %412 = vst [vmem:[#allocation2] sm:$0xff] %v408
        %413 = vst [vmem:[#allocation2 + $0x8] sm:$0xff] %v409
        %414 = vrot.lane.b32.xlu0 %v377, 22
        %v415 = vpop.permute.xlu0 %414
        %416 = vrot.lane.b32.xlu0 %v378, 22
        %v417 = vpop.permute.xlu0 %416
        %418 = vrot.lane.b32.xlu0 %v379, 22
        %v419 = vpop.permute.xlu0 %418
        %420 = vrot.lane.b32.xlu0 %v380, 22
        %v421 = vpop.permute.xlu0 %420
        %vm422 = vcmp.lt.s32.totalorder %v390, 22
        %v423 = vsel %vm422, %v419, %v421
        %v424 = vsel %vm422, %v417, %v419
        %v425 = vsel %vm422, %v415, %v417
        %v426 = vsel %vm422, %v421, %v415
        %v427 = vpack.c.bf16 %v426, %v426
        %v428 = vpack.c.bf16 %v425, %v425
        %v429 = vpack.c.bf16 %v424, %v424
        %v430 = vpack.c.bf16 %v423, %v423
        %v435 = vunpack.c.l.b16 %v427
        %v436 = vunpack.c.l.b16 %v428
        %v437 = vunpack.c.l.b16 %v429
        %v438 = vunpack.c.l.b16 %v430
        %v439 = vpack.c.b16 %v436, %v435
        %v440 = vpack.c.b16 %v438, %v437
        %443 = vst [vmem:[#allocation2 + $0x10] sm:$0xff] %v439
        %444 = vst [vmem:[#allocation2 + $0x18] sm:$0xff] %v440
        %445 = vrot.lane.b32.xlu0 %v377, 21
        %v446 = vpop.permute.xlu0 %445
        %447 = vrot.lane.b32.xlu0 %v378, 21
        %v448 = vpop.permute.xlu0 %447
        %449 = vrot.lane.b32.xlu0 %v379, 21
        %v450 = vpop.permute.xlu0 %449
        %451 = vrot.lane.b32.xlu0 %v380, 21
        %v452 = vpop.permute.xlu0 %451
        %vm453 = vcmp.lt.s32.totalorder %v390, 21
        %v454 = vsel %vm453, %v450, %v452
        %v455 = vsel %vm453, %v448, %v450
        %v456 = vsel %vm453, %v446, %v448
        %v457 = vsel %vm453, %v452, %v446
        %v458 = vpack.c.bf16 %v457, %v457
        %v459 = vpack.c.bf16 %v456, %v456
        %v460 = vpack.c.bf16 %v455, %v455
        %v461 = vpack.c.bf16 %v454, %v454
        %v466 = vunpack.c.l.b16 %v458
        %v467 = vunpack.c.l.b16 %v459
        %v468 = vunpack.c.l.b16 %v460
        %v469 = vunpack.c.l.b16 %v461
        %v470 = vpack.c.b16 %v467, %v466
        %v471 = vpack.c.b16 %v469, %v468
        %474 = vst [vmem:[#allocation2 + $0x20] sm:$0xff] %v470
        %475 = vst [vmem:[#allocation2 + $0x28] sm:$0xff] %v471
        %476 = vrot.lane.b32.xlu0 %v377, 1
        %v477 = vpop.permute.xlu0 %476
        %478 = vrot.lane.b32.xlu0 %v378, 1
        %v479 = vpop.permute.xlu0 %478
        %480 = vrot.lane.b32.xlu0 %v379, 1
        %v481 = vpop.permute.xlu0 %480
        %482 = vrot.lane.b32.xlu0 %v380, 1
        %v483 = vpop.permute.xlu0 %482
        %vm484 = vcmp.lt.s32.totalorder %v390, 1
        %v485 = vsel %vm484, %v481, %v483
        %v486 = vsel %vm484, %v479, %v481
        %v487 = vsel %vm484, %v477, %v479
        %v488 = vsel %vm484, %v483, %v477
        %v489 = vpack.c.bf16 %v488, %v488
        %v490 = vpack.c.bf16 %v487, %v487
        %v491 = vpack.c.bf16 %v486, %v486
        %v492 = vpack.c.bf16 %v485, %v485
        %v497 = vunpack.c.l.b16 %v489
        %v498 = vunpack.c.l.b16 %v490
        %v499 = vunpack.c.l.b16 %v491
        %v500 = vunpack.c.l.b16 %v492
        %v501 = vpack.c.b16 %v498, %v497
        %v502 = vpack.c.b16 %v500, %v499
        %505 = vst [vmem:[#allocation2 + $0x30] sm:$0xff] %v501
        %506 = vst [vmem:[#allocation2 + $0x38] sm:$0xff] %v502
        %v507 = vpack.c.bf16 %v377, %v377
        %v508 = vpack.c.bf16 %v378, %v378
        %v509 = vpack.c.bf16 %v379, %v379
        %v510 = vpack.c.bf16 %v380, %v380
        %v515 = vunpack.c.l.b16 %v507
        %v516 = vunpack.c.l.b16 %v508
        %v517 = vunpack.c.l.b16 %v509
        %v518 = vunpack.c.l.b16 %v510
        %v519 = vpack.c.b16 %v516, %v515
        %v520 = vpack.c.b16 %v518, %v517
        %523 = vst [vmem:[#allocation2 + $0x40] sm:$0xff] %v519
        %524 = vst [vmem:[#allocation2 + $0x48] sm:$0xff] %v520
        %525 = vrot.lane.b32.xlu0 %v377, 127
        %v526 = vpop.permute.xlu0 %525
        %527 = vrot.lane.b32.xlu0 %v378, 127
        %v528 = vpop.permute.xlu0 %527
        %529 = vrot.lane.b32.xlu0 %v379, 127
        %v530 = vpop.permute.xlu0 %529
        %531 = vrot.lane.b32.xlu0 %v380, 127
        %v532 = vpop.permute.xlu0 %531
        %vm533 = vcmp.lt.s32.totalorder %v390, 127
        %v534 = vsel %vm533, %v530, %v532
        %v535 = vsel %vm533, %v528, %v530
        %v536 = vsel %vm533, %v526, %v528
        %v537 = vsel %vm533, %v532, %v526
        %v538 = vpack.c.bf16 %v536, %v536
        %v539 = vpack.c.bf16 %v535, %v535
        %v540 = vpack.c.bf16 %v534, %v534
        %v541 = vpack.c.bf16 %v537, %v537
        %v546 = vunpack.c.l.b16 %v538
        %v547 = vunpack.c.l.b16 %v539
        %v548 = vunpack.c.l.b16 %v540
        %v549 = vunpack.c.l.b16 %v541
        %v550 = vpack.c.b16 %v547, %v546
        %v551 = vpack.c.b16 %v549, %v548
        %554 = vst [vmem:[#allocation2 + $0x50] sm:$0xff] %v550
        %555 = vst [vmem:[#allocation2 + $0x58] sm:$0xff] %v551
        %556 = vrot.lane.b32.xlu0 %v377, 107
        %v557 = vpop.permute.xlu0 %556
        %558 = vrot.lane.b32.xlu0 %v378, 107
        %v559 = vpop.permute.xlu0 %558
        %560 = vrot.lane.b32.xlu0 %v379, 107
        %v561 = vpop.permute.xlu0 %560
        %562 = vrot.lane.b32.xlu0 %v380, 107
        %v563 = vpop.permute.xlu0 %562
        %vm564 = vcmp.lt.s32.totalorder %v390, 107
        %v565 = vsel %vm564, %v561, %v563
        %v566 = vsel %vm564, %v559, %v561
        %v567 = vsel %vm564, %v557, %v559
        %v568 = vsel %vm564, %v563, %v557
        %v569 = vpack.c.bf16 %v567, %v567
        %v570 = vpack.c.bf16 %v566, %v566
        %v571 = vpack.c.bf16 %v565, %v565
        %v572 = vpack.c.bf16 %v568, %v568
        %v577 = vunpack.c.l.b16 %v569
        %v578 = vunpack.c.l.b16 %v570
        %v579 = vunpack.c.l.b16 %v571
        %v580 = vunpack.c.l.b16 %v572
        %v581 = vpack.c.b16 %v578, %v577
        %v582 = vpack.c.b16 %v580, %v579
        %585 = vst [vmem:[#allocation2 + $0x60] sm:$0xff] %v581
        %586 = vst [vmem:[#allocation2 + $0x68] sm:$0xff] %v582
        %587 = vrot.lane.b32.xlu0 %v377, 106
        %v588 = vpop.permute.xlu0 %587
        %589 = vrot.lane.b32.xlu0 %v378, 106
        %v590 = vpop.permute.xlu0 %589
        %591 = vrot.lane.b32.xlu0 %v379, 106
        %v592 = vpop.permute.xlu0 %591
        %593 = vrot.lane.b32.xlu0 %v380, 106
        %v594 = vpop.permute.xlu0 %593
        %vm595 = vcmp.lt.s32.totalorder %v390, 106
        %v596 = vsel %vm595, %v592, %v594
        %v597 = vsel %vm595, %v590, %v592
        %v598 = vsel %vm595, %v588, %v590
        %v599 = vsel %vm595, %v594, %v588
        %v600 = vpack.c.bf16 %v598, %v598
        %v601 = vpack.c.bf16 %v597, %v597
        %v602 = vpack.c.bf16 %v596, %v596
        %v603 = vpack.c.bf16 %v599, %v599
        %v608 = vunpack.c.l.b16 %v600
        %v609 = vunpack.c.l.b16 %v601
        %v610 = vunpack.c.l.b16 %v602
        %v611 = vunpack.c.l.b16 %v603
        %v612 = vpack.c.b16 %v609, %v608
        %v613 = vpack.c.b16 %v611, %v610
        %616 = vst [vmem:[#allocation2 + $0x70] sm:$0xff] %v612
        %617 = vst [vmem:[#allocation2 + $0x78] sm:$0xff] %v613
        %618 = vrot.lane.b32.xlu0 %v377, 105
        %v619 = vpop.permute.xlu0 %618
        %620 = vrot.lane.b32.xlu0 %v378, 105
        %v621 = vpop.permute.xlu0 %620
        %622 = vrot.lane.b32.xlu0 %v379, 105
        %v623 = vpop.permute.xlu0 %622
        %624 = vrot.lane.b32.xlu0 %v380, 105
        %v625 = vpop.permute.xlu0 %624
        %vm626 = vcmp.lt.s32.totalorder %v390, 105
        %v627 = vsel %vm626, %v623, %v625
        %v628 = vsel %vm626, %v621, %v623
        %v629 = vsel %vm626, %v619, %v621
        %v630 = vsel %vm626, %v625, %v619
        %v631 = vpack.c.bf16 %v629, %v629
        %v632 = vpack.c.bf16 %v628, %v628
        %v633 = vpack.c.bf16 %v627, %v627
        %v634 = vpack.c.bf16 %v630, %v630
        %v639 = vunpack.c.l.b16 %v631
        %v640 = vunpack.c.l.b16 %v632
        %v641 = vunpack.c.l.b16 %v633
        %v642 = vunpack.c.l.b16 %v634
        %v643 = vpack.c.b16 %v640, %v639
        %v644 = vpack.c.b16 %v642, %v641
        %647 = vst [vmem:[#allocation2 + $0x80] sm:$0xff] %v643
        %648 = vst [vmem:[#allocation2 + $0x88] sm:$0xff] %v644
        %v649 = vld [vmem:[#allocation10] sm:$0xf]
        %v650 = vld [vmem:[#allocation2] sm:$0xff]
        %v651 = vld [vmem:[#allocation2 + $0x8] sm:$0xff]
        %v652 = vld [vmem:[#allocation2 + $0x10] sm:$0xff]
        %v653 = vld [vmem:[#allocation2 + $0x18] sm:$0xff]
        %v654 = vld [vmem:[#allocation2 + $0x20] sm:$0xff]
        %v655 = vld [vmem:[#allocation2 + $0x28] sm:$0xff]
        %v656 = vld [vmem:[#allocation2 + $0x30] sm:$0xff]
        %v657 = vld [vmem:[#allocation2 + $0x38] sm:$0xff]
        %v658 = vld [vmem:[#allocation2 + $0x40] sm:$0xff]
        %v659 = vld [vmem:[#allocation2 + $0x48] sm:$0xff]
        %v660 = vld [vmem:[#allocation2 + $0x50] sm:$0xff]
        %v661 = vld [vmem:[#allocation2 + $0x58] sm:$0xff]
        %v662 = vld [vmem:[#allocation2 + $0x60] sm:$0xff]
        %v663 = vld [vmem:[#allocation2 + $0x68] sm:$0xff]
        %v664 = vld [vmem:[#allocation2 + $0x70] sm:$0xff]
        %v665 = vld [vmem:[#allocation2 + $0x78] sm:$0xff]
        %v666 = vld [vmem:[#allocation2 + $0x80] sm:$0xff]
        %v667 = vld [vmem:[#allocation2 + $0x88] sm:$0xff]
        %v668 = vld [vmem:[%s4] sm:$0xff]
        %670 = vset.pattern.permute.xlu0 0
        %671 = vperm.xlu0 %670, %v668
        %v672 = vpop.permute.xlu0 %671
        %v692 = vunpack.c.l.b16 %v650
        %v693 = vunpack.c.h.b16 %v650
        %v694 = vunpack.c.l.b16 %v651
        %v695 = vunpack.c.h.b16 %v651
        %v696 = vunpack.c.l.b16 %v652
        %v697 = vunpack.c.h.b16 %v652
        %v698 = vunpack.c.l.b16 %v653
        %v699 = vunpack.c.h.b16 %v653
        %v700 = vunpack.c.l.b16 %v654
        %v701 = vunpack.c.h.b16 %v654
        %v702 = vunpack.c.l.b16 %v655
        %v703 = vunpack.c.h.b16 %v655
        %v704 = vunpack.c.l.b16 %v656
        %v705 = vunpack.c.h.b16 %v656
        %v706 = vunpack.c.l.b16 %v657
        %v707 = vunpack.c.h.b16 %v657
        %v708 = vunpack.c.l.b16 %v658
        %v709 = vunpack.c.h.b16 %v658
        %v710 = vunpack.c.l.b16 %v659
        %v711 = vunpack.c.h.b16 %v659
        %v712 = vunpack.c.l.b16 %v660
        %v713 = vunpack.c.h.b16 %v660
        %v714 = vunpack.c.l.b16 %v661
        %v715 = vunpack.c.h.b16 %v661
        %v716 = vunpack.c.l.b16 %v662
        %v717 = vunpack.c.h.b16 %v662
        %v718 = vunpack.c.l.b16 %v663
        %v719 = vunpack.c.h.b16 %v663
        %v720 = vunpack.c.l.b16 %v664
        %v721 = vunpack.c.h.b16 %v664
        %v722 = vunpack.c.l.b16 %v665
        %v723 = vunpack.c.h.b16 %v665
        %v724 = vunpack.c.l.b16 %v666
        %v725 = vunpack.c.h.b16 %v666
        %v726 = vunpack.c.l.b16 %v667
        %v727 = vunpack.c.h.b16 %v667
        %v728 = vpack.c.b16 %v696, %v692
        %v729 = vpack.c.b16 %v697, %v693
        %v730 = vpack.c.b16 %v698, %v694
        %v731 = vpack.c.b16 %v699, %v695
        %v732 = vpack.c.b16 %v704, %v700
        %v733 = vpack.c.b16 %v705, %v701
        %v734 = vpack.c.b16 %v706, %v702
        %v735 = vpack.c.b16 %v707, %v703
        %v736 = vpack.c.b16 %v712, %v708
        %v737 = vpack.c.b16 %v713, %v709
        %v738 = vpack.c.b16 %v714, %v710
        %v739 = vpack.c.b16 %v715, %v711
        %v740 = vpack.c.b16 %v720, %v716
        %v741 = vpack.c.b16 %v721, %v717
        %v742 = vpack.c.b16 %v722, %v718
        %v743 = vpack.c.b16 %v723, %v719
        %v744 = vpack.c.b16 %v724, %v724
        %v745 = vpack.c.b16 %v725, %v725
        %v746 = vpack.c.b16 %v726, %v726
        %v747 = vpack.c.b16 %v727, %v727
        %vm764 = vcmask 588800
        %v766 = vsel %vm764, %v649, 0
        %vm768 = vcmask 1043456
        %v770 = vsel %vm768, %v744, 0
        %v773 = vsel %vm768, %v745, 0
        %v776 = vsel %vm768, %v746, 0
        %v779 = vsel %vm768, %v747, 0
        %781 = vmatprep.subr.bf16.mxu0 0
        %782 = vmatpush1.bf16.msra.mxu0 0
        %783 = vmatprep.subr.bf16.mxu0 0
        %784 = vmatpush1.bf16.msra.mxu0 0
        %785 = vmatprep.subr.bf16.mxu0 0
        %786 = vmatpush1.bf16.msra.mxu0 0
        %787 = vmatprep.subr.bf16.mxu0 %v773
        %788 = vmatpush1.bf16.msra.mxu0 %v770
        %789 = vmatprep.subr.bf16.mxu0 %v741
        %790 = vmatpush1.bf16.msra.mxu0 %v740
        %791 = vmatprep.subr.bf16.mxu0 %v737
        %792 = vmatpush1.bf16.msra.mxu0 %v736
        %793 = vmatprep.subr.bf16.mxu0 %v733
        %794 = vmatpush1.bf16.msra.mxu0 %v732
        %795 = vmatprep.subr.bf16.mxu0 %v729
        %796 = vmatpush1.bf16.msra.mxu0 %v728
        %797 = vmatprep.subr.bf16.mxu0 0
        %798 = vmatpush2.bf16.msra.mxu0 0
        %799 = vmatprep.subr.bf16.mxu0 0
        %800 = vmatpush2.bf16.msra.mxu0 0
        %801 = vmatprep.subr.bf16.mxu0 0
        %802 = vmatpush2.bf16.msra.mxu0 0
        %803 = vmatprep.subr.bf16.mxu0 0
        %804 = vmatpush2.bf16.msra.mxu0 0
        %805 = vmatprep.subr.bf16.mxu0 0
        %806 = vmatpush2.bf16.msra.mxu0 0
        %807 = vmatprep.subr.bf16.mxu0 0
        %808 = vmatpush2.bf16.msra.mxu0 0
        %809 = vmatprep.subr.bf16.mxu0 0
        %810 = vmatpush2.bf16.msra.mxu0 0
        %811 = vmatprep.subr.bf16.mxu0 0
        %812 = vmatpush2.bf16.msra.mxu0 0
        %813 = vmatprep.mubr.bf16.mxu0 0
        %814 = vmatmul.mubr.bf16.gmra.mxu0 %v766
        %v815 = vpop.f32.mrf.mxu0
        %v816 = vadd.f32 %v672, %v815
        %v817 = vpop.f32.mrf.mxu0
        %v818 = vadd.f32 %v672, %v817
        %v819 = vpop.f32.mrf.mxu0
        %v820 = vpop.f32.mrf.mxu0
        %821 = vdwg.mxu0
        %822 = vmatprep.subr.bf16.mxu0 0
        %823 = vmatpush1.bf16.msra.mxu0 0
        %824 = vmatprep.subr.bf16.mxu0 0
        %825 = vmatpush1.bf16.msra.mxu0 0
        %826 = vmatprep.subr.bf16.mxu0 0
        %827 = vmatpush1.bf16.msra.mxu0 0
        %828 = vmatprep.subr.bf16.mxu0 %v779
        %829 = vmatpush1.bf16.msra.mxu0 %v776
        %830 = vmatprep.subr.bf16.mxu0 %v743
        %831 = vmatpush1.bf16.msra.mxu0 %v742
        %832 = vmatprep.subr.bf16.mxu0 %v739
        %833 = vmatpush1.bf16.msra.mxu0 %v738
        %834 = vmatprep.subr.bf16.mxu0 %v735
        %835 = vmatpush1.bf16.msra.mxu0 %v734
        %836 = vmatprep.subr.bf16.mxu0 %v731
        %837 = vmatpush1.bf16.msra.mxu0 %v730
        %838 = vmatprep.subr.bf16.mxu0 0
        %839 = vmatpush2.bf16.msra.mxu0 0
        %840 = vmatprep.subr.bf16.mxu0 0
        %841 = vmatpush2.bf16.msra.mxu0 0
        %842 = vmatprep.subr.bf16.mxu0 0
        %843 = vmatpush2.bf16.msra.mxu0 0
        %844 = vmatprep.subr.bf16.mxu0 0
        %845 = vmatpush2.bf16.msra.mxu0 0
        %846 = vmatprep.subr.bf16.mxu0 0
        %847 = vmatpush2.bf16.msra.mxu0 0
        %848 = vmatprep.subr.bf16.mxu0 0
        %849 = vmatpush2.bf16.msra.mxu0 0
        %850 = vmatprep.subr.bf16.mxu0 0
        %851 = vmatpush2.bf16.msra.mxu0 0
        %852 = vmatprep.subr.bf16.mxu0 0
        %853 = vmatpush2.bf16.msra.mxu0 0
        %854 = vmatprep.mubr.bf16.mxu0 0
        %855 = vmatmul.mubr.bf16.gmra.mxu0 %v766
        %v856 = vpop.f32.mrf.mxu0
        %v857 = vadd.f32 %v672, %v856
        %v858 = vpop.f32.mrf.mxu0
        %v859 = vadd.f32 %v672, %v858
        %v860 = vpop.f32.mrf.mxu0
        %v861 = vpop.f32.mrf.mxu0
        %862 = vdwg.mxu0
        %v863 = vmax.f32 %v816, 0.0
        %v864 = vmax.f32 %v818, 0.0
        %v865 = vmax.f32 %v857, 0.0
        %v866 = vmax.f32 %v859, 0.0
        %v867 = vld [vmem:[%s323] sm:$0xff]
        %v868 = vld [vmem:[%s323 + $0x8] sm:$0xff]
        %v869 = vld [vmem:[%s323 + $0x10] sm:$0xff]
        %v870 = vld [vmem:[%s323 + $0x18] sm:$0xff]
        %v871 = vadd.f32 %v863, %v867
        %v872 = vadd.f32 %v864, %v868
        %v873 = vadd.f32 %v865, %v869
        %v874 = vadd.f32 %v866, %v870
        %v876 = vlaneseq
        %v877 = vshrl.u32 %v876, 7
        %v878 = vsub.s32 0, %v877
        %v879 = vrot.slane %v376, %v878
        %v880 = vlaneseq
        %v881 = vshrl.u32 %v880, 7
        %v882 = vsub.s32 1, %v881
        %v883 = vrot.slane %v376, %v882
        %v884 = vlaneseq
        %v885 = vshrl.u32 %v884, 7
        %v886 = vsub.s32 2, %v885
        %v887 = vrot.slane %v376, %v886
        %v888 = vlaneseq
        %v889 = vshrl.u32 %v888, 7
        %v890 = vsub.s32 3, %v889
        %v891 = vrot.slane %v376, %v890
        %v896 = vmul.f32 %v871, %v879
        %v897 = vmul.f32 %v872, %v883
        %v898 = vmul.f32 %v873, %v887
        %v899 = vmul.f32 %v874, %v891
        %900 = vrot.lane.b32.xlu0 %v896, 69
        %v901 = vpop.permute.xlu0 %900
        %902 = vrot.lane.b32.xlu0 %v897, 69
        %v903 = vpop.permute.xlu0 %902
        %904 = vrot.lane.b32.xlu0 %v898, 69
        %v905 = vpop.permute.xlu0 %904
        %906 = vrot.lane.b32.xlu0 %v899, 69
        %v907 = vpop.permute.xlu0 %906
        %vm908 = vcmp.lt.s32.totalorder %v390, 69
        %v909 = vsel %vm908, %v905, %v907
        %v910 = vsel %vm908, %v903, %v905
        %v911 = vsel %vm908, %v901, %v903
        %v912 = vsel %vm908, %v907, %v901
        %v913 = vpack.c.bf16 %v912, %v912
        %v914 = vpack.c.bf16 %v911, %v911
        %v915 = vpack.c.bf16 %v910, %v910
        %v916 = vpack.c.bf16 %v909, %v909
        %v921 = vunpack.c.l.b16 %v913
        %v922 = vunpack.c.l.b16 %v914
        %v923 = vunpack.c.l.b16 %v915
        %v924 = vunpack.c.l.b16 %v916
        %v925 = vpack.c.b16 %v922, %v921
        %v926 = vpack.c.b16 %v924, %v923
        %929 = vst [vmem:[#allocation2] sm:$0xff] %v925
        %930 = vst [vmem:[#allocation2 + $0x8] sm:$0xff] %v926
        %931 = vrot.lane.b32.xlu0 %v896, 68
        %v932 = vpop.permute.xlu0 %931
        %933 = vrot.lane.b32.xlu0 %v897, 68
        %v934 = vpop.permute.xlu0 %933
        %935 = vrot.lane.b32.xlu0 %v898, 68
        %v936 = vpop.permute.xlu0 %935
        %937 = vrot.lane.b32.xlu0 %v899, 68
        %v938 = vpop.permute.xlu0 %937
        %vm939 = vcmp.lt.s32.totalorder %v390, 68
        %v940 = vsel %vm939, %v936, %v938
        %v941 = vsel %vm939, %v934, %v936
        %v942 = vsel %vm939, %v932, %v934
        %v943 = vsel %vm939, %v938, %v932
        %v944 = vpack.c.bf16 %v943, %v943
        %v945 = vpack.c.bf16 %v942, %v942
        %v946 = vpack.c.bf16 %v941, %v941
        %v947 = vpack.c.bf16 %v940, %v940
        %v952 = vunpack.c.l.b16 %v944
        %v953 = vunpack.c.l.b16 %v945
        %v954 = vunpack.c.l.b16 %v946
        %v955 = vunpack.c.l.b16 %v947
        %v956 = vpack.c.b16 %v953, %v952
        %v957 = vpack.c.b16 %v955, %v954
        %960 = vst [vmem:[#allocation2 + $0x10] sm:$0xff] %v956
        %961 = vst [vmem:[#allocation2 + $0x18] sm:$0xff] %v957
        %962 = vrot.lane.b32.xlu0 %v896, 67
        %v963 = vpop.permute.xlu0 %962
        %964 = vrot.lane.b32.xlu0 %v897, 67
        %v965 = vpop.permute.xlu0 %964
        %966 = vrot.lane.b32.xlu0 %v898, 67
        %v967 = vpop.permute.xlu0 %966
        %968 = vrot.lane.b32.xlu0 %v899, 67
        %v969 = vpop.permute.xlu0 %968
        %vm970 = vcmp.lt.s32.totalorder %v390, 67
        %v971 = vsel %vm970, %v967, %v969
        %v972 = vsel %vm970, %v965, %v967
        %v973 = vsel %vm970, %v963, %v965
        %v974 = vsel %vm970, %v969, %v963
        %v975 = vpack.c.bf16 %v974, %v974
        %v976 = vpack.c.bf16 %v973, %v973
        %v977 = vpack.c.bf16 %v972, %v972
        %v978 = vpack.c.bf16 %v971, %v971
        %v983 = vunpack.c.l.b16 %v975
        %v984 = vunpack.c.l.b16 %v976
        %v985 = vunpack.c.l.b16 %v977
        %v986 = vunpack.c.l.b16 %v978
        %v987 = vpack.c.b16 %v984, %v983
        %v988 = vpack.c.b16 %v986, %v985
        %991 = vst [vmem:[#allocation2 + $0x20] sm:$0xff] %v987
        %992 = vst [vmem:[#allocation2 + $0x28] sm:$0xff] %v988
        %993 = vrot.lane.b32.xlu0 %v896, 66
        %v994 = vpop.permute.xlu0 %993
        %995 = vrot.lane.b32.xlu0 %v897, 66
        %v996 = vpop.permute.xlu0 %995
        %997 = vrot.lane.b32.xlu0 %v898, 66
        %v998 = vpop.permute.xlu0 %997
        %999 = vrot.lane.b32.xlu0 %v899, 66
        %v1000 = vpop.permute.xlu0 %999
        %vm1001 = vcmp.lt.s32.totalorder %v390, 66
        %v1002 = vsel %vm1001, %v998, %v1000
        %v1003 = vsel %vm1001, %v996, %v998
        %v1004 = vsel %vm1001, %v994, %v996
        %v1005 = vsel %vm1001, %v1000, %v994
        %v1006 = vpack.c.bf16 %v1005, %v1005
        %v1007 = vpack.c.bf16 %v1004, %v1004
        %v1008 = vpack.c.bf16 %v1003, %v1003
        %v1009 = vpack.c.bf16 %v1002, %v1002
        %v1014 = vunpack.c.l.b16 %v1006
        %v1015 = vunpack.c.l.b16 %v1007
        %v1016 = vunpack.c.l.b16 %v1008
        %v1017 = vunpack.c.l.b16 %v1009
        %v1018 = vpack.c.b16 %v1015, %v1014
        %v1019 = vpack.c.b16 %v1017, %v1016
        %1022 = vst [vmem:[#allocation2 + $0x30] sm:$0xff] %v1018
        %1023 = vst [vmem:[#allocation2 + $0x38] sm:$0xff] %v1019
        %1024 = vrot.lane.b32.xlu0 %v896, 65
        %v1025 = vpop.permute.xlu0 %1024
        %1026 = vrot.lane.b32.xlu0 %v897, 65
        %v1027 = vpop.permute.xlu0 %1026
        %1028 = vrot.lane.b32.xlu0 %v898, 65
        %v1029 = vpop.permute.xlu0 %1028
        %1030 = vrot.lane.b32.xlu0 %v899, 65
        %v1031 = vpop.permute.xlu0 %1030
        %vm1032 = vcmp.lt.s32.totalorder %v390, 65
        %v1033 = vsel %vm1032, %v1029, %v1031
        %v1034 = vsel %vm1032, %v1027, %v1029
        %v1035 = vsel %vm1032, %v1025, %v1027
        %v1036 = vsel %vm1032, %v1031, %v1025
        %v1037 = vpack.c.bf16 %v1036, %v1036
        %v1038 = vpack.c.bf16 %v1035, %v1035
        %v1039 = vpack.c.bf16 %v1034, %v1034
        %v1040 = vpack.c.bf16 %v1033, %v1033
        %v1045 = vunpack.c.l.b16 %v1037
        %v1046 = vunpack.c.l.b16 %v1038
        %v1047 = vunpack.c.l.b16 %v1039
        %v1048 = vunpack.c.l.b16 %v1040
        %v1049 = vpack.c.b16 %v1046, %v1045
        %v1050 = vpack.c.b16 %v1048, %v1047
        %1053 = vst [vmem:[#allocation2 + $0x40] sm:$0xff] %v1049
        %1054 = vst [vmem:[#allocation2 + $0x48] sm:$0xff] %v1050
        %1055 = vrot.lane.b32.xlu0 %v896, 64
        %v1056 = vpop.permute.xlu0 %1055
        %1057 = vrot.lane.b32.xlu0 %v897, 64
        %v1058 = vpop.permute.xlu0 %1057
        %1059 = vrot.lane.b32.xlu0 %v898, 64
        %v1060 = vpop.permute.xlu0 %1059
        %1061 = vrot.lane.b32.xlu0 %v899, 64
        %v1062 = vpop.permute.xlu0 %1061
        %vm1063 = vcmp.lt.s32.totalorder %v390, 64
        %v1064 = vsel %vm1063, %v1060, %v1062
        %v1065 = vsel %vm1063, %v1058, %v1060
        %v1066 = vsel %vm1063, %v1056, %v1058
        %v1067 = vsel %vm1063, %v1062, %v1056
        %v1068 = vpack.c.bf16 %v1067, %v1067
        %v1069 = vpack.c.bf16 %v1066, %v1066
        %v1070 = vpack.c.bf16 %v1065, %v1065
        %v1071 = vpack.c.bf16 %v1064, %v1064
        %v1076 = vunpack.c.l.b16 %v1068
        %v1077 = vunpack.c.l.b16 %v1069
        %v1078 = vunpack.c.l.b16 %v1070
        %v1079 = vunpack.c.l.b16 %v1071
        %v1080 = vpack.c.b16 %v1077, %v1076
        %v1081 = vpack.c.b16 %v1079, %v1078
        %1084 = vst [vmem:[#allocation2 + $0x50] sm:$0xff] %v1080
        %1085 = vst [vmem:[#allocation2 + $0x58] sm:$0xff] %v1081
        %1086 = vrot.lane.b32.xlu0 %v896, 63
        %v1087 = vpop.permute.xlu0 %1086
        %1088 = vrot.lane.b32.xlu0 %v897, 63
        %v1089 = vpop.permute.xlu0 %1088
        %1090 = vrot.lane.b32.xlu0 %v898, 63
        %v1091 = vpop.permute.xlu0 %1090
        %1092 = vrot.lane.b32.xlu0 %v899, 63
        %v1093 = vpop.permute.xlu0 %1092
        %vm1094 = vcmp.lt.s32.totalorder %v390, 63
        %v1095 = vsel %vm1094, %v1091, %v1093
        %v1096 = vsel %vm1094, %v1089, %v1091
        %v1097 = vsel %vm1094, %v1087, %v1089
        %v1098 = vsel %vm1094, %v1093, %v1087
        %v1099 = vpack.c.bf16 %v1098, %v1098
        %v1100 = vpack.c.bf16 %v1097, %v1097
        %v1101 = vpack.c.bf16 %v1096, %v1096
        %v1102 = vpack.c.bf16 %v1095, %v1095
        %v1107 = vunpack.c.l.b16 %v1099
        %v1108 = vunpack.c.l.b16 %v1100
        %v1109 = vunpack.c.l.b16 %v1101
        %v1110 = vunpack.c.l.b16 %v1102
        %v1111 = vpack.c.b16 %v1108, %v1107
        %v1112 = vpack.c.b16 %v1110, %v1109
        %1115 = vst [vmem:[#allocation2 + $0x60] sm:$0xff] %v1111
        %1116 = vst [vmem:[#allocation2 + $0x68] sm:$0xff] %v1112
        %1117 = vrot.lane.b32.xlu0 %v896, 47
        %v1118 = vpop.permute.xlu0 %1117
        %1119 = vrot.lane.b32.xlu0 %v897, 47
        %v1120 = vpop.permute.xlu0 %1119
        %1121 = vrot.lane.b32.xlu0 %v898, 47
        %v1122 = vpop.permute.xlu0 %1121
        %1123 = vrot.lane.b32.xlu0 %v899, 47
        %v1124 = vpop.permute.xlu0 %1123
        %vm1125 = vcmp.lt.s32.totalorder %v390, 47
        %v1126 = vsel %vm1125, %v1122, %v1124
        %v1127 = vsel %vm1125, %v1120, %v1122
        %v1128 = vsel %vm1125, %v1118, %v1120
        %v1129 = vsel %vm1125, %v1124, %v1118
        %v1130 = vpack.c.bf16 %v1129, %v1129
        %v1131 = vpack.c.bf16 %v1128, %v1128
        %v1132 = vpack.c.bf16 %v1127, %v1127
        %v1133 = vpack.c.bf16 %v1126, %v1126
        %v1138 = vunpack.c.l.b16 %v1130
        %v1139 = vunpack.c.l.b16 %v1131
        %v1140 = vunpack.c.l.b16 %v1132
        %v1141 = vunpack.c.l.b16 %v1133
        %v1142 = vpack.c.b16 %v1139, %v1138
        %v1143 = vpack.c.b16 %v1141, %v1140
        %1146 = vst [vmem:[#allocation2 + $0x70] sm:$0xff] %v1142
        %1147 = vst [vmem:[#allocation2 + $0x78] sm:$0xff] %v1143
        %1148 = vrot.lane.b32.xlu0 %v896, 46
        %v1149 = vpop.permute.xlu0 %1148
        %1150 = vrot.lane.b32.xlu0 %v897, 46
        %v1151 = vpop.permute.xlu0 %1150
        %1152 = vrot.lane.b32.xlu0 %v898, 46
        %v1153 = vpop.permute.xlu0 %1152
        %1154 = vrot.lane.b32.xlu0 %v899, 46
        %v1155 = vpop.permute.xlu0 %1154
        %vm1156 = vcmp.lt.s32.totalorder %v390, 46
        %v1157 = vsel %vm1156, %v1153, %v1155
        %v1158 = vsel %vm1156, %v1151, %v1153
        %v1159 = vsel %vm1156, %v1149, %v1151
        %v1160 = vsel %vm1156, %v1155, %v1149
        %v1161 = vpack.c.bf16 %v1160, %v1160
        %v1162 = vpack.c.bf16 %v1159, %v1159
        %v1163 = vpack.c.bf16 %v1158, %v1158
        %v1164 = vpack.c.bf16 %v1157, %v1157
        %v1169 = vunpack.c.l.b16 %v1161
        %v1170 = vunpack.c.l.b16 %v1162
        %v1171 = vunpack.c.l.b16 %v1163
        %v1172 = vunpack.c.l.b16 %v1164
        %v1173 = vpack.c.b16 %v1170, %v1169
        %v1174 = vpack.c.b16 %v1172, %v1171
        %1177 = vst [vmem:[#allocation2 + $0x80] sm:$0xff] %v1173
        %1178 = vst [vmem:[#allocation2 + $0x88] sm:$0xff] %v1174
        %1179 = vrot.lane.b32.xlu0 %v896, 45
        %v1180 = vpop.permute.xlu0 %1179
        %1181 = vrot.lane.b32.xlu0 %v897, 45
        %v1182 = vpop.permute.xlu0 %1181
        %1183 = vrot.lane.b32.xlu0 %v898, 45
        %v1184 = vpop.permute.xlu0 %1183
        %1185 = vrot.lane.b32.xlu0 %v899, 45
        %v1186 = vpop.permute.xlu0 %1185
        %vm1187 = vcmp.lt.s32.totalorder %v390, 45
        %v1188 = vsel %vm1187, %v1184, %v1186
        %v1189 = vsel %vm1187, %v1182, %v1184
        %v1190 = vsel %vm1187, %v1180, %v1182
        %v1191 = vsel %vm1187, %v1186, %v1180
        %v1192 = vpack.c.bf16 %v1191, %v1191
        %v1193 = vpack.c.bf16 %v1190, %v1190
        %v1194 = vpack.c.bf16 %v1189, %v1189
        %v1195 = vpack.c.bf16 %v1188, %v1188
        %v1200 = vunpack.c.l.b16 %v1192
        %v1201 = vunpack.c.l.b16 %v1193
        %v1202 = vunpack.c.l.b16 %v1194
        %v1203 = vunpack.c.l.b16 %v1195
        %v1204 = vpack.c.b16 %v1201, %v1200
        %v1205 = vpack.c.b16 %v1203, %v1202
        %1208 = vst [vmem:[#allocation2 + $0x90] sm:$0xff] %v1204
        %1209 = vst [vmem:[#allocation2 + $0x98] sm:$0xff] %v1205
        %1210 = vrot.lane.b32.xlu0 %v896, 44
        %v1211 = vpop.permute.xlu0 %1210
        %1212 = vrot.lane.b32.xlu0 %v897, 44
        %v1213 = vpop.permute.xlu0 %1212
        %1214 = vrot.lane.b32.xlu0 %v898, 44
        %v1215 = vpop.permute.xlu0 %1214
        %1216 = vrot.lane.b32.xlu0 %v899, 44
        %v1217 = vpop.permute.xlu0 %1216
        %vm1218 = vcmp.lt.s32.totalorder %v390, 44
        %v1219 = vsel %vm1218, %v1215, %v1217
        %v1220 = vsel %vm1218, %v1213, %v1215
        %v1221 = vsel %vm1218, %v1211, %v1213
        %v1222 = vsel %vm1218, %v1217, %v1211
        %v1223 = vpack.c.bf16 %v1222, %v1222
        %v1224 = vpack.c.bf16 %v1221, %v1221
        %v1225 = vpack.c.bf16 %v1220, %v1220
        %v1226 = vpack.c.bf16 %v1219, %v1219
        %v1231 = vunpack.c.l.b16 %v1223
        %v1232 = vunpack.c.l.b16 %v1224
        %v1233 = vunpack.c.l.b16 %v1225
        %v1234 = vunpack.c.l.b16 %v1226
        %v1235 = vpack.c.b16 %v1232, %v1231
        %v1236 = vpack.c.b16 %v1234, %v1233
        %1239 = vst [vmem:[#allocation2 + $0xa0] sm:$0xff] %v1235
        %1240 = vst [vmem:[#allocation2 + $0xa8] sm:$0xff] %v1236
        %1241 = vrot.lane.b32.xlu0 %v896, 43
        %v1242 = vpop.permute.xlu0 %1241
        %1243 = vrot.lane.b32.xlu0 %v897, 43
        %v1244 = vpop.permute.xlu0 %1243
        %1245 = vrot.lane.b32.xlu0 %v898, 43
        %v1246 = vpop.permute.xlu0 %1245
        %1247 = vrot.lane.b32.xlu0 %v899, 43
        %v1248 = vpop.permute.xlu0 %1247
        %vm1249 = vcmp.lt.s32.totalorder %v390, 43
        %v1250 = vsel %vm1249, %v1246, %v1248
        %v1251 = vsel %vm1249, %v1244, %v1246
        %v1252 = vsel %vm1249, %v1242, %v1244
        %v1253 = vsel %vm1249, %v1248, %v1242
        %v1254 = vpack.c.bf16 %v1253, %v1253
        %v1255 = vpack.c.bf16 %v1252, %v1252
        %v1256 = vpack.c.bf16 %v1251, %v1251
        %v1257 = vpack.c.bf16 %v1250, %v1250
        %v1262 = vunpack.c.l.b16 %v1254
        %v1263 = vunpack.c.l.b16 %v1255
        %v1264 = vunpack.c.l.b16 %v1256
        %v1265 = vunpack.c.l.b16 %v1257
        %v1266 = vpack.c.b16 %v1263, %v1262
        %v1267 = vpack.c.b16 %v1265, %v1264
        %1270 = vst [vmem:[#allocation2 + $0xb0] sm:$0xff] %v1266
        %1271 = vst [vmem:[#allocation2 + $0xb8] sm:$0xff] %v1267
        %1272 = vrot.lane.b32.xlu0 %v896, 42
        %v1273 = vpop.permute.xlu0 %1272
        %1274 = vrot.lane.b32.xlu0 %v897, 42
        %v1275 = vpop.permute.xlu0 %1274
        %1276 = vrot.lane.b32.xlu0 %v898, 42
        %v1277 = vpop.permute.xlu0 %1276
        %1278 = vrot.lane.b32.xlu0 %v899, 42
        %v1279 = vpop.permute.xlu0 %1278
        %vm1280 = vcmp.lt.s32.totalorder %v390, 42
        %v1281 = vsel %vm1280, %v1277, %v1279
        %v1282 = vsel %vm1280, %v1275, %v1277
        %v1283 = vsel %vm1280, %v1273, %v1275
        %v1284 = vsel %vm1280, %v1279, %v1273
        %v1285 = vpack.c.bf16 %v1284, %v1284
        %v1286 = vpack.c.bf16 %v1283, %v1283
        %v1287 = vpack.c.bf16 %v1282, %v1282
        %v1288 = vpack.c.bf16 %v1281, %v1281
        %v1293 = vunpack.c.l.b16 %v1285
        %v1294 = vunpack.c.l.b16 %v1286
        %v1295 = vunpack.c.l.b16 %v1287
        %v1296 = vunpack.c.l.b16 %v1288
        %v1297 = vpack.c.b16 %v1294, %v1293
        %v1298 = vpack.c.b16 %v1296, %v1295
        %1301 = vst [vmem:[#allocation2 + $0xc0] sm:$0xff] %v1297
        %1302 = vst [vmem:[#allocation2 + $0xc8] sm:$0xff] %v1298
        %1303 = vrot.lane.b32.xlu0 %v896, 41
        %v1304 = vpop.permute.xlu0 %1303
        %1305 = vrot.lane.b32.xlu0 %v897, 41
        %v1306 = vpop.permute.xlu0 %1305
        %1307 = vrot.lane.b32.xlu0 %v898, 41
        %v1308 = vpop.permute.xlu0 %1307
        %1309 = vrot.lane.b32.xlu0 %v899, 41
        %v1310 = vpop.permute.xlu0 %1309
        %vm1311 = vcmp.lt.s32.totalorder %v390, 41
        %v1312 = vsel %vm1311, %v1308, %v1310
        %v1313 = vsel %vm1311, %v1306, %v1308
        %v1314 = vsel %vm1311, %v1304, %v1306
        %v1315 = vsel %vm1311, %v1310, %v1304
        %v1316 = vpack.c.bf16 %v1315, %v1315
        %v1317 = vpack.c.bf16 %v1314, %v1314
        %v1318 = vpack.c.bf16 %v1313, %v1313
        %v1319 = vpack.c.bf16 %v1312, %v1312
        %v1324 = vunpack.c.l.b16 %v1316
        %v1325 = vunpack.c.l.b16 %v1317
        %v1326 = vunpack.c.l.b16 %v1318
        %v1327 = vunpack.c.l.b16 %v1319
        %v1328 = vpack.c.b16 %v1325, %v1324
        %v1329 = vpack.c.b16 %v1327, %v1326
        %1332 = vst [vmem:[#allocation2 + $0xd0] sm:$0xff] %v1328
        %1333 = vst [vmem:[#allocation2 + $0xd8] sm:$0xff] %v1329
        %1334 = vrot.lane.b32.xlu0 %v896, 25
        %v1335 = vpop.permute.xlu0 %1334
        %1336 = vrot.lane.b32.xlu0 %v897, 25
        %v1337 = vpop.permute.xlu0 %1336
        %1338 = vrot.lane.b32.xlu0 %v898, 25
        %v1339 = vpop.permute.xlu0 %1338
        %1340 = vrot.lane.b32.xlu0 %v899, 25
        %v1341 = vpop.permute.xlu0 %1340
        %vm1342 = vcmp.lt.s32.totalorder %v390, 25
        %v1343 = vsel %vm1342, %v1339, %v1341
        %v1344 = vsel %vm1342, %v1337, %v1339
        %v1345 = vsel %vm1342, %v1335, %v1337
        %v1346 = vsel %vm1342, %v1341, %v1335
        %v1347 = vpack.c.bf16 %v1346, %v1346
        %v1348 = vpack.c.bf16 %v1345, %v1345
        %v1349 = vpack.c.bf16 %v1344, %v1344
        %v1350 = vpack.c.bf16 %v1343, %v1343
        %v1355 = vunpack.c.l.b16 %v1347
        %v1356 = vunpack.c.l.b16 %v1348
        %v1357 = vunpack.c.l.b16 %v1349
        %v1358 = vunpack.c.l.b16 %v1350
        %v1359 = vpack.c.b16 %v1356, %v1355
        %v1360 = vpack.c.b16 %v1358, %v1357
        %1363 = vst [vmem:[#allocation2 + $0xe0] sm:$0xff] %v1359
        %1364 = vst [vmem:[#allocation2 + $0xe8] sm:$0xff] %v1360
        %1365 = vrot.lane.b32.xlu0 %v896, 24
        %v1366 = vpop.permute.xlu0 %1365
        %1367 = vrot.lane.b32.xlu0 %v897, 24
        %v1368 = vpop.permute.xlu0 %1367
        %1369 = vrot.lane.b32.xlu0 %v898, 24
        %v1370 = vpop.permute.xlu0 %1369
        %1371 = vrot.lane.b32.xlu0 %v899, 24
        %v1372 = vpop.permute.xlu0 %1371
        %vm1373 = vcmp.lt.s32.totalorder %v390, 24
        %v1374 = vsel %vm1373, %v1370, %v1372
        %v1375 = vsel %vm1373, %v1368, %v1370
        %v1376 = vsel %vm1373, %v1366, %v1368
        %v1377 = vsel %vm1373, %v1372, %v1366
        %v1378 = vpack.c.bf16 %v1377, %v1377
        %v1379 = vpack.c.bf16 %v1376, %v1376
        %v1380 = vpack.c.bf16 %v1375, %v1375
        %v1381 = vpack.c.bf16 %v1374, %v1374
        %v1386 = vunpack.c.l.b16 %v1378
        %v1387 = vunpack.c.l.b16 %v1379
        %v1388 = vunpack.c.l.b16 %v1380
        %v1389 = vunpack.c.l.b16 %v1381
        %v1390 = vpack.c.b16 %v1387, %v1386
        %v1391 = vpack.c.b16 %v1389, %v1388
        %1394 = vst [vmem:[#allocation2 + $0xf0] sm:$0xff] %v1390
        %1395 = vst [vmem:[#allocation2 + $0xf8] sm:$0xff] %v1391
        %1396 = vrot.lane.b32.xlu0 %v896, 23
        %v1397 = vpop.permute.xlu0 %1396
        %1398 = vrot.lane.b32.xlu0 %v897, 23
        %v1399 = vpop.permute.xlu0 %1398
        %1400 = vrot.lane.b32.xlu0 %v898, 23
        %v1401 = vpop.permute.xlu0 %1400
        %1402 = vrot.lane.b32.xlu0 %v899, 23
        %v1403 = vpop.permute.xlu0 %1402
        %v1404 = vsel %vm391, %v1401, %v1403
        %v1405 = vsel %vm391, %v1399, %v1401
        %v1406 = vsel %vm391, %v1397, %v1399
        %v1407 = vsel %vm391, %v1403, %v1397
        %v1408 = vpack.c.bf16 %v1407, %v1407
        %v1409 = vpack.c.bf16 %v1406, %v1406
        %v1410 = vpack.c.bf16 %v1405, %v1405
        %v1411 = vpack.c.bf16 %v1404, %v1404
        %v1416 = vunpack.c.l.b16 %v1408
        %v1417 = vunpack.c.l.b16 %v1409
        %v1418 = vunpack.c.l.b16 %v1410
        %v1419 = vunpack.c.l.b16 %v1411
        %v1420 = vpack.c.b16 %v1417, %v1416
        %v1421 = vpack.c.b16 %v1419, %v1418
        %1424 = vst [vmem:[#allocation2 + $0x100] sm:$0xff] %v1420
        %1425 = vst [vmem:[#allocation2 + $0x108] sm:$0xff] %v1421
        %v1426 = vld [vmem:[%s5] sm:$0xff]
        %v1427 = vld [vmem:[#allocation2] sm:$0xff]
        %v1428 = vld [vmem:[#allocation2 + $0x8] sm:$0xff]
        %v1429 = vld [vmem:[#allocation2 + $0x10] sm:$0xff]
        %v1430 = vld [vmem:[#allocation2 + $0x18] sm:$0xff]
        %v1431 = vld [vmem:[#allocation2 + $0x20] sm:$0xff]
        %v1432 = vld [vmem:[#allocation2 + $0x28] sm:$0xff]
        %v1433 = vld [vmem:[#allocation2 + $0x30] sm:$0xff]
        %v1434 = vld [vmem:[#allocation2 + $0x38] sm:$0xff]
        %v1435 = vld [vmem:[#allocation2 + $0x40] sm:$0xff]
        %v1436 = vld [vmem:[#allocation2 + $0x48] sm:$0xff]
        %v1437 = vld [vmem:[#allocation2 + $0x50] sm:$0xff]
        %v1438 = vld [vmem:[#allocation2 + $0x58] sm:$0xff]
        %v1439 = vld [vmem:[#allocation2 + $0x60] sm:$0xff]
        %v1440 = vld [vmem:[#allocation2 + $0x68] sm:$0xff]
        %v1441 = vld [vmem:[#allocation2 + $0x70] sm:$0xff]
        %v1442 = vld [vmem:[#allocation2 + $0x78] sm:$0xff]
        %v1443 = vld [vmem:[#allocation2 + $0x80] sm:$0xff]
        %v1444 = vld [vmem:[#allocation2 + $0x88] sm:$0xff]
        %v1445 = vld [vmem:[#allocation2 + $0x90] sm:$0xff]
        %v1446 = vld [vmem:[#allocation2 + $0x98] sm:$0xff]
        %v1447 = vld [vmem:[#allocation2 + $0xa0] sm:$0xff]
        %v1448 = vld [vmem:[#allocation2 + $0xa8] sm:$0xff]
        %v1449 = vld [vmem:[#allocation2 + $0xb0] sm:$0xff]
        %v1450 = vld [vmem:[#allocation2 + $0xb8] sm:$0xff]
        %v1451 = vld [vmem:[#allocation2 + $0xc0] sm:$0xff]
        %v1452 = vld [vmem:[#allocation2 + $0xc8] sm:$0xff]
        %v1453 = vld [vmem:[#allocation2 + $0xd0] sm:$0xff]
        %v1454 = vld [vmem:[#allocation2 + $0xd8] sm:$0xff]
        %v1455 = vld [vmem:[#allocation2 + $0xe0] sm:$0xff]
        %v1456 = vld [vmem:[#allocation2 + $0xe8] sm:$0xff]
        %v1457 = vld [vmem:[#allocation2 + $0xf0] sm:$0xff]
        %v1458 = vld [vmem:[#allocation2 + $0xf8] sm:$0xff]
        %v1459 = vld [vmem:[#allocation2 + $0x100] sm:$0xff]
        %v1460 = vld [vmem:[#allocation2 + $0x108] sm:$0xff]
        %1461 = vrot.lane.b32.xlu0 %v896, 22
        %v1462 = vpop.permute.xlu0 %1461
        %1463 = vrot.lane.b32.xlu0 %v897, 22
        %v1464 = vpop.permute.xlu0 %1463
        %1465 = vrot.lane.b32.xlu0 %v898, 22
        %v1466 = vpop.permute.xlu0 %1465
        %1467 = vrot.lane.b32.xlu0 %v899, 22
        %v1468 = vpop.permute.xlu0 %1467
        %v1469 = vsel %vm422, %v1466, %v1468
        %v1470 = vsel %vm422, %v1464, %v1466
        %v1471 = vsel %vm422, %v1462, %v1464
        %v1472 = vsel %vm422, %v1468, %v1462
        %v1473 = vpack.c.bf16 %v1472, %v1472
        %v1474 = vpack.c.bf16 %v1471, %v1471
        %v1475 = vpack.c.bf16 %v1470, %v1470
        %v1476 = vpack.c.bf16 %v1469, %v1469
        %v1481 = vunpack.c.l.b16 %v1473
        %v1482 = vunpack.c.l.b16 %v1474
        %v1483 = vunpack.c.l.b16 %v1475
        %v1484 = vunpack.c.l.b16 %v1476
        %v1485 = vpack.c.b16 %v1482, %v1481
        %v1486 = vpack.c.b16 %v1484, %v1483
        %1489 = vst [vmem:[#allocation2] sm:$0xff] %v1485
        %1490 = vst [vmem:[#allocation2 + $0x8] sm:$0xff] %v1486
        %1491 = vrot.lane.b32.xlu0 %v896, 21
        %v1492 = vpop.permute.xlu0 %1491
        %1493 = vrot.lane.b32.xlu0 %v897, 21
        %v1494 = vpop.permute.xlu0 %1493
        %1495 = vrot.lane.b32.xlu0 %v898, 21
        %v1496 = vpop.permute.xlu0 %1495
        %1497 = vrot.lane.b32.xlu0 %v899, 21
        %v1498 = vpop.permute.xlu0 %1497
        %v1499 = vsel %vm453, %v1496, %v1498
        %v1500 = vsel %vm453, %v1494, %v1496
        %v1501 = vsel %vm453, %v1492, %v1494
        %v1502 = vsel %vm453, %v1498, %v1492
        %v1503 = vpack.c.bf16 %v1502, %v1502
        %v1504 = vpack.c.bf16 %v1501, %v1501
        %v1505 = vpack.c.bf16 %v1500, %v1500
        %v1506 = vpack.c.bf16 %v1499, %v1499
        %v1511 = vunpack.c.l.b16 %v1503
        %v1512 = vunpack.c.l.b16 %v1504
        %v1513 = vunpack.c.l.b16 %v1505
        %v1514 = vunpack.c.l.b16 %v1506
        %v1515 = vpack.c.b16 %v1512, %v1511
        %v1516 = vpack.c.b16 %v1514, %v1513
        %1519 = vst [vmem:[#allocation2 + $0x10] sm:$0xff] %v1515
        %1520 = vst [vmem:[#allocation2 + $0x18] sm:$0xff] %v1516
        %1521 = vrot.lane.b32.xlu0 %v896, 20
        %v1522 = vpop.permute.xlu0 %1521
        %1523 = vrot.lane.b32.xlu0 %v897, 20
        %v1524 = vpop.permute.xlu0 %1523
        %1525 = vrot.lane.b32.xlu0 %v898, 20
        %v1526 = vpop.permute.xlu0 %1525
        %1527 = vrot.lane.b32.xlu0 %v899, 20
        %v1528 = vpop.permute.xlu0 %1527
        %vm1529 = vcmp.lt.s32.totalorder %v390, 20
        %v1530 = vsel %vm1529, %v1526, %v1528
        %v1531 = vsel %vm1529, %v1524, %v1526
        %v1532 = vsel %vm1529, %v1522, %v1524
        %v1533 = vsel %vm1529, %v1528, %v1522
        %v1534 = vpack.c.bf16 %v1533, %v1533
        %v1535 = vpack.c.bf16 %v1532, %v1532
        %v1536 = vpack.c.bf16 %v1531, %v1531
        %v1537 = vpack.c.bf16 %v1530, %v1530
        %v1542 = vunpack.c.l.b16 %v1534
        %v1543 = vunpack.c.l.b16 %v1535
        %v1544 = vunpack.c.l.b16 %v1536
        %v1545 = vunpack.c.l.b16 %v1537
        %v1546 = vpack.c.b16 %v1543, %v1542
        %v1547 = vpack.c.b16 %v1545, %v1544
        %1550 = vst [vmem:[#allocation2 + $0x20] sm:$0xff] %v1546
        %1551 = vst [vmem:[#allocation2 + $0x28] sm:$0xff] %v1547
        %1552 = vrot.lane.b32.xlu0 %v896, 19
        %v1553 = vpop.permute.xlu0 %1552
        %1554 = vrot.lane.b32.xlu0 %v897, 19
        %v1555 = vpop.permute.xlu0 %1554
        %1556 = vrot.lane.b32.xlu0 %v898, 19
        %v1557 = vpop.permute.xlu0 %1556
        %1558 = vrot.lane.b32.xlu0 %v899, 19
        %v1559 = vpop.permute.xlu0 %1558
        %vm1560 = vcmp.lt.s32.totalorder %v390, 19
        %v1561 = vsel %vm1560, %v1557, %v1559
        %v1562 = vsel %vm1560, %v1555, %v1557
        %v1563 = vsel %vm1560, %v1553, %v1555
        %v1564 = vsel %vm1560, %v1559, %v1553
        %v1565 = vpack.c.bf16 %v1564, %v1564
        %v1566 = vpack.c.bf16 %v1563, %v1563
        %v1567 = vpack.c.bf16 %v1562, %v1562
        %v1568 = vpack.c.bf16 %v1561, %v1561
        %v1573 = vunpack.c.l.b16 %v1565
        %v1574 = vunpack.c.l.b16 %v1566
        %v1575 = vunpack.c.l.b16 %v1567
        %v1576 = vunpack.c.l.b16 %v1568
        %v1577 = vpack.c.b16 %v1574, %v1573
        %v1578 = vpack.c.b16 %v1576, %v1575
        %1581 = vst [vmem:[#allocation2 + $0x30] sm:$0xff] %v1577
        %1582 = vst [vmem:[#allocation2 + $0x38] sm:$0xff] %v1578
        %1583 = vrot.lane.b32.xlu0 %v896, 3
        %v1584 = vpop.permute.xlu0 %1583
        %1585 = vrot.lane.b32.xlu0 %v897, 3
        %v1586 = vpop.permute.xlu0 %1585
        %1587 = vrot.lane.b32.xlu0 %v898, 3
        %v1588 = vpop.permute.xlu0 %1587
        %1589 = vrot.lane.b32.xlu0 %v899, 3
        %v1590 = vpop.permute.xlu0 %1589
        %vm1591 = vcmp.lt.s32.totalorder %v390, 3
        %v1592 = vsel %vm1591, %v1588, %v1590
        %v1593 = vsel %vm1591, %v1586, %v1588
        %v1594 = vsel %vm1591, %v1584, %v1586
        %v1595 = vsel %vm1591, %v1590, %v1584
        %v1596 = vpack.c.bf16 %v1595, %v1595
        %v1597 = vpack.c.bf16 %v1594, %v1594
        %v1598 = vpack.c.bf16 %v1593, %v1593
        %v1599 = vpack.c.bf16 %v1592, %v1592
        %v1604 = vunpack.c.l.b16 %v1596
        %v1605 = vunpack.c.l.b16 %v1597
        %v1606 = vunpack.c.l.b16 %v1598
        %v1607 = vunpack.c.l.b16 %v1599
        %v1608 = vpack.c.b16 %v1605, %v1604
        %v1609 = vpack.c.b16 %v1607, %v1606
        %1612 = vst [vmem:[#allocation2 + $0x40] sm:$0xff] %v1608
        %1613 = vst [vmem:[#allocation2 + $0x48] sm:$0xff] %v1609
        %1614 = vrot.lane.b32.xlu0 %v896, 2
        %v1615 = vpop.permute.xlu0 %1614
        %1616 = vrot.lane.b32.xlu0 %v897, 2
        %v1617 = vpop.permute.xlu0 %1616
        %1618 = vrot.lane.b32.xlu0 %v898, 2
        %v1619 = vpop.permute.xlu0 %1618
        %1620 = vrot.lane.b32.xlu0 %v899, 2
        %v1621 = vpop.permute.xlu0 %1620
        %vm1622 = vcmp.lt.s32.totalorder %v390, 2
        %v1623 = vsel %vm1622, %v1619, %v1621
        %v1624 = vsel %vm1622, %v1617, %v1619
        %v1625 = vsel %vm1622, %v1615, %v1617
        %v1626 = vsel %vm1622, %v1621, %v1615
        %v1627 = vpack.c.bf16 %v1626, %v1626
        %v1628 = vpack.c.bf16 %v1625, %v1625
        %v1629 = vpack.c.bf16 %v1624, %v1624
        %v1630 = vpack.c.bf16 %v1623, %v1623
        %v1635 = vunpack.c.l.b16 %v1627
        %v1636 = vunpack.c.l.b16 %v1628
        %v1637 = vunpack.c.l.b16 %v1629
        %v1638 = vunpack.c.l.b16 %v1630
        %v1639 = vpack.c.b16 %v1636, %v1635
        %v1640 = vpack.c.b16 %v1638, %v1637
        %1643 = vst [vmem:[#allocation2 + $0x50] sm:$0xff] %v1639
        %1644 = vst [vmem:[#allocation2 + $0x58] sm:$0xff] %v1640
        %1645 = vrot.lane.b32.xlu0 %v896, 1
        %v1646 = vpop.permute.xlu0 %1645
        %1647 = vrot.lane.b32.xlu0 %v897, 1
        %v1648 = vpop.permute.xlu0 %1647
        %1649 = vrot.lane.b32.xlu0 %v898, 1
        %v1650 = vpop.permute.xlu0 %1649
        %1651 = vrot.lane.b32.xlu0 %v899, 1
        %v1652 = vpop.permute.xlu0 %1651
        %v1653 = vsel %vm484, %v1650, %v1652
        %v1654 = vsel %vm484, %v1648, %v1650
        %v1655 = vsel %vm484, %v1646, %v1648
        %v1656 = vsel %vm484, %v1652, %v1646
        %v1657 = vpack.c.bf16 %v1656, %v1656
        %v1658 = vpack.c.bf16 %v1655, %v1655
        %v1659 = vpack.c.bf16 %v1654, %v1654
        %v1660 = vpack.c.bf16 %v1653, %v1653
        %v1665 = vunpack.c.l.b16 %v1657
        %v1666 = vunpack.c.l.b16 %v1658
        %v1667 = vunpack.c.l.b16 %v1659
        %v1668 = vunpack.c.l.b16 %v1660
        %v1669 = vpack.c.b16 %v1666, %v1665
        %v1670 = vpack.c.b16 %v1668, %v1667
        %1673 = vst [vmem:[#allocation2 + $0x60] sm:$0xff] %v1669
        %1674 = vst [vmem:[#allocation2 + $0x68] sm:$0xff] %v1670
        %v1675 = vpack.c.bf16 %v896, %v896
        %v1676 = vpack.c.bf16 %v897, %v897
        %v1677 = vpack.c.bf16 %v898, %v898
        %v1678 = vpack.c.bf16 %v899, %v899
        %v1683 = vunpack.c.l.b16 %v1675
        %v1684 = vunpack.c.l.b16 %v1676
        %v1685 = vunpack.c.l.b16 %v1677
        %v1686 = vunpack.c.l.b16 %v1678
        %v1687 = vpack.c.b16 %v1684, %v1683
        %v1688 = vpack.c.b16 %v1686, %v1685
        %1691 = vst [vmem:[#allocation2 + $0x70] sm:$0xff] %v1687
        %1692 = vst [vmem:[#allocation2 + $0x78] sm:$0xff] %v1688
        %1693 = vrot.lane.b32.xlu0 %v896, 127
        %v1694 = vpop.permute.xlu0 %1693
        %1695 = vrot.lane.b32.xlu0 %v897, 127
        %v1696 = vpop.permute.xlu0 %1695
        %1697 = vrot.lane.b32.xlu0 %v898, 127
        %v1698 = vpop.permute.xlu0 %1697
        %1699 = vrot.lane.b32.xlu0 %v899, 127
        %v1700 = vpop.permute.xlu0 %1699
        %v1701 = vsel %vm533, %v1698, %v1700
        %v1702 = vsel %vm533, %v1696, %v1698
        %v1703 = vsel %vm533, %v1694, %v1696
        %v1704 = vsel %vm533, %v1700, %v1694
        %v1705 = vpack.c.bf16 %v1703, %v1703
        %v1706 = vpack.c.bf16 %v1702, %v1702
        %v1707 = vpack.c.bf16 %v1701, %v1701
        %v1708 = vpack.c.bf16 %v1704, %v1704
        %v1713 = vunpack.c.l.b16 %v1705
        %v1714 = vunpack.c.l.b16 %v1706
        %v1715 = vunpack.c.l.b16 %v1707
        %v1716 = vunpack.c.l.b16 %v1708
        %v1717 = vpack.c.b16 %v1714, %v1713
        %v1718 = vpack.c.b16 %v1716, %v1715
        %1721 = vst [vmem:[#allocation2 + $0x80] sm:$0xff] %v1717
        %1722 = vst [vmem:[#allocation2 + $0x88] sm:$0xff] %v1718
        %1723 = vrot.lane.b32.xlu0 %v896, 126
        %v1724 = vpop.permute.xlu0 %1723
        %1725 = vrot.lane.b32.xlu0 %v897, 126
        %v1726 = vpop.permute.xlu0 %1725
        %1727 = vrot.lane.b32.xlu0 %v898, 126
        %v1728 = vpop.permute.xlu0 %1727
        %1729 = vrot.lane.b32.xlu0 %v899, 126
        %v1730 = vpop.permute.xlu0 %1729
        %vm1731 = vcmp.lt.s32.totalorder %v390, 126
        %v1732 = vsel %vm1731, %v1728, %v1730
        %v1733 = vsel %vm1731, %v1726, %v1728
        %v1734 = vsel %vm1731, %v1724, %v1726
        %v1735 = vsel %vm1731, %v1730, %v1724
        %v1736 = vpack.c.bf16 %v1734, %v1734
        %v1737 = vpack.c.bf16 %v1733, %v1733
        %v1738 = vpack.c.bf16 %v1732, %v1732
        %v1739 = vpack.c.bf16 %v1735, %v1735
        %v1744 = vunpack.c.l.b16 %v1736
        %v1745 = vunpack.c.l.b16 %v1737
        %v1746 = vunpack.c.l.b16 %v1738
        %v1747 = vunpack.c.l.b16 %v1739
        %v1748 = vpack.c.b16 %v1745, %v1744
        %v1749 = vpack.c.b16 %v1747, %v1746
        %1752 = vst [vmem:[#allocation2 + $0x90] sm:$0xff] %v1748
        %1753 = vst [vmem:[#allocation2 + $0x98] sm:$0xff] %v1749
        %1754 = vrot.lane.b32.xlu0 %v896, 125
        %v1755 = vpop.permute.xlu0 %1754
        %1756 = vrot.lane.b32.xlu0 %v897, 125
        %v1757 = vpop.permute.xlu0 %1756
        %1758 = vrot.lane.b32.xlu0 %v898, 125
        %v1759 = vpop.permute.xlu0 %1758
        %1760 = vrot.lane.b32.xlu0 %v899, 125
        %v1761 = vpop.permute.xlu0 %1760
        %vm1762 = vcmp.lt.s32.totalorder %v390, 125
        %v1763 = vsel %vm1762, %v1759, %v1761
        %v1764 = vsel %vm1762, %v1757, %v1759
        %v1765 = vsel %vm1762, %v1755, %v1757
        %v1766 = vsel %vm1762, %v1761, %v1755
        %v1767 = vpack.c.bf16 %v1765, %v1765
        %v1768 = vpack.c.bf16 %v1764, %v1764
        %v1769 = vpack.c.bf16 %v1763, %v1763
        %v1770 = vpack.c.bf16 %v1766, %v1766
        %v1775 = vunpack.c.l.b16 %v1767
        %v1776 = vunpack.c.l.b16 %v1768
        %v1777 = vunpack.c.l.b16 %v1769
        %v1778 = vunpack.c.l.b16 %v1770
        %v1779 = vpack.c.b16 %v1776, %v1775
        %v1780 = vpack.c.b16 %v1778, %v1777
        %1783 = vst [vmem:[#allocation2 + $0xa0] sm:$0xff] %v1779
        %1784 = vst [vmem:[#allocation2 + $0xa8] sm:$0xff] %v1780
        %1785 = vrot.lane.b32.xlu0 %v896, 109
        %v1786 = vpop.permute.xlu0 %1785
        %1787 = vrot.lane.b32.xlu0 %v897, 109
        %v1788 = vpop.permute.xlu0 %1787
        %1789 = vrot.lane.b32.xlu0 %v898, 109
        %v1790 = vpop.permute.xlu0 %1789
        %1791 = vrot.lane.b32.xlu0 %v899, 109
        %v1792 = vpop.permute.xlu0 %1791
        %vm1793 = vcmp.lt.s32.totalorder %v390, 109
        %v1794 = vsel %vm1793, %v1790, %v1792
        %v1795 = vsel %vm1793, %v1788, %v1790
        %v1796 = vsel %vm1793, %v1786, %v1788
        %v1797 = vsel %vm1793, %v1792, %v1786
        %v1798 = vpack.c.bf16 %v1796, %v1796
        %v1799 = vpack.c.bf16 %v1795, %v1795
        %v1800 = vpack.c.bf16 %v1794, %v1794
        %v1801 = vpack.c.bf16 %v1797, %v1797
        %v1806 = vunpack.c.l.b16 %v1798
        %v1807 = vunpack.c.l.b16 %v1799
        %v1808 = vunpack.c.l.b16 %v1800
        %v1809 = vunpack.c.l.b16 %v1801
        %v1810 = vpack.c.b16 %v1807, %v1806
        %v1811 = vpack.c.b16 %v1809, %v1808
        %1814 = vst [vmem:[#allocation2 + $0xb0] sm:$0xff] %v1810
        %1815 = vst [vmem:[#allocation2 + $0xb8] sm:$0xff] %v1811
        %1816 = vrot.lane.b32.xlu0 %v896, 108
        %v1817 = vpop.permute.xlu0 %1816
        %1818 = vrot.lane.b32.xlu0 %v897, 108
        %v1819 = vpop.permute.xlu0 %1818
        %1820 = vrot.lane.b32.xlu0 %v898, 108
        %v1821 = vpop.permute.xlu0 %1820
        %1822 = vrot.lane.b32.xlu0 %v899, 108
        %v1823 = vpop.permute.xlu0 %1822
        %vm1824 = vcmp.lt.s32.totalorder %v390, 108
        %v1825 = vsel %vm1824, %v1821, %v1823
        %v1826 = vsel %vm1824, %v1819, %v1821
        %v1827 = vsel %vm1824, %v1817, %v1819
        %v1828 = vsel %vm1824, %v1823, %v1817
        %v1829 = vpack.c.bf16 %v1827, %v1827
        %v1830 = vpack.c.bf16 %v1826, %v1826
        %v1831 = vpack.c.bf16 %v1825, %v1825
        %v1832 = vpack.c.bf16 %v1828, %v1828
        %v1837 = vunpack.c.l.b16 %v1829
        %v1838 = vunpack.c.l.b16 %v1830
        %v1839 = vunpack.c.l.b16 %v1831
        %v1840 = vunpack.c.l.b16 %v1832
        %v1841 = vpack.c.b16 %v1838, %v1837
        %v1842 = vpack.c.b16 %v1840, %v1839
        %1845 = vst [vmem:[#allocation2 + $0xc0] sm:$0xff] %v1841
        %1846 = vst [vmem:[#allocation2 + $0xc8] sm:$0xff] %v1842
        %1847 = vrot.lane.b32.xlu0 %v896, 107
        %v1848 = vpop.permute.xlu0 %1847
        %1849 = vrot.lane.b32.xlu0 %v897, 107
        %v1850 = vpop.permute.xlu0 %1849
        %1851 = vrot.lane.b32.xlu0 %v898, 107
        %v1852 = vpop.permute.xlu0 %1851
        %1853 = vrot.lane.b32.xlu0 %v899, 107
        %v1854 = vpop.permute.xlu0 %1853
        %v1855 = vsel %vm564, %v1852, %v1854
        %v1856 = vsel %vm564, %v1850, %v1852
        %v1857 = vsel %vm564, %v1848, %v1850
        %v1858 = vsel %vm564, %v1854, %v1848
        %v1859 = vpack.c.bf16 %v1857, %v1857
        %v1860 = vpack.c.bf16 %v1856, %v1856
        %v1861 = vpack.c.bf16 %v1855, %v1855
        %v1862 = vpack.c.bf16 %v1858, %v1858
        %v1867 = vunpack.c.l.b16 %v1859
        %v1868 = vunpack.c.l.b16 %v1860
        %v1869 = vunpack.c.l.b16 %v1861
        %v1870 = vunpack.c.l.b16 %v1862
        %v1871 = vpack.c.b16 %v1868, %v1867
        %v1872 = vpack.c.b16 %v1870, %v1869
        %1875 = vst [vmem:[#allocation2 + $0xd0] sm:$0xff] %v1871
        %1876 = vst [vmem:[#allocation2 + $0xd8] sm:$0xff] %v1872
        %1877 = vrot.lane.b32.xlu0 %v896, 106
        %v1878 = vpop.permute.xlu0 %1877
        %1879 = vrot.lane.b32.xlu0 %v897, 106
        %v1880 = vpop.permute.xlu0 %1879
        %1881 = vrot.lane.b32.xlu0 %v898, 106
        %v1882 = vpop.permute.xlu0 %1881
        %1883 = vrot.lane.b32.xlu0 %v899, 106
        %v1884 = vpop.permute.xlu0 %1883
        %v1885 = vsel %vm595, %v1882, %v1884
        %v1886 = vsel %vm595, %v1880, %v1882
        %v1887 = vsel %vm595, %v1878, %v1880
        %v1888 = vsel %vm595, %v1884, %v1878
        %v1889 = vpack.c.bf16 %v1887, %v1887
        %v1890 = vpack.c.bf16 %v1886, %v1886
        %v1891 = vpack.c.bf16 %v1885, %v1885
        %v1892 = vpack.c.bf16 %v1888, %v1888
        %v1897 = vunpack.c.l.b16 %v1889
        %v1898 = vunpack.c.l.b16 %v1890
        %v1899 = vunpack.c.l.b16 %v1891
        %v1900 = vunpack.c.l.b16 %v1892
        %v1901 = vpack.c.b16 %v1898, %v1897
        %v1902 = vpack.c.b16 %v1900, %v1899
        %1905 = vst [vmem:[#allocation2 + $0xe0] sm:$0xff] %v1901
        %1906 = vst [vmem:[#allocation2 + $0xe8] sm:$0xff] %v1902
        %1907 = vrot.lane.b32.xlu0 %v896, 105
        %v1908 = vpop.permute.xlu0 %1907
        %1909 = vrot.lane.b32.xlu0 %v897, 105
        %v1910 = vpop.permute.xlu0 %1909
        %1911 = vrot.lane.b32.xlu0 %v898, 105
        %v1912 = vpop.permute.xlu0 %1911
        %1913 = vrot.lane.b32.xlu0 %v899, 105
        %v1914 = vpop.permute.xlu0 %1913
        %v1915 = vsel %vm626, %v1912, %v1914
        %v1916 = vsel %vm626, %v1910, %v1912
        %v1917 = vsel %vm626, %v1908, %v1910
        %v1918 = vsel %vm626, %v1914, %v1908
        %v1919 = vpack.c.bf16 %v1917, %v1917
        %v1920 = vpack.c.bf16 %v1916, %v1916
        %v1921 = vpack.c.bf16 %v1915, %v1915
        %v1922 = vpack.c.bf16 %v1918, %v1918
        %v1927 = vunpack.c.l.b16 %v1919
        %v1928 = vunpack.c.l.b16 %v1920
        %v1929 = vunpack.c.l.b16 %v1921
        %v1930 = vunpack.c.l.b16 %v1922
        %v1931 = vpack.c.b16 %v1928, %v1927
        %v1932 = vpack.c.b16 %v1930, %v1929
        %1935 = vst [vmem:[#allocation2 + $0xf0] sm:$0xff] %v1931
        %1936 = vst [vmem:[#allocation2 + $0xf8] sm:$0xff] %v1932
        %v1937 = vld [vmem:[%s5 + $0x4] sm:$0xff]
        %v1938 = vld [vmem:[#allocation2] sm:$0xff]
        %v1939 = vld [vmem:[#allocation2 + $0x8] sm:$0xff]
        %v1940 = vld [vmem:[#allocation2 + $0x10] sm:$0xff]
        %v1941 = vld [vmem:[#allocation2 + $0x18] sm:$0xff]
        %v1942 = vld [vmem:[#allocation2 + $0x20] sm:$0xff]
        %v1943 = vld [vmem:[#allocation2 + $0x28] sm:$0xff]
        %v1944 = vld [vmem:[#allocation2 + $0x30] sm:$0xff]
        %v1945 = vld [vmem:[#allocation2 + $0x38] sm:$0xff]
        %v1946 = vld [vmem:[#allocation2 + $0x40] sm:$0xff]
        %v1947 = vld [vmem:[#allocation2 + $0x48] sm:$0xff]
        %v1948 = vld [vmem:[#allocation2 + $0x50] sm:$0xff]
        %v1949 = vld [vmem:[#allocation2 + $0x58] sm:$0xff]
        %v1950 = vld [vmem:[#allocation2 + $0x60] sm:$0xff]
        %v1951 = vld [vmem:[#allocation2 + $0x68] sm:$0xff]
        %v1952 = vld [vmem:[#allocation2 + $0x70] sm:$0xff]
        %v1953 = vld [vmem:[#allocation2 + $0x78] sm:$0xff]
        %v1954 = vld [vmem:[#allocation2 + $0x80] sm:$0xff]
        %v1955 = vld [vmem:[#allocation2 + $0x88] sm:$0xff]
        %v1956 = vld [vmem:[#allocation2 + $0x90] sm:$0xff]
        %v1957 = vld [vmem:[#allocation2 + $0x98] sm:$0xff]
        %v1958 = vld [vmem:[#allocation2 + $0xa0] sm:$0xff]
        %v1959 = vld [vmem:[#allocation2 + $0xa8] sm:$0xff]
        %v1960 = vld [vmem:[#allocation2 + $0xb0] sm:$0xff]
        %v1961 = vld [vmem:[#allocation2 + $0xb8] sm:$0xff]
        %v1962 = vld [vmem:[#allocation2 + $0xc0] sm:$0xff]
        %v1963 = vld [vmem:[#allocation2 + $0xc8] sm:$0xff]
        %v1964 = vld [vmem:[#allocation2 + $0xd0] sm:$0xff]
        %v1965 = vld [vmem:[#allocation2 + $0xd8] sm:$0xff]
        %v1966 = vld [vmem:[#allocation2 + $0xe0] sm:$0xff]
        %v1967 = vld [vmem:[#allocation2 + $0xe8] sm:$0xff]
        %v1968 = vld [vmem:[#allocation2 + $0xf0] sm:$0xff]
        %v1969 = vld [vmem:[#allocation2 + $0xf8] sm:$0xff]
        %v1971 = vunpack.c.l.b16 %v1937
        %v1972 = vunpack.c.h.b16 %v1937
        %v1973 = vpack.c.b16 %v1971, %v1971
        %v1974 = vpack.c.b16 %v1972, %v1972
        %1975 = vrot.lane.b32.xlu0 %v1973, 120
        %v1976 = vpop.permute.xlu0 %1975
        %1977 = vrot.lane.b32.xlu0 %v1974, 120
        %v1978 = vpop.permute.xlu0 %1977
        %vm1979 = vcmask 982016
        %v1980 = vsel %vm1979, %v1976, %v1978
        %v2014 = vunpack.c.l.b16 %v1938
        %v2015 = vunpack.c.h.b16 %v1938
        %v2016 = vunpack.c.l.b16 %v1939
        %v2017 = vunpack.c.h.b16 %v1939
        %v2018 = vunpack.c.l.b16 %v1940
        %v2019 = vunpack.c.h.b16 %v1940
        %v2020 = vunpack.c.l.b16 %v1941
        %v2021 = vunpack.c.h.b16 %v1941
        %v2022 = vunpack.c.l.b16 %v1942
        %v2023 = vunpack.c.h.b16 %v1942
        %v2024 = vunpack.c.l.b16 %v1943
        %v2025 = vunpack.c.h.b16 %v1943
        %v2026 = vunpack.c.l.b16 %v1944
        %v2027 = vunpack.c.h.b16 %v1944
        %v2028 = vunpack.c.l.b16 %v1945
        %v2029 = vunpack.c.h.b16 %v1945
        %v2030 = vunpack.c.l.b16 %v1946
        %v2031 = vunpack.c.h.b16 %v1946
        %v2032 = vunpack.c.l.b16 %v1947
        %v2033 = vunpack.c.h.b16 %v1947
        %v2034 = vunpack.c.l.b16 %v1948
        %v2035 = vunpack.c.h.b16 %v1948
        %v2036 = vunpack.c.l.b16 %v1949
        %v2037 = vunpack.c.h.b16 %v1949
        %v2038 = vunpack.c.l.b16 %v1950
        %v2039 = vunpack.c.h.b16 %v1950
        %v2040 = vunpack.c.l.b16 %v1951
        %v2041 = vunpack.c.h.b16 %v1951
        %v2042 = vunpack.c.l.b16 %v1952
        %v2043 = vunpack.c.h.b16 %v1952
        %v2044 = vunpack.c.l.b16 %v1953
        %v2045 = vunpack.c.h.b16 %v1953
        %v2046 = vunpack.c.l.b16 %v1954
        %v2047 = vunpack.c.h.b16 %v1954
        %v2048 = vunpack.c.l.b16 %v1955
        %v2049 = vunpack.c.h.b16 %v1955
        %v2050 = vunpack.c.l.b16 %v1956
        %v2051 = vunpack.c.h.b16 %v1956
        %v2052 = vunpack.c.l.b16 %v1957
        %v2053 = vunpack.c.h.b16 %v1957
        %v2054 = vunpack.c.l.b16 %v1958
        %v2055 = vunpack.c.h.b16 %v1958
        %v2056 = vunpack.c.l.b16 %v1959
        %v2057 = vunpack.c.h.b16 %v1959
        %v2058 = vunpack.c.l.b16 %v1960
        %v2059 = vunpack.c.h.b16 %v1960
        %v2060 = vunpack.c.l.b16 %v1961
        %v2061 = vunpack.c.h.b16 %v1961
        %v2062 = vunpack.c.l.b16 %v1962
        %v2063 = vunpack.c.h.b16 %v1962
        %v2064 = vunpack.c.l.b16 %v1963
        %v2065 = vunpack.c.h.b16 %v1963
        %v2066 = vunpack.c.l.b16 %v1964
        %v2067 = vunpack.c.h.b16 %v1964
        %v2068 = vunpack.c.l.b16 %v1965
        %v2069 = vunpack.c.h.b16 %v1965
        %v2070 = vunpack.c.l.b16 %v1966
        %v2071 = vunpack.c.h.b16 %v1966
        %v2072 = vunpack.c.l.b16 %v1967
        %v2073 = vunpack.c.h.b16 %v1967
        %v2074 = vunpack.c.l.b16 %v1968
        %v2075 = vunpack.c.h.b16 %v1968
        %v2076 = vunpack.c.l.b16 %v1969
        %v2077 = vunpack.c.h.b16 %v1969
        %v2078 = vpack.c.b16 %v2018, %v2014
        %v2079 = vpack.c.b16 %v2019, %v2015
        %v2080 = vpack.c.b16 %v2020, %v2016
        %v2081 = vpack.c.b16 %v2021, %v2017
        %v2082 = vpack.c.b16 %v2026, %v2022
        %v2083 = vpack.c.b16 %v2027, %v2023
        %v2084 = vpack.c.b16 %v2028, %v2024
        %v2085 = vpack.c.b16 %v2029, %v2025
        %v2086 = vpack.c.b16 %v2034, %v2030
        %v2087 = vpack.c.b16 %v2035, %v2031
        %v2088 = vpack.c.b16 %v2036, %v2032
        %v2089 = vpack.c.b16 %v2037, %v2033
        %v2090 = vpack.c.b16 %v2042, %v2038
        %v2091 = vpack.c.b16 %v2043, %v2039
        %v2092 = vpack.c.b16 %v2044, %v2040
        %v2093 = vpack.c.b16 %v2045, %v2041
        %v2094 = vpack.c.b16 %v2050, %v2046
        %v2095 = vpack.c.b16 %v2051, %v2047
        %v2096 = vpack.c.b16 %v2052, %v2048
        %v2097 = vpack.c.b16 %v2053, %v2049
        %v2098 = vpack.c.b16 %v2058, %v2054
        %v2099 = vpack.c.b16 %v2059, %v2055
        %v2100 = vpack.c.b16 %v2060, %v2056
        %v2101 = vpack.c.b16 %v2061, %v2057
        %v2102 = vpack.c.b16 %v2066, %v2062
        %v2103 = vpack.c.b16 %v2067, %v2063
        %v2104 = vpack.c.b16 %v2068, %v2064
        %v2105 = vpack.c.b16 %v2069, %v2065
        %v2106 = vpack.c.b16 %v2074, %v2070
        %v2107 = vpack.c.b16 %v2075, %v2071
        %v2108 = vpack.c.b16 %v2076, %v2072
        %v2109 = vpack.c.b16 %v2077, %v2073
        %2142 = vmatprep.subr.bf16.mxu0 %v2107
        %2143 = vmatpush1.bf16.msra.mxu0 %v2106
        %2144 = vmatprep.subr.bf16.mxu0 %v2103
        %2145 = vmatpush1.bf16.msra.mxu0 %v2102
        %2146 = vmatprep.subr.bf16.mxu0 %v2099
        %2147 = vmatpush1.bf16.msra.mxu0 %v2098
        %2148 = vmatprep.subr.bf16.mxu0 %v2095
        %2149 = vmatpush1.bf16.msra.mxu0 %v2094
        %2150 = vmatprep.subr.bf16.mxu0 %v2091
        %2151 = vmatpush1.bf16.msra.mxu0 %v2090
        %2152 = vmatprep.subr.bf16.mxu0 %v2087
        %2153 = vmatpush1.bf16.msra.mxu0 %v2086
        %2154 = vmatprep.subr.bf16.mxu0 %v2083
        %2155 = vmatpush1.bf16.msra.mxu0 %v2082
        %2156 = vmatprep.subr.bf16.mxu0 %v2079
        %2157 = vmatpush1.bf16.msra.mxu0 %v2078
        %2158 = vmatprep.subr.bf16.mxu0 0
        %2159 = vmatpush2.bf16.msra.mxu0 0
        %2160 = vmatprep.subr.bf16.mxu0 0
        %2161 = vmatpush2.bf16.msra.mxu0 0
        %2162 = vmatprep.subr.bf16.mxu0 0
        %2163 = vmatpush2.bf16.msra.mxu0 0
        %2164 = vmatprep.subr.bf16.mxu0 0
        %2165 = vmatpush2.bf16.msra.mxu0 0
        %2166 = vmatprep.subr.bf16.mxu0 0
        %2167 = vmatpush2.bf16.msra.mxu0 0
        %2168 = vmatprep.subr.bf16.mxu0 0
        %2169 = vmatpush2.bf16.msra.mxu0 0
        %2170 = vmatprep.subr.bf16.mxu0 0
        %2171 = vmatpush2.bf16.msra.mxu0 0
        %2172 = vmatprep.subr.bf16.mxu0 0
        %2173 = vmatpush2.bf16.msra.mxu0 0
        %2174 = vmatprep.mubr.bf16.mxu0 0
        %2175 = vmatmul.mubr.bf16.gmra.mxu0 %v1980
        %v2176 = vpop.f32.mrf.mxu0
        %v2177 = vadd.f32 0.0, %v2176
        %v2178 = vpop.f32.mrf.mxu0
        %v2179 = vadd.f32 0.0, %v2178
        %v2180 = vpop.f32.mrf.mxu0
        %v2181 = vpop.f32.mrf.mxu0
        %2182 = vdwg.mxu0
        %2183 = vmatprep.subr.bf16.mxu0 %v2109
        %2184 = vmatpush1.bf16.msra.mxu0 %v2108
        %2185 = vmatprep.subr.bf16.mxu0 %v2105
        %2186 = vmatpush1.bf16.msra.mxu0 %v2104
        %2187 = vmatprep.subr.bf16.mxu0 %v2101
        %2188 = vmatpush1.bf16.msra.mxu0 %v2100
        %2189 = vmatprep.subr.bf16.mxu0 %v2097
        %2190 = vmatpush1.bf16.msra.mxu0 %v2096
        %2191 = vmatprep.subr.bf16.mxu0 %v2093
        %2192 = vmatpush1.bf16.msra.mxu0 %v2092
        %2193 = vmatprep.subr.bf16.mxu0 %v2089
        %2194 = vmatpush1.bf16.msra.mxu0 %v2088
        %2195 = vmatprep.subr.bf16.mxu0 %v2085
        %2196 = vmatpush1.bf16.msra.mxu0 %v2084
        %2197 = vmatprep.subr.bf16.mxu0 %v2081
        %2198 = vmatpush1.bf16.msra.mxu0 %v2080
        %2199 = vmatprep.subr.bf16.mxu0 0
        %2200 = vmatpush2.bf16.msra.mxu0 0
        %2201 = vmatprep.subr.bf16.mxu0 0
        %2202 = vmatpush2.bf16.msra.mxu0 0
        %2203 = vmatprep.subr.bf16.mxu0 0
        %2204 = vmatpush2.bf16.msra.mxu0 0
        %2205 = vmatprep.subr.bf16.mxu0 0
        %2206 = vmatpush2.bf16.msra.mxu0 0
        %2207 = vmatprep.subr.bf16.mxu0 0
        %2208 = vmatpush2.bf16.msra.mxu0 0
        %2209 = vmatprep.subr.bf16.mxu0 0
        %2210 = vmatpush2.bf16.msra.mxu0 0
        %2211 = vmatprep.subr.bf16.mxu0 0
        %2212 = vmatpush2.bf16.msra.mxu0 0
        %2213 = vmatprep.subr.bf16.mxu0 0
        %2214 = vmatpush2.bf16.msra.mxu0 0
        %2215 = vmatprep.mubr.bf16.mxu0 0
        %2216 = vmatmul.mubr.bf16.gmra.mxu0 %v1980
        %v2217 = vpop.f32.mrf.mxu0
        %v2218 = vadd.f32 0.0, %v2217
        %v2219 = vpop.f32.mrf.mxu0
        %v2220 = vadd.f32 0.0, %v2219
        %v2221 = vpop.f32.mrf.mxu0
        %v2222 = vpop.f32.mrf.mxu0
        %2223 = vdwg.mxu0
        %v2225 = vunpack.c.l.b16 %v1426
        %v2226 = vunpack.c.h.b16 %v1426
        %v2227 = vpack.c.b16 %v2225, %v2225
        %v2228 = vpack.c.b16 %v2226, %v2226
        %v2264 = vunpack.c.l.b16 %v1427
        %v2265 = vunpack.c.h.b16 %v1427
        %v2266 = vunpack.c.l.b16 %v1428
        %v2267 = vunpack.c.h.b16 %v1428
        %v2268 = vunpack.c.l.b16 %v1429
        %v2269 = vunpack.c.h.b16 %v1429
        %v2270 = vunpack.c.l.b16 %v1430
        %v2271 = vunpack.c.h.b16 %v1430
        %v2272 = vunpack.c.l.b16 %v1431
        %v2273 = vunpack.c.h.b16 %v1431
        %v2274 = vunpack.c.l.b16 %v1432
        %v2275 = vunpack.c.h.b16 %v1432
        %v2276 = vunpack.c.l.b16 %v1433
        %v2277 = vunpack.c.h.b16 %v1433
        %v2278 = vunpack.c.l.b16 %v1434
        %v2279 = vunpack.c.h.b16 %v1434
        %v2280 = vunpack.c.l.b16 %v1435
        %v2281 = vunpack.c.h.b16 %v1435
        %v2282 = vunpack.c.l.b16 %v1436
        %v2283 = vunpack.c.h.b16 %v1436
        %v2284 = vunpack.c.l.b16 %v1437
        %v2285 = vunpack.c.h.b16 %v1437
        %v2286 = vunpack.c.l.b16 %v1438
        %v2287 = vunpack.c.h.b16 %v1438
        %v2288 = vunpack.c.l.b16 %v1439
        %v2289 = vunpack.c.h.b16 %v1439
        %v2290 = vunpack.c.l.b16 %v1440
        %v2291 = vunpack.c.h.b16 %v1440
        %v2292 = vunpack.c.l.b16 %v1441
        %v2293 = vunpack.c.h.b16 %v1441
        %v2294 = vunpack.c.l.b16 %v1442
        %v2295 = vunpack.c.h.b16 %v1442
        %v2296 = vunpack.c.l.b16 %v1443
        %v2297 = vunpack.c.h.b16 %v1443
        %v2298 = vunpack.c.l.b16 %v1444
        %v2299 = vunpack.c.h.b16 %v1444
        %v2300 = vunpack.c.l.b16 %v1445
        %v2301 = vunpack.c.h.b16 %v1445
        %v2302 = vunpack.c.l.b16 %v1446
        %v2303 = vunpack.c.h.b16 %v1446
        %v2304 = vunpack.c.l.b16 %v1447
        %v2305 = vunpack.c.h.b16 %v1447
        %v2306 = vunpack.c.l.b16 %v1448
        %v2307 = vunpack.c.h.b16 %v1448
        %v2308 = vunpack.c.l.b16 %v1449
        %v2309 = vunpack.c.h.b16 %v1449
        %v2310 = vunpack.c.l.b16 %v1450
        %v2311 = vunpack.c.h.b16 %v1450
        %v2312 = vunpack.c.l.b16 %v1451
        %v2313 = vunpack.c.h.b16 %v1451
        %v2314 = vunpack.c.l.b16 %v1452
        %v2315 = vunpack.c.h.b16 %v1452
        %v2316 = vunpack.c.l.b16 %v1453
        %v2317 = vunpack.c.h.b16 %v1453
        %v2318 = vunpack.c.l.b16 %v1454
        %v2319 = vunpack.c.h.b16 %v1454
        %v2320 = vunpack.c.l.b16 %v1455
        %v2321 = vunpack.c.h.b16 %v1455
        %v2322 = vunpack.c.l.b16 %v1456
        %v2323 = vunpack.c.h.b16 %v1456
        %v2324 = vunpack.c.l.b16 %v1457
        %v2325 = vunpack.c.h.b16 %v1457
        %v2326 = vunpack.c.l.b16 %v1458
        %v2327 = vunpack.c.h.b16 %v1458
        %v2328 = vunpack.c.l.b16 %v1459
        %v2329 = vunpack.c.h.b16 %v1459
        %v2330 = vunpack.c.l.b16 %v1460
        %v2331 = vunpack.c.h.b16 %v1460
        %v2332 = vpack.c.b16 %v2268, %v2264
        %v2333 = vpack.c.b16 %v2269, %v2265
        %v2334 = vpack.c.b16 %v2270, %v2266
        %v2335 = vpack.c.b16 %v2271, %v2267
        %v2336 = vpack.c.b16 %v2276, %v2272
        %v2337 = vpack.c.b16 %v2277, %v2273
        %v2338 = vpack.c.b16 %v2278, %v2274
        %v2339 = vpack.c.b16 %v2279, %v2275
        %v2340 = vpack.c.b16 %v2284, %v2280
        %v2341 = vpack.c.b16 %v2285, %v2281
        %v2342 = vpack.c.b16 %v2286, %v2282
        %v2343 = vpack.c.b16 %v2287, %v2283
        %v2344 = vpack.c.b16 %v2292, %v2288
        %v2345 = vpack.c.b16 %v2293, %v2289
        %v2346 = vpack.c.b16 %v2294, %v2290
        %v2347 = vpack.c.b16 %v2295, %v2291
        %v2348 = vpack.c.b16 %v2300, %v2296
        %v2349 = vpack.c.b16 %v2301, %v2297
        %v2350 = vpack.c.b16 %v2302, %v2298
        %v2351 = vpack.c.b16 %v2303, %v2299
        %v2352 = vpack.c.b16 %v2308, %v2304
        %v2353 = vpack.c.b16 %v2309, %v2305
        %v2354 = vpack.c.b16 %v2310, %v2306
        %v2355 = vpack.c.b16 %v2311, %v2307
        %v2356 = vpack.c.b16 %v2316, %v2312
        %v2357 = vpack.c.b16 %v2317, %v2313
        %v2358 = vpack.c.b16 %v2318, %v2314
        %v2359 = vpack.c.b16 %v2319, %v2315
        %v2360 = vpack.c.b16 %v2324, %v2320
        %v2361 = vpack.c.b16 %v2325, %v2321
        %v2362 = vpack.c.b16 %v2326, %v2322
        %v2363 = vpack.c.b16 %v2327, %v2323
        %v2364 = vpack.c.b16 %v2328, %v2328
        %v2365 = vpack.c.b16 %v2329, %v2329
        %v2366 = vpack.c.b16 %v2330, %v2330
        %v2367 = vpack.c.b16 %v2331, %v2331
        %vm2400 = vcmask 64512
        %v2402 = vsel %vm2400, %v2228, 0
        %v2405 = vsel %vm768, %v2364, 0
        %v2408 = vsel %vm768, %v2365, 0
        %v2411 = vsel %vm768, %v2366, 0
        %v2414 = vsel %vm768, %v2367, 0
        %2416 = vmatprep.subr.bf16.mxu0 %v2361
        %2417 = vmatpush1.bf16.msra.mxu0 %v2360
        %2418 = vmatprep.subr.bf16.mxu0 %v2357
        %2419 = vmatpush1.bf16.msra.mxu0 %v2356
        %2420 = vmatprep.subr.bf16.mxu0 %v2353
        %2421 = vmatpush1.bf16.msra.mxu0 %v2352
        %2422 = vmatprep.subr.bf16.mxu0 %v2349
        %2423 = vmatpush1.bf16.msra.mxu0 %v2348
        %2424 = vmatprep.subr.bf16.mxu0 %v2345
        %2425 = vmatpush1.bf16.msra.mxu0 %v2344
        %2426 = vmatprep.subr.bf16.mxu0 %v2341
        %2427 = vmatpush1.bf16.msra.mxu0 %v2340
        %2428 = vmatprep.subr.bf16.mxu0 %v2337
        %2429 = vmatpush1.bf16.msra.mxu0 %v2336
        %2430 = vmatprep.subr.bf16.mxu0 %v2333
        %2431 = vmatpush1.bf16.msra.mxu0 %v2332
        %2432 = vmatprep.subr.bf16.mxu0 0
        %2433 = vmatpush2.bf16.msra.mxu0 0
        %2434 = vmatprep.subr.bf16.mxu0 0
        %2435 = vmatpush2.bf16.msra.mxu0 0
        %2436 = vmatprep.subr.bf16.mxu0 0
        %2437 = vmatpush2.bf16.msra.mxu0 0
        %2438 = vmatprep.subr.bf16.mxu0 0
        %2439 = vmatpush2.bf16.msra.mxu0 0
        %2440 = vmatprep.subr.bf16.mxu0 0
        %2441 = vmatpush2.bf16.msra.mxu0 0
        %2442 = vmatprep.subr.bf16.mxu0 0
        %2443 = vmatpush2.bf16.msra.mxu0 0
        %2444 = vmatprep.subr.bf16.mxu0 0
        %2445 = vmatpush2.bf16.msra.mxu0 0
        %2446 = vmatprep.subr.bf16.mxu0 %v2408
        %2447 = vmatpush2.bf16.msra.mxu0 %v2405
        %2448 = vmatprep.mubr.bf16.mxu0 %v2402
        %2449 = vmatmul.mubr.bf16.gmra.mxu0 %v2227
        %v2450 = vpop.f32.mrf.mxu0
        %v2451 = vadd.f32 %v2177, %v2450
        %v2452 = vpop.f32.mrf.mxu0
        %v2453 = vadd.f32 %v2179, %v2452
        %v2454 = vpop.f32.mrf.mxu0
        %v2455 = vpop.f32.mrf.mxu0
        %2456 = vdwg.mxu0
        %2457 = vmatprep.subr.bf16.mxu0 %v2363
        %2458 = vmatpush1.bf16.msra.mxu0 %v2362
        %2459 = vmatprep.subr.bf16.mxu0 %v2359
        %2460 = vmatpush1.bf16.msra.mxu0 %v2358
        %2461 = vmatprep.subr.bf16.mxu0 %v2355
        %2462 = vmatpush1.bf16.msra.mxu0 %v2354
        %2463 = vmatprep.subr.bf16.mxu0 %v2351
        %2464 = vmatpush1.bf16.msra.mxu0 %v2350
        %2465 = vmatprep.subr.bf16.mxu0 %v2347
        %2466 = vmatpush1.bf16.msra.mxu0 %v2346
        %2467 = vmatprep.subr.bf16.mxu0 %v2343
        %2468 = vmatpush1.bf16.msra.mxu0 %v2342
        %2469 = vmatprep.subr.bf16.mxu0 %v2339
        %2470 = vmatpush1.bf16.msra.mxu0 %v2338
        %2471 = vmatprep.subr.bf16.mxu0 %v2335
        %2472 = vmatpush1.bf16.msra.mxu0 %v2334
        %2473 = vmatprep.subr.bf16.mxu0 0
        %2474 = vmatpush2.bf16.msra.mxu0 0
        %2475 = vmatprep.subr.bf16.mxu0 0
        %2476 = vmatpush2.bf16.msra.mxu0 0
        %2477 = vmatprep.subr.bf16.mxu0 0
        %2478 = vmatpush2.bf16.msra.mxu0 0
        %2479 = vmatprep.subr.bf16.mxu0 0
        %2480 = vmatpush2.bf16.msra.mxu0 0
        %2481 = vmatprep.subr.bf16.mxu0 0
        %2482 = vmatpush2.bf16.msra.mxu0 0
        %2483 = vmatprep.subr.bf16.mxu0 0
        %2484 = vmatpush2.bf16.msra.mxu0 0
        %2485 = vmatprep.subr.bf16.mxu0 0
        %2486 = vmatpush2.bf16.msra.mxu0 0
        %2487 = vmatprep.subr.bf16.mxu0 %v2414
        %2488 = vmatpush2.bf16.msra.mxu0 %v2411
        %2489 = vmatprep.mubr.bf16.mxu0 %v2402
        %2490 = vmatmul.mubr.bf16.gmra.mxu0 %v2227
        %v2491 = vpop.f32.mrf.mxu0
        %v2492 = vadd.f32 %v2218, %v2491
        %v2493 = vpop.f32.mrf.mxu0
        %v2494 = vadd.f32 %v2220, %v2493
        %v2495 = vpop.f32.mrf.mxu0
        %v2496 = vpop.f32.mrf.mxu0
        %2497 = vdwg.mxu0
        %2498 = vrot.lane.b32.xlu0 %v896, 104
        %v2499 = vpop.permute.xlu0 %2498
        %2500 = vrot.lane.b32.xlu0 %v897, 104
        %v2501 = vpop.permute.xlu0 %2500
        %2502 = vrot.lane.b32.xlu0 %v898, 104
        %v2503 = vpop.permute.xlu0 %2502
        %2504 = vrot.lane.b32.xlu0 %v899, 104
        %v2505 = vpop.permute.xlu0 %2504
        %vm2506 = vcmp.lt.s32.totalorder %v390, 104
        %v2507 = vsel %vm2506, %v2503, %v2505
        %v2508 = vsel %vm2506, %v2501, %v2503
        %v2509 = vsel %vm2506, %v2499, %v2501
        %v2510 = vsel %vm2506, %v2505, %v2499
        %v2511 = vpack.c.bf16 %v2509, %v2509
        %v2512 = vpack.c.bf16 %v2508, %v2508
        %v2513 = vpack.c.bf16 %v2507, %v2507
        %v2514 = vpack.c.bf16 %v2510, %v2510
        %v2519 = vunpack.c.l.b16 %v2511
        %v2520 = vunpack.c.l.b16 %v2512
        %v2521 = vunpack.c.l.b16 %v2513
        %v2522 = vunpack.c.l.b16 %v2514
        %v2523 = vpack.c.b16 %v2520, %v2519
        %v2524 = vpack.c.b16 %v2522, %v2521
        %2527 = vst [vmem:[#allocation2] sm:$0xff] %v2523
        %2528 = vst [vmem:[#allocation2 + $0x8] sm:$0xff] %v2524
        %2529 = vrot.lane.b32.xlu0 %v896, 103
        %v2530 = vpop.permute.xlu0 %2529
        %2531 = vrot.lane.b32.xlu0 %v897, 103
        %v2532 = vpop.permute.xlu0 %2531
        %2533 = vrot.lane.b32.xlu0 %v898, 103
        %v2534 = vpop.permute.xlu0 %2533
        %2535 = vrot.lane.b32.xlu0 %v899, 103
        %v2536 = vpop.permute.xlu0 %2535
        %vm2537 = vcmp.lt.s32.totalorder %v390, 103
        %v2538 = vsel %vm2537, %v2534, %v2536
        %v2539 = vsel %vm2537, %v2532, %v2534
        %v2540 = vsel %vm2537, %v2530, %v2532
        %v2541 = vsel %vm2537, %v2536, %v2530
        %v2542 = vpack.c.bf16 %v2540, %v2540
        %v2543 = vpack.c.bf16 %v2539, %v2539
        %v2544 = vpack.c.bf16 %v2538, %v2538
        %v2545 = vpack.c.bf16 %v2541, %v2541
        %v2550 = vunpack.c.l.b16 %v2542
        %v2551 = vunpack.c.l.b16 %v2543
        %v2552 = vunpack.c.l.b16 %v2544
        %v2553 = vunpack.c.l.b16 %v2545
        %v2554 = vpack.c.b16 %v2551, %v2550
        %v2555 = vpack.c.b16 %v2553, %v2552
        %2558 = vst [vmem:[#allocation2 + $0x10] sm:$0xff] %v2554
        %2559 = vst [vmem:[#allocation2 + $0x18] sm:$0xff] %v2555
        %2560 = vrot.lane.b32.xlu0 %v896, 87
        %v2561 = vpop.permute.xlu0 %2560
        %2562 = vrot.lane.b32.xlu0 %v897, 87
        %v2563 = vpop.permute.xlu0 %2562
        %2564 = vrot.lane.b32.xlu0 %v898, 87
        %v2565 = vpop.permute.xlu0 %2564
        %2566 = vrot.lane.b32.xlu0 %v899, 87
        %v2567 = vpop.permute.xlu0 %2566
        %vm2568 = vcmp.lt.s32.totalorder %v390, 87
        %v2569 = vsel %vm2568, %v2565, %v2567
        %v2570 = vsel %vm2568, %v2563, %v2565
        %v2571 = vsel %vm2568, %v2561, %v2563
        %v2572 = vsel %vm2568, %v2567, %v2561
        %v2573 = vpack.c.bf16 %v2571, %v2571
        %v2574 = vpack.c.bf16 %v2570, %v2570
        %v2575 = vpack.c.bf16 %v2569, %v2569
        %v2576 = vpack.c.bf16 %v2572, %v2572
        %v2581 = vunpack.c.l.b16 %v2573
        %v2582 = vunpack.c.l.b16 %v2574
        %v2583 = vunpack.c.l.b16 %v2575
        %v2584 = vunpack.c.l.b16 %v2576
        %v2585 = vpack.c.b16 %v2582, %v2581
        %v2586 = vpack.c.b16 %v2584, %v2583
        %2589 = vst [vmem:[#allocation2 + $0x20] sm:$0xff] %v2585
        %2590 = vst [vmem:[#allocation2 + $0x28] sm:$0xff] %v2586
        %2591 = vrot.lane.b32.xlu0 %v896, 86
        %v2592 = vpop.permute.xlu0 %2591
        %2593 = vrot.lane.b32.xlu0 %v897, 86
        %v2594 = vpop.permute.xlu0 %2593
        %2595 = vrot.lane.b32.xlu0 %v898, 86
        %v2596 = vpop.permute.xlu0 %2595
        %2597 = vrot.lane.b32.xlu0 %v899, 86
        %v2598 = vpop.permute.xlu0 %2597
        %vm2599 = vcmp.lt.s32.totalorder %v390, 86
        %v2600 = vsel %vm2599, %v2596, %v2598
        %v2601 = vsel %vm2599, %v2594, %v2596
        %v2602 = vsel %vm2599, %v2592, %v2594
        %v2603 = vsel %vm2599, %v2598, %v2592
        %v2604 = vpack.c.bf16 %v2602, %v2602
        %v2605 = vpack.c.bf16 %v2601, %v2601
        %v2606 = vpack.c.bf16 %v2600, %v2600
        %v2607 = vpack.c.bf16 %v2603, %v2603
        %v2612 = vunpack.c.l.b16 %v2604
        %v2613 = vunpack.c.l.b16 %v2605
        %v2614 = vunpack.c.l.b16 %v2606
        %v2615 = vunpack.c.l.b16 %v2607
        %v2616 = vpack.c.b16 %v2613, %v2612
        %v2617 = vpack.c.b16 %v2615, %v2614
        %2620 = vst [vmem:[#allocation2 + $0x30] sm:$0xff] %v2616
        %2621 = vst [vmem:[#allocation2 + $0x38] sm:$0xff] %v2617
        %2622 = vrot.lane.b32.xlu0 %v896, 85
        %v2623 = vpop.permute.xlu0 %2622
        %2624 = vrot.lane.b32.xlu0 %v897, 85
        %v2625 = vpop.permute.xlu0 %2624
        %2626 = vrot.lane.b32.xlu0 %v898, 85
        %v2627 = vpop.permute.xlu0 %2626
        %2628 = vrot.lane.b32.xlu0 %v899, 85
        %v2629 = vpop.permute.xlu0 %2628
        %vm2630 = vcmp.lt.s32.totalorder %v390, 85
        %v2631 = vsel %vm2630, %v2627, %v2629
        %v2632 = vsel %vm2630, %v2625, %v2627
        %v2633 = vsel %vm2630, %v2623, %v2625
        %v2634 = vsel %vm2630, %v2629, %v2623
        %v2635 = vpack.c.bf16 %v2633, %v2633
        %v2636 = vpack.c.bf16 %v2632, %v2632
        %v2637 = vpack.c.bf16 %v2631, %v2631
        %v2638 = vpack.c.bf16 %v2634, %v2634
        %v2643 = vunpack.c.l.b16 %v2635
        %v2644 = vunpack.c.l.b16 %v2636
        %v2645 = vunpack.c.l.b16 %v2637
        %v2646 = vunpack.c.l.b16 %v2638
        %v2647 = vpack.c.b16 %v2644, %v2643
        %v2648 = vpack.c.b16 %v2646, %v2645
        %2651 = vst [vmem:[#allocation2 + $0x40] sm:$0xff] %v2647
        %2652 = vst [vmem:[#allocation2 + $0x48] sm:$0xff] %v2648
        %2653 = vrot.lane.b32.xlu0 %v896, 84
        %v2654 = vpop.permute.xlu0 %2653
        %2655 = vrot.lane.b32.xlu0 %v897, 84
        %v2656 = vpop.permute.xlu0 %2655
        %2657 = vrot.lane.b32.xlu0 %v898, 84
        %v2658 = vpop.permute.xlu0 %2657
        %2659 = vrot.lane.b32.xlu0 %v899, 84
        %v2660 = vpop.permute.xlu0 %2659
        %vm2661 = vcmp.lt.s32.totalorder %v390, 84
        %v2662 = vsel %vm2661, %v2658, %v2660
        %v2663 = vsel %vm2661, %v2656, %v2658
        %v2664 = vsel %vm2661, %v2654, %v2656
        %v2665 = vsel %vm2661, %v2660, %v2654
        %v2666 = vpack.c.bf16 %v2664, %v2664
        %v2667 = vpack.c.bf16 %v2663, %v2663
        %v2668 = vpack.c.bf16 %v2662, %v2662
        %v2669 = vpack.c.bf16 %v2665, %v2665
        %v2674 = vunpack.c.l.b16 %v2666
        %v2675 = vunpack.c.l.b16 %v2667
        %v2676 = vunpack.c.l.b16 %v2668
        %v2677 = vunpack.c.l.b16 %v2669
        %v2678 = vpack.c.b16 %v2675, %v2674
        %v2679 = vpack.c.b16 %v2677, %v2676
        %2682 = vst [vmem:[#allocation2 + $0x50] sm:$0xff] %v2678
        %2683 = vst [vmem:[#allocation2 + $0x58] sm:$0xff] %v2679
        %2684 = vrot.lane.b32.xlu0 %v896, 83
        %v2685 = vpop.permute.xlu0 %2684
        %2686 = vrot.lane.b32.xlu0 %v897, 83
        %v2687 = vpop.permute.xlu0 %2686
        %2688 = vrot.lane.b32.xlu0 %v898, 83
        %v2689 = vpop.permute.xlu0 %2688
        %2690 = vrot.lane.b32.xlu0 %v899, 83
        %v2691 = vpop.permute.xlu0 %2690
        %vm2692 = vcmp.lt.s32.totalorder %v390, 83
        %v2693 = vsel %vm2692, %v2689, %v2691
        %v2694 = vsel %vm2692, %v2687, %v2689
        %v2695 = vsel %vm2692, %v2685, %v2687
        %v2696 = vsel %vm2692, %v2691, %v2685
        %v2697 = vpack.c.bf16 %v2695, %v2695
        %v2698 = vpack.c.bf16 %v2694, %v2694
        %v2699 = vpack.c.bf16 %v2693, %v2693
        %v2700 = vpack.c.bf16 %v2696, %v2696
        %v2705 = vunpack.c.l.b16 %v2697
        %v2706 = vunpack.c.l.b16 %v2698
        %v2707 = vunpack.c.l.b16 %v2699
        %v2708 = vunpack.c.l.b16 %v2700
        %v2709 = vpack.c.b16 %v2706, %v2705
        %v2710 = vpack.c.b16 %v2708, %v2707
        %2713 = vst [vmem:[#allocation2 + $0x60] sm:$0xff] %v2709
        %2714 = vst [vmem:[#allocation2 + $0x68] sm:$0xff] %v2710
        %2715 = vrot.lane.b32.xlu0 %v896, 82
        %v2716 = vpop.permute.xlu0 %2715
        %2717 = vrot.lane.b32.xlu0 %v897, 82
        %v2718 = vpop.permute.xlu0 %2717
        %2719 = vrot.lane.b32.xlu0 %v898, 82
        %v2720 = vpop.permute.xlu0 %2719
        %2721 = vrot.lane.b32.xlu0 %v899, 82
        %v2722 = vpop.permute.xlu0 %2721
        %vm2723 = vcmp.lt.s32.totalorder %v390, 82
        %v2724 = vsel %vm2723, %v2720, %v2722
        %v2725 = vsel %vm2723, %v2718, %v2720
        %v2726 = vsel %vm2723, %v2716, %v2718
        %v2727 = vsel %vm2723, %v2722, %v2716
        %v2728 = vpack.c.bf16 %v2726, %v2726
        %v2729 = vpack.c.bf16 %v2725, %v2725
        %v2730 = vpack.c.bf16 %v2724, %v2724
        %v2731 = vpack.c.bf16 %v2727, %v2727
        %v2736 = vunpack.c.l.b16 %v2728
        %v2737 = vunpack.c.l.b16 %v2729
        %v2738 = vunpack.c.l.b16 %v2730
        %v2739 = vunpack.c.l.b16 %v2731
        %v2740 = vpack.c.b16 %v2737, %v2736
        %v2741 = vpack.c.b16 %v2739, %v2738
        %2744 = vst [vmem:[#allocation2 + $0x70] sm:$0xff] %v2740
        %2745 = vst [vmem:[#allocation2 + $0x78] sm:$0xff] %v2741
        %2746 = vrot.lane.b32.xlu0 %v896, 81
        %v2747 = vpop.permute.xlu0 %2746
        %2748 = vrot.lane.b32.xlu0 %v897, 81
        %v2749 = vpop.permute.xlu0 %2748
        %2750 = vrot.lane.b32.xlu0 %v898, 81
        %v2751 = vpop.permute.xlu0 %2750
        %2752 = vrot.lane.b32.xlu0 %v899, 81
        %v2753 = vpop.permute.xlu0 %2752
        %vm2754 = vcmp.lt.s32.totalorder %v390, 81
        %v2755 = vsel %vm2754, %v2751, %v2753
        %v2756 = vsel %vm2754, %v2749, %v2751
        %v2757 = vsel %vm2754, %v2747, %v2749
        %v2758 = vsel %vm2754, %v2753, %v2747
        %v2759 = vpack.c.bf16 %v2757, %v2757
        %v2760 = vpack.c.bf16 %v2756, %v2756
        %v2761 = vpack.c.bf16 %v2755, %v2755
        %v2762 = vpack.c.bf16 %v2758, %v2758
        %v2767 = vunpack.c.l.b16 %v2759
        %v2768 = vunpack.c.l.b16 %v2760
        %v2769 = vunpack.c.l.b16 %v2761
        %v2770 = vunpack.c.l.b16 %v2762
        %v2771 = vpack.c.b16 %v2768, %v2767
        %v2772 = vpack.c.b16 %v2770, %v2769
        %2775 = vst [vmem:[#allocation2 + $0x80] sm:$0xff] %v2771
        %2776 = vst [vmem:[#allocation2 + $0x88] sm:$0xff] %v2772
        %v2777 = vpack.c.b16 %v1047, %v1046
        %v2778 = vpack.c.b16 %v1045, %v1048
        %2781 = vst [vmem:[#allocation2 + $0x90] sm:$0xff] %v2777
        %2782 = vst [vmem:[#allocation2 + $0x98] sm:$0xff] %v2778
        %v2783 = vpack.c.b16 %v1078, %v1077
        %v2784 = vpack.c.b16 %v1076, %v1079
        %2787 = vst [vmem:[#allocation2 + $0xa0] sm:$0xff] %v2783
        %2788 = vst [vmem:[#allocation2 + $0xa8] sm:$0xff] %v2784
        %v2789 = vpack.c.b16 %v1109, %v1108
        %v2790 = vpack.c.b16 %v1107, %v1110
        %2793 = vst [vmem:[#allocation2 + $0xb0] sm:$0xff] %v2789
        %2794 = vst [vmem:[#allocation2 + $0xb8] sm:$0xff] %v2790
        %2795 = vrot.lane.b32.xlu0 %v896, 62
        %v2796 = vpop.permute.xlu0 %2795
        %2797 = vrot.lane.b32.xlu0 %v897, 62
        %v2798 = vpop.permute.xlu0 %2797
        %2799 = vrot.lane.b32.xlu0 %v898, 62
        %v2800 = vpop.permute.xlu0 %2799
        %2801 = vrot.lane.b32.xlu0 %v899, 62
        %v2802 = vpop.permute.xlu0 %2801
        %vm2803 = vcmp.lt.s32.totalorder %v390, 62
        %v2804 = vsel %vm2803, %v2800, %v2802
        %v2805 = vsel %vm2803, %v2798, %v2800
        %v2806 = vsel %vm2803, %v2796, %v2798
        %v2807 = vsel %vm2803, %v2802, %v2796
        %v2808 = vpack.c.bf16 %v2806, %v2806
        %v2809 = vpack.c.bf16 %v2805, %v2805
        %v2810 = vpack.c.bf16 %v2804, %v2804
        %v2811 = vpack.c.bf16 %v2807, %v2807
        %v2816 = vunpack.c.l.b16 %v2808
        %v2817 = vunpack.c.l.b16 %v2809
        %v2818 = vunpack.c.l.b16 %v2810
        %v2819 = vunpack.c.l.b16 %v2811
        %v2820 = vpack.c.b16 %v2817, %v2816
        %v2821 = vpack.c.b16 %v2819, %v2818
        %2824 = vst [vmem:[#allocation2 + $0xc0] sm:$0xff] %v2820
        %2825 = vst [vmem:[#allocation2 + $0xc8] sm:$0xff] %v2821
        %2826 = vrot.lane.b32.xlu0 %v896, 61
        %v2827 = vpop.permute.xlu0 %2826
        %2828 = vrot.lane.b32.xlu0 %v897, 61
        %v2829 = vpop.permute.xlu0 %2828
        %2830 = vrot.lane.b32.xlu0 %v898, 61
        %v2831 = vpop.permute.xlu0 %2830
        %2832 = vrot.lane.b32.xlu0 %v899, 61
        %v2833 = vpop.permute.xlu0 %2832
        %vm2834 = vcmp.lt.s32.totalorder %v390, 61
        %v2835 = vsel %vm2834, %v2831, %v2833
        %v2836 = vsel %vm2834, %v2829, %v2831
        %v2837 = vsel %vm2834, %v2827, %v2829
        %v2838 = vsel %vm2834, %v2833, %v2827
        %v2839 = vpack.c.bf16 %v2837, %v2837
        %v2840 = vpack.c.bf16 %v2836, %v2836
        %v2841 = vpack.c.bf16 %v2835, %v2835
        %v2842 = vpack.c.bf16 %v2838, %v2838
        %v2847 = vunpack.c.l.b16 %v2839
        %v2848 = vunpack.c.l.b16 %v2840
        %v2849 = vunpack.c.l.b16 %v2841
        %v2850 = vunpack.c.l.b16 %v2842
        %v2851 = vpack.c.b16 %v2848, %v2847
        %v2852 = vpack.c.b16 %v2850, %v2849
        %2855 = vst [vmem:[#allocation2 + $0xd0] sm:$0xff] %v2851
        %2856 = vst [vmem:[#allocation2 + $0xd8] sm:$0xff] %v2852
        %2857 = vrot.lane.b32.xlu0 %v896, 60
        %v2858 = vpop.permute.xlu0 %2857
        %2859 = vrot.lane.b32.xlu0 %v897, 60
        %v2860 = vpop.permute.xlu0 %2859
        %2861 = vrot.lane.b32.xlu0 %v898, 60
        %v2862 = vpop.permute.xlu0 %2861
        %2863 = vrot.lane.b32.xlu0 %v899, 60
        %v2864 = vpop.permute.xlu0 %2863
        %vm2865 = vcmp.lt.s32.totalorder %v390, 60
        %v2866 = vsel %vm2865, %v2862, %v2864
        %v2867 = vsel %vm2865, %v2860, %v2862
        %v2868 = vsel %vm2865, %v2858, %v2860
        %v2869 = vsel %vm2865, %v2864, %v2858
        %v2870 = vpack.c.bf16 %v2868, %v2868
        %v2871 = vpack.c.bf16 %v2867, %v2867
        %v2872 = vpack.c.bf16 %v2866, %v2866
        %v2873 = vpack.c.bf16 %v2869, %v2869
        %v2878 = vunpack.c.l.b16 %v2870
        %v2879 = vunpack.c.l.b16 %v2871
        %v2880 = vunpack.c.l.b16 %v2872
        %v2881 = vunpack.c.l.b16 %v2873
        %v2882 = vpack.c.b16 %v2879, %v2878
        %v2883 = vpack.c.b16 %v2881, %v2880
        %2886 = vst [vmem:[#allocation2 + $0xe0] sm:$0xff] %v2882
        %2887 = vst [vmem:[#allocation2 + $0xe8] sm:$0xff] %v2883
        %2888 = vrot.lane.b32.xlu0 %v896, 59
        %v2889 = vpop.permute.xlu0 %2888
        %2890 = vrot.lane.b32.xlu0 %v897, 59
        %v2891 = vpop.permute.xlu0 %2890
        %2892 = vrot.lane.b32.xlu0 %v898, 59
        %v2893 = vpop.permute.xlu0 %2892
        %2894 = vrot.lane.b32.xlu0 %v899, 59
        %v2895 = vpop.permute.xlu0 %2894
        %vm2896 = vcmp.lt.s32.totalorder %v390, 59
        %v2897 = vsel %vm2896, %v2893, %v2895
        %v2898 = vsel %vm2896, %v2891, %v2893
        %v2899 = vsel %vm2896, %v2889, %v2891
        %v2900 = vsel %vm2896, %v2895, %v2889
        %v2901 = vpack.c.bf16 %v2899, %v2899
        %v2902 = vpack.c.bf16 %v2898, %v2898
        %v2903 = vpack.c.bf16 %v2897, %v2897
        %v2904 = vpack.c.bf16 %v2900, %v2900
        %v2909 = vunpack.c.l.b16 %v2901
        %v2910 = vunpack.c.l.b16 %v2902
        %v2911 = vunpack.c.l.b16 %v2903
        %v2912 = vunpack.c.l.b16 %v2904
        %v2913 = vpack.c.b16 %v2910, %v2909
        %v2914 = vpack.c.b16 %v2912, %v2911
        %2917 = vst [vmem:[#allocation2 + $0xf0] sm:$0xff] %v2913
        %2918 = vst [vmem:[#allocation2 + $0xf8] sm:$0xff] %v2914
        %v2919 = vld [vmem:[%s5 + $0x8] sm:$0xff]
        %v2920 = vld [vmem:[#allocation2] sm:$0xff]
        %v2921 = vld [vmem:[#allocation2 + $0x8] sm:$0xff]
        %v2922 = vld [vmem:[#allocation2 + $0x10] sm:$0xff]
        %v2923 = vld [vmem:[#allocation2 + $0x18] sm:$0xff]
        %v2924 = vld [vmem:[#allocation2 + $0x20] sm:$0xff]
        %v2925 = vld [vmem:[#allocation2 + $0x28] sm:$0xff]
        %v2926 = vld [vmem:[#allocation2 + $0x30] sm:$0xff]
        %v2927 = vld [vmem:[#allocation2 + $0x38] sm:$0xff]
        %v2928 = vld [vmem:[#allocation2 + $0x40] sm:$0xff]
        %v2929 = vld [vmem:[#allocation2 + $0x48] sm:$0xff]
        %v2930 = vld [vmem:[#allocation2 + $0x50] sm:$0xff]
        %v2931 = vld [vmem:[#allocation2 + $0x58] sm:$0xff]
        %v2932 = vld [vmem:[#allocation2 + $0x60] sm:$0xff]
        %v2933 = vld [vmem:[#allocation2 + $0x68] sm:$0xff]
        %v2934 = vld [vmem:[#allocation2 + $0x70] sm:$0xff]
        %v2935 = vld [vmem:[#allocation2 + $0x78] sm:$0xff]
        %v2936 = vld [vmem:[#allocation2 + $0x80] sm:$0xff]
        %v2937 = vld [vmem:[#allocation2 + $0x88] sm:$0xff]
        %v2938 = vld [vmem:[#allocation2 + $0x90] sm:$0xff]
        %v2939 = vld [vmem:[#allocation2 + $0x98] sm:$0xff]
        %v2940 = vld [vmem:[#allocation2 + $0xa0] sm:$0xff]
        %v2941 = vld [vmem:[#allocation2 + $0xa8] sm:$0xff]
        %v2942 = vld [vmem:[#allocation2 + $0xb0] sm:$0xff]
        %v2943 = vld [vmem:[#allocation2 + $0xb8] sm:$0xff]
        %v2944 = vld [vmem:[#allocation2 + $0xc0] sm:$0xff]
        %v2945 = vld [vmem:[#allocation2 + $0xc8] sm:$0xff]
        %v2946 = vld [vmem:[#allocation2 + $0xd0] sm:$0xff]
        %v2947 = vld [vmem:[#allocation2 + $0xd8] sm:$0xff]
        %v2948 = vld [vmem:[#allocation2 + $0xe0] sm:$0xff]
        %v2949 = vld [vmem:[#allocation2 + $0xe8] sm:$0xff]
        %v2950 = vld [vmem:[#allocation2 + $0xf0] sm:$0xff]
        %v2951 = vld [vmem:[#allocation2 + $0xf8] sm:$0xff]
        %v2953 = vunpack.c.l.b16 %v2919
        %v2954 = vunpack.c.h.b16 %v2919
        %v2955 = vpack.c.b16 %v2953, %v2953
        %v2956 = vpack.c.b16 %v2954, %v2954
        %2957 = vrot.lane.b32.xlu0 %v2955, 120
        %v2958 = vpop.permute.xlu0 %2957
        %2959 = vrot.lane.b32.xlu0 %v2956, 120
        %v2960 = vpop.permute.xlu0 %2959
        %v2961 = vsel %vm1979, %v2958, %v2960
        %v2995 = vunpack.c.l.b16 %v2920
        %v2996 = vunpack.c.h.b16 %v2920
        %v2997 = vunpack.c.l.b16 %v2921
        %v2998 = vunpack.c.h.b16 %v2921
        %v2999 = vunpack.c.l.b16 %v2922
        %v3000 = vunpack.c.h.b16 %v2922
        %v3001 = vunpack.c.l.b16 %v2923
        %v3002 = vunpack.c.h.b16 %v2923
        %v3003 = vunpack.c.l.b16 %v2924
        %v3004 = vunpack.c.h.b16 %v2924
        %v3005 = vunpack.c.l.b16 %v2925
        %v3006 = vunpack.c.h.b16 %v2925
        %v3007 = vunpack.c.l.b16 %v2926
        %v3008 = vunpack.c.h.b16 %v2926
        %v3009 = vunpack.c.l.b16 %v2927
        %v3010 = vunpack.c.h.b16 %v2927
        %v3011 = vunpack.c.l.b16 %v2928
        %v3012 = vunpack.c.h.b16 %v2928
        %v3013 = vunpack.c.l.b16 %v2929
        %v3014 = vunpack.c.h.b16 %v2929
        %v3015 = vunpack.c.l.b16 %v2930
        %v3016 = vunpack.c.h.b16 %v2930
        %v3017 = vunpack.c.l.b16 %v2931
        %v3018 = vunpack.c.h.b16 %v2931
        %v3019 = vunpack.c.l.b16 %v2932
        %v3020 = vunpack.c.h.b16 %v2932
        %v3021 = vunpack.c.l.b16 %v2933
        %v3022 = vunpack.c.h.b16 %v2933
        %v3023 = vunpack.c.l.b16 %v2934
        %v3024 = vunpack.c.h.b16 %v2934
        %v3025 = vunpack.c.l.b16 %v2935
        %v3026 = vunpack.c.h.b16 %v2935
        %v3027 = vunpack.c.l.b16 %v2936
        %v3028 = vunpack.c.h.b16 %v2936
        %v3029 = vunpack.c.l.b16 %v2937
        %v3030 = vunpack.c.h.b16 %v2937
        %v3031 = vunpack.c.l.b16 %v2938
        %v3032 = vunpack.c.h.b16 %v2938
        %v3033 = vunpack.c.l.b16 %v2939
        %v3034 = vunpack.c.h.b16 %v2939
        %v3035 = vunpack.c.l.b16 %v2940
        %v3036 = vunpack.c.h.b16 %v2940
        %v3037 = vunpack.c.l.b16 %v2941
        %v3038 = vunpack.c.h.b16 %v2941
        %v3039 = vunpack.c.l.b16 %v2942
        %v3040 = vunpack.c.h.b16 %v2942
        %v3041 = vunpack.c.l.b16 %v2943
        %v3042 = vunpack.c.h.b16 %v2943
        %v3043 = vunpack.c.l.b16 %v2944
        %v3044 = vunpack.c.h.b16 %v2944
        %v3045 = vunpack.c.l.b16 %v2945
        %v3046 = vunpack.c.h.b16 %v2945
        %v3047 = vunpack.c.l.b16 %v2946
        %v3048 = vunpack.c.h.b16 %v2946
        %v3049 = vunpack.c.l.b16 %v2947
        %v3050 = vunpack.c.h.b16 %v2947
        %v3051 = vunpack.c.l.b16 %v2948
        %v3052 = vunpack.c.h.b16 %v2948
        %v3053 = vunpack.c.l.b16 %v2949
        %v3054 = vunpack.c.h.b16 %v2949
        %v3055 = vunpack.c.l.b16 %v2950
        %v3056 = vunpack.c.h.b16 %v2950
        %v3057 = vunpack.c.l.b16 %v2951
        %v3058 = vunpack.c.h.b16 %v2951
        %v3059 = vpack.c.b16 %v2999, %v2995
        %v3060 = vpack.c.b16 %v3000, %v2996
        %v3061 = vpack.c.b16 %v3001, %v2997
        %v3062 = vpack.c.b16 %v3002, %v2998
        %v3063 = vpack.c.b16 %v3007, %v3003
        %v3064 = vpack.c.b16 %v3008, %v3004
        %v3065 = vpack.c.b16 %v3009, %v3005
        %v3066 = vpack.c.b16 %v3010, %v3006
        %v3067 = vpack.c.b16 %v3015, %v3011
        %v3068 = vpack.c.b16 %v3016, %v3012
        %v3069 = vpack.c.b16 %v3017, %v3013
        %v3070 = vpack.c.b16 %v3018, %v3014
        %v3071 = vpack.c.b16 %v3023, %v3019
        %v3072 = vpack.c.b16 %v3024, %v3020
        %v3073 = vpack.c.b16 %v3025, %v3021
        %v3074 = vpack.c.b16 %v3026, %v3022
        %v3075 = vpack.c.b16 %v3031, %v3027
        %v3076 = vpack.c.b16 %v3032, %v3028
        %v3077 = vpack.c.b16 %v3033, %v3029
        %v3078 = vpack.c.b16 %v3034, %v3030
        %v3079 = vpack.c.b16 %v3039, %v3035
        %v3080 = vpack.c.b16 %v3040, %v3036
        %v3081 = vpack.c.b16 %v3041, %v3037
        %v3082 = vpack.c.b16 %v3042, %v3038
        %v3083 = vpack.c.b16 %v3047, %v3043
        %v3084 = vpack.c.b16 %v3048, %v3044
        %v3085 = vpack.c.b16 %v3049, %v3045
        %v3086 = vpack.c.b16 %v3050, %v3046
        %v3087 = vpack.c.b16 %v3055, %v3051
        %v3088 = vpack.c.b16 %v3056, %v3052
        %v3089 = vpack.c.b16 %v3057, %v3053
        %v3090 = vpack.c.b16 %v3058, %v3054
        %3123 = vmatprep.subr.bf16.mxu0 %v3088
        %3124 = vmatpush1.bf16.msra.mxu0 %v3087
        %3125 = vmatprep.subr.bf16.mxu0 %v3084
        %3126 = vmatpush1.bf16.msra.mxu0 %v3083
        %3127 = vmatprep.subr.bf16.mxu0 %v3080
        %3128 = vmatpush1.bf16.msra.mxu0 %v3079
        %3129 = vmatprep.subr.bf16.mxu0 %v3076
        %3130 = vmatpush1.bf16.msra.mxu0 %v3075
        %3131 = vmatprep.subr.bf16.mxu0 %v3072
        %3132 = vmatpush1.bf16.msra.mxu0 %v3071
        %3133 = vmatprep.subr.bf16.mxu0 %v3068
        %3134 = vmatpush1.bf16.msra.mxu0 %v3067
        %3135 = vmatprep.subr.bf16.mxu0 %v3064
        %3136 = vmatpush1.bf16.msra.mxu0 %v3063
        %3137 = vmatprep.subr.bf16.mxu0 %v3060
        %3138 = vmatpush1.bf16.msra.mxu0 %v3059
        %3139 = vmatprep.subr.bf16.mxu0 0
        %3140 = vmatpush2.bf16.msra.mxu0 0
        %3141 = vmatprep.subr.bf16.mxu0 0
        %3142 = vmatpush2.bf16.msra.mxu0 0
        %3143 = vmatprep.subr.bf16.mxu0 0
        %3144 = vmatpush2.bf16.msra.mxu0 0
        %3145 = vmatprep.subr.bf16.mxu0 0
        %3146 = vmatpush2.bf16.msra.mxu0 0
        %3147 = vmatprep.subr.bf16.mxu0 0
        %3148 = vmatpush2.bf16.msra.mxu0 0
        %3149 = vmatprep.subr.bf16.mxu0 0
        %3150 = vmatpush2.bf16.msra.mxu0 0
        %3151 = vmatprep.subr.bf16.mxu0 0
        %3152 = vmatpush2.bf16.msra.mxu0 0
        %3153 = vmatprep.subr.bf16.mxu0 0
        %3154 = vmatpush2.bf16.msra.mxu0 0
        %3155 = vmatprep.mubr.bf16.mxu0 0
        %3156 = vmatmul.mubr.bf16.gmra.mxu0 %v2961
        %v3157 = vpop.f32.mrf.mxu0
        %v3158 = vadd.f32 0.0, %v3157
        %v3159 = vpop.f32.mrf.mxu0
        %v3160 = vadd.f32 0.0, %v3159
        %v3161 = vpop.f32.mrf.mxu0
        %v3162 = vpop.f32.mrf.mxu0
        %3163 = vdwg.mxu0
        %3164 = vmatprep.subr.bf16.mxu0 %v3090
        %3165 = vmatpush1.bf16.msra.mxu0 %v3089
        %3166 = vmatprep.subr.bf16.mxu0 %v3086
        %3167 = vmatpush1.bf16.msra.mxu0 %v3085
        %3168 = vmatprep.subr.bf16.mxu0 %v3082
        %3169 = vmatpush1.bf16.msra.mxu0 %v3081
        %3170 = vmatprep.subr.bf16.mxu0 %v3078
        %3171 = vmatpush1.bf16.msra.mxu0 %v3077
        %3172 = vmatprep.subr.bf16.mxu0 %v3074
        %3173 = vmatpush1.bf16.msra.mxu0 %v3073
        %3174 = vmatprep.subr.bf16.mxu0 %v3070
        %3175 = vmatpush1.bf16.msra.mxu0 %v3069
        %3176 = vmatprep.subr.bf16.mxu0 %v3066
        %3177 = vmatpush1.bf16.msra.mxu0 %v3065
        %3178 = vmatprep.subr.bf16.mxu0 %v3062
        %3179 = vmatpush1.bf16.msra.mxu0 %v3061
        %3180 = vmatprep.subr.bf16.mxu0 0
        %3181 = vmatpush2.bf16.msra.mxu0 0
        %3182 = vmatprep.subr.bf16.mxu0 0
        %3183 = vmatpush2.bf16.msra.mxu0 0
        %3184 = vmatprep.subr.bf16.mxu0 0
        %3185 = vmatpush2.bf16.msra.mxu0 0
        %3186 = vmatprep.subr.bf16.mxu0 0
        %3187 = vmatpush2.bf16.msra.mxu0 0
        %3188 = vmatprep.subr.bf16.mxu0 0
        %3189 = vmatpush2.bf16.msra.mxu0 0
        %3190 = vmatprep.subr.bf16.mxu0 0
        %3191 = vmatpush2.bf16.msra.mxu0 0
        %3192 = vmatprep.subr.bf16.mxu0 0
        %3193 = vmatpush2.bf16.msra.mxu0 0
        %3194 = vmatprep.subr.bf16.mxu0 0
        %3195 = vmatpush2.bf16.msra.mxu0 0
        %3196 = vmatprep.mubr.bf16.mxu0 0
        %3197 = vmatmul.mubr.bf16.gmra.mxu0 %v2961
        %v3198 = vpop.f32.mrf.mxu0
        %v3199 = vadd.f32 0.0, %v3198
        %v3200 = vpop.f32.mrf.mxu0
        %v3201 = vadd.f32 0.0, %v3200
        %v3202 = vpop.f32.mrf.mxu0
        %v3203 = vpop.f32.mrf.mxu0
        %3204 = vdwg.mxu0
        %v3205 = vadd.f32 %v2451, %v3158
        %v3206 = vadd.f32 %v2453, %v3160
        %v3207 = vadd.f32 %v2492, %v3199
        %v3208 = vadd.f32 %v2494, %v3201
        %v3209 = vsel %vm768, %v3205, -inf
        %v3210 = vrot.slane %v3209, 4
        %v3211 = vmax.f32 %v3209, %v3210
        %v3212 = vrot.slane %v3211, 2
        %v3213 = vmax.f32 %v3211, %v3212
        %v3214 = vrot.slane %v3213, 1
        %v3215 = vmax.f32 %v3213, %v3214
        %v3216 = vsel %vm768, %v3206, -inf
        %v3217 = vrot.slane %v3216, 4
        %v3218 = vmax.f32 %v3216, %v3217
        %v3219 = vrot.slane %v3218, 2
        %v3220 = vmax.f32 %v3218, %v3219
        %v3221 = vrot.slane %v3220, 1
        %v3222 = vmax.f32 %v3220, %v3221
        %v3223 = vsel %vm768, %v3207, -inf
        %v3224 = vrot.slane %v3223, 4
        %v3225 = vmax.f32 %v3223, %v3224
        %v3226 = vrot.slane %v3225, 2
        %v3227 = vmax.f32 %v3225, %v3226
        %v3228 = vrot.slane %v3227, 1
        %v3229 = vmax.f32 %v3227, %v3228
        %v3230 = vsel %vm768, %v3208, -inf
        %v3231 = vrot.slane %v3230, 4
        %v3232 = vmax.f32 %v3230, %v3231
        %v3233 = vrot.slane %v3232, 2
        %v3234 = vmax.f32 %v3232, %v3233
        %v3235 = vrot.slane %v3234, 1
        %v3236 = vmax.f32 %v3234, %v3235
        %v3237 = vsel %vm768, %v3205, 0.0
        %v3238 = vrot.slane %v3237, 4
        %v3239 = vadd.f32 %v3237, %v3238
        %v3240 = vrot.slane %v3239, 2
        %v3241 = vadd.f32 %v3239, %v3240
        %v3242 = vrot.slane %v3241, 1
        %v3243 = vadd.f32 %v3241, %v3242
        %v3244 = vsel %vm768, %v3206, 0.0
        %v3245 = vrot.slane %v3244, 4
        %v3246 = vadd.f32 %v3244, %v3245
        %v3247 = vrot.slane %v3246, 2
        %v3248 = vadd.f32 %v3246, %v3247
        %v3249 = vrot.slane %v3248, 1
        %v3250 = vadd.f32 %v3248, %v3249
        %v3251 = vsel %vm768, %v3207, 0.0
        %v3252 = vrot.slane %v3251, 4
        %v3253 = vadd.f32 %v3251, %v3252
        %v3254 = vrot.slane %v3253, 2
        %v3255 = vadd.f32 %v3253, %v3254
        %v3256 = vrot.slane %v3255, 1
        %v3257 = vadd.f32 %v3255, %v3256
        %v3258 = vsel %vm768, %v3208, 0.0
        %v3259 = vrot.slane %v3258, 4
        %v3260 = vadd.f32 %v3258, %v3259
        %v3261 = vrot.slane %v3260, 2
        %v3262 = vadd.f32 %v3260, %v3261
        %v3263 = vrot.slane %v3262, 1
        %v3264 = vadd.f32 %v3262, %v3263
        %v3265 = vmul.f32 %v3243, 0.25
        %v3266 = vmul.f32 %v3250, 0.25
        %v3267 = vmul.f32 %v3257, 0.25
        %v3268 = vmul.f32 %v3264, 0.25
        %vm3269 = vcmask 1040384
        %v3270 = vsel %vm3269, %v3215, %v3265
        %v3271 = vsel %vm3269, %v3222, %v3266
        %v3272 = vsel %vm3269, %v3229, %v3267
        %v3273 = vsel %vm3269, %v3236, %v3268
        %v3274 = vmul.f32 %v3270, %v879
        %v3275 = vmul.f32 %v3271, %v883
        %v3276 = vmul.f32 %v3272, %v887
        %v3277 = vmul.f32 %v3273, %v891
        %3278 = vrot.lane.b32.xlu0 %v3274, 69
        %v3279 = vpop.permute.xlu0 %3278
        %3280 = vrot.lane.b32.xlu0 %v3275, 69
        %v3281 = vpop.permute.xlu0 %3280
        %3282 = vrot.lane.b32.xlu0 %v3276, 69
        %v3283 = vpop.permute.xlu0 %3282
        %3284 = vrot.lane.b32.xlu0 %v3277, 69
        %v3285 = vpop.permute.xlu0 %3284
        %v3286 = vsel %vm908, %v3283, %v3285
        %v3287 = vsel %vm908, %v3281, %v3283
        %v3288 = vsel %vm908, %v3279, %v3281
        %v3289 = vsel %vm908, %v3285, %v3279
        %s3290 = sld [smem:[#allocation12]]
        %v3291 = vstv %s3290
        %v3292 = vmul.f32 %v3291, %v3289
        %v3293 = vmul.f32 %v3291, %v3288
        %v3294 = vmul.f32 %v3291, %v3287
        %v3295 = vmul.f32 %v3291, %v3286
        %s3296 = sld [smem:[#allocation12 + $0x31]]
        %v3297 = vstv %s3296
        %v3298 = vmul.f32 %v3297, %v3289
        %v3299 = vmul.f32 %v3297, %v3288
        %v3300 = vmul.f32 %v3297, %v3287
        %v3301 = vmul.f32 %v3297, %v3286
        %v3306 = vrot.slane %v3298, 1
        %v3307 = vrot.slane %v3299, 1
        %v3308 = vrot.slane %v3300, 1
        %v3309 = vrot.slane %v3301, 1
        %v3314 = vadd.f32 %v3292, %v3306
        %v3315 = vadd.f32 %v3293, %v3307
        %v3316 = vadd.f32 %v3294, %v3308
        %v3317 = vadd.f32 %v3295, %v3309
        %3318 = vrot.lane.b32.xlu0 %v3274, 68
        %v3319 = vpop.permute.xlu0 %3318
        %3320 = vrot.lane.b32.xlu0 %v3275, 68
        %v3321 = vpop.permute.xlu0 %3320
        %3322 = vrot.lane.b32.xlu0 %v3276, 68
        %v3323 = vpop.permute.xlu0 %3322
        %3324 = vrot.lane.b32.xlu0 %v3277, 68
        %v3325 = vpop.permute.xlu0 %3324
        %v3326 = vsel %vm939, %v3323, %v3325
        %v3327 = vsel %vm939, %v3321, %v3323
        %v3328 = vsel %vm939, %v3319, %v3321
        %v3329 = vsel %vm939, %v3325, %v3319
        %s3330 = sld [smem:[#allocation12 + $0x1]]
        %v3331 = vstv %s3330
        %v3332 = vmul.f32 %v3331, %v3329
        %v3333 = vmul.f32 %v3331, %v3328
        %v3334 = vmul.f32 %v3331, %v3327
        %v3335 = vmul.f32 %v3331, %v3326
        %s3336 = sld [smem:[#allocation12 + $0x32]]
        %v3337 = vstv %s3336
        %v3338 = vmul.f32 %v3337, %v3329
        %v3339 = vmul.f32 %v3337, %v3328
        %v3340 = vmul.f32 %v3337, %v3327
        %v3341 = vmul.f32 %v3337, %v3326
        %v3346 = vrot.slane %v3338, 1
        %v3347 = vrot.slane %v3339, 1
        %v3348 = vrot.slane %v3340, 1
        %v3349 = vrot.slane %v3341, 1
        %v3354 = vadd.f32 %v3332, %v3346
        %v3355 = vadd.f32 %v3333, %v3347
        %v3356 = vadd.f32 %v3334, %v3348
        %v3357 = vadd.f32 %v3335, %v3349
        %v3358 = vadd.f32 %v3314, %v3354
        %v3359 = vadd.f32 %v3315, %v3355
        %v3360 = vadd.f32 %v3316, %v3356
        %v3361 = vadd.f32 %v3317, %v3357
        %3362 = vrot.lane.b32.xlu0 %v3274, 67
        %v3363 = vpop.permute.xlu0 %3362
        %3364 = vrot.lane.b32.xlu0 %v3275, 67
        %v3365 = vpop.permute.xlu0 %3364
        %3366 = vrot.lane.b32.xlu0 %v3276, 67
        %v3367 = vpop.permute.xlu0 %3366
        %3368 = vrot.lane.b32.xlu0 %v3277, 67
        %v3369 = vpop.permute.xlu0 %3368
        %v3370 = vsel %vm970, %v3367, %v3369
        %v3371 = vsel %vm970, %v3365, %v3367
        %v3372 = vsel %vm970, %v3363, %v3365
        %v3373 = vsel %vm970, %v3369, %v3363
        %s3374 = sld [smem:[#allocation12 + $0x2]]
        %v3375 = vstv %s3374
        %v3376 = vmul.f32 %v3375, %v3373
        %v3377 = vmul.f32 %v3375, %v3372
        %v3378 = vmul.f32 %v3375, %v3371
        %v3379 = vmul.f32 %v3375, %v3370
        %s3380 = sld [smem:[#allocation12 + $0x33]]
        %v3381 = vstv %s3380
        %v3382 = vmul.f32 %v3381, %v3373
        %v3383 = vmul.f32 %v3381, %v3372
        %v3384 = vmul.f32 %v3381, %v3371
        %v3385 = vmul.f32 %v3381, %v3370
        %v3390 = vrot.slane %v3382, 1
        %v3391 = vrot.slane %v3383, 1
        %v3392 = vrot.slane %v3384, 1
        %v3393 = vrot.slane %v3385, 1
        %v3398 = vadd.f32 %v3376, %v3390
        %v3399 = vadd.f32 %v3377, %v3391
        %v3400 = vadd.f32 %v3378, %v3392
        %v3401 = vadd.f32 %v3379, %v3393
        %v3402 = vadd.f32 %v3358, %v3398
        %v3403 = vadd.f32 %v3359, %v3399
        %v3404 = vadd.f32 %v3360, %v3400
        %v3405 = vadd.f32 %v3361, %v3401
        %3406 = vrot.lane.b32.xlu0 %v3274, 66
        %v3407 = vpop.permute.xlu0 %3406
        %3408 = vrot.lane.b32.xlu0 %v3275, 66
        %v3409 = vpop.permute.xlu0 %3408
        %3410 = vrot.lane.b32.xlu0 %v3276, 66
        %v3411 = vpop.permute.xlu0 %3410
        %3412 = vrot.lane.b32.xlu0 %v3277, 66
        %v3413 = vpop.permute.xlu0 %3412
        %v3414 = vsel %vm1001, %v3411, %v3413
        %v3415 = vsel %vm1001, %v3409, %v3411
        %v3416 = vsel %vm1001, %v3407, %v3409
        %v3417 = vsel %vm1001, %v3413, %v3407
        %s3418 = sld [smem:[#allocation12 + $0x3]]
        %v3419 = vstv %s3418
        %v3420 = vmul.f32 %v3419, %v3417
        %v3421 = vmul.f32 %v3419, %v3416
        %v3422 = vmul.f32 %v3419, %v3415
        %v3423 = vmul.f32 %v3419, %v3414
        %s3424 = sld [smem:[#allocation12 + $0x34]]
        %v3425 = vstv %s3424
        %v3426 = vmul.f32 %v3425, %v3417
        %v3427 = vmul.f32 %v3425, %v3416
        %v3428 = vmul.f32 %v3425, %v3415
        %v3429 = vmul.f32 %v3425, %v3414
        %v3434 = vrot.slane %v3426, 1
        %v3435 = vrot.slane %v3427, 1
        %v3436 = vrot.slane %v3428, 1
        %v3437 = vrot.slane %v3429, 1
        %v3442 = vadd.f32 %v3420, %v3434
        %v3443 = vadd.f32 %v3421, %v3435
        %v3444 = vadd.f32 %v3422, %v3436
        %v3445 = vadd.f32 %v3423, %v3437
        %v3446 = vadd.f32 %v3402, %v3442
        %v3447 = vadd.f32 %v3403, %v3443
        %v3448 = vadd.f32 %v3404, %v3444
        %v3449 = vadd.f32 %v3405, %v3445
        %3450 = vrot.lane.b32.xlu0 %v3274, 65
        %v3451 = vpop.permute.xlu0 %3450
        %3452 = vrot.lane.b32.xlu0 %v3275, 65
        %v3453 = vpop.permute.xlu0 %3452
        %3454 = vrot.lane.b32.xlu0 %v3276, 65
        %v3455 = vpop.permute.xlu0 %3454
        %3456 = vrot.lane.b32.xlu0 %v3277, 65
        %v3457 = vpop.permute.xlu0 %3456
        %v3458 = vsel %vm1032, %v3455, %v3457
        %v3459 = vsel %vm1032, %v3453, %v3455
        %v3460 = vsel %vm1032, %v3451, %v3453
        %v3461 = vsel %vm1032, %v3457, %v3451
        %s3462 = sld [smem:[#allocation12 + $0x4]]
        %v3463 = vstv %s3462
        %v3464 = vmul.f32 %v3463, %v3461
        %v3465 = vmul.f32 %v3463, %v3460
        %v3466 = vmul.f32 %v3463, %v3459
        %v3467 = vmul.f32 %v3463, %v3458
        %s3468 = sld [smem:[#allocation12 + $0x35]]
        %v3469 = vstv %s3468
        %v3470 = vmul.f32 %v3469, %v3461
        %v3471 = vmul.f32 %v3469, %v3460
        %v3472 = vmul.f32 %v3469, %v3459
        %v3473 = vmul.f32 %v3469, %v3458
        %v3478 = vrot.slane %v3470, 1
        %v3479 = vrot.slane %v3471, 1
        %v3480 = vrot.slane %v3472, 1
        %v3481 = vrot.slane %v3473, 1
        %v3486 = vadd.f32 %v3464, %v3478
        %v3487 = vadd.f32 %v3465, %v3479
        %v3488 = vadd.f32 %v3466, %v3480
        %v3489 = vadd.f32 %v3467, %v3481
        %v3490 = vadd.f32 %v3446, %v3486
        %v3491 = vadd.f32 %v3447, %v3487
        %v3492 = vadd.f32 %v3448, %v3488
        %v3493 = vadd.f32 %v3449, %v3489
        %3494 = vrot.lane.b32.xlu0 %v3274, 64
        %v3495 = vpop.permute.xlu0 %3494
        %3496 = vrot.lane.b32.xlu0 %v3275, 64
        %v3497 = vpop.permute.xlu0 %3496
        %3498 = vrot.lane.b32.xlu0 %v3276, 64
        %v3499 = vpop.permute.xlu0 %3498
        %3500 = vrot.lane.b32.xlu0 %v3277, 64
        %v3501 = vpop.permute.xlu0 %3500
        %v3502 = vsel %vm1063, %v3499, %v3501
        %v3503 = vsel %vm1063, %v3497, %v3499
        %v3504 = vsel %vm1063, %v3495, %v3497
        %v3505 = vsel %vm1063, %v3501, %v3495
        %s3506 = sld [smem:[#allocation12 + $0x5]]
        %v3507 = vstv %s3506
        %v3508 = vmul.f32 %v3507, %v3505
        %v3509 = vmul.f32 %v3507, %v3504
        %v3510 = vmul.f32 %v3507, %v3503
        %v3511 = vmul.f32 %v3507, %v3502
        %s3512 = sld [smem:[#allocation12 + $0x36]]
        %v3513 = vstv %s3512
        %v3514 = vmul.f32 %v3513, %v3505
        %v3515 = vmul.f32 %v3513, %v3504
        %v3516 = vmul.f32 %v3513, %v3503
        %v3517 = vmul.f32 %v3513, %v3502
        %v3522 = vrot.slane %v3514, 1
        %v3523 = vrot.slane %v3515, 1
        %v3524 = vrot.slane %v3516, 1
        %v3525 = vrot.slane %v3517, 1
        %v3530 = vadd.f32 %v3508, %v3522
        %v3531 = vadd.f32 %v3509, %v3523
        %v3532 = vadd.f32 %v3510, %v3524
        %v3533 = vadd.f32 %v3511, %v3525
        %v3534 = vadd.f32 %v3490, %v3530
        %v3535 = vadd.f32 %v3491, %v3531
        %v3536 = vadd.f32 %v3492, %v3532
        %v3537 = vadd.f32 %v3493, %v3533
        %3538 = vrot.lane.b32.xlu0 %v3274, 63
        %v3539 = vpop.permute.xlu0 %3538
        %3540 = vrot.lane.b32.xlu0 %v3275, 63
        %v3541 = vpop.permute.xlu0 %3540
        %3542 = vrot.lane.b32.xlu0 %v3276, 63
        %v3543 = vpop.permute.xlu0 %3542
        %3544 = vrot.lane.b32.xlu0 %v3277, 63
        %v3545 = vpop.permute.xlu0 %3544
        %v3546 = vsel %vm1094, %v3543, %v3545
        %v3547 = vsel %vm1094, %v3541, %v3543
        %v3548 = vsel %vm1094, %v3539, %v3541
        %v3549 = vsel %vm1094, %v3545, %v3539
        %s3550 = sld [smem:[#allocation12 + $0x6]]
        %v3551 = vstv %s3550
        %v3552 = vmul.f32 %v3551, %v3549
        %v3553 = vmul.f32 %v3551, %v3548
        %v3554 = vmul.f32 %v3551, %v3547
        %v3555 = vmul.f32 %v3551, %v3546
        %s3556 = sld [smem:[#allocation12 + $0x37]]
        %v3557 = vstv %s3556
        %v3558 = vmul.f32 %v3557, %v3549
        %v3559 = vmul.f32 %v3557, %v3548
        %v3560 = vmul.f32 %v3557, %v3547
        %v3561 = vmul.f32 %v3557, %v3546
        %v3566 = vrot.slane %v3558, 1
        %v3567 = vrot.slane %v3559, 1
        %v3568 = vrot.slane %v3560, 1
        %v3569 = vrot.slane %v3561, 1
        %v3574 = vadd.f32 %v3552, %v3566
        %v3575 = vadd.f32 %v3553, %v3567
        %v3576 = vadd.f32 %v3554, %v3568
        %v3577 = vadd.f32 %v3555, %v3569
        %v3578 = vadd.f32 %v3534, %v3574
        %v3579 = vadd.f32 %v3535, %v3575
        %v3580 = vadd.f32 %v3536, %v3576
        %v3581 = vadd.f32 %v3537, %v3577
        %3582 = vrot.lane.b32.xlu0 %v3274, 47
        %v3583 = vpop.permute.xlu0 %3582
        %3584 = vrot.lane.b32.xlu0 %v3275, 47
        %v3585 = vpop.permute.xlu0 %3584
        %3586 = vrot.lane.b32.xlu0 %v3276, 47
        %v3587 = vpop.permute.xlu0 %3586
        %3588 = vrot.lane.b32.xlu0 %v3277, 47
        %v3589 = vpop.permute.xlu0 %3588
        %v3590 = vsel %vm1125, %v3587, %v3589
        %v3591 = vsel %vm1125, %v3585, %v3587
        %v3592 = vsel %vm1125, %v3583, %v3585
        %v3593 = vsel %vm1125, %v3589, %v3583
        %s3594 = sld [smem:[#allocation12 + $0x7]]
        %v3595 = vstv %s3594
        %v3596 = vmul.f32 %v3595, %v3593
        %v3597 = vmul.f32 %v3595, %v3592
        %v3598 = vmul.f32 %v3595, %v3591
        %v3599 = vmul.f32 %v3595, %v3590
        %s3600 = sld [smem:[#allocation12 + $0x38]]
        %v3601 = vstv %s3600
        %v3602 = vmul.f32 %v3601, %v3593
        %v3603 = vmul.f32 %v3601, %v3592
        %v3604 = vmul.f32 %v3601, %v3591
        %v3605 = vmul.f32 %v3601, %v3590
        %v3610 = vrot.slane %v3602, 1
        %v3611 = vrot.slane %v3603, 1
        %v3612 = vrot.slane %v3604, 1
        %v3613 = vrot.slane %v3605, 1
        %v3618 = vadd.f32 %v3596, %v3610
        %v3619 = vadd.f32 %v3597, %v3611
        %v3620 = vadd.f32 %v3598, %v3612
        %v3621 = vadd.f32 %v3599, %v3613
        %v3622 = vadd.f32 %v3578, %v3618
        %v3623 = vadd.f32 %v3579, %v3619
        %v3624 = vadd.f32 %v3580, %v3620
        %v3625 = vadd.f32 %v3581, %v3621
        %3626 = vrot.lane.b32.xlu0 %v3274, 46
        %v3627 = vpop.permute.xlu0 %3626
        %3628 = vrot.lane.b32.xlu0 %v3275, 46
        %v3629 = vpop.permute.xlu0 %3628
        %3630 = vrot.lane.b32.xlu0 %v3276, 46
        %v3631 = vpop.permute.xlu0 %3630
        %3632 = vrot.lane.b32.xlu0 %v3277, 46
        %v3633 = vpop.permute.xlu0 %3632
        %v3634 = vsel %vm1156, %v3631, %v3633
        %v3635 = vsel %vm1156, %v3629, %v3631
        %v3636 = vsel %vm1156, %v3627, %v3629
        %v3637 = vsel %vm1156, %v3633, %v3627
        %s3638 = sld [smem:[#allocation12 + $0x8]]
        %v3639 = vstv %s3638
        %v3640 = vmul.f32 %v3639, %v3637
        %v3641 = vmul.f32 %v3639, %v3636
        %v3642 = vmul.f32 %v3639, %v3635
        %v3643 = vmul.f32 %v3639, %v3634
        %s3644 = sld [smem:[#allocation12 + $0x39]]
        %v3645 = vstv %s3644
        %v3646 = vmul.f32 %v3645, %v3637
        %v3647 = vmul.f32 %v3645, %v3636
        %v3648 = vmul.f32 %v3645, %v3635
        %v3649 = vmul.f32 %v3645, %v3634
        %v3654 = vrot.slane %v3646, 1
        %v3655 = vrot.slane %v3647, 1
        %v3656 = vrot.slane %v3648, 1
        %v3657 = vrot.slane %v3649, 1
        %v3662 = vadd.f32 %v3640, %v3654
        %v3663 = vadd.f32 %v3641, %v3655
        %v3664 = vadd.f32 %v3642, %v3656
        %v3665 = vadd.f32 %v3643, %v3657
        %v3666 = vadd.f32 %v3622, %v3662
        %v3667 = vadd.f32 %v3623, %v3663
        %v3668 = vadd.f32 %v3624, %v3664
        %v3669 = vadd.f32 %v3625, %v3665
        %3670 = vrot.lane.b32.xlu0 %v3274, 45
        %v3671 = vpop.permute.xlu0 %3670
        %3672 = vrot.lane.b32.xlu0 %v3275, 45
        %v3673 = vpop.permute.xlu0 %3672
        %3674 = vrot.lane.b32.xlu0 %v3276, 45
        %v3675 = vpop.permute.xlu0 %3674
        %3676 = vrot.lane.b32.xlu0 %v3277, 45
        %v3677 = vpop.permute.xlu0 %3676
        %v3678 = vsel %vm1187, %v3675, %v3677
        %v3679 = vsel %vm1187, %v3673, %v3675
        %v3680 = vsel %vm1187, %v3671, %v3673
        %v3681 = vsel %vm1187, %v3677, %v3671
        %s3682 = sld [smem:[#allocation12 + $0x9]]
        %v3683 = vstv %s3682
        %v3684 = vmul.f32 %v3683, %v3681
        %v3685 = vmul.f32 %v3683, %v3680
        %v3686 = vmul.f32 %v3683, %v3679
        %v3687 = vmul.f32 %v3683, %v3678
        %s3688 = sld [smem:[#allocation12 + $0x3a]]
        %v3689 = vstv %s3688
        %v3690 = vmul.f32 %v3689, %v3681
        %v3691 = vmul.f32 %v3689, %v3680
        %v3692 = vmul.f32 %v3689, %v3679
        %v3693 = vmul.f32 %v3689, %v3678
        %v3698 = vrot.slane %v3690, 1
        %v3699 = vrot.slane %v3691, 1
        %v3700 = vrot.slane %v3692, 1
        %v3701 = vrot.slane %v3693, 1
        %v3706 = vadd.f32 %v3684, %v3698
        %v3707 = vadd.f32 %v3685, %v3699
        %v3708 = vadd.f32 %v3686, %v3700
        %v3709 = vadd.f32 %v3687, %v3701
        %v3710 = vadd.f32 %v3666, %v3706
        %v3711 = vadd.f32 %v3667, %v3707
        %v3712 = vadd.f32 %v3668, %v3708
        %v3713 = vadd.f32 %v3669, %v3709
        %3714 = vrot.lane.b32.xlu0 %v3274, 44
        %v3715 = vpop.permute.xlu0 %3714
        %3716 = vrot.lane.b32.xlu0 %v3275, 44
        %v3717 = vpop.permute.xlu0 %3716
        %3718 = vrot.lane.b32.xlu0 %v3276, 44
        %v3719 = vpop.permute.xlu0 %3718
        %3720 = vrot.lane.b32.xlu0 %v3277, 44
        %v3721 = vpop.permute.xlu0 %3720
        %v3722 = vsel %vm1218, %v3719, %v3721
        %v3723 = vsel %vm1218, %v3717, %v3719
        %v3724 = vsel %vm1218, %v3715, %v3717
        %v3725 = vsel %vm1218, %v3721, %v3715
        %s3726 = sld [smem:[#allocation12 + $0xa]]
        %v3727 = vstv %s3726
        %v3728 = vmul.f32 %v3727, %v3725
        %v3729 = vmul.f32 %v3727, %v3724
        %v3730 = vmul.f32 %v3727, %v3723
        %v3731 = vmul.f32 %v3727, %v3722
        %s3732 = sld [smem:[#allocation12 + $0x3b]]
        %v3733 = vstv %s3732
        %v3734 = vmul.f32 %v3733, %v3725
        %v3735 = vmul.f32 %v3733, %v3724
        %v3736 = vmul.f32 %v3733, %v3723
        %v3737 = vmul.f32 %v3733, %v3722
        %v3742 = vrot.slane %v3734, 1
        %v3743 = vrot.slane %v3735, 1
        %v3744 = vrot.slane %v3736, 1
        %v3745 = vrot.slane %v3737, 1
        %v3750 = vadd.f32 %v3728, %v3742
        %v3751 = vadd.f32 %v3729, %v3743
        %v3752 = vadd.f32 %v3730, %v3744
        %v3753 = vadd.f32 %v3731, %v3745
        %v3754 = vadd.f32 %v3710, %v3750
        %v3755 = vadd.f32 %v3711, %v3751
        %v3756 = vadd.f32 %v3712, %v3752
        %v3757 = vadd.f32 %v3713, %v3753
        %3758 = vrot.lane.b32.xlu0 %v3274, 43
        %v3759 = vpop.permute.xlu0 %3758
        %3760 = vrot.lane.b32.xlu0 %v3275, 43
        %v3761 = vpop.permute.xlu0 %3760
        %3762 = vrot.lane.b32.xlu0 %v3276, 43
        %v3763 = vpop.permute.xlu0 %3762
        %3764 = vrot.lane.b32.xlu0 %v3277, 43
        %v3765 = vpop.permute.xlu0 %3764
        %v3766 = vsel %vm1249, %v3763, %v3765
        %v3767 = vsel %vm1249, %v3761, %v3763
        %v3768 = vsel %vm1249, %v3759, %v3761
        %v3769 = vsel %vm1249, %v3765, %v3759
        %s3770 = sld [smem:[#allocation12 + $0xb]]
        %v3771 = vstv %s3770
        %v3772 = vmul.f32 %v3771, %v3769
        %v3773 = vmul.f32 %v3771, %v3768
        %v3774 = vmul.f32 %v3771, %v3767
        %v3775 = vmul.f32 %v3771, %v3766
        %s3776 = sld [smem:[#allocation12 + $0x3c]]
        %v3777 = vstv %s3776
        %v3778 = vmul.f32 %v3777, %v3769
        %v3779 = vmul.f32 %v3777, %v3768
        %v3780 = vmul.f32 %v3777, %v3767
        %v3781 = vmul.f32 %v3777, %v3766
        %v3786 = vrot.slane %v3778, 1
        %v3787 = vrot.slane %v3779, 1
        %v3788 = vrot.slane %v3780, 1
        %v3789 = vrot.slane %v3781, 1
        %v3794 = vadd.f32 %v3772, %v3786
        %v3795 = vadd.f32 %v3773, %v3787
        %v3796 = vadd.f32 %v3774, %v3788
        %v3797 = vadd.f32 %v3775, %v3789
        %v3798 = vadd.f32 %v3754, %v3794
        %v3799 = vadd.f32 %v3755, %v3795
        %v3800 = vadd.f32 %v3756, %v3796
        %v3801 = vadd.f32 %v3757, %v3797
        %3802 = vrot.lane.b32.xlu0 %v3274, 42
        %v3803 = vpop.permute.xlu0 %3802
        %3804 = vrot.lane.b32.xlu0 %v3275, 42
        %v3805 = vpop.permute.xlu0 %3804
        %3806 = vrot.lane.b32.xlu0 %v3276, 42
        %v3807 = vpop.permute.xlu0 %3806
        %3808 = vrot.lane.b32.xlu0 %v3277, 42
        %v3809 = vpop.permute.xlu0 %3808
        %v3810 = vsel %vm1280, %v3807, %v3809
        %v3811 = vsel %vm1280, %v3805, %v3807
        %v3812 = vsel %vm1280, %v3803, %v3805
        %v3813 = vsel %vm1280, %v3809, %v3803
        %s3814 = sld [smem:[#allocation12 + $0xc]]
        %v3815 = vstv %s3814
        %v3816 = vmul.f32 %v3815, %v3813
        %v3817 = vmul.f32 %v3815, %v3812
        %v3818 = vmul.f32 %v3815, %v3811
        %v3819 = vmul.f32 %v3815, %v3810
        %s3820 = sld [smem:[#allocation12 + $0x3d]]
        %v3821 = vstv %s3820
        %v3822 = vmul.f32 %v3821, %v3813
        %v3823 = vmul.f32 %v3821, %v3812
        %v3824 = vmul.f32 %v3821, %v3811
        %v3825 = vmul.f32 %v3821, %v3810
        %v3830 = vrot.slane %v3822, 1
        %v3831 = vrot.slane %v3823, 1
        %v3832 = vrot.slane %v3824, 1
        %v3833 = vrot.slane %v3825, 1
        %v3838 = vadd.f32 %v3816, %v3830
        %v3839 = vadd.f32 %v3817, %v3831
        %v3840 = vadd.f32 %v3818, %v3832
        %v3841 = vadd.f32 %v3819, %v3833
        %v3842 = vadd.f32 %v3798, %v3838
        %v3843 = vadd.f32 %v3799, %v3839
        %v3844 = vadd.f32 %v3800, %v3840
        %v3845 = vadd.f32 %v3801, %v3841
        %3846 = vrot.lane.b32.xlu0 %v3274, 41
        %v3847 = vpop.permute.xlu0 %3846
        %3848 = vrot.lane.b32.xlu0 %v3275, 41
        %v3849 = vpop.permute.xlu0 %3848
        %3850 = vrot.lane.b32.xlu0 %v3276, 41
        %v3851 = vpop.permute.xlu0 %3850
        %3852 = vrot.lane.b32.xlu0 %v3277, 41
        %v3853 = vpop.permute.xlu0 %3852
        %v3854 = vsel %vm1311, %v3851, %v3853
        %v3855 = vsel %vm1311, %v3849, %v3851
        %v3856 = vsel %vm1311, %v3847, %v3849
        %v3857 = vsel %vm1311, %v3853, %v3847
        %s3858 = sld [smem:[#allocation12 + $0xd]]
        %v3859 = vstv %s3858
        %v3860 = vmul.f32 %v3859, %v3857
        %v3861 = vmul.f32 %v3859, %v3856
        %v3862 = vmul.f32 %v3859, %v3855
        %v3863 = vmul.f32 %v3859, %v3854
        %s3864 = sld [smem:[#allocation12 + $0x3e]]
        %v3865 = vstv %s3864
        %v3866 = vmul.f32 %v3865, %v3857
        %v3867 = vmul.f32 %v3865, %v3856
        %v3868 = vmul.f32 %v3865, %v3855
        %v3869 = vmul.f32 %v3865, %v3854
        %v3874 = vrot.slane %v3866, 1
        %v3875 = vrot.slane %v3867, 1
        %v3876 = vrot.slane %v3868, 1
        %v3877 = vrot.slane %v3869, 1
        %v3882 = vadd.f32 %v3860, %v3874
        %v3883 = vadd.f32 %v3861, %v3875
        %v3884 = vadd.f32 %v3862, %v3876
        %v3885 = vadd.f32 %v3863, %v3877
        %v3886 = vadd.f32 %v3842, %v3882
        %v3887 = vadd.f32 %v3843, %v3883
        %v3888 = vadd.f32 %v3844, %v3884
        %v3889 = vadd.f32 %v3845, %v3885
        %3890 = vrot.lane.b32.xlu0 %v3274, 25
        %v3891 = vpop.permute.xlu0 %3890
        %3892 = vrot.lane.b32.xlu0 %v3275, 25
        %v3893 = vpop.permute.xlu0 %3892
        %3894 = vrot.lane.b32.xlu0 %v3276, 25
        %v3895 = vpop.permute.xlu0 %3894
        %3896 = vrot.lane.b32.xlu0 %v3277, 25
        %v3897 = vpop.permute.xlu0 %3896
        %v3898 = vsel %vm1342, %v3895, %v3897
        %v3899 = vsel %vm1342, %v3893, %v3895
        %v3900 = vsel %vm1342, %v3891, %v3893
        %v3901 = vsel %vm1342, %v3897, %v3891
        %s3902 = sld [smem:[#allocation12 + $0xe]]
        %v3903 = vstv %s3902
        %v3904 = vmul.f32 %v3903, %v3901
        %v3905 = vmul.f32 %v3903, %v3900
        %v3906 = vmul.f32 %v3903, %v3899
        %v3907 = vmul.f32 %v3903, %v3898
        %s3908 = sld [smem:[#allocation12 + $0x3f]]
        %v3909 = vstv %s3908
        %v3910 = vmul.f32 %v3909, %v3901
        %v3911 = vmul.f32 %v3909, %v3900
        %v3912 = vmul.f32 %v3909, %v3899
        %v3913 = vmul.f32 %v3909, %v3898
        %v3918 = vrot.slane %v3910, 1
        %v3919 = vrot.slane %v3911, 1
        %v3920 = vrot.slane %v3912, 1
        %v3921 = vrot.slane %v3913, 1
        %v3926 = vadd.f32 %v3904, %v3918
        %v3927 = vadd.f32 %v3905, %v3919
        %v3928 = vadd.f32 %v3906, %v3920
        %v3929 = vadd.f32 %v3907, %v3921
        %v3930 = vadd.f32 %v3886, %v3926
        %v3931 = vadd.f32 %v3887, %v3927
        %v3932 = vadd.f32 %v3888, %v3928
        %v3933 = vadd.f32 %v3889, %v3929
        %3934 = vrot.lane.b32.xlu0 %v3274, 24
        %v3935 = vpop.permute.xlu0 %3934
        %3936 = vrot.lane.b32.xlu0 %v3275, 24
        %v3937 = vpop.permute.xlu0 %3936
        %3938 = vrot.lane.b32.xlu0 %v3276, 24
        %v3939 = vpop.permute.xlu0 %3938
        %3940 = vrot.lane.b32.xlu0 %v3277, 24
        %v3941 = vpop.permute.xlu0 %3940
        %v3942 = vsel %vm1373, %v3939, %v3941
        %v3943 = vsel %vm1373, %v3937, %v3939
        %v3944 = vsel %vm1373, %v3935, %v3937
        %v3945 = vsel %vm1373, %v3941, %v3935
        %s3946 = sld [smem:[#allocation12 + $0xf]]
        %v3947 = vstv %s3946
        %v3948 = vmul.f32 %v3947, %v3945
        %v3949 = vmul.f32 %v3947, %v3944
        %v3950 = vmul.f32 %v3947, %v3943
        %v3951 = vmul.f32 %v3947, %v3942
        %s3952 = sld [smem:[#allocation12 + $0x40]]
        %v3953 = vstv %s3952
        %v3954 = vmul.f32 %v3953, %v3945
        %v3955 = vmul.f32 %v3953, %v3944
        %v3956 = vmul.f32 %v3953, %v3943
        %v3957 = vmul.f32 %v3953, %v3942
        %v3962 = vrot.slane %v3954, 1
        %v3963 = vrot.slane %v3955, 1
        %v3964 = vrot.slane %v3956, 1
        %v3965 = vrot.slane %v3957, 1
        %v3970 = vadd.f32 %v3948, %v3962
        %v3971 = vadd.f32 %v3949, %v3963
        %v3972 = vadd.f32 %v3950, %v3964
        %v3973 = vadd.f32 %v3951, %v3965
        %v3974 = vadd.f32 %v3930, %v3970
        %v3975 = vadd.f32 %v3931, %v3971
        %v3976 = vadd.f32 %v3932, %v3972
        %v3977 = vadd.f32 %v3933, %v3973
        %3978 = vrot.lane.b32.xlu0 %v3274, 23
        %v3979 = vpop.permute.xlu0 %3978
        %3980 = vrot.lane.b32.xlu0 %v3275, 23
        %v3981 = vpop.permute.xlu0 %3980
        %3982 = vrot.lane.b32.xlu0 %v3276, 23
        %v3983 = vpop.permute.xlu0 %3982
        %3984 = vrot.lane.b32.xlu0 %v3277, 23
        %v3985 = vpop.permute.xlu0 %3984
        %v3986 = vsel %vm391, %v3983, %v3985
        %v3987 = vsel %vm391, %v3981, %v3983
        %v3988 = vsel %vm391, %v3979, %v3981
        %v3989 = vsel %vm391, %v3985, %v3979
        %s3990 = sld [smem:[#allocation12 + $0x10]]
        %v3991 = vstv %s3990
        %v3992 = vmul.f32 %v3991, %v3989
        %v3993 = vmul.f32 %v3991, %v3988
        %v3994 = vmul.f32 %v3991, %v3987
        %v3995 = vmul.f32 %v3991, %v3986
        %s3996 = sld [smem:[#allocation12 + $0x41]]
        %v3997 = vstv %s3996
        %v3998 = vmul.f32 %v3997, %v3989
        %v3999 = vmul.f32 %v3997, %v3988
        %v4000 = vmul.f32 %v3997, %v3987
        %v4001 = vmul.f32 %v3997, %v3986
        %v4006 = vrot.slane %v3998, 1
        %v4007 = vrot.slane %v3999, 1
        %v4008 = vrot.slane %v4000, 1
        %v4009 = vrot.slane %v4001, 1
        %v4014 = vadd.f32 %v3992, %v4006
        %v4015 = vadd.f32 %v3993, %v4007
        %v4016 = vadd.f32 %v3994, %v4008
        %v4017 = vadd.f32 %v3995, %v4009
        %v4018 = vadd.f32 %v3974, %v4014
        %v4019 = vadd.f32 %v3975, %v4015
        %v4020 = vadd.f32 %v3976, %v4016
        %v4021 = vadd.f32 %v3977, %v4017
        %4022 = vrot.lane.b32.xlu0 %v3274, 22
        %v4023 = vpop.permute.xlu0 %4022
        %4024 = vrot.lane.b32.xlu0 %v3275, 22
        %v4025 = vpop.permute.xlu0 %4024
        %4026 = vrot.lane.b32.xlu0 %v3276, 22
        %v4027 = vpop.permute.xlu0 %4026
        %4028 = vrot.lane.b32.xlu0 %v3277, 22
        %v4029 = vpop.permute.xlu0 %4028
        %v4030 = vsel %vm422, %v4027, %v4029
        %v4031 = vsel %vm422, %v4025, %v4027
        %v4032 = vsel %vm422, %v4023, %v4025
        %v4033 = vsel %vm422, %v4029, %v4023
        %s4034 = sld [smem:[#allocation12 + $0x11]]
        %v4035 = vstv %s4034
        %v4036 = vmul.f32 %v4035, %v4033
        %v4037 = vmul.f32 %v4035, %v4032
        %v4038 = vmul.f32 %v4035, %v4031
        %v4039 = vmul.f32 %v4035, %v4030
        %s4040 = sld [smem:[#allocation12 + $0x42]]
        %v4041 = vstv %s4040
        %v4042 = vmul.f32 %v4041, %v4033
        %v4043 = vmul.f32 %v4041, %v4032
        %v4044 = vmul.f32 %v4041, %v4031
        %v4045 = vmul.f32 %v4041, %v4030
        %v4050 = vrot.slane %v4042, 1
        %v4051 = vrot.slane %v4043, 1
        %v4052 = vrot.slane %v4044, 1
        %v4053 = vrot.slane %v4045, 1
        %v4058 = vadd.f32 %v4036, %v4050
        %v4059 = vadd.f32 %v4037, %v4051
        %v4060 = vadd.f32 %v4038, %v4052
        %v4061 = vadd.f32 %v4039, %v4053
        %v4062 = vadd.f32 %v4018, %v4058
        %v4063 = vadd.f32 %v4019, %v4059
        %v4064 = vadd.f32 %v4020, %v4060
        %v4065 = vadd.f32 %v4021, %v4061
        %4066 = vrot.lane.b32.xlu0 %v3274, 21
        %v4067 = vpop.permute.xlu0 %4066
        %4068 = vrot.lane.b32.xlu0 %v3275, 21
        %v4069 = vpop.permute.xlu0 %4068
        %4070 = vrot.lane.b32.xlu0 %v3276, 21
        %v4071 = vpop.permute.xlu0 %4070
        %4072 = vrot.lane.b32.xlu0 %v3277, 21
        %v4073 = vpop.permute.xlu0 %4072
        %v4074 = vsel %vm453, %v4071, %v4073
        %v4075 = vsel %vm453, %v4069, %v4071
        %v4076 = vsel %vm453, %v4067, %v4069
        %v4077 = vsel %vm453, %v4073, %v4067
        %s4078 = sld [smem:[#allocation12 + $0x12]]
        %v4079 = vstv %s4078
        %v4080 = vmul.f32 %v4079, %v4077
        %v4081 = vmul.f32 %v4079, %v4076
        %v4082 = vmul.f32 %v4079, %v4075
        %v4083 = vmul.f32 %v4079, %v4074
        %s4084 = sld [smem:[#allocation12 + $0x43]]
        %v4085 = vstv %s4084
        %v4086 = vmul.f32 %v4085, %v4077
        %v4087 = vmul.f32 %v4085, %v4076
        %v4088 = vmul.f32 %v4085, %v4075
        %v4089 = vmul.f32 %v4085, %v4074
        %v4094 = vrot.slane %v4086, 1
        %v4095 = vrot.slane %v4087, 1
        %v4096 = vrot.slane %v4088, 1
        %v4097 = vrot.slane %v4089, 1
        %v4102 = vadd.f32 %v4080, %v4094
        %v4103 = vadd.f32 %v4081, %v4095
        %v4104 = vadd.f32 %v4082, %v4096
        %v4105 = vadd.f32 %v4083, %v4097
        %v4106 = vadd.f32 %v4062, %v4102
        %v4107 = vadd.f32 %v4063, %v4103
        %v4108 = vadd.f32 %v4064, %v4104
        %v4109 = vadd.f32 %v4065, %v4105
        %4110 = vrot.lane.b32.xlu0 %v3274, 20
        %v4111 = vpop.permute.xlu0 %4110
        %4112 = vrot.lane.b32.xlu0 %v3275, 20
        %v4113 = vpop.permute.xlu0 %4112
        %4114 = vrot.lane.b32.xlu0 %v3276, 20
        %v4115 = vpop.permute.xlu0 %4114
        %4116 = vrot.lane.b32.xlu0 %v3277, 20
        %v4117 = vpop.permute.xlu0 %4116
        %v4118 = vsel %vm1529, %v4115, %v4117
        %v4119 = vsel %vm1529, %v4113, %v4115
        %v4120 = vsel %vm1529, %v4111, %v4113
        %v4121 = vsel %vm1529, %v4117, %v4111
        %s4122 = sld [smem:[#allocation12 + $0x13]]
        %v4123 = vstv %s4122
        %v4124 = vmul.f32 %v4123, %v4121
        %v4125 = vmul.f32 %v4123, %v4120
        %v4126 = vmul.f32 %v4123, %v4119
        %v4127 = vmul.f32 %v4123, %v4118
        %s4128 = sld [smem:[#allocation12 + $0x44]]
        %v4129 = vstv %s4128
        %v4130 = vmul.f32 %v4129, %v4121
        %v4131 = vmul.f32 %v4129, %v4120
        %v4132 = vmul.f32 %v4129, %v4119
        %v4133 = vmul.f32 %v4129, %v4118
        %v4138 = vrot.slane %v4130, 1
        %v4139 = vrot.slane %v4131, 1
        %v4140 = vrot.slane %v4132, 1
        %v4141 = vrot.slane %v4133, 1
        %v4146 = vadd.f32 %v4124, %v4138
        %v4147 = vadd.f32 %v4125, %v4139
        %v4148 = vadd.f32 %v4126, %v4140
        %v4149 = vadd.f32 %v4127, %v4141
        %v4150 = vadd.f32 %v4106, %v4146
        %v4151 = vadd.f32 %v4107, %v4147
        %v4152 = vadd.f32 %v4108, %v4148
        %v4153 = vadd.f32 %v4109, %v4149
        %4154 = vrot.lane.b32.xlu0 %v3274, 19
        %v4155 = vpop.permute.xlu0 %4154
        %4156 = vrot.lane.b32.xlu0 %v3275, 19
        %v4157 = vpop.permute.xlu0 %4156
        %4158 = vrot.lane.b32.xlu0 %v3276, 19
        %v4159 = vpop.permute.xlu0 %4158
        %4160 = vrot.lane.b32.xlu0 %v3277, 19
        %v4161 = vpop.permute.xlu0 %4160
        %v4162 = vsel %vm1560, %v4159, %v4161
        %v4163 = vsel %vm1560, %v4157, %v4159
        %v4164 = vsel %vm1560, %v4155, %v4157
        %v4165 = vsel %vm1560, %v4161, %v4155
        %s4166 = sld [smem:[#allocation12 + $0x14]]
        %v4167 = vstv %s4166
        %v4168 = vmul.f32 %v4167, %v4165
        %v4169 = vmul.f32 %v4167, %v4164
        %v4170 = vmul.f32 %v4167, %v4163
        %v4171 = vmul.f32 %v4167, %v4162
        %s4172 = sld [smem:[#allocation12 + $0x45]]
        %v4173 = vstv %s4172
        %v4174 = vmul.f32 %v4173, %v4165
        %v4175 = vmul.f32 %v4173, %v4164
        %v4176 = vmul.f32 %v4173, %v4163
        %v4177 = vmul.f32 %v4173, %v4162
        %v4182 = vrot.slane %v4174, 1
        %v4183 = vrot.slane %v4175, 1
        %v4184 = vrot.slane %v4176, 1
        %v4185 = vrot.slane %v4177, 1
        %v4190 = vadd.f32 %v4168, %v4182
        %v4191 = vadd.f32 %v4169, %v4183
        %v4192 = vadd.f32 %v4170, %v4184
        %v4193 = vadd.f32 %v4171, %v4185
        %v4194 = vadd.f32 %v4150, %v4190
        %v4195 = vadd.f32 %v4151, %v4191
        %v4196 = vadd.f32 %v4152, %v4192
        %v4197 = vadd.f32 %v4153, %v4193
        %4198 = vrot.lane.b32.xlu0 %v3274, 3
        %v4199 = vpop.permute.xlu0 %4198
        %4200 = vrot.lane.b32.xlu0 %v3275, 3
        %v4201 = vpop.permute.xlu0 %4200
        %4202 = vrot.lane.b32.xlu0 %v3276, 3
        %v4203 = vpop.permute.xlu0 %4202
        %4204 = vrot.lane.b32.xlu0 %v3277, 3
        %v4205 = vpop.permute.xlu0 %4204
        %v4206 = vsel %vm1591, %v4203, %v4205
        %v4207 = vsel %vm1591, %v4201, %v4203
        %v4208 = vsel %vm1591, %v4199, %v4201
        %v4209 = vsel %vm1591, %v4205, %v4199
        %s4210 = sld [smem:[#allocation12 + $0x15]]
        %v4211 = vstv %s4210
        %v4212 = vmul.f32 %v4211, %v4209
        %v4213 = vmul.f32 %v4211, %v4208
        %v4214 = vmul.f32 %v4211, %v4207
        %v4215 = vmul.f32 %v4211, %v4206
        %s4216 = sld [smem:[#allocation12 + $0x46]]
        %v4217 = vstv %s4216
        %v4218 = vmul.f32 %v4217, %v4209
        %v4219 = vmul.f32 %v4217, %v4208
        %v4220 = vmul.f32 %v4217, %v4207
        %v4221 = vmul.f32 %v4217, %v4206
        %v4226 = vrot.slane %v4218, 1
        %v4227 = vrot.slane %v4219, 1
        %v4228 = vrot.slane %v4220, 1
        %v4229 = vrot.slane %v4221, 1
        %v4234 = vadd.f32 %v4212, %v4226
        %v4235 = vadd.f32 %v4213, %v4227
        %v4236 = vadd.f32 %v4214, %v4228
        %v4237 = vadd.f32 %v4215, %v4229
        %v4238 = vadd.f32 %v4194, %v4234
        %v4239 = vadd.f32 %v4195, %v4235
        %v4240 = vadd.f32 %v4196, %v4236
        %v4241 = vadd.f32 %v4197, %v4237
        %4242 = vrot.lane.b32.xlu0 %v3274, 2
        %v4243 = vpop.permute.xlu0 %4242
        %4244 = vrot.lane.b32.xlu0 %v3275, 2
        %v4245 = vpop.permute.xlu0 %4244
        %4246 = vrot.lane.b32.xlu0 %v3276, 2
        %v4247 = vpop.permute.xlu0 %4246
        %4248 = vrot.lane.b32.xlu0 %v3277, 2
        %v4249 = vpop.permute.xlu0 %4248
        %v4250 = vsel %vm1622, %v4247, %v4249
        %v4251 = vsel %vm1622, %v4245, %v4247
        %v4252 = vsel %vm1622, %v4243, %v4245
        %v4253 = vsel %vm1622, %v4249, %v4243
        %s4254 = sld [smem:[#allocation12 + $0x16]]
        %v4255 = vstv %s4254
        %v4256 = vmul.f32 %v4255, %v4253
        %v4257 = vmul.f32 %v4255, %v4252
        %v4258 = vmul.f32 %v4255, %v4251
        %v4259 = vmul.f32 %v4255, %v4250
        %s4260 = sld [smem:[#allocation12 + $0x47]]
        %v4261 = vstv %s4260
        %v4262 = vmul.f32 %v4261, %v4253
        %v4263 = vmul.f32 %v4261, %v4252
        %v4264 = vmul.f32 %v4261, %v4251
        %v4265 = vmul.f32 %v4261, %v4250
        %v4270 = vrot.slane %v4262, 1
        %v4271 = vrot.slane %v4263, 1
        %v4272 = vrot.slane %v4264, 1
        %v4273 = vrot.slane %v4265, 1
        %v4278 = vadd.f32 %v4256, %v4270
        %v4279 = vadd.f32 %v4257, %v4271
        %v4280 = vadd.f32 %v4258, %v4272
        %v4281 = vadd.f32 %v4259, %v4273
        %v4282 = vadd.f32 %v4238, %v4278
        %v4283 = vadd.f32 %v4239, %v4279
        %v4284 = vadd.f32 %v4240, %v4280
        %v4285 = vadd.f32 %v4241, %v4281
        %4286 = vrot.lane.b32.xlu0 %v3274, 1
        %v4287 = vpop.permute.xlu0 %4286
        %4288 = vrot.lane.b32.xlu0 %v3275, 1
        %v4289 = vpop.permute.xlu0 %4288
        %4290 = vrot.lane.b32.xlu0 %v3276, 1
        %v4291 = vpop.permute.xlu0 %4290
        %4292 = vrot.lane.b32.xlu0 %v3277, 1
        %v4293 = vpop.permute.xlu0 %4292
        %v4294 = vsel %vm484, %v4291, %v4293
        %v4295 = vsel %vm484, %v4289, %v4291
        %v4296 = vsel %vm484, %v4287, %v4289
        %v4297 = vsel %vm484, %v4293, %v4287
        %s4298 = sld [smem:[#allocation12 + $0x17]]
        %v4299 = vstv %s4298
        %v4300 = vmul.f32 %v4299, %v4297
        %v4301 = vmul.f32 %v4299, %v4296
        %v4302 = vmul.f32 %v4299, %v4295
        %v4303 = vmul.f32 %v4299, %v4294
        %s4304 = sld [smem:[#allocation12 + $0x48]]
        %v4305 = vstv %s4304
        %v4306 = vmul.f32 %v4305, %v4297
        %v4307 = vmul.f32 %v4305, %v4296
        %v4308 = vmul.f32 %v4305, %v4295
        %v4309 = vmul.f32 %v4305, %v4294
        %v4314 = vrot.slane %v4306, 1
        %v4315 = vrot.slane %v4307, 1
        %v4316 = vrot.slane %v4308, 1
        %v4317 = vrot.slane %v4309, 1
        %v4322 = vadd.f32 %v4300, %v4314
        %v4323 = vadd.f32 %v4301, %v4315
        %v4324 = vadd.f32 %v4302, %v4316
        %v4325 = vadd.f32 %v4303, %v4317
        %v4326 = vadd.f32 %v4282, %v4322
        %v4327 = vadd.f32 %v4283, %v4323
        %v4328 = vadd.f32 %v4284, %v4324
        %v4329 = vadd.f32 %v4285, %v4325
        %s4330 = sld [smem:[#allocation12 + $0x18]]
        %v4331 = vstv %s4330
        %v4332 = vmul.f32 %v4331, %v3274
        %v4333 = vmul.f32 %v4331, %v3275
        %v4334 = vmul.f32 %v4331, %v3276
        %v4335 = vmul.f32 %v4331, %v3277
        %s4336 = sld [smem:[#allocation12 + $0x49]]
        %v4337 = vstv %s4336
        %v4338 = vmul.f32 %v4337, %v3274
        %v4339 = vmul.f32 %v4337, %v3275
        %v4340 = vmul.f32 %v4337, %v3276
        %v4341 = vmul.f32 %v4337, %v3277
        %v4346 = vrot.slane %v4338, 1
        %v4347 = vrot.slane %v4339, 1
        %v4348 = vrot.slane %v4340, 1
        %v4349 = vrot.slane %v4341, 1
        %v4354 = vadd.f32 %v4332, %v4346
        %v4355 = vadd.f32 %v4333, %v4347
        %v4356 = vadd.f32 %v4334, %v4348
        %v4357 = vadd.f32 %v4335, %v4349
        %v4358 = vadd.f32 %v4326, %v4354
        %v4359 = vadd.f32 %v4327, %v4355
        %v4360 = vadd.f32 %v4328, %v4356
        %v4361 = vadd.f32 %v4329, %v4357
        %4362 = vrot.lane.b32.xlu0 %v3274, 127
        %v4363 = vpop.permute.xlu0 %4362
        %4364 = vrot.lane.b32.xlu0 %v3275, 127
        %v4365 = vpop.permute.xlu0 %4364
        %4366 = vrot.lane.b32.xlu0 %v3276, 127
        %v4367 = vpop.permute.xlu0 %4366
        %4368 = vrot.lane.b32.xlu0 %v3277, 127
        %v4369 = vpop.permute.xlu0 %4368
        %v4370 = vsel %vm533, %v4367, %v4369
        %v4371 = vsel %vm533, %v4365, %v4367
        %v4372 = vsel %vm533, %v4363, %v4365
        %v4373 = vsel %vm533, %v4369, %v4363
        %s4374 = sld [smem:[#allocation12 + $0x19]]
        %v4375 = vstv %s4374
        %v4376 = vmul.f32 %v4375, %v4372
        %v4377 = vmul.f32 %v4375, %v4371
        %v4378 = vmul.f32 %v4375, %v4370
        %v4379 = vmul.f32 %v4375, %v4373
        %s4380 = sld [smem:[#allocation12 + $0x4a]]
        %v4381 = vstv %s4380
        %v4382 = vmul.f32 %v4381, %v4372
        %v4383 = vmul.f32 %v4381, %v4371
        %v4384 = vmul.f32 %v4381, %v4370
        %v4385 = vmul.f32 %v4381, %v4373
        %v4390 = vrot.slane %v4382, 1
        %v4391 = vrot.slane %v4383, 1
        %v4392 = vrot.slane %v4384, 1
        %v4393 = vrot.slane %v4385, 1
        %v4398 = vadd.f32 %v4376, %v4390
        %v4399 = vadd.f32 %v4377, %v4391
        %v4400 = vadd.f32 %v4378, %v4392
        %v4401 = vadd.f32 %v4379, %v4393
        %v4402 = vadd.f32 %v4358, %v4398
        %v4403 = vadd.f32 %v4359, %v4399
        %v4404 = vadd.f32 %v4360, %v4400
        %v4405 = vadd.f32 %v4361, %v4401
        %4406 = vrot.lane.b32.xlu0 %v3274, 126
        %v4407 = vpop.permute.xlu0 %4406
        %4408 = vrot.lane.b32.xlu0 %v3275, 126
        %v4409 = vpop.permute.xlu0 %4408
        %4410 = vrot.lane.b32.xlu0 %v3276, 126
        %v4411 = vpop.permute.xlu0 %4410
        %4412 = vrot.lane.b32.xlu0 %v3277, 126
        %v4413 = vpop.permute.xlu0 %4412
        %v4414 = vsel %vm1731, %v4411, %v4413
        %v4415 = vsel %vm1731, %v4409, %v4411
        %v4416 = vsel %vm1731, %v4407, %v4409
        %v4417 = vsel %vm1731, %v4413, %v4407
        %s4418 = sld [smem:[#allocation12 + $0x1a]]
        %v4419 = vstv %s4418
        %v4420 = vmul.f32 %v4419, %v4416
        %v4421 = vmul.f32 %v4419, %v4415
        %v4422 = vmul.f32 %v4419, %v4414
        %v4423 = vmul.f32 %v4419, %v4417
        %s4424 = sld [smem:[#allocation12 + $0x4b]]
        %v4425 = vstv %s4424
        %v4426 = vmul.f32 %v4425, %v4416
        %v4427 = vmul.f32 %v4425, %v4415
        %v4428 = vmul.f32 %v4425, %v4414
        %v4429 = vmul.f32 %v4425, %v4417
        %v4434 = vrot.slane %v4426, 1
        %v4435 = vrot.slane %v4427, 1
        %v4436 = vrot.slane %v4428, 1
        %v4437 = vrot.slane %v4429, 1
        %v4442 = vadd.f32 %v4420, %v4434
        %v4443 = vadd.f32 %v4421, %v4435
        %v4444 = vadd.f32 %v4422, %v4436
        %v4445 = vadd.f32 %v4423, %v4437
        %v4446 = vadd.f32 %v4402, %v4442
        %v4447 = vadd.f32 %v4403, %v4443
        %v4448 = vadd.f32 %v4404, %v4444
        %v4449 = vadd.f32 %v4405, %v4445
        %4450 = vrot.lane.b32.xlu0 %v3274, 125
        %v4451 = vpop.permute.xlu0 %4450
        %4452 = vrot.lane.b32.xlu0 %v3275, 125
        %v4453 = vpop.permute.xlu0 %4452
        %4454 = vrot.lane.b32.xlu0 %v3276, 125
        %v4455 = vpop.permute.xlu0 %4454
        %4456 = vrot.lane.b32.xlu0 %v3277, 125
        %v4457 = vpop.permute.xlu0 %4456
        %v4458 = vsel %vm1762, %v4455, %v4457
        %v4459 = vsel %vm1762, %v4453, %v4455
        %v4460 = vsel %vm1762, %v4451, %v4453
        %v4461 = vsel %vm1762, %v4457, %v4451
        %s4462 = sld [smem:[#allocation12 + $0x1b]]
        %v4463 = vstv %s4462
        %v4464 = vmul.f32 %v4463, %v4460
        %v4465 = vmul.f32 %v4463, %v4459
        %v4466 = vmul.f32 %v4463, %v4458
        %v4467 = vmul.f32 %v4463, %v4461
        %s4468 = sld [smem:[#allocation12 + $0x4c]]
        %v4469 = vstv %s4468
        %v4470 = vmul.f32 %v4469, %v4460
        %v4471 = vmul.f32 %v4469, %v4459
        %v4472 = vmul.f32 %v4469, %v4458
        %v4473 = vmul.f32 %v4469, %v4461
        %v4478 = vrot.slane %v4470, 1
        %v4479 = vrot.slane %v4471, 1
        %v4480 = vrot.slane %v4472, 1
        %v4481 = vrot.slane %v4473, 1
        %v4486 = vadd.f32 %v4464, %v4478
        %v4487 = vadd.f32 %v4465, %v4479
        %v4488 = vadd.f32 %v4466, %v4480
        %v4489 = vadd.f32 %v4467, %v4481
        %v4490 = vadd.f32 %v4446, %v4486
        %v4491 = vadd.f32 %v4447, %v4487
        %v4492 = vadd.f32 %v4448, %v4488
        %v4493 = vadd.f32 %v4449, %v4489
        %4494 = vrot.lane.b32.xlu0 %v3274, 109
        %v4495 = vpop.permute.xlu0 %4494
        %4496 = vrot.lane.b32.xlu0 %v3275, 109
        %v4497 = vpop.permute.xlu0 %4496
        %4498 = vrot.lane.b32.xlu0 %v3276, 109
        %v4499 = vpop.permute.xlu0 %4498
        %4500 = vrot.lane.b32.xlu0 %v3277, 109
        %v4501 = vpop.permute.xlu0 %4500
        %v4502 = vsel %vm1793, %v4499, %v4501
        %v4503 = vsel %vm1793, %v4497, %v4499
        %v4504 = vsel %vm1793, %v4495, %v4497
        %v4505 = vsel %vm1793, %v4501, %v4495
        %s4506 = sld [smem:[#allocation12 + $0x1c]]
        %v4507 = vstv %s4506
        %v4508 = vmul.f32 %v4507, %v4504
        %v4509 = vmul.f32 %v4507, %v4503
        %v4510 = vmul.f32 %v4507, %v4502
        %v4511 = vmul.f32 %v4507, %v4505
        %s4512 = sld [smem:[#allocation12 + $0x4d]]
        %v4513 = vstv %s4512
        %v4514 = vmul.f32 %v4513, %v4504
        %v4515 = vmul.f32 %v4513, %v4503
        %v4516 = vmul.f32 %v4513, %v4502
        %v4517 = vmul.f32 %v4513, %v4505
        %v4522 = vrot.slane %v4514, 1
        %v4523 = vrot.slane %v4515, 1
        %v4524 = vrot.slane %v4516, 1
        %v4525 = vrot.slane %v4517, 1
        %v4530 = vadd.f32 %v4508, %v4522
        %v4531 = vadd.f32 %v4509, %v4523
        %v4532 = vadd.f32 %v4510, %v4524
        %v4533 = vadd.f32 %v4511, %v4525
        %v4534 = vadd.f32 %v4490, %v4530
        %v4535 = vadd.f32 %v4491, %v4531
        %v4536 = vadd.f32 %v4492, %v4532
        %v4537 = vadd.f32 %v4493, %v4533
        %4538 = vrot.lane.b32.xlu0 %v3274, 108
        %v4539 = vpop.permute.xlu0 %4538
        %4540 = vrot.lane.b32.xlu0 %v3275, 108
        %v4541 = vpop.permute.xlu0 %4540
        %4542 = vrot.lane.b32.xlu0 %v3276, 108
        %v4543 = vpop.permute.xlu0 %4542
        %4544 = vrot.lane.b32.xlu0 %v3277, 108
        %v4545 = vpop.permute.xlu0 %4544
        %v4546 = vsel %vm1824, %v4543, %v4545
        %v4547 = vsel %vm1824, %v4541, %v4543
        %v4548 = vsel %vm1824, %v4539, %v4541
        %v4549 = vsel %vm1824, %v4545, %v4539
        %s4550 = sld [smem:[#allocation12 + $0x1d]]
        %v4551 = vstv %s4550
        %v4552 = vmul.f32 %v4551, %v4548
        %v4553 = vmul.f32 %v4551, %v4547
        %v4554 = vmul.f32 %v4551, %v4546
        %v4555 = vmul.f32 %v4551, %v4549
        %s4556 = sld [smem:[#allocation12 + $0x4e]]
        %v4557 = vstv %s4556
        %v4558 = vmul.f32 %v4557, %v4548
        %v4559 = vmul.f32 %v4557, %v4547
        %v4560 = vmul.f32 %v4557, %v4546
        %v4561 = vmul.f32 %v4557, %v4549
        %v4566 = vrot.slane %v4558, 1
        %v4567 = vrot.slane %v4559, 1
        %v4568 = vrot.slane %v4560, 1
        %v4569 = vrot.slane %v4561, 1
        %v4574 = vadd.f32 %v4552, %v4566
        %v4575 = vadd.f32 %v4553, %v4567
        %v4576 = vadd.f32 %v4554, %v4568
        %v4577 = vadd.f32 %v4555, %v4569
        %v4578 = vadd.f32 %v4534, %v4574
        %v4579 = vadd.f32 %v4535, %v4575
        %v4580 = vadd.f32 %v4536, %v4576
        %v4581 = vadd.f32 %v4537, %v4577
        %4582 = vrot.lane.b32.xlu0 %v3274, 107
        %v4583 = vpop.permute.xlu0 %4582
        %4584 = vrot.lane.b32.xlu0 %v3275, 107
        %v4585 = vpop.permute.xlu0 %4584
        %4586 = vrot.lane.b32.xlu0 %v3276, 107
        %v4587 = vpop.permute.xlu0 %4586
        %4588 = vrot.lane.b32.xlu0 %v3277, 107
        %v4589 = vpop.permute.xlu0 %4588
        %v4590 = vsel %vm564, %v4587, %v4589
        %v4591 = vsel %vm564, %v4585, %v4587
        %v4592 = vsel %vm564, %v4583, %v4585
        %v4593 = vsel %vm564, %v4589, %v4583
        %s4594 = sld [smem:[#allocation12 + $0x1e]]
        %v4595 = vstv %s4594
        %v4596 = vmul.f32 %v4595, %v4592
        %v4597 = vmul.f32 %v4595, %v4591
        %v4598 = vmul.f32 %v4595, %v4590
        %v4599 = vmul.f32 %v4595, %v4593
        %s4600 = sld [smem:[#allocation12 + $0x4f]]
        %v4601 = vstv %s4600
        %v4602 = vmul.f32 %v4601, %v4592
        %v4603 = vmul.f32 %v4601, %v4591
        %v4604 = vmul.f32 %v4601, %v4590
        %v4605 = vmul.f32 %v4601, %v4593
        %v4610 = vrot.slane %v4602, 1
        %v4611 = vrot.slane %v4603, 1
        %v4612 = vrot.slane %v4604, 1
        %v4613 = vrot.slane %v4605, 1
        %v4618 = vadd.f32 %v4596, %v4610
        %v4619 = vadd.f32 %v4597, %v4611
        %v4620 = vadd.f32 %v4598, %v4612
        %v4621 = vadd.f32 %v4599, %v4613
        %v4622 = vadd.f32 %v4578, %v4618
        %v4623 = vadd.f32 %v4579, %v4619
        %v4624 = vadd.f32 %v4580, %v4620
        %v4625 = vadd.f32 %v4581, %v4621
        %4626 = vrot.lane.b32.xlu0 %v3274, 106
        %v4627 = vpop.permute.xlu0 %4626
        %4628 = vrot.lane.b32.xlu0 %v3275, 106
        %v4629 = vpop.permute.xlu0 %4628
        %4630 = vrot.lane.b32.xlu0 %v3276, 106
        %v4631 = vpop.permute.xlu0 %4630
        %4632 = vrot.lane.b32.xlu0 %v3277, 106
        %v4633 = vpop.permute.xlu0 %4632
        %v4634 = vsel %vm595, %v4631, %v4633
        %v4635 = vsel %vm595, %v4629, %v4631
        %v4636 = vsel %vm595, %v4627, %v4629
        %v4637 = vsel %vm595, %v4633, %v4627
        %s4638 = sld [smem:[#allocation12 + $0x1f]]
        %v4639 = vstv %s4638
        %v4640 = vmul.f32 %v4639, %v4636
        %v4641 = vmul.f32 %v4639, %v4635
        %v4642 = vmul.f32 %v4639, %v4634
        %v4643 = vmul.f32 %v4639, %v4637
        %s4644 = sld [smem:[#allocation12 + $0x50]]
        %v4645 = vstv %s4644
        %v4646 = vmul.f32 %v4645, %v4636
        %v4647 = vmul.f32 %v4645, %v4635
        %v4648 = vmul.f32 %v4645, %v4634
        %v4649 = vmul.f32 %v4645, %v4637
        %v4654 = vrot.slane %v4646, 1
        %v4655 = vrot.slane %v4647, 1
        %v4656 = vrot.slane %v4648, 1
        %v4657 = vrot.slane %v4649, 1
        %v4662 = vadd.f32 %v4640, %v4654
        %v4663 = vadd.f32 %v4641, %v4655
        %v4664 = vadd.f32 %v4642, %v4656
        %v4665 = vadd.f32 %v4643, %v4657
        %v4666 = vadd.f32 %v4622, %v4662
        %v4667 = vadd.f32 %v4623, %v4663
        %v4668 = vadd.f32 %v4624, %v4664
        %v4669 = vadd.f32 %v4625, %v4665
        %4670 = vrot.lane.b32.xlu0 %v3274, 105
        %v4671 = vpop.permute.xlu0 %4670
        %4672 = vrot.lane.b32.xlu0 %v3275, 105
        %v4673 = vpop.permute.xlu0 %4672
        %4674 = vrot.lane.b32.xlu0 %v3276, 105
        %v4675 = vpop.permute.xlu0 %4674
        %4676 = vrot.lane.b32.xlu0 %v3277, 105
        %v4677 = vpop.permute.xlu0 %4676
        %v4678 = vsel %vm626, %v4675, %v4677
        %v4679 = vsel %vm626, %v4673, %v4675
        %v4680 = vsel %vm626, %v4671, %v4673
        %v4681 = vsel %vm626, %v4677, %v4671
        %s4682 = sld [smem:[#allocation12 + $0x20]]
        %v4683 = vstv %s4682
        %v4684 = vmul.f32 %v4683, %v4680
        %v4685 = vmul.f32 %v4683, %v4679
        %v4686 = vmul.f32 %v4683, %v4678
        %v4687 = vmul.f32 %v4683, %v4681
        %s4688 = sld [smem:[#allocation12 + $0x51]]
        %v4689 = vstv %s4688
        %v4690 = vmul.f32 %v4689, %v4680
        %v4691 = vmul.f32 %v4689, %v4679
        %v4692 = vmul.f32 %v4689, %v4678
        %v4693 = vmul.f32 %v4689, %v4681
        %v4698 = vrot.slane %v4690, 1
        %v4699 = vrot.slane %v4691, 1
        %v4700 = vrot.slane %v4692, 1
        %v4701 = vrot.slane %v4693, 1
        %v4706 = vadd.f32 %v4684, %v4698
        %v4707 = vadd.f32 %v4685, %v4699
        %v4708 = vadd.f32 %v4686, %v4700
        %v4709 = vadd.f32 %v4687, %v4701
        %v4710 = vadd.f32 %v4666, %v4706
        %v4711 = vadd.f32 %v4667, %v4707
        %v4712 = vadd.f32 %v4668, %v4708
        %v4713 = vadd.f32 %v4669, %v4709
        %4714 = vrot.lane.b32.xlu0 %v3274, 104
        %v4715 = vpop.permute.xlu0 %4714
        %4716 = vrot.lane.b32.xlu0 %v3275, 104
        %v4717 = vpop.permute.xlu0 %4716
        %4718 = vrot.lane.b32.xlu0 %v3276, 104
        %v4719 = vpop.permute.xlu0 %4718
        %4720 = vrot.lane.b32.xlu0 %v3277, 104
        %v4721 = vpop.permute.xlu0 %4720
        %v4722 = vsel %vm2506, %v4719, %v4721
        %v4723 = vsel %vm2506, %v4717, %v4719
        %v4724 = vsel %vm2506, %v4715, %v4717
        %v4725 = vsel %vm2506, %v4721, %v4715
        %s4726 = sld [smem:[#allocation12 + $0x21]]
        %v4727 = vstv %s4726
        %v4728 = vmul.f32 %v4727, %v4724
        %v4729 = vmul.f32 %v4727, %v4723
        %v4730 = vmul.f32 %v4727, %v4722
        %v4731 = vmul.f32 %v4727, %v4725
        %s4732 = sld [smem:[#allocation12 + $0x52]]
        %v4733 = vstv %s4732
        %v4734 = vmul.f32 %v4733, %v4724
        %v4735 = vmul.f32 %v4733, %v4723
        %v4736 = vmul.f32 %v4733, %v4722
        %v4737 = vmul.f32 %v4733, %v4725
        %v4742 = vrot.slane %v4734, 1
        %v4743 = vrot.slane %v4735, 1
        %v4744 = vrot.slane %v4736, 1
        %v4745 = vrot.slane %v4737, 1
        %v4750 = vadd.f32 %v4728, %v4742
        %v4751 = vadd.f32 %v4729, %v4743
        %v4752 = vadd.f32 %v4730, %v4744
        %v4753 = vadd.f32 %v4731, %v4745
        %v4754 = vadd.f32 %v4710, %v4750
        %v4755 = vadd.f32 %v4711, %v4751
        %v4756 = vadd.f32 %v4712, %v4752
        %v4757 = vadd.f32 %v4713, %v4753
        %4758 = vrot.lane.b32.xlu0 %v3274, 103
        %v4759 = vpop.permute.xlu0 %4758
        %4760 = vrot.lane.b32.xlu0 %v3275, 103
        %v4761 = vpop.permute.xlu0 %4760
        %4762 = vrot.lane.b32.xlu0 %v3276, 103
        %v4763 = vpop.permute.xlu0 %4762
        %4764 = vrot.lane.b32.xlu0 %v3277, 103
        %v4765 = vpop.permute.xlu0 %4764
        %v4766 = vsel %vm2537, %v4763, %v4765
        %v4767 = vsel %vm2537, %v4761, %v4763
        %v4768 = vsel %vm2537, %v4759, %v4761
        %v4769 = vsel %vm2537, %v4765, %v4759
        %s4770 = sld [smem:[#allocation12 + $0x22]]
        %v4771 = vstv %s4770
        %v4772 = vmul.f32 %v4771, %v4768
        %v4773 = vmul.f32 %v4771, %v4767
        %v4774 = vmul.f32 %v4771, %v4766
        %v4775 = vmul.f32 %v4771, %v4769
        %s4776 = sld [smem:[#allocation12 + $0x53]]
        %v4777 = vstv %s4776
        %v4778 = vmul.f32 %v4777, %v4768
        %v4779 = vmul.f32 %v4777, %v4767
        %v4780 = vmul.f32 %v4777, %v4766
        %v4781 = vmul.f32 %v4777, %v4769
        %v4786 = vrot.slane %v4778, 1
        %v4787 = vrot.slane %v4779, 1
        %v4788 = vrot.slane %v4780, 1
        %v4789 = vrot.slane %v4781, 1
        %v4794 = vadd.f32 %v4772, %v4786
        %v4795 = vadd.f32 %v4773, %v4787
        %v4796 = vadd.f32 %v4774, %v4788
        %v4797 = vadd.f32 %v4775, %v4789
        %v4798 = vadd.f32 %v4754, %v4794
        %v4799 = vadd.f32 %v4755, %v4795
        %v4800 = vadd.f32 %v4756, %v4796
        %v4801 = vadd.f32 %v4757, %v4797
        %4802 = vrot.lane.b32.xlu0 %v3274, 87
        %v4803 = vpop.permute.xlu0 %4802
        %4804 = vrot.lane.b32.xlu0 %v3275, 87
        %v4805 = vpop.permute.xlu0 %4804
        %4806 = vrot.lane.b32.xlu0 %v3276, 87
        %v4807 = vpop.permute.xlu0 %4806
        %4808 = vrot.lane.b32.xlu0 %v3277, 87
        %v4809 = vpop.permute.xlu0 %4808
        %v4810 = vsel %vm2568, %v4807, %v4809
        %v4811 = vsel %vm2568, %v4805, %v4807
        %v4812 = vsel %vm2568, %v4803, %v4805
        %v4813 = vsel %vm2568, %v4809, %v4803
        %s4814 = sld [smem:[#allocation12 + $0x23]]
        %v4815 = vstv %s4814
        %v4816 = vmul.f32 %v4815, %v4812
        %v4817 = vmul.f32 %v4815, %v4811
        %v4818 = vmul.f32 %v4815, %v4810
        %v4819 = vmul.f32 %v4815, %v4813
        %s4820 = sld [smem:[#allocation12 + $0x54]]
        %v4821 = vstv %s4820
        %v4822 = vmul.f32 %v4821, %v4812
        %v4823 = vmul.f32 %v4821, %v4811
        %v4824 = vmul.f32 %v4821, %v4810
        %v4825 = vmul.f32 %v4821, %v4813
        %v4830 = vrot.slane %v4822, 1
        %v4831 = vrot.slane %v4823, 1
        %v4832 = vrot.slane %v4824, 1
        %v4833 = vrot.slane %v4825, 1
        %v4838 = vadd.f32 %v4816, %v4830
        %v4839 = vadd.f32 %v4817, %v4831
        %v4840 = vadd.f32 %v4818, %v4832
        %v4841 = vadd.f32 %v4819, %v4833
        %v4842 = vadd.f32 %v4798, %v4838
        %v4843 = vadd.f32 %v4799, %v4839
        %v4844 = vadd.f32 %v4800, %v4840
        %v4845 = vadd.f32 %v4801, %v4841
        %4846 = vrot.lane.b32.xlu0 %v3274, 86
        %v4847 = vpop.permute.xlu0 %4846
        %4848 = vrot.lane.b32.xlu0 %v3275, 86
        %v4849 = vpop.permute.xlu0 %4848
        %4850 = vrot.lane.b32.xlu0 %v3276, 86
        %v4851 = vpop.permute.xlu0 %4850
        %4852 = vrot.lane.b32.xlu0 %v3277, 86
        %v4853 = vpop.permute.xlu0 %4852
        %v4854 = vsel %vm2599, %v4851, %v4853
        %v4855 = vsel %vm2599, %v4849, %v4851
        %v4856 = vsel %vm2599, %v4847, %v4849
        %v4857 = vsel %vm2599, %v4853, %v4847
        %s4858 = sld [smem:[#allocation12 + $0x24]]
        %v4859 = vstv %s4858
        %v4860 = vmul.f32 %v4859, %v4856
        %v4861 = vmul.f32 %v4859, %v4855
        %v4862 = vmul.f32 %v4859, %v4854
        %v4863 = vmul.f32 %v4859, %v4857
        %s4864 = sld [smem:[#allocation12 + $0x55]]
        %v4865 = vstv %s4864
        %v4866 = vmul.f32 %v4865, %v4856
        %v4867 = vmul.f32 %v4865, %v4855
        %v4868 = vmul.f32 %v4865, %v4854
        %v4869 = vmul.f32 %v4865, %v4857
        %v4874 = vrot.slane %v4866, 1
        %v4875 = vrot.slane %v4867, 1
        %v4876 = vrot.slane %v4868, 1
        %v4877 = vrot.slane %v4869, 1
        %v4882 = vadd.f32 %v4860, %v4874
        %v4883 = vadd.f32 %v4861, %v4875
        %v4884 = vadd.f32 %v4862, %v4876
        %v4885 = vadd.f32 %v4863, %v4877
        %v4886 = vadd.f32 %v4842, %v4882
        %v4887 = vadd.f32 %v4843, %v4883
        %v4888 = vadd.f32 %v4844, %v4884
        %v4889 = vadd.f32 %v4845, %v4885
        %4890 = vrot.lane.b32.xlu0 %v3274, 85
        %v4891 = vpop.permute.xlu0 %4890
        %4892 = vrot.lane.b32.xlu0 %v3275, 85
        %v4893 = vpop.permute.xlu0 %4892
        %4894 = vrot.lane.b32.xlu0 %v3276, 85
        %v4895 = vpop.permute.xlu0 %4894
        %4896 = vrot.lane.b32.xlu0 %v3277, 85
        %v4897 = vpop.permute.xlu0 %4896
        %v4898 = vsel %vm2630, %v4895, %v4897
        %v4899 = vsel %vm2630, %v4893, %v4895
        %v4900 = vsel %vm2630, %v4891, %v4893
        %v4901 = vsel %vm2630, %v4897, %v4891
        %s4902 = sld [smem:[#allocation12 + $0x25]]
        %v4903 = vstv %s4902
        %v4904 = vmul.f32 %v4903, %v4900
        %v4905 = vmul.f32 %v4903, %v4899
        %v4906 = vmul.f32 %v4903, %v4898
        %v4907 = vmul.f32 %v4903, %v4901
        %s4908 = sld [smem:[#allocation12 + $0x56]]
        %v4909 = vstv %s4908
        %v4910 = vmul.f32 %v4909, %v4900
        %v4911 = vmul.f32 %v4909, %v4899
        %v4912 = vmul.f32 %v4909, %v4898
        %v4913 = vmul.f32 %v4909, %v4901
        %v4918 = vrot.slane %v4910, 1
        %v4919 = vrot.slane %v4911, 1
        %v4920 = vrot.slane %v4912, 1
        %v4921 = vrot.slane %v4913, 1
        %v4926 = vadd.f32 %v4904, %v4918
        %v4927 = vadd.f32 %v4905, %v4919
        %v4928 = vadd.f32 %v4906, %v4920
        %v4929 = vadd.f32 %v4907, %v4921
        %v4930 = vadd.f32 %v4886, %v4926
        %v4931 = vadd.f32 %v4887, %v4927
        %v4932 = vadd.f32 %v4888, %v4928
        %v4933 = vadd.f32 %v4889, %v4929
        %4934 = vrot.lane.b32.xlu0 %v3274, 84
        %v4935 = vpop.permute.xlu0 %4934
        %4936 = vrot.lane.b32.xlu0 %v3275, 84
        %v4937 = vpop.permute.xlu0 %4936
        %4938 = vrot.lane.b32.xlu0 %v3276, 84
        %v4939 = vpop.permute.xlu0 %4938
        %4940 = vrot.lane.b32.xlu0 %v3277, 84
        %v4941 = vpop.permute.xlu0 %4940
        %v4942 = vsel %vm2661, %v4939, %v4941
        %v4943 = vsel %vm2661, %v4937, %v4939
        %v4944 = vsel %vm2661, %v4935, %v4937
        %v4945 = vsel %vm2661, %v4941, %v4935
        %s4946 = sld [smem:[#allocation12 + $0x26]]
        %v4947 = vstv %s4946
        %v4948 = vmul.f32 %v4947, %v4944
        %v4949 = vmul.f32 %v4947, %v4943
        %v4950 = vmul.f32 %v4947, %v4942
        %v4951 = vmul.f32 %v4947, %v4945
        %s4952 = sld [smem:[#allocation12 + $0x57]]
        %v4953 = vstv %s4952
        %v4954 = vmul.f32 %v4953, %v4944
        %v4955 = vmul.f32 %v4953, %v4943
        %v4956 = vmul.f32 %v4953, %v4942
        %v4957 = vmul.f32 %v4953, %v4945
        %v4962 = vrot.slane %v4954, 1
        %v4963 = vrot.slane %v4955, 1
        %v4964 = vrot.slane %v4956, 1
        %v4965 = vrot.slane %v4957, 1
        %v4970 = vadd.f32 %v4948, %v4962
        %v4971 = vadd.f32 %v4949, %v4963
        %v4972 = vadd.f32 %v4950, %v4964
        %v4973 = vadd.f32 %v4951, %v4965
        %v4974 = vadd.f32 %v4930, %v4970
        %v4975 = vadd.f32 %v4931, %v4971
        %v4976 = vadd.f32 %v4932, %v4972
        %v4977 = vadd.f32 %v4933, %v4973
        %4978 = vrot.lane.b32.xlu0 %v3274, 83
        %v4979 = vpop.permute.xlu0 %4978
        %4980 = vrot.lane.b32.xlu0 %v3275, 83
        %v4981 = vpop.permute.xlu0 %4980
        %4982 = vrot.lane.b32.xlu0 %v3276, 83
        %v4983 = vpop.permute.xlu0 %4982
        %4984 = vrot.lane.b32.xlu0 %v3277, 83
        %v4985 = vpop.permute.xlu0 %4984
        %v4986 = vsel %vm2692, %v4983, %v4985
        %v4987 = vsel %vm2692, %v4981, %v4983
        %v4988 = vsel %vm2692, %v4979, %v4981
        %v4989 = vsel %vm2692, %v4985, %v4979
        %s4990 = sld [smem:[#allocation12 + $0x27]]
        %v4991 = vstv %s4990
        %v4992 = vmul.f32 %v4991, %v4988
        %v4993 = vmul.f32 %v4991, %v4987
        %v4994 = vmul.f32 %v4991, %v4986
        %v4995 = vmul.f32 %v4991, %v4989
        %s4996 = sld [smem:[#allocation12 + $0x58]]
        %v4997 = vstv %s4996
        %v4998 = vmul.f32 %v4997, %v4988
        %v4999 = vmul.f32 %v4997, %v4987
        %v5000 = vmul.f32 %v4997, %v4986
        %v5001 = vmul.f32 %v4997, %v4989
        %v5006 = vrot.slane %v4998, 1
        %v5007 = vrot.slane %v4999, 1
        %v5008 = vrot.slane %v5000, 1
        %v5009 = vrot.slane %v5001, 1
        %v5014 = vadd.f32 %v4992, %v5006
        %v5015 = vadd.f32 %v4993, %v5007
        %v5016 = vadd.f32 %v4994, %v5008
        %v5017 = vadd.f32 %v4995, %v5009
        %v5018 = vadd.f32 %v4974, %v5014
        %v5019 = vadd.f32 %v4975, %v5015
        %v5020 = vadd.f32 %v4976, %v5016
        %v5021 = vadd.f32 %v4977, %v5017
        %5022 = vrot.lane.b32.xlu0 %v3274, 82
        %v5023 = vpop.permute.xlu0 %5022
        %5024 = vrot.lane.b32.xlu0 %v3275, 82
        %v5025 = vpop.permute.xlu0 %5024
        %5026 = vrot.lane.b32.xlu0 %v3276, 82
        %v5027 = vpop.permute.xlu0 %5026
        %5028 = vrot.lane.b32.xlu0 %v3277, 82
        %v5029 = vpop.permute.xlu0 %5028
        %v5030 = vsel %vm2723, %v5027, %v5029
        %v5031 = vsel %vm2723, %v5025, %v5027
        %v5032 = vsel %vm2723, %v5023, %v5025
        %v5033 = vsel %vm2723, %v5029, %v5023
        %s5034 = sld [smem:[#allocation12 + $0x28]]
        %v5035 = vstv %s5034
        %v5036 = vmul.f32 %v5035, %v5032
        %v5037 = vmul.f32 %v5035, %v5031
        %v5038 = vmul.f32 %v5035, %v5030
        %v5039 = vmul.f32 %v5035, %v5033
        %s5040 = sld [smem:[#allocation12 + $0x59]]
        %v5041 = vstv %s5040
        %v5042 = vmul.f32 %v5041, %v5032
        %v5043 = vmul.f32 %v5041, %v5031
        %v5044 = vmul.f32 %v5041, %v5030
        %v5045 = vmul.f32 %v5041, %v5033
        %v5050 = vrot.slane %v5042, 1
        %v5051 = vrot.slane %v5043, 1
        %v5052 = vrot.slane %v5044, 1
        %v5053 = vrot.slane %v5045, 1
        %v5058 = vadd.f32 %v5036, %v5050
        %v5059 = vadd.f32 %v5037, %v5051
        %v5060 = vadd.f32 %v5038, %v5052
        %v5061 = vadd.f32 %v5039, %v5053
        %v5062 = vadd.f32 %v5018, %v5058
        %v5063 = vadd.f32 %v5019, %v5059
        %v5064 = vadd.f32 %v5020, %v5060
        %v5065 = vadd.f32 %v5021, %v5061
        %5066 = vrot.lane.b32.xlu0 %v3274, 81
        %v5067 = vpop.permute.xlu0 %5066
        %5068 = vrot.lane.b32.xlu0 %v3275, 81
        %v5069 = vpop.permute.xlu0 %5068
        %5070 = vrot.lane.b32.xlu0 %v3276, 81
        %v5071 = vpop.permute.xlu0 %5070
        %5072 = vrot.lane.b32.xlu0 %v3277, 81
        %v5073 = vpop.permute.xlu0 %5072
        %v5074 = vsel %vm2754, %v5071, %v5073
        %v5075 = vsel %vm2754, %v5069, %v5071
        %v5076 = vsel %vm2754, %v5067, %v5069
        %v5077 = vsel %vm2754, %v5073, %v5067
        %s5078 = sld [smem:[#allocation12 + $0x29]]
        %v5079 = vstv %s5078
        %v5080 = vmul.f32 %v5079, %v5076
        %v5081 = vmul.f32 %v5079, %v5075
        %v5082 = vmul.f32 %v5079, %v5074
        %v5083 = vmul.f32 %v5079, %v5077
        %s5084 = sld [smem:[#allocation12 + $0x5a]]
        %v5085 = vstv %s5084
        %v5086 = vmul.f32 %v5085, %v5076
        %v5087 = vmul.f32 %v5085, %v5075
        %v5088 = vmul.f32 %v5085, %v5074
        %v5089 = vmul.f32 %v5085, %v5077
        %v5094 = vrot.slane %v5086, 1
        %v5095 = vrot.slane %v5087, 1
        %v5096 = vrot.slane %v5088, 1
        %v5097 = vrot.slane %v5089, 1
        %v5102 = vadd.f32 %v5080, %v5094
        %v5103 = vadd.f32 %v5081, %v5095
        %v5104 = vadd.f32 %v5082, %v5096
        %v5105 = vadd.f32 %v5083, %v5097
        %v5106 = vadd.f32 %v5062, %v5102
        %v5107 = vadd.f32 %v5063, %v5103
        %v5108 = vadd.f32 %v5064, %v5104
        %v5109 = vadd.f32 %v5065, %v5105
        %s5110 = sld [smem:[#allocation12 + $0x2a]]
        %v5111 = vstv %s5110
        %v5112 = vmul.f32 %v5111, %v3460
        %v5113 = vmul.f32 %v5111, %v3459
        %v5114 = vmul.f32 %v5111, %v3458
        %v5115 = vmul.f32 %v5111, %v3461
        %s5116 = sld [smem:[#allocation12 + $0x5b]]
        %v5117 = vstv %s5116
        %v5118 = vmul.f32 %v5117, %v3460
        %v5119 = vmul.f32 %v5117, %v3459
        %v5120 = vmul.f32 %v5117, %v3458
        %v5121 = vmul.f32 %v5117, %v3461
        %v5126 = vrot.slane %v5118, 1
        %v5127 = vrot.slane %v5119, 1
        %v5128 = vrot.slane %v5120, 1
        %v5129 = vrot.slane %v5121, 1
        %v5134 = vadd.f32 %v5112, %v5126
        %v5135 = vadd.f32 %v5113, %v5127
        %v5136 = vadd.f32 %v5114, %v5128
        %v5137 = vadd.f32 %v5115, %v5129
        %v5138 = vadd.f32 %v5106, %v5134
        %v5139 = vadd.f32 %v5107, %v5135
        %v5140 = vadd.f32 %v5108, %v5136
        %v5141 = vadd.f32 %v5109, %v5137
        %s5142 = sld [smem:[#allocation12 + $0x2b]]
        %v5143 = vstv %s5142
        %v5144 = vmul.f32 %v5143, %v3504
        %v5145 = vmul.f32 %v5143, %v3503
        %v5146 = vmul.f32 %v5143, %v3502
        %v5147 = vmul.f32 %v5143, %v3505
        %s5148 = sld [smem:[#allocation12 + $0x5c]]
        %v5149 = vstv %s5148
        %v5150 = vmul.f32 %v5149, %v3504
        %v5151 = vmul.f32 %v5149, %v3503
        %v5152 = vmul.f32 %v5149, %v3502
        %v5153 = vmul.f32 %v5149, %v3505
        %v5158 = vrot.slane %v5150, 1
        %v5159 = vrot.slane %v5151, 1
        %v5160 = vrot.slane %v5152, 1
        %v5161 = vrot.slane %v5153, 1
        %v5166 = vadd.f32 %v5144, %v5158
        %v5167 = vadd.f32 %v5145, %v5159
        %v5168 = vadd.f32 %v5146, %v5160
        %v5169 = vadd.f32 %v5147, %v5161
        %v5170 = vadd.f32 %v5138, %v5166
        %v5171 = vadd.f32 %v5139, %v5167
        %v5172 = vadd.f32 %v5140, %v5168
        %v5173 = vadd.f32 %v5141, %v5169
        %s5174 = sld [smem:[#allocation12 + $0x2c]]
        %v5175 = vstv %s5174
        %v5176 = vmul.f32 %v5175, %v3548
        %v5177 = vmul.f32 %v5175, %v3547
        %v5178 = vmul.f32 %v5175, %v3546
        %v5179 = vmul.f32 %v5175, %v3549
        %s5180 = sld [smem:[#allocation12 + $0x5d]]
        %v5181 = vstv %s5180
        %v5182 = vmul.f32 %v5181, %v3548
        %v5183 = vmul.f32 %v5181, %v3547
        %v5184 = vmul.f32 %v5181, %v3546
        %v5185 = vmul.f32 %v5181, %v3549
        %v5190 = vrot.slane %v5182, 1
        %v5191 = vrot.slane %v5183, 1
        %v5192 = vrot.slane %v5184, 1
        %v5193 = vrot.slane %v5185, 1
        %v5198 = vadd.f32 %v5176, %v5190
        %v5199 = vadd.f32 %v5177, %v5191
        %v5200 = vadd.f32 %v5178, %v5192
        %v5201 = vadd.f32 %v5179, %v5193
        %v5202 = vadd.f32 %v5170, %v5198
        %v5203 = vadd.f32 %v5171, %v5199
        %v5204 = vadd.f32 %v5172, %v5200
        %v5205 = vadd.f32 %v5173, %v5201
        %5206 = vrot.lane.b32.xlu0 %v3274, 62
        %v5207 = vpop.permute.xlu0 %5206
        %5208 = vrot.lane.b32.xlu0 %v3275, 62
        %v5209 = vpop.permute.xlu0 %5208
        %5210 = vrot.lane.b32.xlu0 %v3276, 62
        %v5211 = vpop.permute.xlu0 %5210
        %5212 = vrot.lane.b32.xlu0 %v3277, 62
        %v5213 = vpop.permute.xlu0 %5212
        %v5214 = vsel %vm2803, %v5211, %v5213
        %v5215 = vsel %vm2803, %v5209, %v5211
        %v5216 = vsel %vm2803, %v5207, %v5209
        %v5217 = vsel %vm2803, %v5213, %v5207
        %s5218 = sld [smem:[#allocation12 + $0x2d]]
        %v5219 = vstv %s5218
        %v5220 = vmul.f32 %v5219, %v5216
        %v5221 = vmul.f32 %v5219, %v5215
        %v5222 = vmul.f32 %v5219, %v5214
        %v5223 = vmul.f32 %v5219, %v5217
        %s5224 = sld [smem:[#allocation12 + $0x5e]]
        %v5225 = vstv %s5224
        %v5226 = vmul.f32 %v5225, %v5216
        %v5227 = vmul.f32 %v5225, %v5215
        %v5228 = vmul.f32 %v5225, %v5214
        %v5229 = vmul.f32 %v5225, %v5217
        %v5234 = vrot.slane %v5226, 1
        %v5235 = vrot.slane %v5227, 1
        %v5236 = vrot.slane %v5228, 1
        %v5237 = vrot.slane %v5229, 1
        %v5242 = vadd.f32 %v5220, %v5234
        %v5243 = vadd.f32 %v5221, %v5235
        %v5244 = vadd.f32 %v5222, %v5236
        %v5245 = vadd.f32 %v5223, %v5237
        %v5246 = vadd.f32 %v5202, %v5242
        %v5247 = vadd.f32 %v5203, %v5243
        %v5248 = vadd.f32 %v5204, %v5244
        %v5249 = vadd.f32 %v5205, %v5245
        %5250 = vrot.lane.b32.xlu0 %v3274, 61
        %v5251 = vpop.permute.xlu0 %5250
        %5252 = vrot.lane.b32.xlu0 %v3275, 61
        %v5253 = vpop.permute.xlu0 %5252
        %5254 = vrot.lane.b32.xlu0 %v3276, 61
        %v5255 = vpop.permute.xlu0 %5254
        %5256 = vrot.lane.b32.xlu0 %v3277, 61
        %v5257 = vpop.permute.xlu0 %5256
        %v5258 = vsel %vm2834, %v5255, %v5257
        %v5259 = vsel %vm2834, %v5253, %v5255
        %v5260 = vsel %vm2834, %v5251, %v5253
        %v5261 = vsel %vm2834, %v5257, %v5251
        %s5262 = sld [smem:[#allocation12 + $0x2e]]
        %v5263 = vstv %s5262
        %v5264 = vmul.f32 %v5263, %v5260
        %v5265 = vmul.f32 %v5263, %v5259
        %v5266 = vmul.f32 %v5263, %v5258
        %v5267 = vmul.f32 %v5263, %v5261
        %s5268 = sld [smem:[#allocation12 + $0x5f]]
        %v5269 = vstv %s5268
        %v5270 = vmul.f32 %v5269, %v5260
        %v5271 = vmul.f32 %v5269, %v5259
        %v5272 = vmul.f32 %v5269, %v5258
        %v5273 = vmul.f32 %v5269, %v5261
        %v5278 = vrot.slane %v5270, 1
        %v5279 = vrot.slane %v5271, 1
        %v5280 = vrot.slane %v5272, 1
        %v5281 = vrot.slane %v5273, 1
        %v5286 = vadd.f32 %v5264, %v5278
        %v5287 = vadd.f32 %v5265, %v5279
        %v5288 = vadd.f32 %v5266, %v5280
        %v5289 = vadd.f32 %v5267, %v5281
        %v5290 = vadd.f32 %v5246, %v5286
        %v5291 = vadd.f32 %v5247, %v5287
        %v5292 = vadd.f32 %v5248, %v5288
        %v5293 = vadd.f32 %v5249, %v5289
        %5294 = vrot.lane.b32.xlu0 %v3274, 60
        %v5295 = vpop.permute.xlu0 %5294
        %5296 = vrot.lane.b32.xlu0 %v3275, 60
        %v5297 = vpop.permute.xlu0 %5296
        %5298 = vrot.lane.b32.xlu0 %v3276, 60
        %v5299 = vpop.permute.xlu0 %5298
        %5300 = vrot.lane.b32.xlu0 %v3277, 60
        %v5301 = vpop.permute.xlu0 %5300
        %v5302 = vsel %vm2865, %v5299, %v5301
        %v5303 = vsel %vm2865, %v5297, %v5299
        %v5304 = vsel %vm2865, %v5295, %v5297
        %v5305 = vsel %vm2865, %v5301, %v5295
        %s5306 = sld [smem:[#allocation12 + $0x2f]]
        %v5307 = vstv %s5306
        %v5308 = vmul.f32 %v5307, %v5304
        %v5309 = vmul.f32 %v5307, %v5303
        %v5310 = vmul.f32 %v5307, %v5302
        %v5311 = vmul.f32 %v5307, %v5305
        %s5312 = sld [smem:[#allocation12 + $0x60]]
        %v5313 = vstv %s5312
        %v5314 = vmul.f32 %v5313, %v5304
        %v5315 = vmul.f32 %v5313, %v5303
        %v5316 = vmul.f32 %v5313, %v5302
        %v5317 = vmul.f32 %v5313, %v5305
        %v5322 = vrot.slane %v5314, 1
        %v5323 = vrot.slane %v5315, 1
        %v5324 = vrot.slane %v5316, 1
        %v5325 = vrot.slane %v5317, 1
        %v5330 = vadd.f32 %v5308, %v5322
        %v5331 = vadd.f32 %v5309, %v5323
        %v5332 = vadd.f32 %v5310, %v5324
        %v5333 = vadd.f32 %v5311, %v5325
        %v5334 = vadd.f32 %v5290, %v5330
        %v5335 = vadd.f32 %v5291, %v5331
        %v5336 = vadd.f32 %v5292, %v5332
        %v5337 = vadd.f32 %v5293, %v5333
        %5338 = vrot.lane.b32.xlu0 %v3274, 59
        %v5339 = vpop.permute.xlu0 %5338
        %5340 = vrot.lane.b32.xlu0 %v3275, 59
        %v5341 = vpop.permute.xlu0 %5340
        %5342 = vrot.lane.b32.xlu0 %v3276, 59
        %v5343 = vpop.permute.xlu0 %5342
        %5344 = vrot.lane.b32.xlu0 %v3277, 59
        %v5345 = vpop.permute.xlu0 %5344
        %v5346 = vsel %vm2896, %v5343, %v5345
        %v5347 = vsel %vm2896, %v5341, %v5343
        %v5348 = vsel %vm2896, %v5339, %v5341
        %v5349 = vsel %vm2896, %v5345, %v5339
        %s5350 = sld [smem:[#allocation12 + $0x30]]
        %v5351 = vstv %s5350
        %v5352 = vmul.f32 %v5351, %v5348
        %v5353 = vmul.f32 %v5351, %v5347
        %v5354 = vmul.f32 %v5351, %v5346
        %v5355 = vmul.f32 %v5351, %v5349
        %s5356 = sld [smem:[#allocation12 + $0x61]]
        %v5357 = vstv %s5356
        %v5358 = vmul.f32 %v5357, %v5348
        %v5359 = vmul.f32 %v5357, %v5347
        %v5360 = vmul.f32 %v5357, %v5346
        %v5361 = vmul.f32 %v5357, %v5349
        %v5366 = vrot.slane %v5358, 1
        %v5367 = vrot.slane %v5359, 1
        %v5368 = vrot.slane %v5360, 1
        %v5369 = vrot.slane %v5361, 1
        %v5374 = vadd.f32 %v5352, %v5366
        %v5375 = vadd.f32 %v5353, %v5367
        %v5376 = vadd.f32 %v5354, %v5368
        %v5377 = vadd.f32 %v5355, %v5369
        %v5378 = vadd.f32 %v5334, %v5374
        %v5379 = vadd.f32 %v5335, %v5375
        %v5380 = vadd.f32 %v5336, %v5376
        %v5381 = vadd.f32 %v5337, %v5377
        %v5382 = vxor.u32 %v5378, 2147483648
        %v5383 = vxor.u32 %v5379, 2147483648
        %v5384 = vxor.u32 %v5380, 2147483648
        %v5385 = vxor.u32 %v5381, 2147483648
        %v5386 = vmul.f32 %v5382, 1.442695
        %v5387 = vpow.pop %v5386
        %v5388 = vmul.f32 %v5383, 1.442695
        %v5389 = vpow.pop %v5388
        %v5390 = vmul.f32 %v5384, 1.442695
        %v5391 = vpow.pop %v5390
        %v5392 = vmul.f32 %v5385, 1.442695
        %v5393 = vpow.pop %v5392
        %v5394 = vadd.f32 %v5387, 1.0
        %v5395 = vadd.f32 %v5389, 1.0
        %v5396 = vadd.f32 %v5391, 1.0
        %v5397 = vadd.f32 %v5393, 1.0
        %v5398 = vrcp.pop %v5394
        %v5399 = vmul.f32 1.0, %v5398
        %v5400 = vrcp.pop %v5395
        %v5401 = vmul.f32 1.0, %v5400
        %v5402 = vrcp.pop %v5396
        %v5403 = vmul.f32 1.0, %v5402
        %v5404 = vrcp.pop %v5397
        %v5405 = vmul.f32 1.0, %v5404
        %v5406 = vmul.f32 %v5399, %v5378
        %v5407 = vmul.f32 %v5401, %v5379
        %v5408 = vmul.f32 %v5403, %v5380
        %v5409 = vmul.f32 %v5405, %v5381
        %v5414 = vcombine.low %v5406, %v5407
        %v5415 = vcombine.low %v5408, %v5409
        %v5417 = vunpack.c.l.s4 1966171168
        %v5418 = vunpack.c.0.s8 %v5417
        %v5419 = vlaneseq
        %v5420 = vshrl.u32 %v5419, 7
        %v5421 = vsub.s32 %v5418, %v5420
        %v5422 = vrot.slane %v5414, %v5421
        %v5424 = vunpack.c.l.s4 1966171168
        %v5425 = vunpack.c.0.s8 %v5424
        %v5426 = vlaneseq
        %v5427 = vshrl.u32 %v5426, 7
        %v5428 = vsub.s32 %v5425, %v5427
        %v5429 = vrot.slane %v5415, %v5428
        %v5430 = vcombine.low %v5422, %v5429
        %v5432 = vunpack.c.l.s4 1966171168
        %v5433 = vunpack.c.0.s8 %v5432
        %v5434 = vlaneseq
        %v5435 = vshrl.u32 %v5434, 7
        %v5436 = vsub.s32 %v5433, %v5435
        %v5437 = vrot.slane %v5430, %v5436
        %v5439 = vlaneseq
        %vm5440 = vcmp.ge.s32.totalorder %v5439, 0
        %vm5441 = vcmp.lt.s32.totalorder %v5439, 512
        %vm5442 = vmand %vm5440, %vm5441
        %5443 = vst.msk [vmem:[%s371] sm:$0xf] %vm5442, %v5437
        %s5444 = sand.u32 %s194, 1
        %s5445 = scalar_lea.sflag [#allocation5], %s5444
        %s5446 = sand.u32 %s194, 1
        %s5447 = smul.addr %s5446, 4
        %s5448 = scalar_lea.vmem [#allocation13], %s5447
        // Predicated region
        $region69: #{tpu_custom_call.1} parent=47 // pred_check
          %p5449 = pneg %p204
        $region70: #{tpu_custom_call.1} parent=47 // pred_check_branch
          %5451 = sbr.rel (%p5449) target = $region72
        $region71: #{tpu_custom_call.1} parent=47 // pred_region
          %s5452 = smul.u32 4, %s29
          %s5454 = ssub.s32 64, 64
          %5455 = vsyncadd %s5445, %s5454
          %s5456 = smul.addr %s5452, 16
          %s5457 = scalar_lea.hbm %s7, %s5456
          %s5459 = sshll.u32 %s5448, 4
          %s5460 = int_to_ptr.vmem [resolvable:$true] %s5459
          %5462 = dma.vmem_to_hbm [thread:$0]  %s5460, 64, %s5457, %s5445
        $region72: #{tpu_custom_call.1} parent=47 // pred_fallthru
          _
      $region48: #{tpu_custom_call.1} parent=5 // pred_fallthru
        _
      %p5463 = scmp.le.s32.totalorder 2, %s24
      // Predicated region
      $region73: #{tpu_custom_call.1} parent=5 // pred_check
        %p5464 = pneg %p5463
      $region74: #{tpu_custom_call.1} parent=5 // pred_check_branch
        %5466 = sbr.rel (%p5464) target = $region76
      $region75: #{tpu_custom_call.1} parent=5 // pred_region
        %s5467 = ssub.s32 %s24, 2
        // Predicated region
        $region77: #{tpu_custom_call.1} parent=75 // pred_check
          %p5468 = pneg %p210
        $region78: #{tpu_custom_call.1} parent=75 // pred_check_branch
          %5470 = sbr.rel (%p5468) target = $region80
        $region79: #{tpu_custom_call.1} parent=75 // pred_region
          %s5471 = sand.u32 %s195, 1
          %s5472 = scalar_lea.sflag [#allocation5], %s5471
          %s5473 = sand.u32 %s195, 1
          %s5474 = smul.addr %s5473, 4
          %s5475 = scalar_lea.vmem [#allocation13], %s5474
          %5476 = dma.done %s5472, 64
        $region80: #{tpu_custom_call.1} parent=75 // pred_fallthru
          _
      $region76: #{tpu_custom_call.1} parent=5 // pred_fallthru
        _
    $region6: #{tpu_custom_call.1} parent=1 // loop_footer
      %s28 = sadd.s32 1, %s24
    $region7: #{tpu_custom_call.1} parent=1 // loop_footer_branch
      %23 = sbr.rel target = $region3
    $region8: #{tpu_custom_call.1} parent=1 // loop_exit
      _
    %5477 = vsyncpa [#allocation4], 1
    %s5478 = scalar_lea.sflag [#allocation4], 1
    %5479 = vsyncpa %s5478, 1
    %5480 = vsyncpa [#allocation8], 1
    %s5481 = scalar_lea.sflag [#allocation8], 1
    %5482 = vsyncpa %s5481, 1
    %5483 = vsyncpa [#allocation11], 1
    %5484 = vsyncpa [#allocation5], 1
    %s5485 = scalar_lea.sflag [#allocation5], 1
    %5486 = vsyncpa %s5485, 1
    %5487 = vsyncpa [#allocation6], 1
    %s5488 = scalar_lea.sflag [#allocation6], 1
    %5489 = vsyncpa %s5488, 1

</llo_original>
